<compile_context>
chip_gen: v7x
topology: tpu7x:2x2x1
jax: 0.10.0
libtpu: 0.0.40
codegen_flags: <defaults>
</compile_context>

<pallas_src>
import functools

import jax
import jax.numpy as jnp
from jax.experimental import pallas as pl
from jax.experimental.pallas import tpu as pltpu

NEG_SLOPE = 0.01   # nn.LeakyReLU() default negative_slope
LANE = 128
SUBLANE = 8


def _round_up(x, m):
    return (x + m - 1) // m * m


# ----------------------------------------------------------------------------
# Flat lane-dense conv layout helpers (host-side JAX glue, all tiny tensors)
# ----------------------------------------------------------------------------
def flat_geometry(d, h, w):
    dp, hp, wp = d + 2, h + 2, w + 2
    p = dp * hp * wp                       # padded voxel count
    lead = hp * wp + wp + 1                # halo so every tap window is in-bounds
    p_out = _round_up(p, LANE)             # lane-dense output length
    p_ext = p_out + 2 * lead               # input length incl. halo
    taps = tuple(kd * hp * wp + kh * wp + kw
                 for kd in range(3) for kh in range(3) for kw in range(3))
    return dict(d=d, h=h, w=w, dp=dp, hp=hp, wp=wp, p=p, lead=lead,
                p_out=p_out, p_ext=p_ext, taps=taps)


def _pad_channels_to(x, mult=SUBLANE):
    c = x.shape[1]
    cp = _round_up(c, mult)
    if cp == c:
        return x
    pad = [(0, 0)] * x.ndim
    pad[1] = (0, cp - c)
    return jnp.pad(x, pad)


def to_flat_ext(x, g):
    """(N, C, D, H, W) -> (N, C_pad8, P_ext): pad spatially, flatten, add halo."""
    x = _pad_channels_to(x)
    n, c = x.shape[:2]
    xp = jnp.pad(x, ((0, 0), (0, 0), (1, 1), (1, 1), (1, 1)))
    xf = xp.reshape(n, c, g["p"])
    return jnp.pad(xf, ((0, 0), (0, 0),
                        (g["lead"], g["p_ext"] - g["lead"] - g["p"])))


def flat_to_ext(y, g):
    """Conv output (N, C, P_out), zero at pad voxels -> next-layer input (N, C_pad8, P_ext)."""
    y = _pad_channels_to(y)
    return jnp.pad(y, ((0, 0), (0, 0), (g["lead"], g["lead"])))


def valid_mask(g):
    """(1, P_out) f32: 1.0 at valid voxels, 0.0 at pad voxels / rounding tail."""
    m = jnp.pad(jnp.ones((g["d"], g["h"], g["w"]), jnp.float32),
                ((1, 1), (1, 1), (1, 1)))
    m = m.reshape(1, g["p"])
    return jnp.pad(m, ((0, 0), (0, g["p_out"] - g["p"])))


def from_flat(y, g):
    """(N, C, P_out) -> (N, C, D, H, W)."""
    n, c = y.shape[:2]
    y = y[:, :, :g["p"]].reshape(n, c, g["dp"], g["hp"], g["wp"])
    return y[:, :, 1:-1, 1:-1, 1:-1]


def pack_conv_weight(w):
    """(3,3,3,Cin,Cout) -> (Cout, 27*Cin_pad8) bf16, columns ordered tap-major.

    Cin is padded to a multiple of 8 with zero taps so every im2col scratch
    store is a fully aligned (8, 128) tile.
    """
    _, _, _, cin, cout = w.shape
    cin_p = _round_up(cin, SUBLANE)
    if cin_p != cin:
        w = jnp.pad(w, ((0, 0), (0, 0), (0, 0), (0, cin_p - cin), (0, 0)))
    wm = jnp.transpose(w, (4, 0, 1, 2, 3)).reshape(cout, 27 * cin_p)
    return wm.astype(jnp.bfloat16)


# ----------------------------------------------------------------------------
# Pallas kernel: fused Conv3d(k3, p1) + bias + LeakyReLU in the flat layout.
# One batch element per grid step; one MXU matmul per step.
# ----------------------------------------------------------------------------
def _conv3d_lrelu_kernel(x_ref, w_ref, b_ref, m_ref, o_ref, col_ref,
                         *, taps, neg_slope):
    # x_ref  : (1, Cin, P_ext)   f32  zero-padded + halo, flattened spatial
    # w_ref  : (Cout, 27*Cin)    bf16 packed weights (cols = tap*Cin + cin)
    # b_ref  : (Cout, 1)         f32
    # m_ref  : (1, P_out)        f32  valid-voxel mask
    # o_ref  : (1, Cout, P_out)  f32
    # col_ref: (27*Cin, P_out)   f32  VMEM im2col scratch
    cin = x_ref.shape[1]
    p_out = o_ref.shape[2]

    # im2col: each tap is a contiguous window of the lane axis (static offset).
    for t, off in enumerate(taps):
        col_ref[pl.ds(t * cin, cin), :] = x_ref[0, :, off:off + p_out]

    # Single MXU matmul over K = 27*Cin, bf16 operands, f32 accumulation.
    acc = jnp.dot(w_ref[...],
                  col_ref[...].astype(jnp.bfloat16),
                  preferred_element_type=jnp.float32)       # (Cout, P_out)
    acc = acc + b_ref[...]                                    # bias, once
    acc = jnp.where(acc >= 0, acc, acc * neg_slope)           # LeakyReLU
    # Zero pad/tail voxels so the output feeds the next conv layer directly
    # (it expects zero padding there).
    o_ref[0] = (acc * m_ref[...]).astype(o_ref.dtype)


def conv3d_lrelu_flat(x_ext, wm, b2, mask, g):
    """x_ext: (N, Cin, P_ext) f32; wm: (Cout, 27*Cin) bf16; b2: (Cout, 1) f32;
    mask: (1, P_out) f32  ->  (N, Cout, P_out) f32."""
    n, cin, p_ext = x_ext.shape
    cout, k = wm.shape
    p_out = g["p_out"]
    assert p_ext == g["p_ext"] and k == 27 * cin

    kernel = functools.partial(_conv3d_lrelu_kernel,
                               taps=g["taps"], neg_slope=NEG_SLOPE)
    return pl.pallas_call(
        kernel,
        out_shape=jax.ShapeDtypeStruct((n, cout, p_out), jnp.float32),
        grid_spec=pltpu.PrefetchScalarGridSpec(
            num_scalar_prefetch=0,
            grid=(n,),
            in_specs=[
                pl.BlockSpec((1, cin, p_ext), lambda i: (i, 0, 0)),
                pl.BlockSpec((cout, k), lambda i: (0, 0)),
                pl.BlockSpec((cout, 1), lambda i: (0, 0)),
                pl.BlockSpec((1, p_out), lambda i: (0, 0)),
            ],
            out_specs=pl.BlockSpec((1, cout, p_out), lambda i: (i, 0, 0)),
            scratch_shapes=[pltpu.VMEM((k, p_out), jnp.float32)],
        ),
        compiler_params=pltpu.CompilerParams(
            dimension_semantics=("parallel",),
            vmem_limit_bytes=32 * 1024 * 1024,
        ),
    )(x_ext, wm, b2, mask)


# ----------------------------------------------------------------------------
# Layout-only glue: VoxelUnshuffle (3-D depth-to-space)
# ----------------------------------------------------------------------------
def voxel_unshuffle(x, r=2):
    """(N, C*r^3, D, H, W) -> (N, C, D*r, H*r, W*r); channel order (C, rd, rh, rw)."""
    n, cr, d, h, w = x.shape
    c = cr // (r ** 3)
    x = x.reshape(n, c, r, r, r, d, h, w)
    x = x.transpose(0, 1, 5, 2, 6, 3, 7, 4)   # N, C, D, rd, H, rh, W, rw
    return x.reshape(n, c, d * r, h * r, w * r)


# ----------------------------------------------------------------------------
# UpBlock parameters + forward
# ----------------------------------------------------------------------------
def init_upblock_params(key, in1, in2, out_ch, n_layers):
    assert n_layers >= 1
    keys = jax.random.split(key, 2 + 2 * n_layers)

    def conv_w(k, cin, cout):
        return 0.1 * jax.random.normal(k, (3, 3, 3, cin, cout), jnp.float32)

    params = {
        "up_w": conv_w(keys[0], in1, in1 * 8),
        "up_b": 0.1 * jax.random.normal(keys[1], (in1 * 8,), jnp.float32),
        "convs": [],
    }
    cin = in1 + in2
    for i in range(n_layers):
        w = conv_w(keys[2 + 2 * i], cin, out_ch)
        b = 0.1 * jax.random.normal(keys[3 + 2 * i], (out_ch,), jnp.float32)
        params["convs"].append((w, b))
        cin = out_ch
    return params


def upblock_forward(params, x1, x2):
    """x1: (N, in1, D, H, W) NCDHW f32; x2: (N, in2, 2D, 2H, 2W) NCDHW f32."""
    n, c1, d, h, w = x1.shape
    g1 = flat_geometry(d, h, w)
    g2 = flat_geometry(2 * d, 2 * h, 2 * w)
    mask1, mask2 = valid_mask(g1), valid_mask(g2)

    # self.up: Conv3d(in1 -> in1*8, k3, p1) + LeakyReLU (Pallas kernel),
    # then VoxelUnshuffle(2) (pure layout, XLA glue).
    y = conv3d_lrelu_flat(to_flat_ext(x1, g1),
                          pack_conv_weight(params["up_w"]),
                          params["up_b"].reshape(-1, 1), mask1, g1)
    x3 = voxel_unshuffle(from_flat(y, g1), 2)          # (N, in1, 2D, 2H, 2W)

    # torch.cat([x2, x3], dim=1), then enter the flat layout once.
    yf = to_flat_ext(jnp.concatenate([x2, x3], axis=1), g2)

    # self.convs: n_layers x (Conv3d k3 p1 + bias + LeakyReLU), all Pallas,
    # staying in the flat layout between layers (only a cheap 1-D halo pad).
    n_layers = len(params["convs"])
    y = None
    for i, (wc, bc) in enumerate(params["convs"]):
        y = conv3d_lrelu_flat(yf, pack_conv_weight(wc), bc.reshape(-1, 1),
                              mask2, g2)
        if i + 1 < n_layers:
            yf = flat_to_ext(y, g2)

    return from_flat(y, g2)                            # NCDHW, matches PyTorch


# ----------------------------------------------------------------------------
# Pure-JAX reference (same bf16-operand / f32-accumulation numerics)
# ----------------------------------------------------------------------------
def _ref_conv3d_lrelu(x, w, b):
    y = jax.lax.conv_general_dilated(
        x.astype(jnp.bfloat16), w.astype(jnp.bfloat16),
        window_strides=(1, 1, 1), padding="SAME",
        dimension_numbers=("NCDHW", "DHWIO", "NCDHW"),
        preferred_element_type=jnp.float32)
    y = y + b.reshape(1, -1, 1, 1, 1)
    return jnp.where(y >= 0, y, y * NEG_SLOPE)


def ref_forward(params, x1, x2):
    x3 = _ref_conv3d_lrelu(x1, params["up_w"], params["up_b"])
    x3 = voxel_unshuffle(x3, 2)
    y = jnp.concatenate([x2, x3], axis=1)
    for w, b in params["convs"]:
        y = _ref_conv3d_lrelu(y, w, b)
    return y


if __name__ == "__main__":
    key = jax.random.PRNGKey(0)
    k_p, k_x1, k_x2 = jax.random.split(key, 3)

    # UpBlock(in1_channels=4, in2_channels=4, out_channels=8, bias=True,
    #         conv_mode="standard", n_layers_in_block=2)
    in1, in2, out_ch, n_layers = 4, 4, 8, 2
    N, D, H, W = 2, 4, 8, 8

    params = init_upblock_params(k_p, in1, in2, out_ch, n_layers)
    x1 = jax.random.normal(k_x1, (N, in1, D, H, W), jnp.float32)
    x2 = jax.random.normal(k_x2, (N, in2, 2 * D, 2 * H, 2 * W), jnp.float32)

    y = jax.jit(upblock_forward)(params, x1, x2)
    jax.block_until_ready(y)
    assert y.shape == (N, out_ch, 2 * D, 2 * H, 2 * W), y.shape

    y_ref = ref_forward(params, x1, x2)
    max_err = float(jnp.max(jnp.abs(y - y_ref)))
    assert jnp.allclose(y, y_ref, rtol=2e-3, atol=2e-3), max_err

    print("KERNEL_OK")
</pallas_src>

<mosaic_0001>
module attributes {stable_mosaic.version = 11 : i64} {
  func.func @_conv3d_lrelu_kernel(%arg0: i32, %arg1: memref<1x8x862xf32, #tpu.memory_space<vmem>>, %arg2: memref<32x216xbf16, #tpu.memory_space<vmem>>, %arg3: memref<32x1xf32, #tpu.memory_space<vmem>>, %arg4: memref<1x640xf32, #tpu.memory_space<vmem>>, %arg5: memref<1x32x640xf32, #tpu.memory_space<vmem>>, %arg6: memref<216x640xf32, #tpu.memory_space<vmem>>) attributes {dimension_semantics = [#tpu.dimension_semantics<parallel>], iteration_bounds = array<i64: 2>, scalar_prefetch = 0 : i64, scratch_operands = 1 : i64, tpu.core_type = #tpu.core_type<tc>, window_params = [{transform_indices = @transform_0, window_bounds = array<i64: 1, 8, 862>}, {pipeline_mode = #tpu.pipeline_mode<synchronous>, transform_indices = @transform_1, window_bounds = array<i64: 32, 216>}, {pipeline_mode = #tpu.pipeline_mode<synchronous>, transform_indices = @transform_2, window_bounds = array<i64: 32, 1>}, {pipeline_mode = #tpu.pipeline_mode<synchronous>, transform_indices = @transform_3, window_bounds = array<i64: 1, 640>}, {transform_indices = @transform_4, window_bounds = array<i64: 1, 32, 640>}]} {
    %c0 = arith.constant 0 : index
    %c0_0 = arith.constant 0 : index
    %c0_1 = arith.constant 0 : index
    %0 = vector.load %arg1[%c0, %c0_0, %c0_1] : memref<1x8x862xf32, #tpu.memory_space<vmem>>, vector<1x8x640xf32>
    %1 = vector.shape_cast %0 : vector<1x8x640xf32> to vector<8x640xf32>
    %c0_2 = arith.constant 0 : index
    %c0_3 = arith.constant 0 : index
    %2 = vector.load %arg6[%c0_2, %c0_3] : memref<216x640xf32, #tpu.memory_space<vmem>>, vector<8x640xf32>
    tpu.vector_store %arg6[%c0_2, %c0_3], %1 {strides = array<i32>} : memref<216x640xf32, #tpu.memory_space<vmem>>, vector<8x640xf32>,
    %c0_4 = arith.constant 0 : index
    %c0_5 = arith.constant 0 : index
    %c1 = arith.constant 1 : index
    %3 = vector.load %arg1[%c0_4, %c0_5, %c1] : memref<1x8x862xf32, #tpu.memory_space<vmem>>, vector<1x8x640xf32>
    %4 = vector.shape_cast %3 : vector<1x8x640xf32> to vector<8x640xf32>
    %c8 = arith.constant 8 : index
    %c0_6 = arith.constant 0 : index
    %5 = vector.load %arg6[%c8, %c0_6] : memref<216x640xf32, #tpu.memory_space<vmem>>, vector<8x640xf32>
    tpu.vector_store %arg6[%c8, %c0_6], %4 {strides = array<i32>} : memref<216x640xf32, #tpu.memory_space<vmem>>, vector<8x640xf32>,
    %c0_7 = arith.constant 0 : index
    %c0_8 = arith.constant 0 : index
    %c2 = arith.constant 2 : index
    %6 = vector.load %arg1[%c0_7, %c0_8, %c2] : memref<1x8x862xf32, #tpu.memory_space<vmem>>, vector<1x8x640xf32>
    %7 = vector.shape_cast %6 : vector<1x8x640xf32> to vector<8x640xf32>
    %c16 = arith.constant 16 : index
    %c0_9 = arith.constant 0 : index
    %8 = vector.load %arg6[%c16, %c0_9] : memref<216x640xf32, #tpu.memory_space<vmem>>, vector<8x640xf32>
    tpu.vector_store %arg6[%c16, %c0_9], %7 {strides = array<i32>} : memref<216x640xf32, #tpu.memory_space<vmem>>, vector<8x640xf32>,
    %c0_10 = arith.constant 0 : index
    %c0_11 = arith.constant 0 : index
    %c10 = arith.constant 10 : index
    %9 = vector.load %arg1[%c0_10, %c0_11, %c10] : memref<1x8x862xf32, #tpu.memory_space<vmem>>, vector<1x8x640xf32>
    %10 = vector.shape_cast %9 : vector<1x8x640xf32> to vector<8x640xf32>
    %c24 = arith.constant 24 : index
    %c0_12 = arith.constant 0 : index
    %11 = vector.load %arg6[%c24, %c0_12] : memref<216x640xf32, #tpu.memory_space<vmem>>, vector<8x640xf32>
    tpu.vector_store %arg6[%c24, %c0_12], %10 {strides = array<i32>} : memref<216x640xf32, #tpu.memory_space<vmem>>, vector<8x640xf32>,
    %c0_13 = arith.constant 0 : index
    %c0_14 = arith.constant 0 : index
    %c11 = arith.constant 11 : index
    %12 = vector.load %arg1[%c0_13, %c0_14, %c11] : memref<1x8x862xf32, #tpu.memory_space<vmem>>, vector<1x8x640xf32>
    %13 = vector.shape_cast %12 : vector<1x8x640xf32> to vector<8x640xf32>
    %c32 = arith.constant 32 : index
    %c0_15 = arith.constant 0 : index
    %14 = vector.load %arg6[%c32, %c0_15] : memref<216x640xf32, #tpu.memory_space<vmem>>, vector<8x640xf32>
    tpu.vector_store %arg6[%c32, %c0_15], %13 {strides = array<i32>} : memref<216x640xf32, #tpu.memory_space<vmem>>, vector<8x640xf32>,
    %c0_16 = arith.constant 0 : index
    %c0_17 = arith.constant 0 : index
    %c12 = arith.constant 12 : index
    %15 = vector.load %arg1[%c0_16, %c0_17, %c12] : memref<1x8x862xf32, #tpu.memory_space<vmem>>, vector<1x8x640xf32>
    %16 = vector.shape_cast %15 : vector<1x8x640xf32> to vector<8x640xf32>
    %c40 = arith.constant 40 : index
    %c0_18 = arith.constant 0 : index
    %17 = vector.load %arg6[%c40, %c0_18] : memref<216x640xf32, #tpu.memory_space<vmem>>, vector<8x640xf32>
    tpu.vector_store %arg6[%c40, %c0_18], %16 {strides = array<i32>} : memref<216x640xf32, #tpu.memory_space<vmem>>, vector<8x640xf32>,
    %c0_19 = arith.constant 0 : index
    %c0_20 = arith.constant 0 : index
    %c20 = arith.constant 20 : index
    %18 = vector.load %arg1[%c0_19, %c0_20, %c20] : memref<1x8x862xf32, #tpu.memory_space<vmem>>, vector<1x8x640xf32>
    %19 = vector.shape_cast %18 : vector<1x8x640xf32> to vector<8x640xf32>
    %c48 = arith.constant 48 : index
    %c0_21 = arith.constant 0 : index
    %20 = vector.load %arg6[%c48, %c0_21] : memref<216x640xf32, #tpu.memory_space<vmem>>, vector<8x640xf32>
    tpu.vector_store %arg6[%c48, %c0_21], %19 {strides = array<i32>} : memref<216x640xf32, #tpu.memory_space<vmem>>, vector<8x640xf32>,
    %c0_22 = arith.constant 0 : index
    %c0_23 = arith.constant 0 : index
    %c21 = arith.constant 21 : index
    %21 = vector.load %arg1[%c0_22, %c0_23, %c21] : memref<1x8x862xf32, #tpu.memory_space<vmem>>, vector<1x8x640xf32>
    %22 = vector.shape_cast %21 : vector<1x8x640xf32> to vector<8x640xf32>
    %c56 = arith.constant 56 : index
    %c0_24 = arith.constant 0 : index
    %23 = vector.load %arg6[%c56, %c0_24] : memref<216x640xf32, #tpu.memory_space<vmem>>, vector<8x640xf32>
    tpu.vector_store %arg6[%c56, %c0_24], %22 {strides = array<i32>} : memref<216x640xf32, #tpu.memory_space<vmem>>, vector<8x640xf32>,
    %c0_25 = arith.constant 0 : index
    %c0_26 = arith.constant 0 : index
    %c22 = arith.constant 22 : index
    %24 = vector.load %arg1[%c0_25, %c0_26, %c22] : memref<1x8x862xf32, #tpu.memory_space<vmem>>, vector<1x8x640xf32>
    %25 = vector.shape_cast %24 : vector<1x8x640xf32> to vector<8x640xf32>
    %c64 = arith.constant 64 : index
    %c0_27 = arith.constant 0 : index
    %26 = vector.load %arg6[%c64, %c0_27] : memref<216x640xf32, #tpu.memory_space<vmem>>, vector<8x640xf32>
    tpu.vector_store %arg6[%c64, %c0_27], %25 {strides = array<i32>} : memref<216x640xf32, #tpu.memory_space<vmem>>, vector<8x640xf32>,
    %c0_28 = arith.constant 0 : index
    %c0_29 = arith.constant 0 : index
    %c100 = arith.constant 100 : index
    %27 = vector.load %arg1[%c0_28, %c0_29, %c100] : memref<1x8x862xf32, #tpu.memory_space<vmem>>, vector<1x8x640xf32>
    %28 = vector.shape_cast %27 : vector<1x8x640xf32> to vector<8x640xf32>
    %c72 = arith.constant 72 : index
    %c0_30 = arith.constant 0 : index
    %29 = vector.load %arg6[%c72, %c0_30] : memref<216x640xf32, #tpu.memory_space<vmem>>, vector<8x640xf32>
    tpu.vector_store %arg6[%c72, %c0_30], %28 {strides = array<i32>} : memref<216x640xf32, #tpu.memory_space<vmem>>, vector<8x640xf32>,
    %c0_31 = arith.constant 0 : index
    %c0_32 = arith.constant 0 : index
    %c101 = arith.constant 101 : index
    %30 = vector.load %arg1[%c0_31, %c0_32, %c101] : memref<1x8x862xf32, #tpu.memory_space<vmem>>, vector<1x8x640xf32>
    %31 = vector.shape_cast %30 : vector<1x8x640xf32> to vector<8x640xf32>
    %c80 = arith.constant 80 : index
    %c0_33 = arith.constant 0 : index
    %32 = vector.load %arg6[%c80, %c0_33] : memref<216x640xf32, #tpu.memory_space<vmem>>, vector<8x640xf32>
    tpu.vector_store %arg6[%c80, %c0_33], %31 {strides = array<i32>} : memref<216x640xf32, #tpu.memory_space<vmem>>, vector<8x640xf32>,
    %c0_34 = arith.constant 0 : index
    %c0_35 = arith.constant 0 : index
    %c102 = arith.constant 102 : index
    %33 = vector.load %arg1[%c0_34, %c0_35, %c102] : memref<1x8x862xf32, #tpu.memory_space<vmem>>, vector<1x8x640xf32>
    %34 = vector.shape_cast %33 : vector<1x8x640xf32> to vector<8x640xf32>
    %c88 = arith.constant 88 : index
    %c0_36 = arith.constant 0 : index
    %35 = vector.load %arg6[%c88, %c0_36] : memref<216x640xf32, #tpu.memory_space<vmem>>, vector<8x640xf32>
    tpu.vector_store %arg6[%c88, %c0_36], %34 {strides = array<i32>} : memref<216x640xf32, #tpu.memory_space<vmem>>, vector<8x640xf32>,
    %c0_37 = arith.constant 0 : index
    %c0_38 = arith.constant 0 : index
    %c110 = arith.constant 110 : index
    %36 = vector.load %arg1[%c0_37, %c0_38, %c110] : memref<1x8x862xf32, #tpu.memory_space<vmem>>, vector<1x8x640xf32>
    %37 = vector.shape_cast %36 : vector<1x8x640xf32> to vector<8x640xf32>
    %c96 = arith.constant 96 : index
    %c0_39 = arith.constant 0 : index
    %38 = vector.load %arg6[%c96, %c0_39] : memref<216x640xf32, #tpu.memory_space<vmem>>, vector<8x640xf32>
    tpu.vector_store %arg6[%c96, %c0_39], %37 {strides = array<i32>} : memref<216x640xf32, #tpu.memory_space<vmem>>, vector<8x640xf32>,
    %c0_40 = arith.constant 0 : index
    %c0_41 = arith.constant 0 : index
    %c111 = arith.constant 111 : index
    %39 = vector.load %arg1[%c0_40, %c0_41, %c111] : memref<1x8x862xf32, #tpu.memory_space<vmem>>, vector<1x8x640xf32>
    %40 = vector.shape_cast %39 : vector<1x8x640xf32> to vector<8x640xf32>
    %c104 = arith.constant 104 : index
    %c0_42 = arith.constant 0 : index
    %41 = vector.load %arg6[%c104, %c0_42] : memref<216x640xf32, #tpu.memory_space<vmem>>, vector<8x640xf32>
    tpu.vector_store %arg6[%c104, %c0_42], %40 {strides = array<i32>} : memref<216x640xf32, #tpu.memory_space<vmem>>, vector<8x640xf32>,
    %c0_43 = arith.constant 0 : index
    %c0_44 = arith.constant 0 : index
    %c112 = arith.constant 112 : index
    %42 = vector.load %arg1[%c0_43, %c0_44, %c112] : memref<1x8x862xf32, #tpu.memory_space<vmem>>, vector<1x8x640xf32>
    %43 = vector.shape_cast %42 : vector<1x8x640xf32> to vector<8x640xf32>
    %c112_45 = arith.constant 112 : index
    %c0_46 = arith.constant 0 : index
    %44 = vector.load %arg6[%c112_45, %c0_46] : memref<216x640xf32, #tpu.memory_space<vmem>>, vector<8x640xf32>
    tpu.vector_store %arg6[%c112_45, %c0_46], %43 {strides = array<i32>} : memref<216x640xf32, #tpu.memory_space<vmem>>, vector<8x640xf32>,
    %c0_47 = arith.constant 0 : index
    %c0_48 = arith.constant 0 : index
    %c120 = arith.constant 120 : index
    %45 = vector.load %arg1[%c0_47, %c0_48, %c120] : memref<1x8x862xf32, #tpu.memory_space<vmem>>, vector<1x8x640xf32>
    %46 = vector.shape_cast %45 : vector<1x8x640xf32> to vector<8x640xf32>
    %c120_49 = arith.constant 120 : index
    %c0_50 = arith.constant 0 : index
    %47 = vector.load %arg6[%c120_49, %c0_50] : memref<216x640xf32, #tpu.memory_space<vmem>>, vector<8x640xf32>
    tpu.vector_store %arg6[%c120_49, %c0_50], %46 {strides = array<i32>} : memref<216x640xf32, #tpu.memory_space<vmem>>, vector<8x640xf32>,
    %c0_51 = arith.constant 0 : index
    %c0_52 = arith.constant 0 : index
    %c121 = arith.constant 121 : index
    %48 = vector.load %arg1[%c0_51, %c0_52, %c121] : memref<1x8x862xf32, #tpu.memory_space<vmem>>, vector<1x8x640xf32>
    %49 = vector.shape_cast %48 : vector<1x8x640xf32> to vector<8x640xf32>
    %c128 = arith.constant 128 : index
    %c0_53 = arith.constant 0 : index
    %50 = vector.load %arg6[%c128, %c0_53] : memref<216x640xf32, #tpu.memory_space<vmem>>, vector<8x640xf32>
    tpu.vector_store %arg6[%c128, %c0_53], %49 {strides = array<i32>} : memref<216x640xf32, #tpu.memory_space<vmem>>, vector<8x640xf32>,
    %c0_54 = arith.constant 0 : index
    %c0_55 = arith.constant 0 : index
    %c122 = arith.constant 122 : index
    %51 = vector.load %arg1[%c0_54, %c0_55, %c122] : memref<1x8x862xf32, #tpu.memory_space<vmem>>, vector<1x8x640xf32>
    %52 = vector.shape_cast %51 : vector<1x8x640xf32> to vector<8x640xf32>
    %c136 = arith.constant 136 : index
    %c0_56 = arith.constant 0 : index
    %53 = vector.load %arg6[%c136, %c0_56] : memref<216x640xf32, #tpu.memory_space<vmem>>, vector<8x640xf32>
    tpu.vector_store %arg6[%c136, %c0_56], %52 {strides = array<i32>} : memref<216x640xf32, #tpu.memory_space<vmem>>, vector<8x640xf32>,
    %c0_57 = arith.constant 0 : index
    %c0_58 = arith.constant 0 : index
    %c200 = arith.constant 200 : index
    %54 = vector.load %arg1[%c0_57, %c0_58, %c200] : memref<1x8x862xf32, #tpu.memory_space<vmem>>, vector<1x8x640xf32>
    %55 = vector.shape_cast %54 : vector<1x8x640xf32> to vector<8x640xf32>
    %c144 = arith.constant 144 : index
    %c0_59 = arith.constant 0 : index
    %56 = vector.load %arg6[%c144, %c0_59] : memref<216x640xf32, #tpu.memory_space<vmem>>, vector<8x640xf32>
    tpu.vector_store %arg6[%c144, %c0_59], %55 {strides = array<i32>} : memref<216x640xf32, #tpu.memory_space<vmem>>, vector<8x640xf32>,
    %c0_60 = arith.constant 0 : index
    %c0_61 = arith.constant 0 : index
    %c201 = arith.constant 201 : index
    %57 = vector.load %arg1[%c0_60, %c0_61, %c201] : memref<1x8x862xf32, #tpu.memory_space<vmem>>, vector<1x8x640xf32>
    %58 = vector.shape_cast %57 : vector<1x8x640xf32> to vector<8x640xf32>
    %c152 = arith.constant 152 : index
    %c0_62 = arith.constant 0 : index
    %59 = vector.load %arg6[%c152, %c0_62] : memref<216x640xf32, #tpu.memory_space<vmem>>, vector<8x640xf32>
    tpu.vector_store %arg6[%c152, %c0_62], %58 {strides = array<i32>} : memref<216x640xf32, #tpu.memory_space<vmem>>, vector<8x640xf32>,
    %c0_63 = arith.constant 0 : index
    %c0_64 = arith.constant 0 : index
    %c202 = arith.constant 202 : index
    %60 = vector.load %arg1[%c0_63, %c0_64, %c202] : memref<1x8x862xf32, #tpu.memory_space<vmem>>, vector<1x8x640xf32>
    %61 = vector.shape_cast %60 : vector<1x8x640xf32> to vector<8x640xf32>
    %c160 = arith.constant 160 : index
    %c0_65 = arith.constant 0 : index
    %62 = vector.load %arg6[%c160, %c0_65] : memref<216x640xf32, #tpu.memory_space<vmem>>, vector<8x640xf32>
    tpu.vector_store %arg6[%c160, %c0_65], %61 {strides = array<i32>} : memref<216x640xf32, #tpu.memory_space<vmem>>, vector<8x640xf32>,
    %c0_66 = arith.constant 0 : index
    %c0_67 = arith.constant 0 : index
    %c210 = arith.constant 210 : index
    %63 = vector.load %arg1[%c0_66, %c0_67, %c210] : memref<1x8x862xf32, #tpu.memory_space<vmem>>, vector<1x8x640xf32>
    %64 = vector.shape_cast %63 : vector<1x8x640xf32> to vector<8x640xf32>
    %c168 = arith.constant 168 : index
    %c0_68 = arith.constant 0 : index
    %65 = vector.load %arg6[%c168, %c0_68] : memref<216x640xf32, #tpu.memory_space<vmem>>, vector<8x640xf32>
    tpu.vector_store %arg6[%c168, %c0_68], %64 {strides = array<i32>} : memref<216x640xf32, #tpu.memory_space<vmem>>, vector<8x640xf32>,
    %c0_69 = arith.constant 0 : index
    %c0_70 = arith.constant 0 : index
    %c211 = arith.constant 211 : index
    %66 = vector.load %arg1[%c0_69, %c0_70, %c211] : memref<1x8x862xf32, #tpu.memory_space<vmem>>, vector<1x8x640xf32>
    %67 = vector.shape_cast %66 : vector<1x8x640xf32> to vector<8x640xf32>
    %c176 = arith.constant 176 : index
    %c0_71 = arith.constant 0 : index
    %68 = vector.load %arg6[%c176, %c0_71] : memref<216x640xf32, #tpu.memory_space<vmem>>, vector<8x640xf32>
    tpu.vector_store %arg6[%c176, %c0_71], %67 {strides = array<i32>} : memref<216x640xf32, #tpu.memory_space<vmem>>, vector<8x640xf32>,
    %c0_72 = arith.constant 0 : index
    %c0_73 = arith.constant 0 : index
    %c212 = arith.constant 212 : index
    %69 = vector.load %arg1[%c0_72, %c0_73, %c212] : memref<1x8x862xf32, #tpu.memory_space<vmem>>, vector<1x8x640xf32>
    %70 = vector.shape_cast %69 : vector<1x8x640xf32> to vector<8x640xf32>
    %c184 = arith.constant 184 : index
    %c0_74 = arith.constant 0 : index
    %71 = vector.load %arg6[%c184, %c0_74] : memref<216x640xf32, #tpu.memory_space<vmem>>, vector<8x640xf32>
    tpu.vector_store %arg6[%c184, %c0_74], %70 {strides = array<i32>} : memref<216x640xf32, #tpu.memory_space<vmem>>, vector<8x640xf32>,
    %c0_75 = arith.constant 0 : index
    %c0_76 = arith.constant 0 : index
    %c220 = arith.constant 220 : index
    %72 = vector.load %arg1[%c0_75, %c0_76, %c220] : memref<1x8x862xf32, #tpu.memory_space<vmem>>, vector<1x8x640xf32>
    %73 = vector.shape_cast %72 : vector<1x8x640xf32> to vector<8x640xf32>
    %c192 = arith.constant 192 : index
    %c0_77 = arith.constant 0 : index
    %74 = vector.load %arg6[%c192, %c0_77] : memref<216x640xf32, #tpu.memory_space<vmem>>, vector<8x640xf32>
    tpu.vector_store %arg6[%c192, %c0_77], %73 {strides = array<i32>} : memref<216x640xf32, #tpu.memory_space<vmem>>, vector<8x640xf32>,
    %c0_78 = arith.constant 0 : index
    %c0_79 = arith.constant 0 : index
    %c221 = arith.constant 221 : index
    %75 = vector.load %arg1[%c0_78, %c0_79, %c221] : memref<1x8x862xf32, #tpu.memory_space<vmem>>, vector<1x8x640xf32>
    %76 = vector.shape_cast %75 : vector<1x8x640xf32> to vector<8x640xf32>
    %c200_80 = arith.constant 200 : index
    %c0_81 = arith.constant 0 : index
    %77 = vector.load %arg6[%c200_80, %c0_81] : memref<216x640xf32, #tpu.memory_space<vmem>>, vector<8x640xf32>
    tpu.vector_store %arg6[%c200_80, %c0_81], %76 {strides = array<i32>} : memref<216x640xf32, #tpu.memory_space<vmem>>, vector<8x640xf32>,
    %c0_82 = arith.constant 0 : index
    %c0_83 = arith.constant 0 : index
    %c222 = arith.constant 222 : index
    %78 = vector.load %arg1[%c0_82, %c0_83, %c222] : memref<1x8x862xf32, #tpu.memory_space<vmem>>, vector<1x8x640xf32>
    %79 = vector.shape_cast %78 : vector<1x8x640xf32> to vector<8x640xf32>
    %c208 = arith.constant 208 : index
    %c0_84 = arith.constant 0 : index
    %80 = vector.load %arg6[%c208, %c0_84] : memref<216x640xf32, #tpu.memory_space<vmem>>, vector<8x640xf32>
    tpu.vector_store %arg6[%c208, %c0_84], %79 {strides = array<i32>} : memref<216x640xf32, #tpu.memory_space<vmem>>, vector<8x640xf32>,
    %c0_85 = arith.constant 0 : index
    %c0_86 = arith.constant 0 : index
    %81 = vector.load %arg2[%c0_85, %c0_86] : memref<32x216xbf16, #tpu.memory_space<vmem>>, vector<32x216xbf16>
    %c0_87 = arith.constant 0 : index
    %c0_88 = arith.constant 0 : index
    %82 = vector.load %arg6[%c0_87, %c0_88] : memref<216x640xf32, #tpu.memory_space<vmem>>, vector<216x640xf32>
    %83 = arith.truncf %82 : vector<216x640xf32> to vector<216x640xbf16>
    %cst = arith.constant dense<0.000000e+00> : vector<32x640xf32>
    %84 = tpu.matmul %81, %83, %cst {dimension_numbers = #tpu.dot_dimension_numbers<[1], [0], [0], [1], [0, 0, 1, 1], [], []>} : vector<32x216xbf16>, vector<216x640xbf16>, vector<32x640xf32> -> vector<32x640xf32>
    %c0_89 = arith.constant 0 : index
    %c0_90 = arith.constant 0 : index
    %85 = vector.load %arg3[%c0_89, %c0_90] : memref<32x1xf32, #tpu.memory_space<vmem>>, vector<32x1xf32>
    %86 = vector.broadcast %85 : vector<32x1xf32> to vector<32x640xf32>
    %87 = arith.addf %84, %86 : vector<32x640xf32>
    %cst_91 = arith.constant 0.000000e+00 : f32
    %88 = vector.broadcast %cst_91 : f32 to vector<32x640xf32>
    %89 = arith.cmpf oge, %87, %88 : vector<32x640xf32>
    %cst_92 = arith.constant 0.00999999977 : f32
    %90 = vector.broadcast %cst_92 : f32 to vector<32x640xf32>
    %91 = arith.mulf %87, %90 : vector<32x640xf32>
    %92 = arith.select %89, %87, %91 : vector<32x640xi1>, vector<32x640xf32>
    %c0_93 = arith.constant 0 : index
    %c0_94 = arith.constant 0 : index
    %93 = vector.load %arg4[%c0_93, %c0_94] : memref<1x640xf32, #tpu.memory_space<vmem>>, vector<1x640xf32>
    %94 = vector.broadcast %93 : vector<1x640xf32> to vector<32x640xf32>
    %95 = arith.mulf %92, %94 : vector<32x640xf32>
    %c0_95 = arith.constant 0 : index
    %c0_96 = arith.constant 0 : index
    %c0_97 = arith.constant 0 : index
    %96 = vector.load %arg5[%c0_95, %c0_96, %c0_97] : memref<1x32x640xf32, #tpu.memory_space<vmem>>, vector<1x32x640xf32>
    %97 = vector.shape_cast %96 : vector<1x32x640xf32> to vector<32x640xf32>
    %98 = vector.shape_cast %95 : vector<32x640xf32> to vector<1x32x640xf32>
    tpu.vector_store %arg5[%c0_95, %c0_96, %c0_97], %98 {strides = array<i32>} : memref<1x32x640xf32, #tpu.memory_space<vmem>>, vector<1x32x640xf32>,
    return
  }
  func.func @transform_0(%arg0: i32) -> (i32, i32, i32) {
    %c0_i32 = arith.constant 0 : i32
    %c0_i32_0 = arith.constant 0 : i32
    %c0_i32_1 = arith.constant 0 : i32
    return %arg0, %c0_i32, %c0_i32_0 : i32, i32, i32
  }
  func.func @transform_1(%arg0: i32) -> (i32, i32) {
    %c0_i32 = arith.constant 0 : i32
    %c0_i32_0 = arith.constant 0 : i32
    %c0_i32_1 = arith.constant 0 : i32
    return %c0_i32, %c0_i32_0 : i32, i32
  }
  func.func @transform_2(%arg0: i32) -> (i32, i32) {
    %c0_i32 = arith.constant 0 : i32
    %c0_i32_0 = arith.constant 0 : i32
    %c0_i32_1 = arith.constant 0 : i32
    return %c0_i32, %c0_i32_0 : i32, i32
  }
  func.func @transform_3(%arg0: i32) -> (i32, i32) {
    %c0_i32 = arith.constant 0 : i32
    %c0_i32_0 = arith.constant 0 : i32
    %c0_i32_1 = arith.constant 0 : i32
    return %c0_i32, %c0_i32_0 : i32, i32
  }
  func.func @transform_4(%arg0: i32) -> (i32, i32, i32) {
    %c0_i32 = arith.constant 0 : i32
    %c0_i32_0 = arith.constant 0 : i32
    %c0_i32_1 = arith.constant 0 : i32
    return %arg0, %c0_i32, %c0_i32_0 : i32, i32, i32
  }
}

module attributes {stable_mosaic.version = 11 : i64} {
  func.func @_conv3d_lrelu_kernel(%arg0: i32, %arg1: memref<1x8x4014xf32, #tpu.memory_space<vmem>>, %arg2: memref<8x216xbf16, #tpu.memory_space<vmem>>, %arg3: memref<8x1xf32, #tpu.memory_space<vmem>>, %arg4: memref<1x3328xf32, #tpu.memory_space<vmem>>, %arg5: memref<1x8x3328xf32, #tpu.memory_space<vmem>>, %arg6: memref<216x3328xf32, #tpu.memory_space<vmem>>) attributes {dimension_semantics = [#tpu.dimension_semantics<parallel>], iteration_bounds = array<i64: 2>, scalar_prefetch = 0 : i64, scratch_operands = 1 : i64, tpu.core_type = #tpu.core_type<tc>, window_params = [{transform_indices = @transform_0, window_bounds = array<i64: 1, 8, 4014>}, {pipeline_mode = #tpu.pipeline_mode<synchronous>, transform_indices = @transform_1, window_bounds = array<i64: 8, 216>}, {pipeline_mode = #tpu.pipeline_mode<synchronous>, transform_indices = @transform_2, window_bounds = array<i64: 8, 1>}, {pipeline_mode = #tpu.pipeline_mode<synchronous>, transform_indices = @transform_3, window_bounds = array<i64: 1, 3328>}, {transform_indices = @transform_4, window_bounds = array<i64: 1, 8, 3328>}]} {
    %c0 = arith.constant 0 : index
    %c0_0 = arith.constant 0 : index
    %c0_1 = arith.constant 0 : index
    %0 = vector.load %arg1[%c0, %c0_0, %c0_1] : memref<1x8x4014xf32, #tpu.memory_space<vmem>>, vector<1x8x3328xf32>
    %1 = vector.shape_cast %0 : vector<1x8x3328xf32> to vector<8x3328xf32>
    %c0_2 = arith.constant 0 : index
    %c0_3 = arith.constant 0 : index
    %2 = vector.load %arg6[%c0_2, %c0_3] : memref<216x3328xf32, #tpu.memory_space<vmem>>, vector<8x3328xf32>
    tpu.vector_store %arg6[%c0_2, %c0_3], %1 {strides = array<i32>} : memref<216x3328xf32, #tpu.memory_space<vmem>>, vector<8x3328xf32>,
    %c0_4 = arith.constant 0 : index
    %c0_5 = arith.constant 0 : index
    %c1 = arith.constant 1 : index
    %3 = vector.load %arg1[%c0_4, %c0_5, %c1] : memref<1x8x4014xf32, #tpu.memory_space<vmem>>, vector<1x8x3328xf32>
    %4 = vector.shape_cast %3 : vector<1x8x3328xf32> to vector<8x3328xf32>
    %c8 = arith.constant 8 : index
    %c0_6 = arith.constant 0 : index
    %5 = vector.load %arg6[%c8, %c0_6] : memref<216x3328xf32, #tpu.memory_space<vmem>>, vector<8x3328xf32>
    tpu.vector_store %arg6[%c8, %c0_6], %4 {strides = array<i32>} : memref<216x3328xf32, #tpu.memory_space<vmem>>, vector<8x3328xf32>,
    %c0_7 = arith.constant 0 : index
    %c0_8 = arith.constant 0 : index
    %c2 = arith.constant 2 : index
    %6 = vector.load %arg1[%c0_7, %c0_8, %c2] : memref<1x8x4014xf32, #tpu.memory_space<vmem>>, vector<1x8x3328xf32>
    %7 = vector.shape_cast %6 : vector<1x8x3328xf32> to vector<8x3328xf32>
    %c16 = arith.constant 16 : index
    %c0_9 = arith.constant 0 : index
    %8 = vector.load %arg6[%c16, %c0_9] : memref<216x3328xf32, #tpu.memory_space<vmem>>, vector<8x3328xf32>
    tpu.vector_store %arg6[%c16, %c0_9], %7 {strides = array<i32>} : memref<216x3328xf32, #tpu.memory_space<vmem>>, vector<8x3328xf32>,
    %c0_10 = arith.constant 0 : index
    %c0_11 = arith.constant 0 : index
    %c18 = arith.constant 18 : index
    %9 = vector.load %arg1[%c0_10, %c0_11, %c18] : memref<1x8x4014xf32, #tpu.memory_space<vmem>>, vector<1x8x3328xf32>
    %10 = vector.shape_cast %9 : vector<1x8x3328xf32> to vector<8x3328xf32>
    %c24 = arith.constant 24 : index
    %c0_12 = arith.constant 0 : index
    %11 = vector.load %arg6[%c24, %c0_12] : memref<216x3328xf32, #tpu.memory_space<vmem>>, vector<8x3328xf32>
    tpu.vector_store %arg6[%c24, %c0_12], %10 {strides = array<i32>} : memref<216x3328xf32, #tpu.memory_space<vmem>>, vector<8x3328xf32>,
    %c0_13 = arith.constant 0 : index
    %c0_14 = arith.constant 0 : index
    %c19 = arith.constant 19 : index
    %12 = vector.load %arg1[%c0_13, %c0_14, %c19] : memref<1x8x4014xf32, #tpu.memory_space<vmem>>, vector<1x8x3328xf32>
    %13 = vector.shape_cast %12 : vector<1x8x3328xf32> to vector<8x3328xf32>
    %c32 = arith.constant 32 : index
    %c0_15 = arith.constant 0 : index
    %14 = vector.load %arg6[%c32, %c0_15] : memref<216x3328xf32, #tpu.memory_space<vmem>>, vector<8x3328xf32>
    tpu.vector_store %arg6[%c32, %c0_15], %13 {strides = array<i32>} : memref<216x3328xf32, #tpu.memory_space<vmem>>, vector<8x3328xf32>,
    %c0_16 = arith.constant 0 : index
    %c0_17 = arith.constant 0 : index
    %c20 = arith.constant 20 : index
    %15 = vector.load %arg1[%c0_16, %c0_17, %c20] : memref<1x8x4014xf32, #tpu.memory_space<vmem>>, vector<1x8x3328xf32>
    %16 = vector.shape_cast %15 : vector<1x8x3328xf32> to vector<8x3328xf32>
    %c40 = arith.constant 40 : index
    %c0_18 = arith.constant 0 : index
    %17 = vector.load %arg6[%c40, %c0_18] : memref<216x3328xf32, #tpu.memory_space<vmem>>, vector<8x3328xf32>
    tpu.vector_store %arg6[%c40, %c0_18], %16 {strides = array<i32>} : memref<216x3328xf32, #tpu.memory_space<vmem>>, vector<8x3328xf32>,
    %c0_19 = arith.constant 0 : index
    %c0_20 = arith.constant 0 : index
    %c36 = arith.constant 36 : index
    %18 = vector.load %arg1[%c0_19, %c0_20, %c36] : memref<1x8x4014xf32, #tpu.memory_space<vmem>>, vector<1x8x3328xf32>
    %19 = vector.shape_cast %18 : vector<1x8x3328xf32> to vector<8x3328xf32>
    %c48 = arith.constant 48 : index
    %c0_21 = arith.constant 0 : index
    %20 = vector.load %arg6[%c48, %c0_21] : memref<216x3328xf32, #tpu.memory_space<vmem>>, vector<8x3328xf32>
    tpu.vector_store %arg6[%c48, %c0_21], %19 {strides = array<i32>} : memref<216x3328xf32, #tpu.memory_space<vmem>>, vector<8x3328xf32>,
    %c0_22 = arith.constant 0 : index
    %c0_23 = arith.constant 0 : index
    %c37 = arith.constant 37 : index
    %21 = vector.load %arg1[%c0_22, %c0_23, %c37] : memref<1x8x4014xf32, #tpu.memory_space<vmem>>, vector<1x8x3328xf32>
    %22 = vector.shape_cast %21 : vector<1x8x3328xf32> to vector<8x3328xf32>
    %c56 = arith.constant 56 : index
    %c0_24 = arith.constant 0 : index
    %23 = vector.load %arg6[%c56, %c0_24] : memref<216x3328xf32, #tpu.memory_space<vmem>>, vector<8x3328xf32>
    tpu.vector_store %arg6[%c56, %c0_24], %22 {strides = array<i32>} : memref<216x3328xf32, #tpu.memory_space<vmem>>, vector<8x3328xf32>,
    %c0_25 = arith.constant 0 : index
    %c0_26 = arith.constant 0 : index
    %c38 = arith.constant 38 : index
    %24 = vector.load %arg1[%c0_25, %c0_26, %c38] : memref<1x8x4014xf32, #tpu.memory_space<vmem>>, vector<1x8x3328xf32>
    %25 = vector.shape_cast %24 : vector<1x8x3328xf32> to vector<8x3328xf32>
    %c64 = arith.constant 64 : index
    %c0_27 = arith.constant 0 : index
    %26 = vector.load %arg6[%c64, %c0_27] : memref<216x3328xf32, #tpu.memory_space<vmem>>, vector<8x3328xf32>
    tpu.vector_store %arg6[%c64, %c0_27], %25 {strides = array<i32>} : memref<216x3328xf32, #tpu.memory_space<vmem>>, vector<8x3328xf32>,
    %c0_28 = arith.constant 0 : index
    %c0_29 = arith.constant 0 : index
    %c324 = arith.constant 324 : index
    %27 = vector.load %arg1[%c0_28, %c0_29, %c324] : memref<1x8x4014xf32, #tpu.memory_space<vmem>>, vector<1x8x3328xf32>
    %28 = vector.shape_cast %27 : vector<1x8x3328xf32> to vector<8x3328xf32>
    %c72 = arith.constant 72 : index
    %c0_30 = arith.constant 0 : index
    %29 = vector.load %arg6[%c72, %c0_30] : memref<216x3328xf32, #tpu.memory_space<vmem>>, vector<8x3328xf32>
    tpu.vector_store %arg6[%c72, %c0_30], %28 {strides = array<i32>} : memref<216x3328xf32, #tpu.memory_space<vmem>>, vector<8x3328xf32>,
    %c0_31 = arith.constant 0 : index
    %c0_32 = arith.constant 0 : index
    %c325 = arith.constant 325 : index
    %30 = vector.load %arg1[%c0_31, %c0_32, %c325] : memref<1x8x4014xf32, #tpu.memory_space<vmem>>, vector<1x8x3328xf32>
    %31 = vector.shape_cast %30 : vector<1x8x3328xf32> to vector<8x3328xf32>
    %c80 = arith.constant 80 : index
    %c0_33 = arith.constant 0 : index
    %32 = vector.load %arg6[%c80, %c0_33] : memref<216x3328xf32, #tpu.memory_space<vmem>>, vector<8x3328xf32>
    tpu.vector_store %arg6[%c80, %c0_33], %31 {strides = array<i32>} : memref<216x3328xf32, #tpu.memory_space<vmem>>, vector<8x3328xf32>,
    %c0_34 = arith.constant 0 : index
    %c0_35 = arith.constant 0 : index
    %c326 = arith.constant 326 : index
    %33 = vector.load %arg1[%c0_34, %c0_35, %c326] : memref<1x8x4014xf32, #tpu.memory_space<vmem>>, vector<1x8x3328xf32>
    %34 = vector.shape_cast %33 : vector<1x8x3328xf32> to vector<8x3328xf32>
    %c88 = arith.constant 88 : index
    %c0_36 = arith.constant 0 : index
    %35 = vector.load %arg6[%c88, %c0_36] : memref<216x3328xf32, #tpu.memory_space<vmem>>, vector<8x3328xf32>
    tpu.vector_store %arg6[%c88, %c0_36], %34 {strides = array<i32>} : memref<216x3328xf32, #tpu.memory_space<vmem>>, vector<8x3328xf32>,
    %c0_37 = arith.constant 0 : index
    %c0_38 = arith.constant 0 : index
    %c342 = arith.constant 342 : index
    %36 = vector.load %arg1[%c0_37, %c0_38, %c342] : memref<1x8x4014xf32, #tpu.memory_space<vmem>>, vector<1x8x3328xf32>
    %37 = vector.shape_cast %36 : vector<1x8x3328xf32> to vector<8x3328xf32>
    %c96 = arith.constant 96 : index
    %c0_39 = arith.constant 0 : index
    %38 = vector.load %arg6[%c96, %c0_39] : memref<216x3328xf32, #tpu.memory_space<vmem>>, vector<8x3328xf32>
    tpu.vector_store %arg6[%c96, %c0_39], %37 {strides = array<i32>} : memref<216x3328xf32, #tpu.memory_space<vmem>>, vector<8x3328xf32>,
    %c0_40 = arith.constant 0 : index
    %c0_41 = arith.constant 0 : index
    %c343 = arith.constant 343 : index
    %39 = vector.load %arg1[%c0_40, %c0_41, %c343] : memref<1x8x4014xf32, #tpu.memory_space<vmem>>, vector<1x8x3328xf32>
    %40 = vector.shape_cast %39 : vector<1x8x3328xf32> to vector<8x3328xf32>
    %c104 = arith.constant 104 : index
    %c0_42 = arith.constant 0 : index
    %41 = vector.load %arg6[%c104, %c0_42] : memref<216x3328xf32, #tpu.memory_space<vmem>>, vector<8x3328xf32>
    tpu.vector_store %arg6[%c104, %c0_42], %40 {strides = array<i32>} : memref<216x3328xf32, #tpu.memory_space<vmem>>, vector<8x3328xf32>,
    %c0_43 = arith.constant 0 : index
    %c0_44 = arith.constant 0 : index
    %c344 = arith.constant 344 : index
    %42 = vector.load %arg1[%c0_43, %c0_44, %c344] : memref<1x8x4014xf32, #tpu.memory_space<vmem>>, vector<1x8x3328xf32>
    %43 = vector.shape_cast %42 : vector<1x8x3328xf32> to vector<8x3328xf32>
    %c112 = arith.constant 112 : index
    %c0_45 = arith.constant 0 : index
    %44 = vector.load %arg6[%c112, %c0_45] : memref<216x3328xf32, #tpu.memory_space<vmem>>, vector<8x3328xf32>
    tpu.vector_store %arg6[%c112, %c0_45], %43 {strides = array<i32>} : memref<216x3328xf32, #tpu.memory_space<vmem>>, vector<8x3328xf32>,
    %c0_46 = arith.constant 0 : index
    %c0_47 = arith.constant 0 : index
    %c360 = arith.constant 360 : index
    %45 = vector.load %arg1[%c0_46, %c0_47, %c360] : memref<1x8x4014xf32, #tpu.memory_space<vmem>>, vector<1x8x3328xf32>
    %46 = vector.shape_cast %45 : vector<1x8x3328xf32> to vector<8x3328xf32>
    %c120 = arith.constant 120 : index
    %c0_48 = arith.constant 0 : index
    %47 = vector.load %arg6[%c120, %c0_48] : memref<216x3328xf32, #tpu.memory_space<vmem>>, vector<8x3328xf32>
    tpu.vector_store %arg6[%c120, %c0_48], %46 {strides = array<i32>} : memref<216x3328xf32, #tpu.memory_space<vmem>>, vector<8x3328xf32>,
    %c0_49 = arith.constant 0 : index
    %c0_50 = arith.constant 0 : index
    %c361 = arith.constant 361 : index
    %48 = vector.load %arg1[%c0_49, %c0_50, %c361] : memref<1x8x4014xf32, #tpu.memory_space<vmem>>, vector<1x8x3328xf32>
    %49 = vector.shape_cast %48 : vector<1x8x3328xf32> to vector<8x3328xf32>
    %c128 = arith.constant 128 : index
    %c0_51 = arith.constant 0 : index
    %50 = vector.load %arg6[%c128, %c0_51] : memref<216x3328xf32, #tpu.memory_space<vmem>>, vector<8x3328xf32>
    tpu.vector_store %arg6[%c128, %c0_51], %49 {strides = array<i32>} : memref<216x3328xf32, #tpu.memory_space<vmem>>, vector<8x3328xf32>,
    %c0_52 = arith.constant 0 : index
    %c0_53 = arith.constant 0 : index
    %c362 = arith.constant 362 : index
    %51 = vector.load %arg1[%c0_52, %c0_53, %c362] : memref<1x8x4014xf32, #tpu.memory_space<vmem>>, vector<1x8x3328xf32>
    %52 = vector.shape_cast %51 : vector<1x8x3328xf32> to vector<8x3328xf32>
    %c136 = arith.constant 136 : index
    %c0_54 = arith.constant 0 : index
    %53 = vector.load %arg6[%c136, %c0_54] : memref<216x3328xf32, #tpu.memory_space<vmem>>, vector<8x3328xf32>
    tpu.vector_store %arg6[%c136, %c0_54], %52 {strides = array<i32>} : memref<216x3328xf32, #tpu.memory_space<vmem>>, vector<8x3328xf32>,
    %c0_55 = arith.constant 0 : index
    %c0_56 = arith.constant 0 : index
    %c648 = arith.constant 648 : index
    %54 = vector.load %arg1[%c0_55, %c0_56, %c648] : memref<1x8x4014xf32, #tpu.memory_space<vmem>>, vector<1x8x3328xf32>
    %55 = vector.shape_cast %54 : vector<1x8x3328xf32> to vector<8x3328xf32>
    %c144 = arith.constant 144 : index
    %c0_57 = arith.constant 0 : index
    %56 = vector.load %arg6[%c144, %c0_57] : memref<216x3328xf32, #tpu.memory_space<vmem>>, vector<8x3328xf32>
    tpu.vector_store %arg6[%c144, %c0_57], %55 {strides = array<i32>} : memref<216x3328xf32, #tpu.memory_space<vmem>>, vector<8x3328xf32>,
    %c0_58 = arith.constant 0 : index
    %c0_59 = arith.constant 0 : index
    %c649 = arith.constant 649 : index
    %57 = vector.load %arg1[%c0_58, %c0_59, %c649] : memref<1x8x4014xf32, #tpu.memory_space<vmem>>, vector<1x8x3328xf32>
    %58 = vector.shape_cast %57 : vector<1x8x3328xf32> to vector<8x3328xf32>
    %c152 = arith.constant 152 : index
    %c0_60 = arith.constant 0 : index
    %59 = vector.load %arg6[%c152, %c0_60] : memref<216x3328xf32, #tpu.memory_space<vmem>>, vector<8x3328xf32>
    tpu.vector_store %arg6[%c152, %c0_60], %58 {strides = array<i32>} : memref<216x3328xf32, #tpu.memory_space<vmem>>, vector<8x3328xf32>,
    %c0_61 = arith.constant 0 : index
    %c0_62 = arith.constant 0 : index
    %c650 = arith.constant 650 : index
    %60 = vector.load %arg1[%c0_61, %c0_62, %c650] : memref<1x8x4014xf32, #tpu.memory_space<vmem>>, vector<1x8x3328xf32>
    %61 = vector.shape_cast %60 : vector<1x8x3328xf32> to vector<8x3328xf32>
    %c160 = arith.constant 160 : index
    %c0_63 = arith.constant 0 : index
    %62 = vector.load %arg6[%c160, %c0_63] : memref<216x3328xf32, #tpu.memory_space<vmem>>, vector<8x3328xf32>
    tpu.vector_store %arg6[%c160, %c0_63], %61 {strides = array<i32>} : memref<216x3328xf32, #tpu.memory_space<vmem>>, vector<8x3328xf32>,
    %c0_64 = arith.constant 0 : index
    %c0_65 = arith.constant 0 : index
    %c666 = arith.constant 666 : index
    %63 = vector.load %arg1[%c0_64, %c0_65, %c666] : memref<1x8x4014xf32, #tpu.memory_space<vmem>>, vector<1x8x3328xf32>
    %64 = vector.shape_cast %63 : vector<1x8x3328xf32> to vector<8x3328xf32>
    %c168 = arith.constant 168 : index
    %c0_66 = arith.constant 0 : index
    %65 = vector.load %arg6[%c168, %c0_66] : memref<216x3328xf32, #tpu.memory_space<vmem>>, vector<8x3328xf32>
    tpu.vector_store %arg6[%c168, %c0_66], %64 {strides = array<i32>} : memref<216x3328xf32, #tpu.memory_space<vmem>>, vector<8x3328xf32>,
    %c0_67 = arith.constant 0 : index
    %c0_68 = arith.constant 0 : index
    %c667 = arith.constant 667 : index
    %66 = vector.load %arg1[%c0_67, %c0_68, %c667] : memref<1x8x4014xf32, #tpu.memory_space<vmem>>, vector<1x8x3328xf32>
    %67 = vector.shape_cast %66 : vector<1x8x3328xf32> to vector<8x3328xf32>
    %c176 = arith.constant 176 : index
    %c0_69 = arith.constant 0 : index
    %68 = vector.load %arg6[%c176, %c0_69] : memref<216x3328xf32, #tpu.memory_space<vmem>>, vector<8x3328xf32>
    tpu.vector_store %arg6[%c176, %c0_69], %67 {strides = array<i32>} : memref<216x3328xf32, #tpu.memory_space<vmem>>, vector<8x3328xf32>,
    %c0_70 = arith.constant 0 : index
    %c0_71 = arith.constant 0 : index
    %c668 = arith.constant 668 : index
    %69 = vector.load %arg1[%c0_70, %c0_71, %c668] : memref<1x8x4014xf32, #tpu.memory_space<vmem>>, vector<1x8x3328xf32>
    %70 = vector.shape_cast %69 : vector<1x8x3328xf32> to vector<8x3328xf32>
    %c184 = arith.constant 184 : index
    %c0_72 = arith.constant 0 : index
    %71 = vector.load %arg6[%c184, %c0_72] : memref<216x3328xf32, #tpu.memory_space<vmem>>, vector<8x3328xf32>
    tpu.vector_store %arg6[%c184, %c0_72], %70 {strides = array<i32>} : memref<216x3328xf32, #tpu.memory_space<vmem>>, vector<8x3328xf32>,
    %c0_73 = arith.constant 0 : index
    %c0_74 = arith.constant 0 : index
    %c684 = arith.constant 684 : index
    %72 = vector.load %arg1[%c0_73, %c0_74, %c684] : memref<1x8x4014xf32, #tpu.memory_space<vmem>>, vector<1x8x3328xf32>
    %73 = vector.shape_cast %72 : vector<1x8x3328xf32> to vector<8x3328xf32>
    %c192 = arith.constant 192 : index
    %c0_75 = arith.constant 0 : index
    %74 = vector.load %arg6[%c192, %c0_75] : memref<216x3328xf32, #tpu.memory_space<vmem>>, vector<8x3328xf32>
    tpu.vector_store %arg6[%c192, %c0_75], %73 {strides = array<i32>} : memref<216x3328xf32, #tpu.memory_space<vmem>>, vector<8x3328xf32>,
    %c0_76 = arith.constant 0 : index
    %c0_77 = arith.constant 0 : index
    %c685 = arith.constant 685 : index
    %75 = vector.load %arg1[%c0_76, %c0_77, %c685] : memref<1x8x4014xf32, #tpu.memory_space<vmem>>, vector<1x8x3328xf32>
    %76 = vector.shape_cast %75 : vector<1x8x3328xf32> to vector<8x3328xf32>
    %c200 = arith.constant 200 : index
    %c0_78 = arith.constant 0 : index
    %77 = vector.load %arg6[%c200, %c0_78] : memref<216x3328xf32, #tpu.memory_space<vmem>>, vector<8x3328xf32>
    tpu.vector_store %arg6[%c200, %c0_78], %76 {strides = array<i32>} : memref<216x3328xf32, #tpu.memory_space<vmem>>, vector<8x3328xf32>,
    %c0_79 = arith.constant 0 : index
    %c0_80 = arith.constant 0 : index
    %c686 = arith.constant 686 : index
    %78 = vector.load %arg1[%c0_79, %c0_80, %c686] : memref<1x8x4014xf32, #tpu.memory_space<vmem>>, vector<1x8x3328xf32>
    %79 = vector.shape_cast %78 : vector<1x8x3328xf32> to vector<8x3328xf32>
    %c208 = arith.constant 208 : index
    %c0_81 = arith.constant 0 : index
    %80 = vector.load %arg6[%c208, %c0_81] : memref<216x3328xf32, #tpu.memory_space<vmem>>, vector<8x3328xf32>
    tpu.vector_store %arg6[%c208, %c0_81], %79 {strides = array<i32>} : memref<216x3328xf32, #tpu.memory_space<vmem>>, vector<8x3328xf32>,
    %c0_82 = arith.constant 0 : index
    %c0_83 = arith.constant 0 : index
    %81 = vector.load %arg2[%c0_82, %c0_83] : memref<8x216xbf16, #tpu.memory_space<vmem>>, vector<8x216xbf16>
    %c0_84 = arith.constant 0 : index
    %c0_85 = arith.constant 0 : index
    %82 = vector.load %arg6[%c0_84, %c0_85] : memref<216x3328xf32, #tpu.memory_space<vmem>>, vector<216x3328xf32>
    %83 = arith.truncf %82 : vector<216x3328xf32> to vector<216x3328xbf16>
    %cst = arith.constant dense<0.000000e+00> : vector<8x3328xf32>
    %84 = tpu.matmul %81, %83, %cst {dimension_numbers = #tpu.dot_dimension_numbers<[1], [0], [0], [1], [0, 0, 1, 1], [], []>} : vector<8x216xbf16>, vector<216x3328xbf16>, vector<8x3328xf32> -> vector<8x3328xf32>
    %c0_86 = arith.constant 0 : index
    %c0_87 = arith.constant 0 : index
    %85 = vector.load %arg3[%c0_86, %c0_87] : memref<8x1xf32, #tpu.memory_space<vmem>>, vector<8x1xf32>
    %86 = vector.broadcast %85 : vector<8x1xf32> to vector<8x3328xf32>
    %87 = arith.addf %84, %86 : vector<8x3328xf32>
    %cst_88 = arith.constant 0.000000e+00 : f32
    %88 = vector.broadcast %cst_88 : f32 to vector<8x3328xf32>
    %89 = arith.cmpf oge, %87, %88 : vector<8x3328xf32>
    %cst_89 = arith.constant 0.00999999977 : f32
    %90 = vector.broadcast %cst_89 : f32 to vector<8x3328xf32>
    %91 = arith.mulf %87, %90 : vector<8x3328xf32>
    %92 = arith.select %89, %87, %91 : vector<8x3328xi1>, vector<8x3328xf32>
    %c0_90 = arith.constant 0 : index
    %c0_91 = arith.constant 0 : index
    %93 = vector.load %arg4[%c0_90, %c0_91] : memref<1x3328xf32, #tpu.memory_space<vmem>>, vector<1x3328xf32>
    %94 = vector.broadcast %93 : vector<1x3328xf32> to vector<8x3328xf32>
    %95 = arith.mulf %92, %94 : vector<8x3328xf32>
    %c0_92 = arith.constant 0 : index
    %c0_93 = arith.constant 0 : index
    %c0_94 = arith.constant 0 : index
    %96 = vector.load %arg5[%c0_92, %c0_93, %c0_94] : memref<1x8x3328xf32, #tpu.memory_space<vmem>>, vector<1x8x3328xf32>
    %97 = vector.shape_cast %96 : vector<1x8x3328xf32> to vector<8x3328xf32>
    %98 = vector.shape_cast %95 : vector<8x3328xf32> to vector<1x8x3328xf32>
    tpu.vector_store %arg5[%c0_92, %c0_93, %c0_94], %98 {strides = array<i32>} : memref<1x8x3328xf32, #tpu.memory_space<vmem>>, vector<1x8x3328xf32>,
    return
  }
  func.func @transform_0(%arg0: i32) -> (i32, i32, i32) {
    %c0_i32 = arith.constant 0 : i32
    %c0_i32_0 = arith.constant 0 : i32
    %c0_i32_1 = arith.constant 0 : i32
    return %arg0, %c0_i32, %c0_i32_0 : i32, i32, i32
  }
  func.func @transform_1(%arg0: i32) -> (i32, i32) {
    %c0_i32 = arith.constant 0 : i32
    %c0_i32_0 = arith.constant 0 : i32
    %c0_i32_1 = arith.constant 0 : i32
    return %c0_i32, %c0_i32_0 : i32, i32
  }
  func.func @transform_2(%arg0: i32) -> (i32, i32) {
    %c0_i32 = arith.constant 0 : i32
    %c0_i32_0 = arith.constant 0 : i32
    %c0_i32_1 = arith.constant 0 : i32
    return %c0_i32, %c0_i32_0 : i32, i32
  }
  func.func @transform_3(%arg0: i32) -> (i32, i32) {
    %c0_i32 = arith.constant 0 : i32
    %c0_i32_0 = arith.constant 0 : i32
    %c0_i32_1 = arith.constant 0 : i32
    return %c0_i32, %c0_i32_0 : i32, i32
  }
  func.func @transform_4(%arg0: i32) -> (i32, i32, i32) {
    %c0_i32 = arith.constant 0 : i32
    %c0_i32_0 = arith.constant 0 : i32
    %c0_i32_1 = arith.constant 0 : i32
    return %arg0, %c0_i32, %c0_i32_0 : i32, i32, i32
  }
}

</mosaic_0001>

<llo_original>
// kernel: upblock_forward.3
$region0: #{upblock_forward.3}
  #allocation0 [shape = 'u32[]', space=smem, size = 0x4, offset = 0x4, fixed_abs, tag = 'smem constant byte address 0x4 - core index']
  #allocation1 [shape = 'u32[144,128]{1,0:T(1,128)}', space=vmem, size = 0x12000, scoped, tag = 'internal scratch']
  #allocation2 [shape = 'f32[216,640]{1,0:T(8,128)}', space=vmem, size = 0x87000, scoped, tag = 'scratch operand']
  %s0 = inlined_call_operand.vmem [shape: f32[2,8,862], index: 0, kind: input, shape index: {}]
  %s1 = inlined_call_operand.vmem [shape: bf16[32,216], index: 1, kind: input, shape index: {}]
  %s2 = inlined_call_operand.vmem [shape: f32[32,1], index: 2, kind: input, shape index: {}]
  %s3 = inlined_call_operand.vmem [shape: f32[1,640], index: 3, kind: input, shape index: {}]
  %s4 = inlined_call_operand.vmem [shape: f32[2,32,640], index: 4, kind: output, shape index: {}]
  %s5 = sld [smem:[#allocation0]]
  $region49: #{upblock_forward.3} parent=0
    _
  %s7 = ssub.s32 1, %s5
  %s8 = scalar_select 0, %s7, %s5
  loop: start=0, step=1, limit=4
  $region2: #{upblock_forward.3} parent=0 // loop_pre_header
    _
  $region3: #{upblock_forward.3} parent=0 // loop_header
    %s10 = sphi 0, %s14
    %p11 = scmp.ge.s32.totalorder %s10, 4
    %s20 = sphi 0, %s22
    %s23 = sphi 0, %s20
    %s24 = sphi 0, %s23
    %s40 = sphi 0, %s24
    %s44 = sphi 0, %s44
    %s46 = sphi 0, %s44
    %s47 = sphi 0, %s46
    %s61 = sphi 0, %s47
    %s65 = sphi 0, %s65
    %s67 = sphi 0, %s65
    %s68 = sphi 0, %s67
    %s82 = sphi 0, %s68
    %s86 = sphi 0, %s86
    %s88 = sphi 0, %s86
    %s89 = sphi 0, %s88
    %s103 = sphi 0, %s89
    %s109 = sphi 0, %s111
    %s112 = sphi 0, %s109
    %s113 = sphi 0, %s112
    %s129 = sphi 0, %s113
  $region4: #{upblock_forward.3} parent=0 // loop_header_branch
    %13 = sbr.rel (%p11) target = $region8
  $region5: #{upblock_forward.3} parent=0 // loop_body
    %s15 = ssub.s32 %s10, 1
    %s16 = ssub.s32 %s10, 2
    %s17 = sadd.s32 %s10, 1
    %s18 = ssub.s32 %s10, %s17
    %p19 = scmp.eq.s32.totalorder %s18, 0
    %s21 = sadd.s32 %s20, 1
    %s22 = scalar_select %p19, %s20, %s21
    %p25 = pneg %p19
    %p26 = scmp.eq.s32.totalorder %s10, 1
    %p27 = por %p25, %p26
    %p28 = scmp.ne.s32.totalorder %s20, %s23
    %p29 = scmp.eq.s32.totalorder %s10, 0
    %p30 = por %p28, %p29
    %p31 = scmp.ne.s32.totalorder %s20, %s23
    %p32 = scmp.eq.s32.totalorder %s15, 1
    %p33 = por %p31, %p32
    %p34 = scmp.ne.s32.totalorder %s23, %s24
    %p35 = scmp.eq.s32.totalorder %s15, 0
    %p36 = por %p34, %p35
    %p37 = scmp.ne.s32.totalorder %s23, %s24
    %p38 = scmp.eq.s32.totalorder %s16, 1
    %p39 = por %p37, %p38
    %p41 = scmp.ne.s32.totalorder %s24, %s40
    %p42 = scmp.eq.s32.totalorder %s16, 0
    %p43 = por %p41, %p42
    %s45 = sadd.s32 %s44, 1
    %p48 = scmp.eq.s32.totalorder %s10, 1
    %p49 = scmp.ne.s32.totalorder %s44, %s46
    %p50 = scmp.eq.s32.totalorder %s10, 0
    %p51 = por %p49, %p50
    %p52 = scmp.ne.s32.totalorder %s44, %s46
    %p53 = scmp.eq.s32.totalorder %s15, 1
    %p54 = por %p52, %p53
    %p55 = scmp.ne.s32.totalorder %s46, %s47
    %p56 = scmp.eq.s32.totalorder %s15, 0
    %p57 = por %p55, %p56
    %p58 = scmp.ne.s32.totalorder %s46, %s47
    %p59 = scmp.eq.s32.totalorder %s16, 1
    %p60 = por %p58, %p59
    %p62 = scmp.ne.s32.totalorder %s47, %s61
    %p63 = scmp.eq.s32.totalorder %s16, 0
    %p64 = por %p62, %p63
    %s66 = sadd.s32 %s65, 1
    %p69 = scmp.eq.s32.totalorder %s10, 1
    %p70 = scmp.ne.s32.totalorder %s65, %s67
    %p71 = scmp.eq.s32.totalorder %s10, 0
    %p72 = por %p70, %p71
    %p73 = scmp.ne.s32.totalorder %s65, %s67
    %p74 = scmp.eq.s32.totalorder %s15, 1
    %p75 = por %p73, %p74
    %p76 = scmp.ne.s32.totalorder %s67, %s68
    %p77 = scmp.eq.s32.totalorder %s15, 0
    %p78 = por %p76, %p77
    %p79 = scmp.ne.s32.totalorder %s67, %s68
    %p80 = scmp.eq.s32.totalorder %s16, 1
    %p81 = por %p79, %p80
    %p83 = scmp.ne.s32.totalorder %s68, %s82
    %p84 = scmp.eq.s32.totalorder %s16, 0
    %p85 = por %p83, %p84
    %s87 = sadd.s32 %s86, 1
    %p90 = scmp.eq.s32.totalorder %s10, 1
    %p91 = scmp.ne.s32.totalorder %s86, %s88
    %p92 = scmp.eq.s32.totalorder %s10, 0
    %p93 = por %p91, %p92
    %p94 = scmp.ne.s32.totalorder %s86, %s88
    %p95 = scmp.eq.s32.totalorder %s15, 1
    %p96 = por %p94, %p95
    %p97 = scmp.ne.s32.totalorder %s88, %s89
    %p98 = scmp.eq.s32.totalorder %s15, 0
    %p99 = por %p97, %p98
    %p100 = scmp.ne.s32.totalorder %s88, %s89
    %p101 = scmp.eq.s32.totalorder %s16, 1
    %p102 = por %p100, %p101
    %p104 = scmp.ne.s32.totalorder %s89, %s103
    %p105 = scmp.eq.s32.totalorder %s16, 0
    %p106 = por %p104, %p105
    %s107 = ssub.s32 %s10, %s17
    %p108 = scmp.eq.s32.totalorder %s107, 0
    %s110 = sadd.s32 %s109, 1
    %s111 = scalar_select %p108, %s109, %s110
    %p114 = pneg %p108
    %p115 = scmp.eq.s32.totalorder %s10, 1
    %p116 = por %p114, %p115
    %p117 = scmp.ne.s32.totalorder %s109, %s112
    %p118 = scmp.eq.s32.totalorder %s10, 0
    %p119 = por %p117, %p118
    %p120 = scmp.ne.s32.totalorder %s109, %s112
    %p121 = scmp.eq.s32.totalorder %s15, 1
    %p122 = por %p120, %p121
    %p123 = scmp.ne.s32.totalorder %s112, %s113
    %p124 = scmp.eq.s32.totalorder %s15, 0
    %p125 = por %p123, %p124
    %p126 = scmp.ne.s32.totalorder %s112, %s113
    %p127 = scmp.eq.s32.totalorder %s16, 1
    %p128 = por %p126, %p127
    %p130 = scmp.ne.s32.totalorder %s113, %s129
    %p131 = scmp.eq.s32.totalorder %s16, 0
    %p132 = por %p130, %p131
    %p133 = scmp.le.s32.totalorder 1, %s10
    %p134 = scmp.lt.s32.totalorder %s10, 3
    %p135 = pnand %p133, %p134
    %p136 = pneg %p135
    // Predicated region
    $region9: #{upblock_forward.3} parent=5 // pred_check
      _
    $region10: #{upblock_forward.3} parent=5 // pred_check_branch
      %138 = sbr.rel (%p135) target = $region12
    $region11: #{upblock_forward.3} parent=5 // pred_region
      %s139 = ssub.s32 %s10, 1
      // Predicated region
      $region13: #{upblock_forward.3} parent=11 // pred_check
        %p140 = pneg %p57
      $region14: #{upblock_forward.3} parent=11 // pred_check_branch
        %142 = sbr.rel (%p140) target = $region16
      $region15: #{upblock_forward.3} parent=11 // pred_region
        _
      $region16: #{upblock_forward.3} parent=11 // pred_fallthru
        _
      // Predicated region
      $region17: #{upblock_forward.3} parent=11 // pred_check
        %p143 = pneg %p78
      $region18: #{upblock_forward.3} parent=11 // pred_check_branch
        %145 = sbr.rel (%p143) target = $region20
      $region19: #{upblock_forward.3} parent=11 // pred_region
        _
      $region20: #{upblock_forward.3} parent=11 // pred_fallthru
        _
      // Predicated region
      $region21: #{upblock_forward.3} parent=11 // pred_check
        %p146 = pneg %p99
      $region22: #{upblock_forward.3} parent=11 // pred_check_branch
        %148 = sbr.rel (%p146) target = $region24
      $region23: #{upblock_forward.3} parent=11 // pred_region
        _
      $region24: #{upblock_forward.3} parent=11 // pred_fallthru
        _
    $region12: #{upblock_forward.3} parent=5 // pred_fallthru
      _
    %p149 = scmp.lt.s32.totalorder %s10, 2
    // Predicated region
    $region25: #{upblock_forward.3} parent=5 // pred_check
      %p150 = pneg %p149
    $region26: #{upblock_forward.3} parent=5 // pred_check_branch
      %152 = sbr.rel (%p150) target = $region28
    $region27: #{upblock_forward.3} parent=5 // pred_region
      // Predicated region
      $region29: #{upblock_forward.3} parent=27 // pred_check
        %p153 = pneg %p30
      $region30: #{upblock_forward.3} parent=27 // pred_check_branch
        %155 = sbr.rel (%p153) target = $region32
      $region31: #{upblock_forward.3} parent=27 // pred_region
        %p156 = scmp.lt.s32.totalorder %s10, 1
        %s157 = scalar_select %p156, %s10, 1
        %s158 = smul.addr %s157, 7
        %s159 = smul.addr %s158, 8
        %s160 = scalar_lea.vmem %s0, %s159
      $region32: #{upblock_forward.3} parent=27 // pred_fallthru
        _
    $region28: #{upblock_forward.3} parent=5 // pred_fallthru
      _
    %p161 = scmp.le.s32.totalorder 1, %s10
    %p162 = scmp.lt.s32.totalorder %s10, 3
    %p163 = pnand %p161, %p162
    %p164 = pneg %p163
    // Predicated region
    $region33: #{upblock_forward.3} parent=5 // pred_check
      _
    $region34: #{upblock_forward.3} parent=5 // pred_check_branch
      %166 = sbr.rel (%p163) target = $region36
    $region35: #{upblock_forward.3} parent=5 // pred_region
      %s167 = ssub.s32 %s10, 1
      %p168 = scmp.lt.s32.totalorder %s15, 1
      %s169 = scalar_select %p168, %s15, 1
      %s170 = smul.addr %s169, 7
      %s171 = smul.addr %s170, 8
      %s172 = scalar_lea.vmem %s0, %s171
      %p173 = pneg %p36
      %p174 = pneg %p33
      %p175 = pneg %p57
      %p176 = pneg %p54
      %p177 = pneg %p78
      %p178 = pneg %p75
      %p179 = pneg %p99
      %p180 = pneg %p96
      %p181 = pneg %p125
      %p182 = pneg %p122
      %p183 = scmp.lt.s32.totalorder %s15, 1
      %s184 = scalar_select %p183, %s15, 1
      %s185 = smul.addr %s184, 20
      %s186 = smul.addr %s185, 8
      %s187 = scalar_lea.vmem %s4, %s186
      %p188 = scmp.lt.s32.totalorder %s15, 1
      %s189 = scalar_select %p188, %s15, 1
      %s190 = smul.addr %s189, 7
      %s191 = smul.addr %s190, 8
      %s192 = scalar_lea.vmem %s0, %s191
      %p193 = scmp.lt.s32.totalorder %s15, 1
      %s194 = scalar_select %p193, %s15, 1
      %s195 = smul.addr %s194, 20
      %s196 = smul.addr %s195, 8
      %s197 = scalar_lea.vmem %s4, %s196
      %v199 = vld [vmem:[%s192] sm:$0xff]
      %v200 = vld [vmem:[%s192 + $0x8] sm:$0xff]
      %v201 = vld [vmem:[%s192 + $0x10] sm:$0xff]
      %v202 = vld [vmem:[%s192 + $0x18] sm:$0xff]
      %v203 = vld [vmem:[%s192 + $0x20] sm:$0xff]
      %204 = vst [vmem:[#allocation2] sm:$0xff] %v199
      %205 = vst [vmem:[#allocation2 + $0x8] sm:$0xff] %v200
      %206 = vst [vmem:[#allocation2 + $0x10] sm:$0xff] %v201
      %207 = vst [vmem:[#allocation2 + $0x18] sm:$0xff] %v202
      %208 = vst [vmem:[#allocation2 + $0x20] sm:$0xff] %v203
      %v209 = vld [vmem:[%s192] sm:$0xff]
      %v210 = vld [vmem:[%s192 + $0x8] sm:$0xff]
      %v211 = vld [vmem:[%s192 + $0x10] sm:$0xff]
      %v212 = vld [vmem:[%s192 + $0x18] sm:$0xff]
      %v213 = vld [vmem:[%s192 + $0x20] sm:$0xff]
      %v214 = vld [vmem:[%s192 + $0x28] sm:$0xff]
      %221 = vrot.lane.b32.xlu0 %v209, 127
      %v222 = vpop.permute.xlu0 %221
      %223 = vrot.lane.b32.xlu0 %v210, 127
      %v224 = vpop.permute.xlu0 %223
      %225 = vrot.lane.b32.xlu0 %v211, 127
      %v226 = vpop.permute.xlu0 %225
      %227 = vrot.lane.b32.xlu0 %v212, 127
      %v228 = vpop.permute.xlu0 %227
      %229 = vrot.lane.b32.xlu0 %v213, 127
      %v230 = vpop.permute.xlu0 %229
      %231 = vrot.lane.b32.xlu0 %v214, 127
      %v232 = vpop.permute.xlu0 %231
      %vm233 = vcmask 1039360
      %v234 = vsel %vm233, %v222, %v224
      %v235 = vsel %vm233, %v224, %v226
      %v236 = vsel %vm233, %v226, %v228
      %v237 = vsel %vm233, %v228, %v230
      %v238 = vsel %vm233, %v230, %v232
      %244 = vst [vmem:[#allocation2 + $0x28] sm:$0xff] %v234
      %245 = vst [vmem:[#allocation2 + $0x30] sm:$0xff] %v235
      %246 = vst [vmem:[#allocation2 + $0x38] sm:$0xff] %v236
      %247 = vst [vmem:[#allocation2 + $0x40] sm:$0xff] %v237
      %248 = vst [vmem:[#allocation2 + $0x48] sm:$0xff] %v238
      %v249 = vld [vmem:[%s192] sm:$0xff]
      %v250 = vld [vmem:[%s192 + $0x8] sm:$0xff]
      %v251 = vld [vmem:[%s192 + $0x10] sm:$0xff]
      %v252 = vld [vmem:[%s192 + $0x18] sm:$0xff]
      %v253 = vld [vmem:[%s192 + $0x20] sm:$0xff]
      %v254 = vld [vmem:[%s192 + $0x28] sm:$0xff]
      %261 = vrot.lane.b32.xlu0 %v249, 126
      %v262 = vpop.permute.xlu0 %261
      %263 = vrot.lane.b32.xlu0 %v250, 126
      %v264 = vpop.permute.xlu0 %263
      %265 = vrot.lane.b32.xlu0 %v251, 126
      %v266 = vpop.permute.xlu0 %265
      %267 = vrot.lane.b32.xlu0 %v252, 126
      %v268 = vpop.permute.xlu0 %267
      %269 = vrot.lane.b32.xlu0 %v253, 126
      %v270 = vpop.permute.xlu0 %269
      %271 = vrot.lane.b32.xlu0 %v254, 126
      %v272 = vpop.permute.xlu0 %271
      %vm273 = vcmask 1031168
      %v274 = vsel %vm273, %v262, %v264
      %v275 = vsel %vm273, %v264, %v266
      %v276 = vsel %vm273, %v266, %v268
      %v277 = vsel %vm273, %v268, %v270
      %v278 = vsel %vm273, %v270, %v272
      %284 = vst [vmem:[#allocation2 + $0x50] sm:$0xff] %v274
      %285 = vst [vmem:[#allocation2 + $0x58] sm:$0xff] %v275
      %286 = vst [vmem:[#allocation2 + $0x60] sm:$0xff] %v276
      %287 = vst [vmem:[#allocation2 + $0x68] sm:$0xff] %v277
      %288 = vst [vmem:[#allocation2 + $0x70] sm:$0xff] %v278
      %v289 = vld [vmem:[%s192] sm:$0xff]
      %v290 = vld [vmem:[%s192 + $0x8] sm:$0xff]
      %v291 = vld [vmem:[%s192 + $0x10] sm:$0xff]
      %v292 = vld [vmem:[%s192 + $0x18] sm:$0xff]
      %v293 = vld [vmem:[%s192 + $0x20] sm:$0xff]
      %v294 = vld [vmem:[%s192 + $0x28] sm:$0xff]
      %301 = vrot.lane.b32.xlu0 %v289, 118
      %v302 = vpop.permute.xlu0 %301
      %303 = vrot.lane.b32.xlu0 %v290, 118
      %v304 = vpop.permute.xlu0 %303
      %305 = vrot.lane.b32.xlu0 %v291, 118
      %v306 = vpop.permute.xlu0 %305
      %307 = vrot.lane.b32.xlu0 %v292, 118
      %v308 = vpop.permute.xlu0 %307
      %309 = vrot.lane.b32.xlu0 %v293, 118
      %v310 = vpop.permute.xlu0 %309
      %311 = vrot.lane.b32.xlu0 %v294, 118
      %v312 = vpop.permute.xlu0 %311
      %vm313 = vcmask 965632
      %v314 = vsel %vm313, %v302, %v304
      %v315 = vsel %vm313, %v304, %v306
      %v316 = vsel %vm313, %v306, %v308
      %v317 = vsel %vm313, %v308, %v310
      %v318 = vsel %vm313, %v310, %v312
      %324 = vst [vmem:[#allocation2 + $0x78] sm:$0xff] %v314
      %325 = vst [vmem:[#allocation2 + $0x80] sm:$0xff] %v315
      %326 = vst [vmem:[#allocation2 + $0x88] sm:$0xff] %v316
      %327 = vst [vmem:[#allocation2 + $0x90] sm:$0xff] %v317
      %328 = vst [vmem:[#allocation2 + $0x98] sm:$0xff] %v318
      %v329 = vld [vmem:[%s192] sm:$0xff]
      %v330 = vld [vmem:[%s192 + $0x8] sm:$0xff]
      %v331 = vld [vmem:[%s192 + $0x10] sm:$0xff]
      %v332 = vld [vmem:[%s192 + $0x18] sm:$0xff]
      %v333 = vld [vmem:[%s192 + $0x20] sm:$0xff]
      %v334 = vld [vmem:[%s192 + $0x28] sm:$0xff]
      %341 = vrot.lane.b32.xlu0 %v329, 117
      %v342 = vpop.permute.xlu0 %341
      %343 = vrot.lane.b32.xlu0 %v330, 117
      %v344 = vpop.permute.xlu0 %343
      %345 = vrot.lane.b32.xlu0 %v331, 117
      %v346 = vpop.permute.xlu0 %345
      %347 = vrot.lane.b32.xlu0 %v332, 117
      %v348 = vpop.permute.xlu0 %347
      %349 = vrot.lane.b32.xlu0 %v333, 117
      %v350 = vpop.permute.xlu0 %349
      %351 = vrot.lane.b32.xlu0 %v334, 117
      %v352 = vpop.permute.xlu0 %351
      %vm353 = vcmask 957440
      %v354 = vsel %vm353, %v342, %v344
      %v355 = vsel %vm353, %v344, %v346
      %v356 = vsel %vm353, %v346, %v348
      %v357 = vsel %vm353, %v348, %v350
      %v358 = vsel %vm353, %v350, %v352
      %364 = vst [vmem:[#allocation2 + $0xa0] sm:$0xff] %v354
      %365 = vst [vmem:[#allocation2 + $0xa8] sm:$0xff] %v355
      %366 = vst [vmem:[#allocation2 + $0xb0] sm:$0xff] %v356
      %367 = vst [vmem:[#allocation2 + $0xb8] sm:$0xff] %v357
      %368 = vst [vmem:[#allocation2 + $0xc0] sm:$0xff] %v358
      %v369 = vld [vmem:[%s192] sm:$0xff]
      %v370 = vld [vmem:[%s192 + $0x8] sm:$0xff]
      %v371 = vld [vmem:[%s192 + $0x10] sm:$0xff]
      %v372 = vld [vmem:[%s192 + $0x18] sm:$0xff]
      %v373 = vld [vmem:[%s192 + $0x20] sm:$0xff]
      %v374 = vld [vmem:[%s192 + $0x28] sm:$0xff]
      %381 = vrot.lane.b32.xlu0 %v369, 116
      %v382 = vpop.permute.xlu0 %381
      %383 = vrot.lane.b32.xlu0 %v370, 116
      %v384 = vpop.permute.xlu0 %383
      %385 = vrot.lane.b32.xlu0 %v371, 116
      %v386 = vpop.permute.xlu0 %385
      %387 = vrot.lane.b32.xlu0 %v372, 116
      %v388 = vpop.permute.xlu0 %387
      %389 = vrot.lane.b32.xlu0 %v373, 116
      %v390 = vpop.permute.xlu0 %389
      %391 = vrot.lane.b32.xlu0 %v374, 116
      %v392 = vpop.permute.xlu0 %391
      %vm393 = vcmask 949248
      %v394 = vsel %vm393, %v382, %v384
      %v395 = vsel %vm393, %v384, %v386
      %v396 = vsel %vm393, %v386, %v388
      %v397 = vsel %vm393, %v388, %v390
      %v398 = vsel %vm393, %v390, %v392
      %404 = vst [vmem:[#allocation2 + $0xc8] sm:$0xff] %v394
      %405 = vst [vmem:[#allocation2 + $0xd0] sm:$0xff] %v395
      %406 = vst [vmem:[#allocation2 + $0xd8] sm:$0xff] %v396
      %407 = vst [vmem:[#allocation2 + $0xe0] sm:$0xff] %v397
      %408 = vst [vmem:[#allocation2 + $0xe8] sm:$0xff] %v398
      %v409 = vld [vmem:[%s192] sm:$0xff]
      %v410 = vld [vmem:[%s192 + $0x8] sm:$0xff]
      %v411 = vld [vmem:[%s192 + $0x10] sm:$0xff]
      %v412 = vld [vmem:[%s192 + $0x18] sm:$0xff]
      %v413 = vld [vmem:[%s192 + $0x20] sm:$0xff]
      %v414 = vld [vmem:[%s192 + $0x28] sm:$0xff]
      %421 = vrot.lane.b32.xlu0 %v409, 108
      %v422 = vpop.permute.xlu0 %421
      %423 = vrot.lane.b32.xlu0 %v410, 108
      %v424 = vpop.permute.xlu0 %423
      %425 = vrot.lane.b32.xlu0 %v411, 108
      %v426 = vpop.permute.xlu0 %425
      %427 = vrot.lane.b32.xlu0 %v412, 108
      %v428 = vpop.permute.xlu0 %427
      %429 = vrot.lane.b32.xlu0 %v413, 108
      %v430 = vpop.permute.xlu0 %429
      %431 = vrot.lane.b32.xlu0 %v414, 108
      %v432 = vpop.permute.xlu0 %431
      %vm433 = vcmask 883712
      %v434 = vsel %vm433, %v422, %v424
      %v435 = vsel %vm433, %v424, %v426
      %v436 = vsel %vm433, %v426, %v428
      %v437 = vsel %vm433, %v428, %v430
      %v438 = vsel %vm433, %v430, %v432
      %444 = vst [vmem:[#allocation2 + $0xf0] sm:$0xff] %v434
      %445 = vst [vmem:[#allocation2 + $0xf8] sm:$0xff] %v435
      %446 = vst [vmem:[#allocation2 + $0x100] sm:$0xff] %v436
      %447 = vst [vmem:[#allocation2 + $0x108] sm:$0xff] %v437
      %448 = vst [vmem:[#allocation2 + $0x110] sm:$0xff] %v438
      %v449 = vld [vmem:[%s192] sm:$0xff]
      %v450 = vld [vmem:[%s192 + $0x8] sm:$0xff]
      %v451 = vld [vmem:[%s192 + $0x10] sm:$0xff]
      %v452 = vld [vmem:[%s192 + $0x18] sm:$0xff]
      %v453 = vld [vmem:[%s192 + $0x20] sm:$0xff]
      %v454 = vld [vmem:[%s192 + $0x28] sm:$0xff]
      %461 = vrot.lane.b32.xlu0 %v449, 107
      %v462 = vpop.permute.xlu0 %461
      %463 = vrot.lane.b32.xlu0 %v450, 107
      %v464 = vpop.permute.xlu0 %463
      %465 = vrot.lane.b32.xlu0 %v451, 107
      %v466 = vpop.permute.xlu0 %465
      %467 = vrot.lane.b32.xlu0 %v452, 107
      %v468 = vpop.permute.xlu0 %467
      %469 = vrot.lane.b32.xlu0 %v453, 107
      %v470 = vpop.permute.xlu0 %469
      %471 = vrot.lane.b32.xlu0 %v454, 107
      %v472 = vpop.permute.xlu0 %471
      %vm473 = vcmask 875520
      %v474 = vsel %vm473, %v462, %v464
      %v475 = vsel %vm473, %v464, %v466
      %v476 = vsel %vm473, %v466, %v468
      %v477 = vsel %vm473, %v468, %v470
      %v478 = vsel %vm473, %v470, %v472
      %484 = vst [vmem:[#allocation2 + $0x118] sm:$0xff] %v474
      %485 = vst [vmem:[#allocation2 + $0x120] sm:$0xff] %v475
      %486 = vst [vmem:[#allocation2 + $0x128] sm:$0xff] %v476
      %487 = vst [vmem:[#allocation2 + $0x130] sm:$0xff] %v477
      %488 = vst [vmem:[#allocation2 + $0x138] sm:$0xff] %v478
      %v489 = vld [vmem:[%s192] sm:$0xff]
      %v490 = vld [vmem:[%s192 + $0x8] sm:$0xff]
      %v491 = vld [vmem:[%s192 + $0x10] sm:$0xff]
      %v492 = vld [vmem:[%s192 + $0x18] sm:$0xff]
      %v493 = vld [vmem:[%s192 + $0x20] sm:$0xff]
      %v494 = vld [vmem:[%s192 + $0x28] sm:$0xff]
      %501 = vrot.lane.b32.xlu0 %v489, 106
      %v502 = vpop.permute.xlu0 %501
      %503 = vrot.lane.b32.xlu0 %v490, 106
      %v504 = vpop.permute.xlu0 %503
      %505 = vrot.lane.b32.xlu0 %v491, 106
      %v506 = vpop.permute.xlu0 %505
      %507 = vrot.lane.b32.xlu0 %v492, 106
      %v508 = vpop.permute.xlu0 %507
      %509 = vrot.lane.b32.xlu0 %v493, 106
      %v510 = vpop.permute.xlu0 %509
      %511 = vrot.lane.b32.xlu0 %v494, 106
      %v512 = vpop.permute.xlu0 %511
      %vm513 = vcmask 867328
      %v514 = vsel %vm513, %v502, %v504
      %v515 = vsel %vm513, %v504, %v506
      %v516 = vsel %vm513, %v506, %v508
      %v517 = vsel %vm513, %v508, %v510
      %v518 = vsel %vm513, %v510, %v512
      %524 = vst [vmem:[#allocation2 + $0x140] sm:$0xff] %v514
      %525 = vst [vmem:[#allocation2 + $0x148] sm:$0xff] %v515
      %526 = vst [vmem:[#allocation2 + $0x150] sm:$0xff] %v516
      %527 = vst [vmem:[#allocation2 + $0x158] sm:$0xff] %v517
      %528 = vst [vmem:[#allocation2 + $0x160] sm:$0xff] %v518
      %v529 = vld [vmem:[%s192] sm:$0xff]
      %v530 = vld [vmem:[%s192 + $0x8] sm:$0xff]
      %v531 = vld [vmem:[%s192 + $0x10] sm:$0xff]
      %v532 = vld [vmem:[%s192 + $0x18] sm:$0xff]
      %v533 = vld [vmem:[%s192 + $0x20] sm:$0xff]
      %v534 = vld [vmem:[%s192 + $0x28] sm:$0xff]
      %541 = vrot.lane.b32.xlu0 %v529, 28
      %v542 = vpop.permute.xlu0 %541
      %543 = vrot.lane.b32.xlu0 %v530, 28
      %v544 = vpop.permute.xlu0 %543
      %545 = vrot.lane.b32.xlu0 %v531, 28
      %v546 = vpop.permute.xlu0 %545
      %547 = vrot.lane.b32.xlu0 %v532, 28
      %v548 = vpop.permute.xlu0 %547
      %549 = vrot.lane.b32.xlu0 %v533, 28
      %v550 = vpop.permute.xlu0 %549
      %551 = vrot.lane.b32.xlu0 %v534, 28
      %v552 = vpop.permute.xlu0 %551
      %vm553 = vcmask 228352
      %v554 = vsel %vm553, %v542, %v544
      %v555 = vsel %vm553, %v544, %v546
      %v556 = vsel %vm553, %v546, %v548
      %v557 = vsel %vm553, %v548, %v550
      %v558 = vsel %vm553, %v550, %v552
      %564 = vst [vmem:[#allocation2 + $0x168] sm:$0xff] %v554
      %565 = vst [vmem:[#allocation2 + $0x170] sm:$0xff] %v555
      %566 = vst [vmem:[#allocation2 + $0x178] sm:$0xff] %v556
      %567 = vst [vmem:[#allocation2 + $0x180] sm:$0xff] %v557
      %568 = vst [vmem:[#allocation2 + $0x188] sm:$0xff] %v558
      %v569 = vld [vmem:[%s192] sm:$0xff]
      %v570 = vld [vmem:[%s192 + $0x8] sm:$0xff]
      %v571 = vld [vmem:[%s192 + $0x10] sm:$0xff]
      %v572 = vld [vmem:[%s192 + $0x18] sm:$0xff]
      %v573 = vld [vmem:[%s192 + $0x20] sm:$0xff]
      %v574 = vld [vmem:[%s192 + $0x28] sm:$0xff]
      %581 = vrot.lane.b32.xlu0 %v569, 27
      %v582 = vpop.permute.xlu0 %581
      %583 = vrot.lane.b32.xlu0 %v570, 27
      %v584 = vpop.permute.xlu0 %583
      %585 = vrot.lane.b32.xlu0 %v571, 27
      %v586 = vpop.permute.xlu0 %585
      %587 = vrot.lane.b32.xlu0 %v572, 27
      %v588 = vpop.permute.xlu0 %587
      %589 = vrot.lane.b32.xlu0 %v573, 27
      %v590 = vpop.permute.xlu0 %589
      %591 = vrot.lane.b32.xlu0 %v574, 27
      %v592 = vpop.permute.xlu0 %591
      %vm593 = vcmask 220160
      %v594 = vsel %vm593, %v582, %v584
      %v595 = vsel %vm593, %v584, %v586
      %v596 = vsel %vm593, %v586, %v588
      %v597 = vsel %vm593, %v588, %v590
      %v598 = vsel %vm593, %v590, %v592
      %604 = vst [vmem:[#allocation2 + $0x190] sm:$0xff] %v594
      %605 = vst [vmem:[#allocation2 + $0x198] sm:$0xff] %v595
      %606 = vst [vmem:[#allocation2 + $0x1a0] sm:$0xff] %v596
      %607 = vst [vmem:[#allocation2 + $0x1a8] sm:$0xff] %v597
      %608 = vst [vmem:[#allocation2 + $0x1b0] sm:$0xff] %v598
      %v609 = vld [vmem:[%s192] sm:$0xff]
      %v610 = vld [vmem:[%s192 + $0x8] sm:$0xff]
      %v611 = vld [vmem:[%s192 + $0x10] sm:$0xff]
      %v612 = vld [vmem:[%s192 + $0x18] sm:$0xff]
      %v613 = vld [vmem:[%s192 + $0x20] sm:$0xff]
      %v614 = vld [vmem:[%s192 + $0x28] sm:$0xff]
      %621 = vrot.lane.b32.xlu0 %v609, 26
      %v622 = vpop.permute.xlu0 %621
      %623 = vrot.lane.b32.xlu0 %v610, 26
      %v624 = vpop.permute.xlu0 %623
      %625 = vrot.lane.b32.xlu0 %v611, 26
      %v626 = vpop.permute.xlu0 %625
      %627 = vrot.lane.b32.xlu0 %v612, 26
      %v628 = vpop.permute.xlu0 %627
      %629 = vrot.lane.b32.xlu0 %v613, 26
      %v630 = vpop.permute.xlu0 %629
      %631 = vrot.lane.b32.xlu0 %v614, 26
      %v632 = vpop.permute.xlu0 %631
      %vm633 = vcmask 211968
      %v634 = vsel %vm633, %v622, %v624
      %v635 = vsel %vm633, %v624, %v626
      %v636 = vsel %vm633, %v626, %v628
      %v637 = vsel %vm633, %v628, %v630
      %v638 = vsel %vm633, %v630, %v632
      %644 = vst [vmem:[#allocation2 + $0x1b8] sm:$0xff] %v634
      %645 = vst [vmem:[#allocation2 + $0x1c0] sm:$0xff] %v635
      %646 = vst [vmem:[#allocation2 + $0x1c8] sm:$0xff] %v636
      %647 = vst [vmem:[#allocation2 + $0x1d0] sm:$0xff] %v637
      %648 = vst [vmem:[#allocation2 + $0x1d8] sm:$0xff] %v638
      %v649 = vld [vmem:[%s192] sm:$0xff]
      %v650 = vld [vmem:[%s192 + $0x8] sm:$0xff]
      %v651 = vld [vmem:[%s192 + $0x10] sm:$0xff]
      %v652 = vld [vmem:[%s192 + $0x18] sm:$0xff]
      %v653 = vld [vmem:[%s192 + $0x20] sm:$0xff]
      %v654 = vld [vmem:[%s192 + $0x28] sm:$0xff]
      %661 = vrot.lane.b32.xlu0 %v649, 18
      %v662 = vpop.permute.xlu0 %661
      %663 = vrot.lane.b32.xlu0 %v650, 18
      %v664 = vpop.permute.xlu0 %663
      %665 = vrot.lane.b32.xlu0 %v651, 18
      %v666 = vpop.permute.xlu0 %665
      %667 = vrot.lane.b32.xlu0 %v652, 18
      %v668 = vpop.permute.xlu0 %667
      %669 = vrot.lane.b32.xlu0 %v653, 18
      %v670 = vpop.permute.xlu0 %669
      %671 = vrot.lane.b32.xlu0 %v654, 18
      %v672 = vpop.permute.xlu0 %671
      %vm673 = vcmask 146432
      %v674 = vsel %vm673, %v662, %v664
      %v675 = vsel %vm673, %v664, %v666
      %v676 = vsel %vm673, %v666, %v668
      %v677 = vsel %vm673, %v668, %v670
      %v678 = vsel %vm673, %v670, %v672
      %684 = vst [vmem:[#allocation2 + $0x1e0] sm:$0xff] %v674
      %685 = vst [vmem:[#allocation2 + $0x1e8] sm:$0xff] %v675
      %686 = vst [vmem:[#allocation2 + $0x1f0] sm:$0xff] %v676
      %687 = vst [vmem:[#allocation2 + $0x1f8] sm:$0xff] %v677
      %688 = vst [vmem:[#allocation2 + $0x200] sm:$0xff] %v678
      %v689 = vld [vmem:[%s192] sm:$0xff]
      %v690 = vld [vmem:[%s192 + $0x8] sm:$0xff]
      %v691 = vld [vmem:[%s192 + $0x10] sm:$0xff]
      %v692 = vld [vmem:[%s192 + $0x18] sm:$0xff]
      %v693 = vld [vmem:[%s192 + $0x20] sm:$0xff]
      %v694 = vld [vmem:[%s192 + $0x28] sm:$0xff]
      %701 = vrot.lane.b32.xlu0 %v689, 17
      %v702 = vpop.permute.xlu0 %701
      %703 = vrot.lane.b32.xlu0 %v690, 17
      %v704 = vpop.permute.xlu0 %703
      %705 = vrot.lane.b32.xlu0 %v691, 17
      %v706 = vpop.permute.xlu0 %705
      %707 = vrot.lane.b32.xlu0 %v692, 17
      %v708 = vpop.permute.xlu0 %707
      %709 = vrot.lane.b32.xlu0 %v693, 17
      %v710 = vpop.permute.xlu0 %709
      %711 = vrot.lane.b32.xlu0 %v694, 17
      %v712 = vpop.permute.xlu0 %711
      %vm713 = vcmask 138240
      %v714 = vsel %vm713, %v702, %v704
      %v715 = vsel %vm713, %v704, %v706
      %v716 = vsel %vm713, %v706, %v708
      %v717 = vsel %vm713, %v708, %v710
      %v718 = vsel %vm713, %v710, %v712
      %724 = vst [vmem:[#allocation2 + $0x208] sm:$0xff] %v714
      %725 = vst [vmem:[#allocation2 + $0x210] sm:$0xff] %v715
      %726 = vst [vmem:[#allocation2 + $0x218] sm:$0xff] %v716
      %727 = vst [vmem:[#allocation2 + $0x220] sm:$0xff] %v717
      %728 = vst [vmem:[#allocation2 + $0x228] sm:$0xff] %v718
      %v729 = vld [vmem:[%s192] sm:$0xff]
      %v730 = vld [vmem:[%s192 + $0x8] sm:$0xff]
      %v731 = vld [vmem:[%s192 + $0x10] sm:$0xff]
      %v732 = vld [vmem:[%s192 + $0x18] sm:$0xff]
      %v733 = vld [vmem:[%s192 + $0x20] sm:$0xff]
      %v734 = vld [vmem:[%s192 + $0x28] sm:$0xff]
      %741 = vrot.lane.b32.xlu0 %v729, 16
      %v742 = vpop.permute.xlu0 %741
      %743 = vrot.lane.b32.xlu0 %v730, 16
      %v744 = vpop.permute.xlu0 %743
      %745 = vrot.lane.b32.xlu0 %v731, 16
      %v746 = vpop.permute.xlu0 %745
      %747 = vrot.lane.b32.xlu0 %v732, 16
      %v748 = vpop.permute.xlu0 %747
      %749 = vrot.lane.b32.xlu0 %v733, 16
      %v750 = vpop.permute.xlu0 %749
      %751 = vrot.lane.b32.xlu0 %v734, 16
      %v752 = vpop.permute.xlu0 %751
      %vm753 = vcmask 130048
      %v754 = vsel %vm753, %v742, %v744
      %v755 = vsel %vm753, %v744, %v746
      %v756 = vsel %vm753, %v746, %v748
      %v757 = vsel %vm753, %v748, %v750
      %v758 = vsel %vm753, %v750, %v752
      %764 = vst [vmem:[#allocation2 + $0x230] sm:$0xff] %v754
      %765 = vst [vmem:[#allocation2 + $0x238] sm:$0xff] %v755
      %766 = vst [vmem:[#allocation2 + $0x240] sm:$0xff] %v756
      %767 = vst [vmem:[#allocation2 + $0x248] sm:$0xff] %v757
      %768 = vst [vmem:[#allocation2 + $0x250] sm:$0xff] %v758
      %v769 = vld [vmem:[%s192] sm:$0xff]
      %v770 = vld [vmem:[%s192 + $0x8] sm:$0xff]
      %v771 = vld [vmem:[%s192 + $0x10] sm:$0xff]
      %v772 = vld [vmem:[%s192 + $0x18] sm:$0xff]
      %v773 = vld [vmem:[%s192 + $0x20] sm:$0xff]
      %v774 = vld [vmem:[%s192 + $0x28] sm:$0xff]
      %781 = vrot.lane.b32.xlu0 %v769, 8
      %v782 = vpop.permute.xlu0 %781
      %783 = vrot.lane.b32.xlu0 %v770, 8
      %v784 = vpop.permute.xlu0 %783
      %785 = vrot.lane.b32.xlu0 %v771, 8
      %v786 = vpop.permute.xlu0 %785
      %787 = vrot.lane.b32.xlu0 %v772, 8
      %v788 = vpop.permute.xlu0 %787
      %789 = vrot.lane.b32.xlu0 %v773, 8
      %v790 = vpop.permute.xlu0 %789
      %791 = vrot.lane.b32.xlu0 %v774, 8
      %v792 = vpop.permute.xlu0 %791
      %vm793 = vcmask 64512
      %v794 = vsel %vm793, %v782, %v784
      %v795 = vsel %vm793, %v784, %v786
      %v796 = vsel %vm793, %v786, %v788
      %v797 = vsel %vm793, %v788, %v790
      %v798 = vsel %vm793, %v790, %v792
      %804 = vst [vmem:[#allocation2 + $0x258] sm:$0xff] %v794
      %805 = vst [vmem:[#allocation2 + $0x260] sm:$0xff] %v795
      %806 = vst [vmem:[#allocation2 + $0x268] sm:$0xff] %v796
      %807 = vst [vmem:[#allocation2 + $0x270] sm:$0xff] %v797
      %808 = vst [vmem:[#allocation2 + $0x278] sm:$0xff] %v798
      %v809 = vld [vmem:[%s192] sm:$0xff]
      %v810 = vld [vmem:[%s192 + $0x8] sm:$0xff]
      %v811 = vld [vmem:[%s192 + $0x10] sm:$0xff]
      %v812 = vld [vmem:[%s192 + $0x18] sm:$0xff]
      %v813 = vld [vmem:[%s192 + $0x20] sm:$0xff]
      %v814 = vld [vmem:[%s192 + $0x28] sm:$0xff]
      %821 = vrot.lane.b32.xlu0 %v809, 7
      %v822 = vpop.permute.xlu0 %821
      %823 = vrot.lane.b32.xlu0 %v810, 7
      %v824 = vpop.permute.xlu0 %823
      %825 = vrot.lane.b32.xlu0 %v811, 7
      %v826 = vpop.permute.xlu0 %825
      %827 = vrot.lane.b32.xlu0 %v812, 7
      %v828 = vpop.permute.xlu0 %827
      %829 = vrot.lane.b32.xlu0 %v813, 7
      %v830 = vpop.permute.xlu0 %829
      %831 = vrot.lane.b32.xlu0 %v814, 7
      %v832 = vpop.permute.xlu0 %831
      %vm833 = vcmask 56320
      %v834 = vsel %vm833, %v822, %v824
      %v835 = vsel %vm833, %v824, %v826
      %v836 = vsel %vm833, %v826, %v828
      %v837 = vsel %vm833, %v828, %v830
      %v838 = vsel %vm833, %v830, %v832
      %844 = vst [vmem:[#allocation2 + $0x280] sm:$0xff] %v834
      %845 = vst [vmem:[#allocation2 + $0x288] sm:$0xff] %v835
      %846 = vst [vmem:[#allocation2 + $0x290] sm:$0xff] %v836
      %847 = vst [vmem:[#allocation2 + $0x298] sm:$0xff] %v837
      %848 = vst [vmem:[#allocation2 + $0x2a0] sm:$0xff] %v838
      %v849 = vld [vmem:[%s192] sm:$0xff]
      %v850 = vld [vmem:[%s192 + $0x8] sm:$0xff]
      %v851 = vld [vmem:[%s192 + $0x10] sm:$0xff]
      %v852 = vld [vmem:[%s192 + $0x18] sm:$0xff]
      %v853 = vld [vmem:[%s192 + $0x20] sm:$0xff]
      %v854 = vld [vmem:[%s192 + $0x28] sm:$0xff]
      %861 = vrot.lane.b32.xlu0 %v849, 6
      %v862 = vpop.permute.xlu0 %861
      %863 = vrot.lane.b32.xlu0 %v850, 6
      %v864 = vpop.permute.xlu0 %863
      %865 = vrot.lane.b32.xlu0 %v851, 6
      %v866 = vpop.permute.xlu0 %865
      %867 = vrot.lane.b32.xlu0 %v852, 6
      %v868 = vpop.permute.xlu0 %867
      %869 = vrot.lane.b32.xlu0 %v853, 6
      %v870 = vpop.permute.xlu0 %869
      %871 = vrot.lane.b32.xlu0 %v854, 6
      %v872 = vpop.permute.xlu0 %871
      %vm873 = vcmask 48128
      %v874 = vsel %vm873, %v862, %v864
      %v875 = vsel %vm873, %v864, %v866
      %v876 = vsel %vm873, %v866, %v868
      %v877 = vsel %vm873, %v868, %v870
      %v878 = vsel %vm873, %v870, %v872
      %884 = vst [vmem:[#allocation2 + $0x2a8] sm:$0xff] %v874
      %885 = vst [vmem:[#allocation2 + $0x2b0] sm:$0xff] %v875
      %886 = vst [vmem:[#allocation2 + $0x2b8] sm:$0xff] %v876
      %887 = vst [vmem:[#allocation2 + $0x2c0] sm:$0xff] %v877
      %888 = vst [vmem:[#allocation2 + $0x2c8] sm:$0xff] %v878
      %v889 = vld [vmem:[%s192 + $0x8] sm:$0xff]
      %v890 = vld [vmem:[%s192 + $0x10] sm:$0xff]
      %v891 = vld [vmem:[%s192 + $0x18] sm:$0xff]
      %v892 = vld [vmem:[%s192 + $0x20] sm:$0xff]
      %v893 = vld [vmem:[%s192 + $0x28] sm:$0xff]
      %v894 = vld [vmem:[%s192 + $0x30] sm:$0xff]
      %901 = vrot.lane.b32.xlu0 %v889, 56
      %v902 = vpop.permute.xlu0 %901
      %903 = vrot.lane.b32.xlu0 %v890, 56
      %v904 = vpop.permute.xlu0 %903
      %905 = vrot.lane.b32.xlu0 %v891, 56
      %v906 = vpop.permute.xlu0 %905
      %907 = vrot.lane.b32.xlu0 %v892, 56
      %v908 = vpop.permute.xlu0 %907
      %909 = vrot.lane.b32.xlu0 %v893, 56
      %v910 = vpop.permute.xlu0 %909
      %911 = vrot.lane.b32.xlu0 %v894, 56
      %v912 = vpop.permute.xlu0 %911
      %vm913 = vcmask 457728
      %v914 = vsel %vm913, %v902, %v904
      %v915 = vsel %vm913, %v904, %v906
      %v916 = vsel %vm913, %v906, %v908
      %v917 = vsel %vm913, %v908, %v910
      %v918 = vsel %vm913, %v910, %v912
      %924 = vst [vmem:[#allocation2 + $0x2d0] sm:$0xff] %v914
      %925 = vst [vmem:[#allocation2 + $0x2d8] sm:$0xff] %v915
      %926 = vst [vmem:[#allocation2 + $0x2e0] sm:$0xff] %v916
      %927 = vst [vmem:[#allocation2 + $0x2e8] sm:$0xff] %v917
      %928 = vst [vmem:[#allocation2 + $0x2f0] sm:$0xff] %v918
      %v929 = vld [vmem:[%s192 + $0x8] sm:$0xff]
      %v930 = vld [vmem:[%s192 + $0x10] sm:$0xff]
      %v931 = vld [vmem:[%s192 + $0x18] sm:$0xff]
      %v932 = vld [vmem:[%s192 + $0x20] sm:$0xff]
      %v933 = vld [vmem:[%s192 + $0x28] sm:$0xff]
      %v934 = vld [vmem:[%s192 + $0x30] sm:$0xff]
      %941 = vrot.lane.b32.xlu0 %v929, 55
      %v942 = vpop.permute.xlu0 %941
      %943 = vrot.lane.b32.xlu0 %v930, 55
      %v944 = vpop.permute.xlu0 %943
      %945 = vrot.lane.b32.xlu0 %v931, 55
      %v946 = vpop.permute.xlu0 %945
      %947 = vrot.lane.b32.xlu0 %v932, 55
      %v948 = vpop.permute.xlu0 %947
      %949 = vrot.lane.b32.xlu0 %v933, 55
      %v950 = vpop.permute.xlu0 %949
      %951 = vrot.lane.b32.xlu0 %v934, 55
      %v952 = vpop.permute.xlu0 %951
      %vm953 = vcmask 449536
      %v954 = vsel %vm953, %v942, %v944
      %v955 = vsel %vm953, %v944, %v946
      %v956 = vsel %vm953, %v946, %v948
      %v957 = vsel %vm953, %v948, %v950
      %v958 = vsel %vm953, %v950, %v952
      %964 = vst [vmem:[#allocation2 + $0x2f8] sm:$0xff] %v954
      %965 = vst [vmem:[#allocation2 + $0x300] sm:$0xff] %v955
      %966 = vst [vmem:[#allocation2 + $0x308] sm:$0xff] %v956
      %967 = vst [vmem:[#allocation2 + $0x310] sm:$0xff] %v957
      %968 = vst [vmem:[#allocation2 + $0x318] sm:$0xff] %v958
      %v969 = vld [vmem:[%s192 + $0x8] sm:$0xff]
      %v970 = vld [vmem:[%s192 + $0x10] sm:$0xff]
      %v971 = vld [vmem:[%s192 + $0x18] sm:$0xff]
      %v972 = vld [vmem:[%s192 + $0x20] sm:$0xff]
      %v973 = vld [vmem:[%s192 + $0x28] sm:$0xff]
      %v974 = vld [vmem:[%s192 + $0x30] sm:$0xff]
      %981 = vrot.lane.b32.xlu0 %v969, 54
      %v982 = vpop.permute.xlu0 %981
      %983 = vrot.lane.b32.xlu0 %v970, 54
      %v984 = vpop.permute.xlu0 %983
      %985 = vrot.lane.b32.xlu0 %v971, 54
      %v986 = vpop.permute.xlu0 %985
      %987 = vrot.lane.b32.xlu0 %v972, 54
      %v988 = vpop.permute.xlu0 %987
      %989 = vrot.lane.b32.xlu0 %v973, 54
      %v990 = vpop.permute.xlu0 %989
      %991 = vrot.lane.b32.xlu0 %v974, 54
      %v992 = vpop.permute.xlu0 %991
      %vm993 = vcmask 441344
      %v994 = vsel %vm993, %v982, %v984
      %v995 = vsel %vm993, %v984, %v986
      %v996 = vsel %vm993, %v986, %v988
      %v997 = vsel %vm993, %v988, %v990
      %v998 = vsel %vm993, %v990, %v992
      %1004 = vst [vmem:[#allocation2 + $0x320] sm:$0xff] %v994
      %1005 = vst [vmem:[#allocation2 + $0x328] sm:$0xff] %v995
      %1006 = vst [vmem:[#allocation2 + $0x330] sm:$0xff] %v996
      %1007 = vst [vmem:[#allocation2 + $0x338] sm:$0xff] %v997
      %1008 = vst [vmem:[#allocation2 + $0x340] sm:$0xff] %v998
      %v1009 = vld [vmem:[%s192 + $0x8] sm:$0xff]
      %v1010 = vld [vmem:[%s192 + $0x10] sm:$0xff]
      %v1011 = vld [vmem:[%s192 + $0x18] sm:$0xff]
      %v1012 = vld [vmem:[%s192 + $0x20] sm:$0xff]
      %v1013 = vld [vmem:[%s192 + $0x28] sm:$0xff]
      %v1014 = vld [vmem:[%s192 + $0x30] sm:$0xff]
      %1021 = vrot.lane.b32.xlu0 %v1009, 46
      %v1022 = vpop.permute.xlu0 %1021
      %1023 = vrot.lane.b32.xlu0 %v1010, 46
      %v1024 = vpop.permute.xlu0 %1023
      %1025 = vrot.lane.b32.xlu0 %v1011, 46
      %v1026 = vpop.permute.xlu0 %1025
      %1027 = vrot.lane.b32.xlu0 %v1012, 46
      %v1028 = vpop.permute.xlu0 %1027
      %1029 = vrot.lane.b32.xlu0 %v1013, 46
      %v1030 = vpop.permute.xlu0 %1029
      %1031 = vrot.lane.b32.xlu0 %v1014, 46
      %v1032 = vpop.permute.xlu0 %1031
      %vm1033 = vcmask 375808
      %v1034 = vsel %vm1033, %v1022, %v1024
      %v1035 = vsel %vm1033, %v1024, %v1026
      %v1036 = vsel %vm1033, %v1026, %v1028
      %v1037 = vsel %vm1033, %v1028, %v1030
      %v1038 = vsel %vm1033, %v1030, %v1032
      %1044 = vst [vmem:[#allocation2 + $0x348] sm:$0xff] %v1034
      %1045 = vst [vmem:[#allocation2 + $0x350] sm:$0xff] %v1035
      %1046 = vst [vmem:[#allocation2 + $0x358] sm:$0xff] %v1036
      %1047 = vst [vmem:[#allocation2 + $0x360] sm:$0xff] %v1037
      %1048 = vst [vmem:[#allocation2 + $0x368] sm:$0xff] %v1038
      %v1049 = vld [vmem:[%s192 + $0x8] sm:$0xff]
      %v1050 = vld [vmem:[%s192 + $0x10] sm:$0xff]
      %v1051 = vld [vmem:[%s192 + $0x18] sm:$0xff]
      %v1052 = vld [vmem:[%s192 + $0x20] sm:$0xff]
      %v1053 = vld [vmem:[%s192 + $0x28] sm:$0xff]
      %v1054 = vld [vmem:[%s192 + $0x30] sm:$0xff]
      %1061 = vrot.lane.b32.xlu0 %v1049, 45
      %v1062 = vpop.permute.xlu0 %1061
      %1063 = vrot.lane.b32.xlu0 %v1050, 45
      %v1064 = vpop.permute.xlu0 %1063
      %1065 = vrot.lane.b32.xlu0 %v1051, 45
      %v1066 = vpop.permute.xlu0 %1065
      %1067 = vrot.lane.b32.xlu0 %v1052, 45
      %v1068 = vpop.permute.xlu0 %1067
      %1069 = vrot.lane.b32.xlu0 %v1053, 45
      %v1070 = vpop.permute.xlu0 %1069
      %1071 = vrot.lane.b32.xlu0 %v1054, 45
      %v1072 = vpop.permute.xlu0 %1071
      %vm1073 = vcmask 367616
      %v1074 = vsel %vm1073, %v1062, %v1064
      %v1075 = vsel %vm1073, %v1064, %v1066
      %v1076 = vsel %vm1073, %v1066, %v1068
      %v1077 = vsel %vm1073, %v1068, %v1070
      %v1078 = vsel %vm1073, %v1070, %v1072
      %1084 = vst [vmem:[#allocation2 + $0x370] sm:$0xff] %v1074
      %1085 = vst [vmem:[#allocation2 + $0x378] sm:$0xff] %v1075
      %1086 = vst [vmem:[#allocation2 + $0x380] sm:$0xff] %v1076
      %1087 = vst [vmem:[#allocation2 + $0x388] sm:$0xff] %v1077
      %1088 = vst [vmem:[#allocation2 + $0x390] sm:$0xff] %v1078
      %v1089 = vld [vmem:[%s192 + $0x8] sm:$0xff]
      %v1090 = vld [vmem:[%s192 + $0x10] sm:$0xff]
      %v1091 = vld [vmem:[%s192 + $0x18] sm:$0xff]
      %v1092 = vld [vmem:[%s192 + $0x20] sm:$0xff]
      %v1093 = vld [vmem:[%s192 + $0x28] sm:$0xff]
      %v1094 = vld [vmem:[%s192 + $0x30] sm:$0xff]
      %1101 = vrot.lane.b32.xlu0 %v1089, 44
      %v1102 = vpop.permute.xlu0 %1101
      %1103 = vrot.lane.b32.xlu0 %v1090, 44
      %v1104 = vpop.permute.xlu0 %1103
      %1105 = vrot.lane.b32.xlu0 %v1091, 44
      %v1106 = vpop.permute.xlu0 %1105
      %1107 = vrot.lane.b32.xlu0 %v1092, 44
      %v1108 = vpop.permute.xlu0 %1107
      %1109 = vrot.lane.b32.xlu0 %v1093, 44
      %v1110 = vpop.permute.xlu0 %1109
      %1111 = vrot.lane.b32.xlu0 %v1094, 44
      %v1112 = vpop.permute.xlu0 %1111
      %vm1113 = vcmask 359424
      %v1114 = vsel %vm1113, %v1102, %v1104
      %v1115 = vsel %vm1113, %v1104, %v1106
      %v1116 = vsel %vm1113, %v1106, %v1108
      %v1117 = vsel %vm1113, %v1108, %v1110
      %v1118 = vsel %vm1113, %v1110, %v1112
      %1124 = vst [vmem:[#allocation2 + $0x398] sm:$0xff] %v1114
      %1125 = vst [vmem:[#allocation2 + $0x3a0] sm:$0xff] %v1115
      %1126 = vst [vmem:[#allocation2 + $0x3a8] sm:$0xff] %v1116
      %1127 = vst [vmem:[#allocation2 + $0x3b0] sm:$0xff] %v1117
      %1128 = vst [vmem:[#allocation2 + $0x3b8] sm:$0xff] %v1118
      %v1129 = vld [vmem:[%s192 + $0x8] sm:$0xff]
      %v1130 = vld [vmem:[%s192 + $0x10] sm:$0xff]
      %v1131 = vld [vmem:[%s192 + $0x18] sm:$0xff]
      %v1132 = vld [vmem:[%s192 + $0x20] sm:$0xff]
      %v1133 = vld [vmem:[%s192 + $0x28] sm:$0xff]
      %v1134 = vld [vmem:[%s192 + $0x30] sm:$0xff]
      %1141 = vrot.lane.b32.xlu0 %v1129, 36
      %v1142 = vpop.permute.xlu0 %1141
      %1143 = vrot.lane.b32.xlu0 %v1130, 36
      %v1144 = vpop.permute.xlu0 %1143
      %1145 = vrot.lane.b32.xlu0 %v1131, 36
      %v1146 = vpop.permute.xlu0 %1145
      %1147 = vrot.lane.b32.xlu0 %v1132, 36
      %v1148 = vpop.permute.xlu0 %1147
      %1149 = vrot.lane.b32.xlu0 %v1133, 36
      %v1150 = vpop.permute.xlu0 %1149
      %1151 = vrot.lane.b32.xlu0 %v1134, 36
      %v1152 = vpop.permute.xlu0 %1151
      %vm1153 = vcmask 293888
      %v1154 = vsel %vm1153, %v1142, %v1144
      %v1155 = vsel %vm1153, %v1144, %v1146
      %v1156 = vsel %vm1153, %v1146, %v1148
      %v1157 = vsel %vm1153, %v1148, %v1150
      %v1158 = vsel %vm1153, %v1150, %v1152
      %1164 = vst [vmem:[#allocation2 + $0x3c0] sm:$0xff] %v1154
      %1165 = vst [vmem:[#allocation2 + $0x3c8] sm:$0xff] %v1155
      %1166 = vst [vmem:[#allocation2 + $0x3d0] sm:$0xff] %v1156
      %1167 = vst [vmem:[#allocation2 + $0x3d8] sm:$0xff] %v1157
      %1168 = vst [vmem:[#allocation2 + $0x3e0] sm:$0xff] %v1158
      %v1169 = vld [vmem:[%s192 + $0x8] sm:$0xff]
      %v1170 = vld [vmem:[%s192 + $0x10] sm:$0xff]
      %v1171 = vld [vmem:[%s192 + $0x18] sm:$0xff]
      %v1172 = vld [vmem:[%s192 + $0x20] sm:$0xff]
      %v1173 = vld [vmem:[%s192 + $0x28] sm:$0xff]
      %v1174 = vld [vmem:[%s192 + $0x30] sm:$0xff]
      %1181 = vrot.lane.b32.xlu0 %v1169, 35
      %v1182 = vpop.permute.xlu0 %1181
      %1183 = vrot.lane.b32.xlu0 %v1170, 35
      %v1184 = vpop.permute.xlu0 %1183
      %1185 = vrot.lane.b32.xlu0 %v1171, 35
      %v1186 = vpop.permute.xlu0 %1185
      %1187 = vrot.lane.b32.xlu0 %v1172, 35
      %v1188 = vpop.permute.xlu0 %1187
      %1189 = vrot.lane.b32.xlu0 %v1173, 35
      %v1190 = vpop.permute.xlu0 %1189
      %1191 = vrot.lane.b32.xlu0 %v1174, 35
      %v1192 = vpop.permute.xlu0 %1191
      %vm1193 = vcmask 285696
      %v1194 = vsel %vm1193, %v1182, %v1184
      %v1195 = vsel %vm1193, %v1184, %v1186
      %v1196 = vsel %vm1193, %v1186, %v1188
      %v1197 = vsel %vm1193, %v1188, %v1190
      %v1198 = vsel %vm1193, %v1190, %v1192
      %1204 = vst [vmem:[#allocation2 + $0x3e8] sm:$0xff] %v1194
      %1205 = vst [vmem:[#allocation2 + $0x3f0] sm:$0xff] %v1195
      %1206 = vst [vmem:[#allocation2 + $0x3f8] sm:$0xff] %v1196
      %1207 = vst [vmem:[#allocation2 + $0x400] sm:$0xff] %v1197
      %1208 = vst [vmem:[#allocation2 + $0x408] sm:$0xff] %v1198
      %v1209 = vld [vmem:[%s192 + $0x8] sm:$0xff]
      %v1210 = vld [vmem:[%s192 + $0x10] sm:$0xff]
      %v1211 = vld [vmem:[%s192 + $0x18] sm:$0xff]
      %v1212 = vld [vmem:[%s192 + $0x20] sm:$0xff]
      %v1213 = vld [vmem:[%s192 + $0x28] sm:$0xff]
      %v1214 = vld [vmem:[%s192 + $0x30] sm:$0xff]
      %1221 = vrot.lane.b32.xlu0 %v1209, 34
      %v1222 = vpop.permute.xlu0 %1221
      %1223 = vrot.lane.b32.xlu0 %v1210, 34
      %v1224 = vpop.permute.xlu0 %1223
      %1225 = vrot.lane.b32.xlu0 %v1211, 34
      %v1226 = vpop.permute.xlu0 %1225
      %1227 = vrot.lane.b32.xlu0 %v1212, 34
      %v1228 = vpop.permute.xlu0 %1227
      %1229 = vrot.lane.b32.xlu0 %v1213, 34
      %v1230 = vpop.permute.xlu0 %1229
      %1231 = vrot.lane.b32.xlu0 %v1214, 34
      %v1232 = vpop.permute.xlu0 %1231
      %vm1233 = vcmask 277504
      %v1234 = vsel %vm1233, %v1222, %v1224
      %v1235 = vsel %vm1233, %v1224, %v1226
      %v1236 = vsel %vm1233, %v1226, %v1228
      %v1237 = vsel %vm1233, %v1228, %v1230
      %v1238 = vsel %vm1233, %v1230, %v1232
      %1244 = vst [vmem:[#allocation2 + $0x410] sm:$0xff] %v1234
      %1245 = vst [vmem:[#allocation2 + $0x418] sm:$0xff] %v1235
      %1246 = vst [vmem:[#allocation2 + $0x420] sm:$0xff] %v1236
      %1247 = vst [vmem:[#allocation2 + $0x428] sm:$0xff] %v1237
      %1248 = vst [vmem:[#allocation2 + $0x430] sm:$0xff] %v1238
      %v1249 = vld [vmem:[%s1] sm:$0xff]
      %v1250 = vld [vmem:[%s1 + $0x8] sm:$0xff]
      %v1251 = vld [vmem:[%s1 + $0x10] sm:$0xff]
      %v1252 = vld [vmem:[%s1 + $0x18] sm:$0xff]
      %v1253 = vld [vmem:[#allocation2] sm:$0xff]
      %v1254 = vld [vmem:[#allocation2 + $0x8] sm:$0xff]
      %v1255 = vld [vmem:[#allocation2 + $0x10] sm:$0xff]
      %v1256 = vld [vmem:[#allocation2 + $0x18] sm:$0xff]
      %v1257 = vld [vmem:[#allocation2 + $0x20] sm:$0xff]
      %v1258 = vld [vmem:[#allocation2 + $0x28] sm:$0xff]
      %v1259 = vld [vmem:[#allocation2 + $0x30] sm:$0xff]
      %v1260 = vld [vmem:[#allocation2 + $0x38] sm:$0xff]
      %v1261 = vld [vmem:[#allocation2 + $0x40] sm:$0xff]
      %v1262 = vld [vmem:[#allocation2 + $0x48] sm:$0xff]
      %v1263 = vld [vmem:[#allocation2 + $0x50] sm:$0xff]
      %v1264 = vld [vmem:[#allocation2 + $0x58] sm:$0xff]
      %v1265 = vld [vmem:[#allocation2 + $0x60] sm:$0xff]
      %v1266 = vld [vmem:[#allocation2 + $0x68] sm:$0xff]
      %v1267 = vld [vmem:[#allocation2 + $0x70] sm:$0xff]
      %v1268 = vld [vmem:[#allocation2 + $0x78] sm:$0xff]
      %v1269 = vld [vmem:[#allocation2 + $0x80] sm:$0xff]
      %v1270 = vld [vmem:[#allocation2 + $0x88] sm:$0xff]
      %v1271 = vld [vmem:[#allocation2 + $0x90] sm:$0xff]
      %v1272 = vld [vmem:[#allocation2 + $0x98] sm:$0xff]
      %v1273 = vld [vmem:[#allocation2 + $0xa0] sm:$0xff]
      %v1274 = vld [vmem:[#allocation2 + $0xa8] sm:$0xff]
      %v1275 = vld [vmem:[#allocation2 + $0xb0] sm:$0xff]
      %v1276 = vld [vmem:[#allocation2 + $0xb8] sm:$0xff]
      %v1277 = vld [vmem:[#allocation2 + $0xc0] sm:$0xff]
      %v1278 = vld [vmem:[#allocation2 + $0xc8] sm:$0xff]
      %v1279 = vld [vmem:[#allocation2 + $0xd0] sm:$0xff]
      %v1280 = vld [vmem:[#allocation2 + $0xd8] sm:$0xff]
      %v1281 = vld [vmem:[#allocation2 + $0xe0] sm:$0xff]
      %v1282 = vld [vmem:[#allocation2 + $0xe8] sm:$0xff]
      %v1283 = vld [vmem:[#allocation2 + $0xf0] sm:$0xff]
      %v1284 = vld [vmem:[#allocation2 + $0xf8] sm:$0xff]
      %v1285 = vld [vmem:[#allocation2 + $0x100] sm:$0xff]
      %v1286 = vld [vmem:[#allocation2 + $0x108] sm:$0xff]
      %v1287 = vld [vmem:[#allocation2 + $0x110] sm:$0xff]
      %v1288 = vld [vmem:[#allocation2 + $0x118] sm:$0xff]
      %v1289 = vld [vmem:[#allocation2 + $0x120] sm:$0xff]
      %v1290 = vld [vmem:[#allocation2 + $0x128] sm:$0xff]
      %v1291 = vld [vmem:[#allocation2 + $0x130] sm:$0xff]
      %v1292 = vld [vmem:[#allocation2 + $0x138] sm:$0xff]
      %v1293 = vld [vmem:[#allocation2 + $0x140] sm:$0xff]
      %v1294 = vld [vmem:[#allocation2 + $0x148] sm:$0xff]
      %v1295 = vld [vmem:[#allocation2 + $0x150] sm:$0xff]
      %v1296 = vld [vmem:[#allocation2 + $0x158] sm:$0xff]
      %v1297 = vld [vmem:[#allocation2 + $0x160] sm:$0xff]
      %v1298 = vld [vmem:[#allocation2 + $0x168] sm:$0xff]
      %v1299 = vld [vmem:[#allocation2 + $0x170] sm:$0xff]
      %v1300 = vld [vmem:[#allocation2 + $0x178] sm:$0xff]
      %v1301 = vld [vmem:[#allocation2 + $0x180] sm:$0xff]
      %v1302 = vld [vmem:[#allocation2 + $0x188] sm:$0xff]
      %v1303 = vld [vmem:[#allocation2 + $0x190] sm:$0xff]
      %v1304 = vld [vmem:[#allocation2 + $0x198] sm:$0xff]
      %v1305 = vld [vmem:[#allocation2 + $0x1a0] sm:$0xff]
      %v1306 = vld [vmem:[#allocation2 + $0x1a8] sm:$0xff]
      %v1307 = vld [vmem:[#allocation2 + $0x1b0] sm:$0xff]
      %v1308 = vld [vmem:[#allocation2 + $0x1b8] sm:$0xff]
      %v1309 = vld [vmem:[#allocation2 + $0x1c0] sm:$0xff]
      %v1310 = vld [vmem:[#allocation2 + $0x1c8] sm:$0xff]
      %v1311 = vld [vmem:[#allocation2 + $0x1d0] sm:$0xff]
      %v1312 = vld [vmem:[#allocation2 + $0x1d8] sm:$0xff]
      %v1313 = vld [vmem:[#allocation2 + $0x1e0] sm:$0xff]
      %v1314 = vld [vmem:[#allocation2 + $0x1e8] sm:$0xff]
      %v1315 = vld [vmem:[#allocation2 + $0x1f0] sm:$0xff]
      %v1316 = vld [vmem:[#allocation2 + $0x1f8] sm:$0xff]
      %v1317 = vld [vmem:[#allocation2 + $0x200] sm:$0xff]
      %v1318 = vld [vmem:[#allocation2 + $0x208] sm:$0xff]
      %v1319 = vld [vmem:[#allocation2 + $0x210] sm:$0xff]
      %v1320 = vld [vmem:[#allocation2 + $0x218] sm:$0xff]
      %v1321 = vld [vmem:[#allocation2 + $0x220] sm:$0xff]
      %v1322 = vld [vmem:[#allocation2 + $0x228] sm:$0xff]
      %v1323 = vld [vmem:[#allocation2 + $0x230] sm:$0xff]
      %v1324 = vld [vmem:[#allocation2 + $0x238] sm:$0xff]
      %v1325 = vld [vmem:[#allocation2 + $0x240] sm:$0xff]
      %v1326 = vld [vmem:[#allocation2 + $0x248] sm:$0xff]
      %v1327 = vld [vmem:[#allocation2 + $0x250] sm:$0xff]
      %v1328 = vld [vmem:[#allocation2 + $0x258] sm:$0xff]
      %v1329 = vld [vmem:[#allocation2 + $0x260] sm:$0xff]
      %v1330 = vld [vmem:[#allocation2 + $0x268] sm:$0xff]
      %v1331 = vld [vmem:[#allocation2 + $0x270] sm:$0xff]
      %v1332 = vld [vmem:[#allocation2 + $0x278] sm:$0xff]
      %v1333 = vld [vmem:[#allocation2 + $0x280] sm:$0xff]
      %v1334 = vld [vmem:[#allocation2 + $0x288] sm:$0xff]
      %v1335 = vld [vmem:[#allocation2 + $0x290] sm:$0xff]
      %v1336 = vld [vmem:[#allocation2 + $0x298] sm:$0xff]
      %v1337 = vld [vmem:[#allocation2 + $0x2a0] sm:$0xff]
      %v1338 = vld [vmem:[#allocation2 + $0x2a8] sm:$0xff]
      %v1339 = vld [vmem:[#allocation2 + $0x2b0] sm:$0xff]
      %v1340 = vld [vmem:[#allocation2 + $0x2b8] sm:$0xff]
      %v1341 = vld [vmem:[#allocation2 + $0x2c0] sm:$0xff]
      %v1342 = vld [vmem:[#allocation2 + $0x2c8] sm:$0xff]
      %v1343 = vld [vmem:[#allocation2 + $0x2d0] sm:$0xff]
      %v1344 = vld [vmem:[#allocation2 + $0x2d8] sm:$0xff]
      %v1345 = vld [vmem:[#allocation2 + $0x2e0] sm:$0xff]
      %v1346 = vld [vmem:[#allocation2 + $0x2e8] sm:$0xff]
      %v1347 = vld [vmem:[#allocation2 + $0x2f0] sm:$0xff]
      %v1348 = vld [vmem:[#allocation2 + $0x2f8] sm:$0xff]
      %v1349 = vld [vmem:[#allocation2 + $0x300] sm:$0xff]
      %v1350 = vld [vmem:[#allocation2 + $0x308] sm:$0xff]
      %v1351 = vld [vmem:[#allocation2 + $0x310] sm:$0xff]
      %v1352 = vld [vmem:[#allocation2 + $0x318] sm:$0xff]
      %v1353 = vld [vmem:[#allocation2 + $0x320] sm:$0xff]
      %v1354 = vld [vmem:[#allocation2 + $0x328] sm:$0xff]
      %v1355 = vld [vmem:[#allocation2 + $0x330] sm:$0xff]
      %v1356 = vld [vmem:[#allocation2 + $0x338] sm:$0xff]
      %v1357 = vld [vmem:[#allocation2 + $0x340] sm:$0xff]
      %v1358 = vld [vmem:[#allocation2 + $0x348] sm:$0xff]
      %v1359 = vld [vmem:[#allocation2 + $0x350] sm:$0xff]
      %v1360 = vld [vmem:[#allocation2 + $0x358] sm:$0xff]
      %v1361 = vld [vmem:[#allocation2 + $0x360] sm:$0xff]
      %v1362 = vld [vmem:[#allocation2 + $0x368] sm:$0xff]
      %v1363 = vld [vmem:[#allocation2 + $0x370] sm:$0xff]
      %v1364 = vld [vmem:[#allocation2 + $0x378] sm:$0xff]
      %v1365 = vld [vmem:[#allocation2 + $0x380] sm:$0xff]
      %v1366 = vld [vmem:[#allocation2 + $0x388] sm:$0xff]
      %v1367 = vld [vmem:[#allocation2 + $0x390] sm:$0xff]
      %v1368 = vld [vmem:[#allocation2 + $0x398] sm:$0xff]
      %v1369 = vld [vmem:[#allocation2 + $0x3a0] sm:$0xff]
      %v1370 = vld [vmem:[#allocation2 + $0x3a8] sm:$0xff]
      %v1371 = vld [vmem:[#allocation2 + $0x3b0] sm:$0xff]
      %v1372 = vld [vmem:[#allocation2 + $0x3b8] sm:$0xff]
      %v1373 = vld [vmem:[#allocation2 + $0x3c0] sm:$0xff]
      %v1374 = vld [vmem:[#allocation2 + $0x3c8] sm:$0xff]
      %v1375 = vld [vmem:[#allocation2 + $0x3d0] sm:$0xff]
      %v1376 = vld [vmem:[#allocation2 + $0x3d8] sm:$0xff]
      %v1377 = vld [vmem:[#allocation2 + $0x3e0] sm:$0xff]
      %v1378 = vld [vmem:[#allocation2 + $0x3e8] sm:$0xff]
      %v1379 = vld [vmem:[#allocation2 + $0x3f0] sm:$0xff]
      %v1380 = vld [vmem:[#allocation2 + $0x3f8] sm:$0xff]
      %v1381 = vld [vmem:[#allocation2 + $0x400] sm:$0xff]
      %v1382 = vld [vmem:[#allocation2 + $0x408] sm:$0xff]
      %v1383 = vld [vmem:[#allocation2 + $0x410] sm:$0xff]
      %v1384 = vld [vmem:[#allocation2 + $0x418] sm:$0xff]
      %v1385 = vld [vmem:[#allocation2 + $0x420] sm:$0xff]
      %v1386 = vld [vmem:[#allocation2 + $0x428] sm:$0xff]
      %v1387 = vld [vmem:[#allocation2 + $0x430] sm:$0xff]
      %v1388 = vpack.c.bf16 %v1258, %v1253
      %v1389 = vpack.c.bf16 %v1259, %v1254
      %v1390 = vpack.c.bf16 %v1260, %v1255
      %v1391 = vpack.c.bf16 %v1261, %v1256
      %v1392 = vpack.c.bf16 %v1262, %v1257
      %v1393 = vpack.c.bf16 %v1268, %v1263
      %v1394 = vpack.c.bf16 %v1269, %v1264
      %v1395 = vpack.c.bf16 %v1270, %v1265
      %v1396 = vpack.c.bf16 %v1271, %v1266
      %v1397 = vpack.c.bf16 %v1272, %v1267
      %v1398 = vpack.c.bf16 %v1278, %v1273
      %v1399 = vpack.c.bf16 %v1279, %v1274
      %v1400 = vpack.c.bf16 %v1280, %v1275
      %v1401 = vpack.c.bf16 %v1281, %v1276
      %v1402 = vpack.c.bf16 %v1282, %v1277
      %v1403 = vpack.c.bf16 %v1288, %v1283
      %v1404 = vpack.c.bf16 %v1289, %v1284
      %v1405 = vpack.c.bf16 %v1290, %v1285
      %v1406 = vpack.c.bf16 %v1291, %v1286
      %v1407 = vpack.c.bf16 %v1292, %v1287
      %v1408 = vpack.c.bf16 %v1298, %v1293
      %v1409 = vpack.c.bf16 %v1299, %v1294
      %v1410 = vpack.c.bf16 %v1300, %v1295
      %v1411 = vpack.c.bf16 %v1301, %v1296
      %v1412 = vpack.c.bf16 %v1302, %v1297
      %v1413 = vpack.c.bf16 %v1308, %v1303
      %v1414 = vpack.c.bf16 %v1309, %v1304
      %v1415 = vpack.c.bf16 %v1310, %v1305
      %v1416 = vpack.c.bf16 %v1311, %v1306
      %v1417 = vpack.c.bf16 %v1312, %v1307
      %v1418 = vpack.c.bf16 %v1318, %v1313
      %v1419 = vpack.c.bf16 %v1319, %v1314
      %v1420 = vpack.c.bf16 %v1320, %v1315
      %v1421 = vpack.c.bf16 %v1321, %v1316
      %v1422 = vpack.c.bf16 %v1322, %v1317
      %v1423 = vpack.c.bf16 %v1328, %v1323
      %v1424 = vpack.c.bf16 %v1329, %v1324
      %v1425 = vpack.c.bf16 %v1330, %v1325
      %v1426 = vpack.c.bf16 %v1331, %v1326
      %v1427 = vpack.c.bf16 %v1332, %v1327
      %v1428 = vpack.c.bf16 %v1338, %v1333
      %v1429 = vpack.c.bf16 %v1339, %v1334
      %v1430 = vpack.c.bf16 %v1340, %v1335
      %v1431 = vpack.c.bf16 %v1341, %v1336
      %v1432 = vpack.c.bf16 %v1342, %v1337
      %v1433 = vpack.c.bf16 %v1348, %v1343
      %v1434 = vpack.c.bf16 %v1349, %v1344
      %v1435 = vpack.c.bf16 %v1350, %v1345
      %v1436 = vpack.c.bf16 %v1351, %v1346
      %v1437 = vpack.c.bf16 %v1352, %v1347
      %v1438 = vpack.c.bf16 %v1358, %v1353
      %v1439 = vpack.c.bf16 %v1359, %v1354
      %v1440 = vpack.c.bf16 %v1360, %v1355
      %v1441 = vpack.c.bf16 %v1361, %v1356
      %v1442 = vpack.c.bf16 %v1362, %v1357
      %v1443 = vpack.c.bf16 %v1368, %v1363
      %v1444 = vpack.c.bf16 %v1369, %v1364
      %v1445 = vpack.c.bf16 %v1370, %v1365
      %v1446 = vpack.c.bf16 %v1371, %v1366
      %v1447 = vpack.c.bf16 %v1372, %v1367
      %v1448 = vpack.c.bf16 %v1378, %v1373
      %v1449 = vpack.c.bf16 %v1379, %v1374
      %v1450 = vpack.c.bf16 %v1380, %v1375
      %v1451 = vpack.c.bf16 %v1381, %v1376
      %v1452 = vpack.c.bf16 %v1382, %v1377
      %v1453 = vpack.c.bf16 %v1383, %v1383
      %v1454 = vpack.c.bf16 %v1384, %v1384
      %v1455 = vpack.c.bf16 %v1385, %v1385
      %v1456 = vpack.c.bf16 %v1386, %v1386
      %v1457 = vpack.c.bf16 %v1387, %v1387
      %v1458 = vld [vmem:[%s2] sm:$0xff]
      %v1459 = vld [vmem:[%s2 + $0x8] sm:$0xff]
      %v1460 = vld [vmem:[%s2 + $0x10] sm:$0xff]
      %v1461 = vld [vmem:[%s2 + $0x18] sm:$0xff]
      %1463 = vset.pattern.permute.xlu0 0
      %1464 = vperm.xlu0 %1463, %v1458
      %v1465 = vpop.permute.xlu0 %1464
      %1468 = vset.pattern.permute.xlu0 0
      %1469 = vperm.xlu0 %1468, %v1459
      %v1470 = vpop.permute.xlu0 %1469
      %1473 = vset.pattern.permute.xlu0 0
      %1474 = vperm.xlu0 %1473, %v1460
      %v1475 = vpop.permute.xlu0 %1474
      %1478 = vset.pattern.permute.xlu0 0
      %1479 = vperm.xlu0 %1478, %v1461
      %v1480 = vpop.permute.xlu0 %1479
      %v1486 = vunpack.c.l.b16 %v1249
      %v1487 = vunpack.c.h.b16 %v1249
      %v1488 = vunpack.c.l.b16 %v1250
      %v1489 = vunpack.c.h.b16 %v1250
      %v1490 = vunpack.c.l.b16 %v1251
      %v1491 = vunpack.c.h.b16 %v1251
      %v1492 = vunpack.c.l.b16 %v1252
      %v1493 = vunpack.c.h.b16 %v1252
      %v1494 = vpack.c.b16 %v1488, %v1486
      %v1495 = vpack.c.b16 %v1489, %v1487
      %v1496 = vpack.c.b16 %v1492, %v1490
      %v1497 = vpack.c.b16 %v1493, %v1491
      %vm1500 = vcmask 719872
      %v1502 = vsel %vm1500, %v1495, 0
      %v1505 = vsel %vm1500, %v1497, 0
      %vm1507 = vcmask 1043456
      %v1509 = vsel %vm1507, %v1453, 0
      %v1512 = vsel %vm1507, %v1454, 0
      %v1515 = vsel %vm1507, %v1455, 0
      %v1518 = vsel %vm1507, %v1456, 0
      %v1521 = vsel %vm1507, %v1457, 0
      %1523 = vmatprep.subr.bf16.mxu0 %v1389
      %1524 = vmatpush1.bf16.msra.mxu0 %v1388
      %1525 = vmatprep.subr.bf16.mxu0 %v1394
      %1526 = vmatpush1.bf16.msra.mxu0 %v1393
      %1527 = vmatprep.subr.bf16.mxu0 %v1399
      %1528 = vmatpush1.bf16.msra.mxu0 %v1398
      %1529 = vmatprep.subr.bf16.mxu0 %v1404
      %1530 = vmatpush1.bf16.msra.mxu0 %v1403
      %1531 = vmatprep.subr.bf16.mxu0 %v1409
      %1532 = vmatpush1.bf16.msra.mxu0 %v1408
      %1533 = vmatprep.subr.bf16.mxu0 %v1414
      %1534 = vmatpush1.bf16.msra.mxu0 %v1413
      %1535 = vmatprep.subr.bf16.mxu0 %v1419
      %1536 = vmatpush1.bf16.msra.mxu0 %v1418
      %1537 = vmatprep.subr.bf16.mxu0 %v1424
      %1538 = vmatpush1.bf16.msra.mxu0 %v1423
      %1539 = vmatprep.subr.bf16.mxu0 %v1429
      %1540 = vmatpush1.bf16.msra.mxu0 %v1428
      %1541 = vmatprep.subr.bf16.mxu0 %v1434
      %1542 = vmatpush1.bf16.msra.mxu0 %v1433
      %1543 = vmatprep.subr.bf16.mxu0 %v1439
      %1544 = vmatpush1.bf16.msra.mxu0 %v1438
      %1545 = vmatprep.subr.bf16.mxu0 %v1444
      %1546 = vmatpush1.bf16.msra.mxu0 %v1443
      %1547 = vmatprep.subr.bf16.mxu0 %v1449
      %1548 = vmatpush1.bf16.msra.mxu0 %v1448
      %1549 = vmatprep.subr.bf16.mxu0 %v1512
      %1550 = vmatpush1.bf16.msra.mxu0 %v1509
      %1551 = vmatprep.subr.bf16.mxu0 0
      %1552 = vmatpush1.bf16.msra.mxu0 0
      %1553 = vmatprep.subr.bf16.mxu0 0
      %1554 = vmatpush1.bf16.msra.mxu0 0
      %1555 = vmatprep.mubr.bf16.mxu0 %v1502
      %1556 = vmatmul.mubr.bf16.gmra.mrb[0].mxu0 %v1494
      %v1557 = vpop.f32.mrb[0].mxu0
      %v1558 = vadd.f32 %v1465, %v1557
      %v1559 = vpop.f32.mrb[0].mxu0
      %v1560 = vadd.f32 %v1465, %v1559
      %v1561 = vpop.f32.mrb[0].mxu0
      %v1562 = vadd.f32 %v1470, %v1561
      %v1563 = vpop.f32.mrb[0].mxu0
      %v1564 = vadd.f32 %v1470, %v1563
      %1565 = vmatprep.mubr.bf16.mxu0 %v1505
      %1566 = vmatmul.mubr.bf16.gmra.mrb[0].mxu0 %v1496
      %v1567 = vpop.f32.mrb[0].mxu0
      %v1568 = vadd.f32 %v1475, %v1567
      %v1569 = vpop.f32.mrb[0].mxu0
      %v1570 = vadd.f32 %v1475, %v1569
      %v1571 = vpop.f32.mrb[0].mxu0
      %v1572 = vadd.f32 %v1480, %v1571
      %v1573 = vpop.f32.mrb[0].mxu0
      %v1574 = vadd.f32 %v1480, %v1573
      %1575 = vdwg.mxu0
      %1576 = vmatprep.subr.bf16.mxu0 %v1391
      %1577 = vmatpush1.bf16.msra.mxu0 %v1390
      %1578 = vmatprep.subr.bf16.mxu0 %v1396
      %1579 = vmatpush1.bf16.msra.mxu0 %v1395
      %1580 = vmatprep.subr.bf16.mxu0 %v1401
      %1581 = vmatpush1.bf16.msra.mxu0 %v1400
      %1582 = vmatprep.subr.bf16.mxu0 %v1406
      %1583 = vmatpush1.bf16.msra.mxu0 %v1405
      %1584 = vmatprep.subr.bf16.mxu0 %v1411
      %1585 = vmatpush1.bf16.msra.mxu0 %v1410
      %1586 = vmatprep.subr.bf16.mxu0 %v1416
      %1587 = vmatpush1.bf16.msra.mxu0 %v1415
      %1588 = vmatprep.subr.bf16.mxu0 %v1421
      %1589 = vmatpush1.bf16.msra.mxu0 %v1420
      %1590 = vmatprep.subr.bf16.mxu0 %v1426
      %1591 = vmatpush1.bf16.msra.mxu0 %v1425
      %1592 = vmatprep.subr.bf16.mxu0 %v1431
      %1593 = vmatpush1.bf16.msra.mxu0 %v1430
      %1594 = vmatprep.subr.bf16.mxu0 %v1436
      %1595 = vmatpush1.bf16.msra.mxu0 %v1435
      %1596 = vmatprep.subr.bf16.mxu0 %v1441
      %1597 = vmatpush1.bf16.msra.mxu0 %v1440
      %1598 = vmatprep.subr.bf16.mxu0 %v1446
      %1599 = vmatpush1.bf16.msra.mxu0 %v1445
      %1600 = vmatprep.subr.bf16.mxu0 %v1451
      %1601 = vmatpush1.bf16.msra.mxu0 %v1450
      %1602 = vmatprep.subr.bf16.mxu0 %v1518
      %1603 = vmatpush1.bf16.msra.mxu0 %v1515
      %1604 = vmatprep.subr.bf16.mxu0 0
      %1605 = vmatpush1.bf16.msra.mxu0 0
      %1606 = vmatprep.subr.bf16.mxu0 0
      %1607 = vmatpush1.bf16.msra.mxu0 0
      %1608 = vmatprep.mubr.bf16.mxu0 %v1502
      %1609 = vmatmul.mubr.bf16.gmra.mrb[0].mxu0 %v1494
      %v1610 = vpop.f32.mrb[0].mxu0
      %v1611 = vadd.f32 %v1465, %v1610
      %v1612 = vpop.f32.mrb[0].mxu0
      %v1613 = vadd.f32 %v1465, %v1612
      %v1614 = vpop.f32.mrb[0].mxu0
      %v1615 = vadd.f32 %v1470, %v1614
      %v1616 = vpop.f32.mrb[0].mxu0
      %v1617 = vadd.f32 %v1470, %v1616
      %1618 = vmatprep.mubr.bf16.mxu0 %v1505
      %1619 = vmatmul.mubr.bf16.gmra.mrb[0].mxu0 %v1496
      %v1620 = vpop.f32.mrb[0].mxu0
      %v1621 = vadd.f32 %v1475, %v1620
      %v1622 = vpop.f32.mrb[0].mxu0
      %v1623 = vadd.f32 %v1475, %v1622
      %v1624 = vpop.f32.mrb[0].mxu0
      %v1625 = vadd.f32 %v1480, %v1624
      %v1626 = vpop.f32.mrb[0].mxu0
      %v1627 = vadd.f32 %v1480, %v1626
      %1628 = vdwg.mxu0
      %1629 = vmatprep.subr.bf16.mxu0 0
      %1630 = vmatpush1.bf16.msra.mxu0 %v1392
      %1631 = vmatprep.subr.bf16.mxu0 0
      %1632 = vmatpush1.bf16.msra.mxu0 %v1397
      %1633 = vmatprep.subr.bf16.mxu0 0
      %1634 = vmatpush1.bf16.msra.mxu0 %v1402
      %1635 = vmatprep.subr.bf16.mxu0 0
      %1636 = vmatpush1.bf16.msra.mxu0 %v1407
      %1637 = vmatprep.subr.bf16.mxu0 0
      %1638 = vmatpush1.bf16.msra.mxu0 %v1412
      %1639 = vmatprep.subr.bf16.mxu0 0
      %1640 = vmatpush1.bf16.msra.mxu0 %v1417
      %1641 = vmatprep.subr.bf16.mxu0 0
      %1642 = vmatpush1.bf16.msra.mxu0 %v1422
      %1643 = vmatprep.subr.bf16.mxu0 0
      %1644 = vmatpush1.bf16.msra.mxu0 %v1427
      %1645 = vmatprep.subr.bf16.mxu0 0
      %1646 = vmatpush1.bf16.msra.mxu0 %v1432
      %1647 = vmatprep.subr.bf16.mxu0 0
      %1648 = vmatpush1.bf16.msra.mxu0 %v1437
      %1649 = vmatprep.subr.bf16.mxu0 0
      %1650 = vmatpush1.bf16.msra.mxu0 %v1442
      %1651 = vmatprep.subr.bf16.mxu0 0
      %1652 = vmatpush1.bf16.msra.mxu0 %v1447
      %1653 = vmatprep.subr.bf16.mxu0 0
      %1654 = vmatpush1.bf16.msra.mxu0 %v1452
      %1655 = vmatprep.subr.bf16.mxu0 0
      %1656 = vmatpush1.bf16.msra.mxu0 %v1521
      %1657 = vmatprep.subr.bf16.mxu0 0
      %1658 = vmatpush1.bf16.msra.mxu0 0
      %1659 = vmatprep.subr.bf16.mxu0 0
      %1660 = vmatpush1.bf16.msra.mxu0 0
      %1661 = vmatprep.mubr.bf16.mxu0 %v1502
      %1662 = vmatmul.mubr.bf16.gmra.mrb[0].mxu0 %v1494
      %v1663 = vpop.f32.mrb[0].mxu0
      %v1664 = vadd.f32 %v1465, %v1663
      %v1665 = vpop.f32.mrb[0].mxu0
      %v1666 = vpop.f32.mrb[0].mxu0
      %v1667 = vadd.f32 %v1470, %v1666
      %v1668 = vpop.f32.mrb[0].mxu0
      %1669 = vmatprep.mubr.bf16.mxu0 %v1505
      %1670 = vmatmul.mubr.bf16.gmra.mrb[0].mxu0 %v1496
      %v1671 = vpop.f32.mrb[0].mxu0
      %v1672 = vadd.f32 %v1475, %v1671
      %v1673 = vpop.f32.mrb[0].mxu0
      %v1674 = vpop.f32.mrb[0].mxu0
      %v1675 = vadd.f32 %v1480, %v1674
      %v1676 = vpop.f32.mrb[0].mxu0
      %1677 = vdwg.mxu0
      %vm1678 = vcmp.ge.f32.partialorder %v1558, 0.0
      %vm1679 = vcmp.ge.f32.partialorder %v1560, 0.0
      %vm1680 = vcmp.ge.f32.partialorder %v1611, 0.0
      %vm1681 = vcmp.ge.f32.partialorder %v1613, 0.0
      %vm1682 = vcmp.ge.f32.partialorder %v1664, 0.0
      %vm1683 = vcmp.ge.f32.partialorder %v1562, 0.0
      %vm1684 = vcmp.ge.f32.partialorder %v1564, 0.0
      %vm1685 = vcmp.ge.f32.partialorder %v1615, 0.0
      %vm1686 = vcmp.ge.f32.partialorder %v1617, 0.0
      %vm1687 = vcmp.ge.f32.partialorder %v1667, 0.0
      %vm1688 = vcmp.ge.f32.partialorder %v1568, 0.0
      %vm1689 = vcmp.ge.f32.partialorder %v1570, 0.0
      %vm1690 = vcmp.ge.f32.partialorder %v1621, 0.0
      %vm1691 = vcmp.ge.f32.partialorder %v1623, 0.0
      %vm1692 = vcmp.ge.f32.partialorder %v1672, 0.0
      %vm1693 = vcmp.ge.f32.partialorder %v1572, 0.0
      %vm1694 = vcmp.ge.f32.partialorder %v1574, 0.0
      %vm1695 = vcmp.ge.f32.partialorder %v1625, 0.0
      %vm1696 = vcmp.ge.f32.partialorder %v1627, 0.0
      %vm1697 = vcmp.ge.f32.partialorder %v1675, 0.0
      %v1698 = vmul.f32 %v1558, 0.01
      %v1699 = vmul.f32 %v1560, 0.01
      %v1700 = vmul.f32 %v1611, 0.01
      %v1701 = vmul.f32 %v1613, 0.01
      %v1702 = vmul.f32 %v1664, 0.01
      %v1703 = vmul.f32 %v1562, 0.01
      %v1704 = vmul.f32 %v1564, 0.01
      %v1705 = vmul.f32 %v1615, 0.01
      %v1706 = vmul.f32 %v1617, 0.01
      %v1707 = vmul.f32 %v1667, 0.01
      %v1708 = vmul.f32 %v1568, 0.01
      %v1709 = vmul.f32 %v1570, 0.01
      %v1710 = vmul.f32 %v1621, 0.01
      %v1711 = vmul.f32 %v1623, 0.01
      %v1712 = vmul.f32 %v1672, 0.01
      %v1713 = vmul.f32 %v1572, 0.01
      %v1714 = vmul.f32 %v1574, 0.01
      %v1715 = vmul.f32 %v1625, 0.01
      %v1716 = vmul.f32 %v1627, 0.01
      %v1717 = vmul.f32 %v1675, 0.01
      %v1718 = vsel %vm1678, %v1558, %v1698
      %v1719 = vsel %vm1679, %v1560, %v1699
      %v1720 = vsel %vm1680, %v1611, %v1700
      %v1721 = vsel %vm1681, %v1613, %v1701
      %v1722 = vsel %vm1682, %v1664, %v1702
      %v1723 = vsel %vm1683, %v1562, %v1703
      %v1724 = vsel %vm1684, %v1564, %v1704
      %v1725 = vsel %vm1685, %v1615, %v1705
      %v1726 = vsel %vm1686, %v1617, %v1706
      %v1727 = vsel %vm1687, %v1667, %v1707
      %v1728 = vsel %vm1688, %v1568, %v1708
      %v1729 = vsel %vm1689, %v1570, %v1709
      %v1730 = vsel %vm1690, %v1621, %v1710
      %v1731 = vsel %vm1691, %v1623, %v1711
      %v1732 = vsel %vm1692, %v1672, %v1712
      %v1733 = vsel %vm1693, %v1572, %v1713
      %v1734 = vsel %vm1694, %v1574, %v1714
      %v1735 = vsel %vm1695, %v1625, %v1715
      %v1736 = vsel %vm1696, %v1627, %v1716
      %v1737 = vsel %vm1697, %v1675, %v1717
      %v1738 = vld [vmem:[%s3] sm:$0x1f]
      %v1740 = vlaneseq
      %v1741 = vshrl.u32 %v1740, 7
      %v1742 = vsub.s32 0, %v1741
      %v1743 = vrot.slane %v1738, %v1742
      %v1744 = vlaneseq
      %v1745 = vshrl.u32 %v1744, 7
      %v1746 = vsub.s32 1, %v1745
      %v1747 = vrot.slane %v1738, %v1746
      %v1748 = vlaneseq
      %v1749 = vshrl.u32 %v1748, 7
      %v1750 = vsub.s32 2, %v1749
      %v1751 = vrot.slane %v1738, %v1750
      %v1752 = vlaneseq
      %v1753 = vshrl.u32 %v1752, 7
      %v1754 = vsub.s32 3, %v1753
      %v1755 = vrot.slane %v1738, %v1754
      %v1756 = vlaneseq
      %v1757 = vshrl.u32 %v1756, 7
      %v1758 = vsub.s32 4, %v1757
      %v1759 = vrot.slane %v1738, %v1758
      %v1765 = vmul.f32 %v1718, %v1743
      %v1766 = vmul.f32 %v1719, %v1747
      %v1767 = vmul.f32 %v1720, %v1751
      %v1768 = vmul.f32 %v1721, %v1755
      %v1769 = vmul.f32 %v1722, %v1759
      %v1770 = vmul.f32 %v1723, %v1743
      %v1771 = vmul.f32 %v1724, %v1747
      %v1772 = vmul.f32 %v1725, %v1751
      %v1773 = vmul.f32 %v1726, %v1755
      %v1774 = vmul.f32 %v1727, %v1759
      %v1775 = vmul.f32 %v1728, %v1743
      %v1776 = vmul.f32 %v1729, %v1747
      %v1777 = vmul.f32 %v1730, %v1751
      %v1778 = vmul.f32 %v1731, %v1755
      %v1779 = vmul.f32 %v1732, %v1759
      %v1780 = vmul.f32 %v1733, %v1743
      %v1781 = vmul.f32 %v1734, %v1747
      %v1782 = vmul.f32 %v1735, %v1751
      %v1783 = vmul.f32 %v1736, %v1755
      %v1784 = vmul.f32 %v1737, %v1759
      %1785 = vst [vmem:[%s197] sm:$0xff] %v1765
      %1786 = vst [vmem:[%s197 + $0x8] sm:$0xff] %v1766
      %1787 = vst [vmem:[%s197 + $0x10] sm:$0xff] %v1767
      %1788 = vst [vmem:[%s197 + $0x18] sm:$0xff] %v1768
      %1789 = vst [vmem:[%s197 + $0x20] sm:$0xff] %v1769
      %1790 = vst [vmem:[%s197 + $0x28] sm:$0xff] %v1770
      %1791 = vst [vmem:[%s197 + $0x30] sm:$0xff] %v1771
      %1792 = vst [vmem:[%s197 + $0x38] sm:$0xff] %v1772
      %1793 = vst [vmem:[%s197 + $0x40] sm:$0xff] %v1773
      %1794 = vst [vmem:[%s197 + $0x48] sm:$0xff] %v1774
      %1795 = vst [vmem:[%s197 + $0x50] sm:$0xff] %v1775
      %1796 = vst [vmem:[%s197 + $0x58] sm:$0xff] %v1776
      %1797 = vst [vmem:[%s197 + $0x60] sm:$0xff] %v1777
      %1798 = vst [vmem:[%s197 + $0x68] sm:$0xff] %v1778
      %1799 = vst [vmem:[%s197 + $0x70] sm:$0xff] %v1779
      %1800 = vst [vmem:[%s197 + $0x78] sm:$0xff] %v1780
      %1801 = vst [vmem:[%s197 + $0x80] sm:$0xff] %v1781
      %1802 = vst [vmem:[%s197 + $0x88] sm:$0xff] %v1782
      %1803 = vst [vmem:[%s197 + $0x90] sm:$0xff] %v1783
      %1804 = vst [vmem:[%s197 + $0x98] sm:$0xff] %v1784
      %p1805 = scmp.lt.s32.totalorder %s15, 1
      %s1806 = scalar_select %p1805, %s15, 1
      %s1807 = smul.addr %s1806, 20
      %s1808 = smul.addr %s1807, 8
      %s1809 = scalar_lea.vmem %s4, %s1808
      // Predicated region
      $region37: #{upblock_forward.3} parent=35 // pred_check
        %p1810 = pneg %p122
      $region38: #{upblock_forward.3} parent=35 // pred_check_branch
        %1812 = sbr.rel (%p1810) target = $region40
      $region39: #{upblock_forward.3} parent=35 // pred_region
        _
      $region40: #{upblock_forward.3} parent=35 // pred_fallthru
        _
    $region36: #{upblock_forward.3} parent=5 // pred_fallthru
      _
    %p1813 = scmp.le.s32.totalorder 2, %s10
    // Predicated region
    $region41: #{upblock_forward.3} parent=5 // pred_check
      %p1814 = pneg %p1813
    $region42: #{upblock_forward.3} parent=5 // pred_check_branch
      %1816 = sbr.rel (%p1814) target = $region44
    $region43: #{upblock_forward.3} parent=5 // pred_region
      %s1817 = ssub.s32 %s10, 2
      // Predicated region
      $region45: #{upblock_forward.3} parent=43 // pred_check
        %p1818 = pneg %p128
      $region46: #{upblock_forward.3} parent=43 // pred_check_branch
        %1820 = sbr.rel (%p1818) target = $region48
      $region47: #{upblock_forward.3} parent=43 // pred_region
        %p1821 = scmp.lt.s32.totalorder %s16, 1
        %s1822 = scalar_select %p1821, %s16, 1
        %s1823 = smul.addr %s1822, 20
        %s1824 = smul.addr %s1823, 8
        %s1825 = scalar_lea.vmem %s4, %s1824
      $region48: #{upblock_forward.3} parent=43 // pred_fallthru
        _
    $region44: #{upblock_forward.3} parent=5 // pred_fallthru
      _
  $region6: #{upblock_forward.3} parent=0 // loop_footer
    %s14 = sadd.s32 1, %s10
  $region7: #{upblock_forward.3} parent=0 // loop_footer_branch
    %9 = sbr.rel target = $region3
  $region8: #{upblock_forward.3} parent=0 // loop_exit
    _

// kernel: upblock_forward.4
$region0: #{upblock_forward.4}
  #allocation0 [shape = 'u32[]', space=smem, size = 0x4, offset = 0x4, fixed_abs, tag = 'smem constant byte address 0x4 - core index']
  #allocation1 [shape = 'u32[144,128]{1,0:T(1,128)}', space=vmem, size = 0x12000, scoped, tag = 'internal scratch']
  #allocation2 [shape = 'f32[216,3328]{1,0:T(8,128)}', space=vmem, size = 0x2be000, scoped, tag = 'scratch operand']
  %s0 = inlined_call_operand.vmem [shape: f32[2,8,4014], index: 0, kind: input, shape index: {}]
  %s1 = inlined_call_operand.vmem [shape: bf16[8,216], index: 1, kind: input, shape index: {}]
  %s2 = inlined_call_operand.vmem [shape: f32[8,1], index: 2, kind: input, shape index: {}]
  %s3 = inlined_call_operand.vmem [shape: f32[1,3328], index: 3, kind: input, shape index: {}]
  %s4 = inlined_call_operand.vmem [shape: f32[2,8,3328], index: 4, kind: output, shape index: {}]
  %s5 = sld [smem:[#allocation0]]
  $region49: #{upblock_forward.4} parent=0
    _
  %s7 = ssub.s32 1, %s5
  %s8 = scalar_select 0, %s7, %s5
  loop: start=0, step=1, limit=4
  $region2: #{upblock_forward.4} parent=0 // loop_pre_header
    _
  $region3: #{upblock_forward.4} parent=0 // loop_header
    %s10 = sphi 0, %s14
    %p11 = scmp.ge.s32.totalorder %s10, 4
    %s20 = sphi 0, %s22
    %s23 = sphi 0, %s20
    %s24 = sphi 0, %s23
    %s40 = sphi 0, %s24
    %s44 = sphi 0, %s44
    %s46 = sphi 0, %s44
    %s47 = sphi 0, %s46
    %s61 = sphi 0, %s47
    %s65 = sphi 0, %s65
    %s67 = sphi 0, %s65
    %s68 = sphi 0, %s67
    %s82 = sphi 0, %s68
    %s86 = sphi 0, %s86
    %s88 = sphi 0, %s86
    %s89 = sphi 0, %s88
    %s103 = sphi 0, %s89
    %s109 = sphi 0, %s111
    %s112 = sphi 0, %s109
    %s113 = sphi 0, %s112
    %s129 = sphi 0, %s113
  $region4: #{upblock_forward.4} parent=0 // loop_header_branch
    %13 = sbr.rel (%p11) target = $region8
  $region5: #{upblock_forward.4} parent=0 // loop_body
    %s15 = ssub.s32 %s10, 1
    %s16 = ssub.s32 %s10, 2
    %s17 = sadd.s32 %s10, 1
    %s18 = ssub.s32 %s10, %s17
    %p19 = scmp.eq.s32.totalorder %s18, 0
    %s21 = sadd.s32 %s20, 1
    %s22 = scalar_select %p19, %s20, %s21
    %p25 = pneg %p19
    %p26 = scmp.eq.s32.totalorder %s10, 1
    %p27 = por %p25, %p26
    %p28 = scmp.ne.s32.totalorder %s20, %s23
    %p29 = scmp.eq.s32.totalorder %s10, 0
    %p30 = por %p28, %p29
    %p31 = scmp.ne.s32.totalorder %s20, %s23
    %p32 = scmp.eq.s32.totalorder %s15, 1
    %p33 = por %p31, %p32
    %p34 = scmp.ne.s32.totalorder %s23, %s24
    %p35 = scmp.eq.s32.totalorder %s15, 0
    %p36 = por %p34, %p35
    %p37 = scmp.ne.s32.totalorder %s23, %s24
    %p38 = scmp.eq.s32.totalorder %s16, 1
    %p39 = por %p37, %p38
    %p41 = scmp.ne.s32.totalorder %s24, %s40
    %p42 = scmp.eq.s32.totalorder %s16, 0
    %p43 = por %p41, %p42
    %s45 = sadd.s32 %s44, 1
    %p48 = scmp.eq.s32.totalorder %s10, 1
    %p49 = scmp.ne.s32.totalorder %s44, %s46
    %p50 = scmp.eq.s32.totalorder %s10, 0
    %p51 = por %p49, %p50
    %p52 = scmp.ne.s32.totalorder %s44, %s46
    %p53 = scmp.eq.s32.totalorder %s15, 1
    %p54 = por %p52, %p53
    %p55 = scmp.ne.s32.totalorder %s46, %s47
    %p56 = scmp.eq.s32.totalorder %s15, 0
    %p57 = por %p55, %p56
    %p58 = scmp.ne.s32.totalorder %s46, %s47
    %p59 = scmp.eq.s32.totalorder %s16, 1
    %p60 = por %p58, %p59
    %p62 = scmp.ne.s32.totalorder %s47, %s61
    %p63 = scmp.eq.s32.totalorder %s16, 0
    %p64 = por %p62, %p63
    %s66 = sadd.s32 %s65, 1
    %p69 = scmp.eq.s32.totalorder %s10, 1
    %p70 = scmp.ne.s32.totalorder %s65, %s67
    %p71 = scmp.eq.s32.totalorder %s10, 0
    %p72 = por %p70, %p71
    %p73 = scmp.ne.s32.totalorder %s65, %s67
    %p74 = scmp.eq.s32.totalorder %s15, 1
    %p75 = por %p73, %p74
    %p76 = scmp.ne.s32.totalorder %s67, %s68
    %p77 = scmp.eq.s32.totalorder %s15, 0
    %p78 = por %p76, %p77
    %p79 = scmp.ne.s32.totalorder %s67, %s68
    %p80 = scmp.eq.s32.totalorder %s16, 1
    %p81 = por %p79, %p80
    %p83 = scmp.ne.s32.totalorder %s68, %s82
    %p84 = scmp.eq.s32.totalorder %s16, 0
    %p85 = por %p83, %p84
    %s87 = sadd.s32 %s86, 1
    %p90 = scmp.eq.s32.totalorder %s10, 1
    %p91 = scmp.ne.s32.totalorder %s86, %s88
    %p92 = scmp.eq.s32.totalorder %s10, 0
    %p93 = por %p91, %p92
    %p94 = scmp.ne.s32.totalorder %s86, %s88
    %p95 = scmp.eq.s32.totalorder %s15, 1
    %p96 = por %p94, %p95
    %p97 = scmp.ne.s32.totalorder %s88, %s89
    %p98 = scmp.eq.s32.totalorder %s15, 0
    %p99 = por %p97, %p98
    %p100 = scmp.ne.s32.totalorder %s88, %s89
    %p101 = scmp.eq.s32.totalorder %s16, 1
    %p102 = por %p100, %p101
    %p104 = scmp.ne.s32.totalorder %s89, %s103
    %p105 = scmp.eq.s32.totalorder %s16, 0
    %p106 = por %p104, %p105
    %s107 = ssub.s32 %s10, %s17
    %p108 = scmp.eq.s32.totalorder %s107, 0
    %s110 = sadd.s32 %s109, 1
    %s111 = scalar_select %p108, %s109, %s110
    %p114 = pneg %p108
    %p115 = scmp.eq.s32.totalorder %s10, 1
    %p116 = por %p114, %p115
    %p117 = scmp.ne.s32.totalorder %s109, %s112
    %p118 = scmp.eq.s32.totalorder %s10, 0
    %p119 = por %p117, %p118
    %p120 = scmp.ne.s32.totalorder %s109, %s112
    %p121 = scmp.eq.s32.totalorder %s15, 1
    %p122 = por %p120, %p121
    %p123 = scmp.ne.s32.totalorder %s112, %s113
    %p124 = scmp.eq.s32.totalorder %s15, 0
    %p125 = por %p123, %p124
    %p126 = scmp.ne.s32.totalorder %s112, %s113
    %p127 = scmp.eq.s32.totalorder %s16, 1
    %p128 = por %p126, %p127
    %p130 = scmp.ne.s32.totalorder %s113, %s129
    %p131 = scmp.eq.s32.totalorder %s16, 0
    %p132 = por %p130, %p131
    %p133 = scmp.le.s32.totalorder 1, %s10
    %p134 = scmp.lt.s32.totalorder %s10, 3
    %p135 = pnand %p133, %p134
    %p136 = pneg %p135
    // Predicated region
    $region9: #{upblock_forward.4} parent=5 // pred_check
      _
    $region10: #{upblock_forward.4} parent=5 // pred_check_branch
      %138 = sbr.rel (%p135) target = $region12
    $region11: #{upblock_forward.4} parent=5 // pred_region
      %s139 = ssub.s32 %s10, 1
      // Predicated region
      $region13: #{upblock_forward.4} parent=11 // pred_check
        %p140 = pneg %p57
      $region14: #{upblock_forward.4} parent=11 // pred_check_branch
        %142 = sbr.rel (%p140) target = $region16
      $region15: #{upblock_forward.4} parent=11 // pred_region
        _
      $region16: #{upblock_forward.4} parent=11 // pred_fallthru
        _
      // Predicated region
      $region17: #{upblock_forward.4} parent=11 // pred_check
        %p143 = pneg %p78
      $region18: #{upblock_forward.4} parent=11 // pred_check_branch
        %145 = sbr.rel (%p143) target = $region20
      $region19: #{upblock_forward.4} parent=11 // pred_region
        _
      $region20: #{upblock_forward.4} parent=11 // pred_fallthru
        _
      // Predicated region
      $region21: #{upblock_forward.4} parent=11 // pred_check
        %p146 = pneg %p99
      $region22: #{upblock_forward.4} parent=11 // pred_check_branch
        %148 = sbr.rel (%p146) target = $region24
      $region23: #{upblock_forward.4} parent=11 // pred_region
        _
      $region24: #{upblock_forward.4} parent=11 // pred_fallthru
        _
    $region12: #{upblock_forward.4} parent=5 // pred_fallthru
      _
    %p149 = scmp.lt.s32.totalorder %s10, 2
    // Predicated region
    $region25: #{upblock_forward.4} parent=5 // pred_check
      %p150 = pneg %p149
    $region26: #{upblock_forward.4} parent=5 // pred_check_branch
      %152 = sbr.rel (%p150) target = $region28
    $region27: #{upblock_forward.4} parent=5 // pred_region
      // Predicated region
      $region29: #{upblock_forward.4} parent=27 // pred_check
        %p153 = pneg %p30
      $region30: #{upblock_forward.4} parent=27 // pred_check_branch
        %155 = sbr.rel (%p153) target = $region32
      $region31: #{upblock_forward.4} parent=27 // pred_region
        %p156 = scmp.lt.s32.totalorder %s10, 1
        %s157 = scalar_select %p156, %s10, 1
        %s158 = smul.addr %s157, 32
        %s159 = smul.addr %s158, 8
        %s160 = scalar_lea.vmem %s0, %s159
      $region32: #{upblock_forward.4} parent=27 // pred_fallthru
        _
    $region28: #{upblock_forward.4} parent=5 // pred_fallthru
      _
    %p161 = scmp.le.s32.totalorder 1, %s10
    %p162 = scmp.lt.s32.totalorder %s10, 3
    %p163 = pnand %p161, %p162
    %p164 = pneg %p163
    // Predicated region
    $region33: #{upblock_forward.4} parent=5 // pred_check
      _
    $region34: #{upblock_forward.4} parent=5 // pred_check_branch
      %166 = sbr.rel (%p163) target = $region36
    $region35: #{upblock_forward.4} parent=5 // pred_region
      %s167 = ssub.s32 %s10, 1
      %p168 = scmp.lt.s32.totalorder %s15, 1
      %s169 = scalar_select %p168, %s15, 1
      %s170 = smul.addr %s169, 32
      %s171 = smul.addr %s170, 8
      %s172 = scalar_lea.vmem %s0, %s171
      %p173 = pneg %p36
      %p174 = pneg %p33
      %p175 = pneg %p57
      %p176 = pneg %p54
      %p177 = pneg %p78
      %p178 = pneg %p75
      %p179 = pneg %p99
      %p180 = pneg %p96
      %p181 = pneg %p125
      %p182 = pneg %p122
      %p183 = scmp.lt.s32.totalorder %s15, 1
      %s184 = scalar_select %p183, %s15, 1
      %s185 = smul.addr %s184, 26
      %s186 = smul.addr %s185, 8
      %s187 = scalar_lea.vmem %s4, %s186
      %p188 = scmp.lt.s32.totalorder %s15, 1
      %s189 = scalar_select %p188, %s15, 1
      %s190 = smul.addr %s189, 32
      %s191 = smul.addr %s190, 8
      %s192 = scalar_lea.vmem %s0, %s191
      %p193 = scmp.lt.s32.totalorder %s15, 1
      %s194 = scalar_select %p193, %s15, 1
      %s195 = smul.addr %s194, 26
      %s196 = smul.addr %s195, 8
      %s197 = scalar_lea.vmem %s4, %s196
      %v199 = vld [vmem:[%s192] sm:$0xff]
      %v200 = vld [vmem:[%s192 + $0x8] sm:$0xff]
      %v201 = vld [vmem:[%s192 + $0x10] sm:$0xff]
      %v202 = vld [vmem:[%s192 + $0x18] sm:$0xff]
      %v203 = vld [vmem:[%s192 + $0x20] sm:$0xff]
      %v204 = vld [vmem:[%s192 + $0x28] sm:$0xff]
      %v205 = vld [vmem:[%s192 + $0x30] sm:$0xff]
      %v206 = vld [vmem:[%s192 + $0x38] sm:$0xff]
      %v207 = vld [vmem:[%s192 + $0x40] sm:$0xff]
      %v208 = vld [vmem:[%s192 + $0x48] sm:$0xff]
      %v209 = vld [vmem:[%s192 + $0x50] sm:$0xff]
      %v210 = vld [vmem:[%s192 + $0x58] sm:$0xff]
      %v211 = vld [vmem:[%s192 + $0x60] sm:$0xff]
      %v212 = vld [vmem:[%s192 + $0x68] sm:$0xff]
      %v213 = vld [vmem:[%s192 + $0x70] sm:$0xff]
      %v214 = vld [vmem:[%s192 + $0x78] sm:$0xff]
      %v215 = vld [vmem:[%s192 + $0x80] sm:$0xff]
      %v216 = vld [vmem:[%s192 + $0x88] sm:$0xff]
      %v217 = vld [vmem:[%s192 + $0x90] sm:$0xff]
      %v218 = vld [vmem:[%s192 + $0x98] sm:$0xff]
      %v219 = vld [vmem:[%s192 + $0xa0] sm:$0xff]
      %v220 = vld [vmem:[%s192 + $0xa8] sm:$0xff]
      %v221 = vld [vmem:[%s192 + $0xb0] sm:$0xff]
      %v222 = vld [vmem:[%s192 + $0xb8] sm:$0xff]
      %v223 = vld [vmem:[%s192 + $0xc0] sm:$0xff]
      %v224 = vld [vmem:[%s192 + $0xc8] sm:$0xff]
      %225 = vst [vmem:[#allocation2] sm:$0xff] %v199
      %226 = vst [vmem:[#allocation2 + $0x8] sm:$0xff] %v200
      %227 = vst [vmem:[#allocation2 + $0x10] sm:$0xff] %v201
      %228 = vst [vmem:[#allocation2 + $0x18] sm:$0xff] %v202
      %229 = vst [vmem:[#allocation2 + $0x20] sm:$0xff] %v203
      %230 = vst [vmem:[#allocation2 + $0x28] sm:$0xff] %v204
      %231 = vst [vmem:[#allocation2 + $0x30] sm:$0xff] %v205
      %232 = vst [vmem:[#allocation2 + $0x38] sm:$0xff] %v206
      %233 = vst [vmem:[#allocation2 + $0x40] sm:$0xff] %v207
      %234 = vst [vmem:[#allocation2 + $0x48] sm:$0xff] %v208
      %235 = vst [vmem:[#allocation2 + $0x50] sm:$0xff] %v209
      %236 = vst [vmem:[#allocation2 + $0x58] sm:$0xff] %v210
      %237 = vst [vmem:[#allocation2 + $0x60] sm:$0xff] %v211
      %238 = vst [vmem:[#allocation2 + $0x68] sm:$0xff] %v212
      %239 = vst [vmem:[#allocation2 + $0x70] sm:$0xff] %v213
      %240 = vst [vmem:[#allocation2 + $0x78] sm:$0xff] %v214
      %241 = vst [vmem:[#allocation2 + $0x80] sm:$0xff] %v215
      %242 = vst [vmem:[#allocation2 + $0x88] sm:$0xff] %v216
      %243 = vst [vmem:[#allocation2 + $0x90] sm:$0xff] %v217
      %244 = vst [vmem:[#allocation2 + $0x98] sm:$0xff] %v218
      %245 = vst [vmem:[#allocation2 + $0xa0] sm:$0xff] %v219
      %246 = vst [vmem:[#allocation2 + $0xa8] sm:$0xff] %v220
      %247 = vst [vmem:[#allocation2 + $0xb0] sm:$0xff] %v221
      %248 = vst [vmem:[#allocation2 + $0xb8] sm:$0xff] %v222
      %249 = vst [vmem:[#allocation2 + $0xc0] sm:$0xff] %v223
      %250 = vst [vmem:[#allocation2 + $0xc8] sm:$0xff] %v224
      %v251 = vld [vmem:[%s192] sm:$0xff]
      %v252 = vld [vmem:[%s192 + $0x8] sm:$0xff]
      %v253 = vld [vmem:[%s192 + $0x10] sm:$0xff]
      %v254 = vld [vmem:[%s192 + $0x18] sm:$0xff]
      %v255 = vld [vmem:[%s192 + $0x20] sm:$0xff]
      %v256 = vld [vmem:[%s192 + $0x28] sm:$0xff]
      %v257 = vld [vmem:[%s192 + $0x30] sm:$0xff]
      %v258 = vld [vmem:[%s192 + $0x38] sm:$0xff]
      %v259 = vld [vmem:[%s192 + $0x40] sm:$0xff]
      %v260 = vld [vmem:[%s192 + $0x48] sm:$0xff]
      %v261 = vld [vmem:[%s192 + $0x50] sm:$0xff]
      %v262 = vld [vmem:[%s192 + $0x58] sm:$0xff]
      %v263 = vld [vmem:[%s192 + $0x60] sm:$0xff]
      %v264 = vld [vmem:[%s192 + $0x68] sm:$0xff]
      %v265 = vld [vmem:[%s192 + $0x70] sm:$0xff]
      %v266 = vld [vmem:[%s192 + $0x78] sm:$0xff]
      %v267 = vld [vmem:[%s192 + $0x80] sm:$0xff]
      %v268 = vld [vmem:[%s192 + $0x88] sm:$0xff]
      %v269 = vld [vmem:[%s192 + $0x90] sm:$0xff]
      %v270 = vld [vmem:[%s192 + $0x98] sm:$0xff]
      %v271 = vld [vmem:[%s192 + $0xa0] sm:$0xff]
      %v272 = vld [vmem:[%s192 + $0xa8] sm:$0xff]
      %v273 = vld [vmem:[%s192 + $0xb0] sm:$0xff]
      %v274 = vld [vmem:[%s192 + $0xb8] sm:$0xff]
      %v275 = vld [vmem:[%s192 + $0xc0] sm:$0xff]
      %v276 = vld [vmem:[%s192 + $0xc8] sm:$0xff]
      %v277 = vld [vmem:[%s192 + $0xd0] sm:$0xff]
      %305 = vrot.lane.b32.xlu0 %v251, 127
      %v306 = vpop.permute.xlu0 %305
      %307 = vrot.lane.b32.xlu0 %v252, 127
      %v308 = vpop.permute.xlu0 %307
      %309 = vrot.lane.b32.xlu0 %v253, 127
      %v310 = vpop.permute.xlu0 %309
      %311 = vrot.lane.b32.xlu0 %v254, 127
      %v312 = vpop.permute.xlu0 %311
      %313 = vrot.lane.b32.xlu0 %v255, 127
      %v314 = vpop.permute.xlu0 %313
      %315 = vrot.lane.b32.xlu0 %v256, 127
      %v316 = vpop.permute.xlu0 %315
      %317 = vrot.lane.b32.xlu0 %v257, 127
      %v318 = vpop.permute.xlu0 %317
      %319 = vrot.lane.b32.xlu0 %v258, 127
      %v320 = vpop.permute.xlu0 %319
      %321 = vrot.lane.b32.xlu0 %v259, 127
      %v322 = vpop.permute.xlu0 %321
      %323 = vrot.lane.b32.xlu0 %v260, 127
      %v324 = vpop.permute.xlu0 %323
      %325 = vrot.lane.b32.xlu0 %v261, 127
      %v326 = vpop.permute.xlu0 %325
      %327 = vrot.lane.b32.xlu0 %v262, 127
      %v328 = vpop.permute.xlu0 %327
      %329 = vrot.lane.b32.xlu0 %v263, 127
      %v330 = vpop.permute.xlu0 %329
      %331 = vrot.lane.b32.xlu0 %v264, 127
      %v332 = vpop.permute.xlu0 %331
      %333 = vrot.lane.b32.xlu0 %v265, 127
      %v334 = vpop.permute.xlu0 %333
      %335 = vrot.lane.b32.xlu0 %v266, 127
      %v336 = vpop.permute.xlu0 %335
      %337 = vrot.lane.b32.xlu0 %v267, 127
      %v338 = vpop.permute.xlu0 %337
      %339 = vrot.lane.b32.xlu0 %v268, 127
      %v340 = vpop.permute.xlu0 %339
      %341 = vrot.lane.b32.xlu0 %v269, 127
      %v342 = vpop.permute.xlu0 %341
      %343 = vrot.lane.b32.xlu0 %v270, 127
      %v344 = vpop.permute.xlu0 %343
      %345 = vrot.lane.b32.xlu0 %v271, 127
      %v346 = vpop.permute.xlu0 %345
      %347 = vrot.lane.b32.xlu0 %v272, 127
      %v348 = vpop.permute.xlu0 %347
      %349 = vrot.lane.b32.xlu0 %v273, 127
      %v350 = vpop.permute.xlu0 %349
      %351 = vrot.lane.b32.xlu0 %v274, 127
      %v352 = vpop.permute.xlu0 %351
      %353 = vrot.lane.b32.xlu0 %v275, 127
      %v354 = vpop.permute.xlu0 %353
      %355 = vrot.lane.b32.xlu0 %v276, 127
      %v356 = vpop.permute.xlu0 %355
      %357 = vrot.lane.b32.xlu0 %v277, 127
      %v358 = vpop.permute.xlu0 %357
      %vm359 = vcmask 1039360
      %v360 = vsel %vm359, %v306, %v308
      %v361 = vsel %vm359, %v308, %v310
      %v362 = vsel %vm359, %v310, %v312
      %v363 = vsel %vm359, %v312, %v314
      %v364 = vsel %vm359, %v314, %v316
      %v365 = vsel %vm359, %v316, %v318
      %v366 = vsel %vm359, %v318, %v320
      %v367 = vsel %vm359, %v320, %v322
      %v368 = vsel %vm359, %v322, %v324
      %v369 = vsel %vm359, %v324, %v326
      %v370 = vsel %vm359, %v326, %v328
      %v371 = vsel %vm359, %v328, %v330
      %v372 = vsel %vm359, %v330, %v332
      %v373 = vsel %vm359, %v332, %v334
      %v374 = vsel %vm359, %v334, %v336
      %v375 = vsel %vm359, %v336, %v338
      %v376 = vsel %vm359, %v338, %v340
      %v377 = vsel %vm359, %v340, %v342
      %v378 = vsel %vm359, %v342, %v344
      %v379 = vsel %vm359, %v344, %v346
      %v380 = vsel %vm359, %v346, %v348
      %v381 = vsel %vm359, %v348, %v350
      %v382 = vsel %vm359, %v350, %v352
      %v383 = vsel %vm359, %v352, %v354
      %v384 = vsel %vm359, %v354, %v356
      %v385 = vsel %vm359, %v356, %v358
      %412 = vst [vmem:[#allocation2 + $0xd0] sm:$0xff] %v360
      %413 = vst [vmem:[#allocation2 + $0xd8] sm:$0xff] %v361
      %414 = vst [vmem:[#allocation2 + $0xe0] sm:$0xff] %v362
      %415 = vst [vmem:[#allocation2 + $0xe8] sm:$0xff] %v363
      %416 = vst [vmem:[#allocation2 + $0xf0] sm:$0xff] %v364
      %417 = vst [vmem:[#allocation2 + $0xf8] sm:$0xff] %v365
      %418 = vst [vmem:[#allocation2 + $0x100] sm:$0xff] %v366
      %419 = vst [vmem:[#allocation2 + $0x108] sm:$0xff] %v367
      %420 = vst [vmem:[#allocation2 + $0x110] sm:$0xff] %v368
      %421 = vst [vmem:[#allocation2 + $0x118] sm:$0xff] %v369
      %422 = vst [vmem:[#allocation2 + $0x120] sm:$0xff] %v370
      %423 = vst [vmem:[#allocation2 + $0x128] sm:$0xff] %v371
      %424 = vst [vmem:[#allocation2 + $0x130] sm:$0xff] %v372
      %425 = vst [vmem:[#allocation2 + $0x138] sm:$0xff] %v373
      %426 = vst [vmem:[#allocation2 + $0x140] sm:$0xff] %v374
      %427 = vst [vmem:[#allocation2 + $0x148] sm:$0xff] %v375
      %428 = vst [vmem:[#allocation2 + $0x150] sm:$0xff] %v376
      %429 = vst [vmem:[#allocation2 + $0x158] sm:$0xff] %v377
      %430 = vst [vmem:[#allocation2 + $0x160] sm:$0xff] %v378
      %431 = vst [vmem:[#allocation2 + $0x168] sm:$0xff] %v379
      %432 = vst [vmem:[#allocation2 + $0x170] sm:$0xff] %v380
      %433 = vst [vmem:[#allocation2 + $0x178] sm:$0xff] %v381
      %434 = vst [vmem:[#allocation2 + $0x180] sm:$0xff] %v382
      %435 = vst [vmem:[#allocation2 + $0x188] sm:$0xff] %v383
      %436 = vst [vmem:[#allocation2 + $0x190] sm:$0xff] %v384
      %437 = vst [vmem:[#allocation2 + $0x198] sm:$0xff] %v385
      %v438 = vld [vmem:[%s192] sm:$0xff]
      %v439 = vld [vmem:[%s192 + $0x8] sm:$0xff]
      %v440 = vld [vmem:[%s192 + $0x10] sm:$0xff]
      %v441 = vld [vmem:[%s192 + $0x18] sm:$0xff]
      %v442 = vld [vmem:[%s192 + $0x20] sm:$0xff]
      %v443 = vld [vmem:[%s192 + $0x28] sm:$0xff]
      %v444 = vld [vmem:[%s192 + $0x30] sm:$0xff]
      %v445 = vld [vmem:[%s192 + $0x38] sm:$0xff]
      %v446 = vld [vmem:[%s192 + $0x40] sm:$0xff]
      %v447 = vld [vmem:[%s192 + $0x48] sm:$0xff]
      %v448 = vld [vmem:[%s192 + $0x50] sm:$0xff]
      %v449 = vld [vmem:[%s192 + $0x58] sm:$0xff]
      %v450 = vld [vmem:[%s192 + $0x60] sm:$0xff]
      %v451 = vld [vmem:[%s192 + $0x68] sm:$0xff]
      %v452 = vld [vmem:[%s192 + $0x70] sm:$0xff]
      %v453 = vld [vmem:[%s192 + $0x78] sm:$0xff]
      %v454 = vld [vmem:[%s192 + $0x80] sm:$0xff]
      %v455 = vld [vmem:[%s192 + $0x88] sm:$0xff]
      %v456 = vld [vmem:[%s192 + $0x90] sm:$0xff]
      %v457 = vld [vmem:[%s192 + $0x98] sm:$0xff]
      %v458 = vld [vmem:[%s192 + $0xa0] sm:$0xff]
      %v459 = vld [vmem:[%s192 + $0xa8] sm:$0xff]
      %v460 = vld [vmem:[%s192 + $0xb0] sm:$0xff]
      %v461 = vld [vmem:[%s192 + $0xb8] sm:$0xff]
      %v462 = vld [vmem:[%s192 + $0xc0] sm:$0xff]
      %v463 = vld [vmem:[%s192 + $0xc8] sm:$0xff]
      %v464 = vld [vmem:[%s192 + $0xd0] sm:$0xff]
      %492 = vrot.lane.b32.xlu0 %v438, 126
      %v493 = vpop.permute.xlu0 %492
      %494 = vrot.lane.b32.xlu0 %v439, 126
      %v495 = vpop.permute.xlu0 %494
      %496 = vrot.lane.b32.xlu0 %v440, 126
      %v497 = vpop.permute.xlu0 %496
      %498 = vrot.lane.b32.xlu0 %v441, 126
      %v499 = vpop.permute.xlu0 %498
      %500 = vrot.lane.b32.xlu0 %v442, 126
      %v501 = vpop.permute.xlu0 %500
      %502 = vrot.lane.b32.xlu0 %v443, 126
      %v503 = vpop.permute.xlu0 %502
      %504 = vrot.lane.b32.xlu0 %v444, 126
      %v505 = vpop.permute.xlu0 %504
      %506 = vrot.lane.b32.xlu0 %v445, 126
      %v507 = vpop.permute.xlu0 %506
      %508 = vrot.lane.b32.xlu0 %v446, 126
      %v509 = vpop.permute.xlu0 %508
      %510 = vrot.lane.b32.xlu0 %v447, 126
      %v511 = vpop.permute.xlu0 %510
      %512 = vrot.lane.b32.xlu0 %v448, 126
      %v513 = vpop.permute.xlu0 %512
      %514 = vrot.lane.b32.xlu0 %v449, 126
      %v515 = vpop.permute.xlu0 %514
      %516 = vrot.lane.b32.xlu0 %v450, 126
      %v517 = vpop.permute.xlu0 %516
      %518 = vrot.lane.b32.xlu0 %v451, 126
      %v519 = vpop.permute.xlu0 %518
      %520 = vrot.lane.b32.xlu0 %v452, 126
      %v521 = vpop.permute.xlu0 %520
      %522 = vrot.lane.b32.xlu0 %v453, 126
      %v523 = vpop.permute.xlu0 %522
      %524 = vrot.lane.b32.xlu0 %v454, 126
      %v525 = vpop.permute.xlu0 %524
      %526 = vrot.lane.b32.xlu0 %v455, 126
      %v527 = vpop.permute.xlu0 %526
      %528 = vrot.lane.b32.xlu0 %v456, 126
      %v529 = vpop.permute.xlu0 %528
      %530 = vrot.lane.b32.xlu0 %v457, 126
      %v531 = vpop.permute.xlu0 %530
      %532 = vrot.lane.b32.xlu0 %v458, 126
      %v533 = vpop.permute.xlu0 %532
      %534 = vrot.lane.b32.xlu0 %v459, 126
      %v535 = vpop.permute.xlu0 %534
      %536 = vrot.lane.b32.xlu0 %v460, 126
      %v537 = vpop.permute.xlu0 %536
      %538 = vrot.lane.b32.xlu0 %v461, 126
      %v539 = vpop.permute.xlu0 %538
      %540 = vrot.lane.b32.xlu0 %v462, 126
      %v541 = vpop.permute.xlu0 %540
      %542 = vrot.lane.b32.xlu0 %v463, 126
      %v543 = vpop.permute.xlu0 %542
      %544 = vrot.lane.b32.xlu0 %v464, 126
      %v545 = vpop.permute.xlu0 %544
      %vm546 = vcmask 1031168
      %v547 = vsel %vm546, %v493, %v495
      %v548 = vsel %vm546, %v495, %v497
      %v549 = vsel %vm546, %v497, %v499
      %v550 = vsel %vm546, %v499, %v501
      %v551 = vsel %vm546, %v501, %v503
      %v552 = vsel %vm546, %v503, %v505
      %v553 = vsel %vm546, %v505, %v507
      %v554 = vsel %vm546, %v507, %v509
      %v555 = vsel %vm546, %v509, %v511
      %v556 = vsel %vm546, %v511, %v513
      %v557 = vsel %vm546, %v513, %v515
      %v558 = vsel %vm546, %v515, %v517
      %v559 = vsel %vm546, %v517, %v519
      %v560 = vsel %vm546, %v519, %v521
      %v561 = vsel %vm546, %v521, %v523
      %v562 = vsel %vm546, %v523, %v525
      %v563 = vsel %vm546, %v525, %v527
      %v564 = vsel %vm546, %v527, %v529
      %v565 = vsel %vm546, %v529, %v531
      %v566 = vsel %vm546, %v531, %v533
      %v567 = vsel %vm546, %v533, %v535
      %v568 = vsel %vm546, %v535, %v537
      %v569 = vsel %vm546, %v537, %v539
      %v570 = vsel %vm546, %v539, %v541
      %v571 = vsel %vm546, %v541, %v543
      %v572 = vsel %vm546, %v543, %v545
      %599 = vst [vmem:[#allocation2 + $0x1a0] sm:$0xff] %v547
      %600 = vst [vmem:[#allocation2 + $0x1a8] sm:$0xff] %v548
      %601 = vst [vmem:[#allocation2 + $0x1b0] sm:$0xff] %v549
      %602 = vst [vmem:[#allocation2 + $0x1b8] sm:$0xff] %v550
      %603 = vst [vmem:[#allocation2 + $0x1c0] sm:$0xff] %v551
      %604 = vst [vmem:[#allocation2 + $0x1c8] sm:$0xff] %v552
      %605 = vst [vmem:[#allocation2 + $0x1d0] sm:$0xff] %v553
      %606 = vst [vmem:[#allocation2 + $0x1d8] sm:$0xff] %v554
      %607 = vst [vmem:[#allocation2 + $0x1e0] sm:$0xff] %v555
      %608 = vst [vmem:[#allocation2 + $0x1e8] sm:$0xff] %v556
      %609 = vst [vmem:[#allocation2 + $0x1f0] sm:$0xff] %v557
      %610 = vst [vmem:[#allocation2 + $0x1f8] sm:$0xff] %v558
      %611 = vst [vmem:[#allocation2 + $0x200] sm:$0xff] %v559
      %612 = vst [vmem:[#allocation2 + $0x208] sm:$0xff] %v560
      %613 = vst [vmem:[#allocation2 + $0x210] sm:$0xff] %v561
      %614 = vst [vmem:[#allocation2 + $0x218] sm:$0xff] %v562
      %615 = vst [vmem:[#allocation2 + $0x220] sm:$0xff] %v563
      %616 = vst [vmem:[#allocation2 + $0x228] sm:$0xff] %v564
      %617 = vst [vmem:[#allocation2 + $0x230] sm:$0xff] %v565
      %618 = vst [vmem:[#allocation2 + $0x238] sm:$0xff] %v566
      %619 = vst [vmem:[#allocation2 + $0x240] sm:$0xff] %v567
      %620 = vst [vmem:[#allocation2 + $0x248] sm:$0xff] %v568
      %621 = vst [vmem:[#allocation2 + $0x250] sm:$0xff] %v569
      %622 = vst [vmem:[#allocation2 + $0x258] sm:$0xff] %v570
      %623 = vst [vmem:[#allocation2 + $0x260] sm:$0xff] %v571
      %624 = vst [vmem:[#allocation2 + $0x268] sm:$0xff] %v572
      %v625 = vld [vmem:[%s192] sm:$0xff]
      %v626 = vld [vmem:[%s192 + $0x8] sm:$0xff]
      %v627 = vld [vmem:[%s192 + $0x10] sm:$0xff]
      %v628 = vld [vmem:[%s192 + $0x18] sm:$0xff]
      %v629 = vld [vmem:[%s192 + $0x20] sm:$0xff]
      %v630 = vld [vmem:[%s192 + $0x28] sm:$0xff]
      %v631 = vld [vmem:[%s192 + $0x30] sm:$0xff]
      %v632 = vld [vmem:[%s192 + $0x38] sm:$0xff]
      %v633 = vld [vmem:[%s192 + $0x40] sm:$0xff]
      %v634 = vld [vmem:[%s192 + $0x48] sm:$0xff]
      %v635 = vld [vmem:[%s192 + $0x50] sm:$0xff]
      %v636 = vld [vmem:[%s192 + $0x58] sm:$0xff]
      %v637 = vld [vmem:[%s192 + $0x60] sm:$0xff]
      %v638 = vld [vmem:[%s192 + $0x68] sm:$0xff]
      %v639 = vld [vmem:[%s192 + $0x70] sm:$0xff]
      %v640 = vld [vmem:[%s192 + $0x78] sm:$0xff]
      %v641 = vld [vmem:[%s192 + $0x80] sm:$0xff]
      %v642 = vld [vmem:[%s192 + $0x88] sm:$0xff]
      %v643 = vld [vmem:[%s192 + $0x90] sm:$0xff]
      %v644 = vld [vmem:[%s192 + $0x98] sm:$0xff]
      %v645 = vld [vmem:[%s192 + $0xa0] sm:$0xff]
      %v646 = vld [vmem:[%s192 + $0xa8] sm:$0xff]
      %v647 = vld [vmem:[%s192 + $0xb0] sm:$0xff]
      %v648 = vld [vmem:[%s192 + $0xb8] sm:$0xff]
      %v649 = vld [vmem:[%s192 + $0xc0] sm:$0xff]
      %v650 = vld [vmem:[%s192 + $0xc8] sm:$0xff]
      %v651 = vld [vmem:[%s192 + $0xd0] sm:$0xff]
      %679 = vrot.lane.b32.xlu0 %v625, 110
      %v680 = vpop.permute.xlu0 %679
      %681 = vrot.lane.b32.xlu0 %v626, 110
      %v682 = vpop.permute.xlu0 %681
      %683 = vrot.lane.b32.xlu0 %v627, 110
      %v684 = vpop.permute.xlu0 %683
      %685 = vrot.lane.b32.xlu0 %v628, 110
      %v686 = vpop.permute.xlu0 %685
      %687 = vrot.lane.b32.xlu0 %v629, 110
      %v688 = vpop.permute.xlu0 %687
      %689 = vrot.lane.b32.xlu0 %v630, 110
      %v690 = vpop.permute.xlu0 %689
      %691 = vrot.lane.b32.xlu0 %v631, 110
      %v692 = vpop.permute.xlu0 %691
      %693 = vrot.lane.b32.xlu0 %v632, 110
      %v694 = vpop.permute.xlu0 %693
      %695 = vrot.lane.b32.xlu0 %v633, 110
      %v696 = vpop.permute.xlu0 %695
      %697 = vrot.lane.b32.xlu0 %v634, 110
      %v698 = vpop.permute.xlu0 %697
      %699 = vrot.lane.b32.xlu0 %v635, 110
      %v700 = vpop.permute.xlu0 %699
      %701 = vrot.lane.b32.xlu0 %v636, 110
      %v702 = vpop.permute.xlu0 %701
      %703 = vrot.lane.b32.xlu0 %v637, 110
      %v704 = vpop.permute.xlu0 %703
      %705 = vrot.lane.b32.xlu0 %v638, 110
      %v706 = vpop.permute.xlu0 %705
      %707 = vrot.lane.b32.xlu0 %v639, 110
      %v708 = vpop.permute.xlu0 %707
      %709 = vrot.lane.b32.xlu0 %v640, 110
      %v710 = vpop.permute.xlu0 %709
      %711 = vrot.lane.b32.xlu0 %v641, 110
      %v712 = vpop.permute.xlu0 %711
      %713 = vrot.lane.b32.xlu0 %v642, 110
      %v714 = vpop.permute.xlu0 %713
      %715 = vrot.lane.b32.xlu0 %v643, 110
      %v716 = vpop.permute.xlu0 %715
      %717 = vrot.lane.b32.xlu0 %v644, 110
      %v718 = vpop.permute.xlu0 %717
      %719 = vrot.lane.b32.xlu0 %v645, 110
      %v720 = vpop.permute.xlu0 %719
      %721 = vrot.lane.b32.xlu0 %v646, 110
      %v722 = vpop.permute.xlu0 %721
      %723 = vrot.lane.b32.xlu0 %v647, 110
      %v724 = vpop.permute.xlu0 %723
      %725 = vrot.lane.b32.xlu0 %v648, 110
      %v726 = vpop.permute.xlu0 %725
      %727 = vrot.lane.b32.xlu0 %v649, 110
      %v728 = vpop.permute.xlu0 %727
      %729 = vrot.lane.b32.xlu0 %v650, 110
      %v730 = vpop.permute.xlu0 %729
      %731 = vrot.lane.b32.xlu0 %v651, 110
      %v732 = vpop.permute.xlu0 %731
      %vm733 = vcmask 900096
      %v734 = vsel %vm733, %v680, %v682
      %v735 = vsel %vm733, %v682, %v684
      %v736 = vsel %vm733, %v684, %v686
      %v737 = vsel %vm733, %v686, %v688
      %v738 = vsel %vm733, %v688, %v690
      %v739 = vsel %vm733, %v690, %v692
      %v740 = vsel %vm733, %v692, %v694
      %v741 = vsel %vm733, %v694, %v696
      %v742 = vsel %vm733, %v696, %v698
      %v743 = vsel %vm733, %v698, %v700
      %v744 = vsel %vm733, %v700, %v702
      %v745 = vsel %vm733, %v702, %v704
      %v746 = vsel %vm733, %v704, %v706
      %v747 = vsel %vm733, %v706, %v708
      %v748 = vsel %vm733, %v708, %v710
      %v749 = vsel %vm733, %v710, %v712
      %v750 = vsel %vm733, %v712, %v714
      %v751 = vsel %vm733, %v714, %v716
      %v752 = vsel %vm733, %v716, %v718
      %v753 = vsel %vm733, %v718, %v720
      %v754 = vsel %vm733, %v720, %v722
      %v755 = vsel %vm733, %v722, %v724
      %v756 = vsel %vm733, %v724, %v726
      %v757 = vsel %vm733, %v726, %v728
      %v758 = vsel %vm733, %v728, %v730
      %v759 = vsel %vm733, %v730, %v732
      %786 = vst [vmem:[#allocation2 + $0x270] sm:$0xff] %v734
      %787 = vst [vmem:[#allocation2 + $0x278] sm:$0xff] %v735
      %788 = vst [vmem:[#allocation2 + $0x280] sm:$0xff] %v736
      %789 = vst [vmem:[#allocation2 + $0x288] sm:$0xff] %v737
      %790 = vst [vmem:[#allocation2 + $0x290] sm:$0xff] %v738
      %791 = vst [vmem:[#allocation2 + $0x298] sm:$0xff] %v739
      %792 = vst [vmem:[#allocation2 + $0x2a0] sm:$0xff] %v740
      %793 = vst [vmem:[#allocation2 + $0x2a8] sm:$0xff] %v741
      %794 = vst [vmem:[#allocation2 + $0x2b0] sm:$0xff] %v742
      %795 = vst [vmem:[#allocation2 + $0x2b8] sm:$0xff] %v743
      %796 = vst [vmem:[#allocation2 + $0x2c0] sm:$0xff] %v744
      %797 = vst [vmem:[#allocation2 + $0x2c8] sm:$0xff] %v745
      %798 = vst [vmem:[#allocation2 + $0x2d0] sm:$0xff] %v746
      %799 = vst [vmem:[#allocation2 + $0x2d8] sm:$0xff] %v747
      %800 = vst [vmem:[#allocation2 + $0x2e0] sm:$0xff] %v748
      %801 = vst [vmem:[#allocation2 + $0x2e8] sm:$0xff] %v749
      %802 = vst [vmem:[#allocation2 + $0x2f0] sm:$0xff] %v750
      %803 = vst [vmem:[#allocation2 + $0x2f8] sm:$0xff] %v751
      %804 = vst [vmem:[#allocation2 + $0x300] sm:$0xff] %v752
      %805 = vst [vmem:[#allocation2 + $0x308] sm:$0xff] %v753
      %806 = vst [vmem:[#allocation2 + $0x310] sm:$0xff] %v754
      %807 = vst [vmem:[#allocation2 + $0x318] sm:$0xff] %v755
      %808 = vst [vmem:[#allocation2 + $0x320] sm:$0xff] %v756
      %809 = vst [vmem:[#allocation2 + $0x328] sm:$0xff] %v757
      %810 = vst [vmem:[#allocation2 + $0x330] sm:$0xff] %v758
      %811 = vst [vmem:[#allocation2 + $0x338] sm:$0xff] %v759
      %v812 = vld [vmem:[%s192] sm:$0xff]
      %v813 = vld [vmem:[%s192 + $0x8] sm:$0xff]
      %v814 = vld [vmem:[%s192 + $0x10] sm:$0xff]
      %v815 = vld [vmem:[%s192 + $0x18] sm:$0xff]
      %v816 = vld [vmem:[%s192 + $0x20] sm:$0xff]
      %v817 = vld [vmem:[%s192 + $0x28] sm:$0xff]
      %v818 = vld [vmem:[%s192 + $0x30] sm:$0xff]
      %v819 = vld [vmem:[%s192 + $0x38] sm:$0xff]
      %v820 = vld [vmem:[%s192 + $0x40] sm:$0xff]
      %v821 = vld [vmem:[%s192 + $0x48] sm:$0xff]
      %v822 = vld [vmem:[%s192 + $0x50] sm:$0xff]
      %v823 = vld [vmem:[%s192 + $0x58] sm:$0xff]
      %v824 = vld [vmem:[%s192 + $0x60] sm:$0xff]
      %v825 = vld [vmem:[%s192 + $0x68] sm:$0xff]
      %v826 = vld [vmem:[%s192 + $0x70] sm:$0xff]
      %v827 = vld [vmem:[%s192 + $0x78] sm:$0xff]
      %v828 = vld [vmem:[%s192 + $0x80] sm:$0xff]
      %v829 = vld [vmem:[%s192 + $0x88] sm:$0xff]
      %v830 = vld [vmem:[%s192 + $0x90] sm:$0xff]
      %v831 = vld [vmem:[%s192 + $0x98] sm:$0xff]
      %v832 = vld [vmem:[%s192 + $0xa0] sm:$0xff]
      %v833 = vld [vmem:[%s192 + $0xa8] sm:$0xff]
      %v834 = vld [vmem:[%s192 + $0xb0] sm:$0xff]
      %v835 = vld [vmem:[%s192 + $0xb8] sm:$0xff]
      %v836 = vld [vmem:[%s192 + $0xc0] sm:$0xff]
      %v837 = vld [vmem:[%s192 + $0xc8] sm:$0xff]
      %v838 = vld [vmem:[%s192 + $0xd0] sm:$0xff]
      %866 = vrot.lane.b32.xlu0 %v812, 109
      %v867 = vpop.permute.xlu0 %866
      %868 = vrot.lane.b32.xlu0 %v813, 109
      %v869 = vpop.permute.xlu0 %868
      %870 = vrot.lane.b32.xlu0 %v814, 109
      %v871 = vpop.permute.xlu0 %870
      %872 = vrot.lane.b32.xlu0 %v815, 109
      %v873 = vpop.permute.xlu0 %872
      %874 = vrot.lane.b32.xlu0 %v816, 109
      %v875 = vpop.permute.xlu0 %874
      %876 = vrot.lane.b32.xlu0 %v817, 109
      %v877 = vpop.permute.xlu0 %876
      %878 = vrot.lane.b32.xlu0 %v818, 109
      %v879 = vpop.permute.xlu0 %878
      %880 = vrot.lane.b32.xlu0 %v819, 109
      %v881 = vpop.permute.xlu0 %880
      %882 = vrot.lane.b32.xlu0 %v820, 109
      %v883 = vpop.permute.xlu0 %882
      %884 = vrot.lane.b32.xlu0 %v821, 109
      %v885 = vpop.permute.xlu0 %884
      %886 = vrot.lane.b32.xlu0 %v822, 109
      %v887 = vpop.permute.xlu0 %886
      %888 = vrot.lane.b32.xlu0 %v823, 109
      %v889 = vpop.permute.xlu0 %888
      %890 = vrot.lane.b32.xlu0 %v824, 109
      %v891 = vpop.permute.xlu0 %890
      %892 = vrot.lane.b32.xlu0 %v825, 109
      %v893 = vpop.permute.xlu0 %892
      %894 = vrot.lane.b32.xlu0 %v826, 109
      %v895 = vpop.permute.xlu0 %894
      %896 = vrot.lane.b32.xlu0 %v827, 109
      %v897 = vpop.permute.xlu0 %896
      %898 = vrot.lane.b32.xlu0 %v828, 109
      %v899 = vpop.permute.xlu0 %898
      %900 = vrot.lane.b32.xlu0 %v829, 109
      %v901 = vpop.permute.xlu0 %900
      %902 = vrot.lane.b32.xlu0 %v830, 109
      %v903 = vpop.permute.xlu0 %902
      %904 = vrot.lane.b32.xlu0 %v831, 109
      %v905 = vpop.permute.xlu0 %904
      %906 = vrot.lane.b32.xlu0 %v832, 109
      %v907 = vpop.permute.xlu0 %906
      %908 = vrot.lane.b32.xlu0 %v833, 109
      %v909 = vpop.permute.xlu0 %908
      %910 = vrot.lane.b32.xlu0 %v834, 109
      %v911 = vpop.permute.xlu0 %910
      %912 = vrot.lane.b32.xlu0 %v835, 109
      %v913 = vpop.permute.xlu0 %912
      %914 = vrot.lane.b32.xlu0 %v836, 109
      %v915 = vpop.permute.xlu0 %914
      %916 = vrot.lane.b32.xlu0 %v837, 109
      %v917 = vpop.permute.xlu0 %916
      %918 = vrot.lane.b32.xlu0 %v838, 109
      %v919 = vpop.permute.xlu0 %918
      %vm920 = vcmask 891904
      %v921 = vsel %vm920, %v867, %v869
      %v922 = vsel %vm920, %v869, %v871
      %v923 = vsel %vm920, %v871, %v873
      %v924 = vsel %vm920, %v873, %v875
      %v925 = vsel %vm920, %v875, %v877
      %v926 = vsel %vm920, %v877, %v879
      %v927 = vsel %vm920, %v879, %v881
      %v928 = vsel %vm920, %v881, %v883
      %v929 = vsel %vm920, %v883, %v885
      %v930 = vsel %vm920, %v885, %v887
      %v931 = vsel %vm920, %v887, %v889
      %v932 = vsel %vm920, %v889, %v891
      %v933 = vsel %vm920, %v891, %v893
      %v934 = vsel %vm920, %v893, %v895
      %v935 = vsel %vm920, %v895, %v897
      %v936 = vsel %vm920, %v897, %v899
      %v937 = vsel %vm920, %v899, %v901
      %v938 = vsel %vm920, %v901, %v903
      %v939 = vsel %vm920, %v903, %v905
      %v940 = vsel %vm920, %v905, %v907
      %v941 = vsel %vm920, %v907, %v909
      %v942 = vsel %vm920, %v909, %v911
      %v943 = vsel %vm920, %v911, %v913
      %v944 = vsel %vm920, %v913, %v915
      %v945 = vsel %vm920, %v915, %v917
      %v946 = vsel %vm920, %v917, %v919
      %973 = vst [vmem:[#allocation2 + $0x340] sm:$0xff] %v921
      %974 = vst [vmem:[#allocation2 + $0x348] sm:$0xff] %v922
      %975 = vst [vmem:[#allocation2 + $0x350] sm:$0xff] %v923
      %976 = vst [vmem:[#allocation2 + $0x358] sm:$0xff] %v924
      %977 = vst [vmem:[#allocation2 + $0x360] sm:$0xff] %v925
      %978 = vst [vmem:[#allocation2 + $0x368] sm:$0xff] %v926
      %979 = vst [vmem:[#allocation2 + $0x370] sm:$0xff] %v927
      %980 = vst [vmem:[#allocation2 + $0x378] sm:$0xff] %v928
      %981 = vst [vmem:[#allocation2 + $0x380] sm:$0xff] %v929
      %982 = vst [vmem:[#allocation2 + $0x388] sm:$0xff] %v930
      %983 = vst [vmem:[#allocation2 + $0x390] sm:$0xff] %v931
      %984 = vst [vmem:[#allocation2 + $0x398] sm:$0xff] %v932
      %985 = vst [vmem:[#allocation2 + $0x3a0] sm:$0xff] %v933
      %986 = vst [vmem:[#allocation2 + $0x3a8] sm:$0xff] %v934
      %987 = vst [vmem:[#allocation2 + $0x3b0] sm:$0xff] %v935
      %988 = vst [vmem:[#allocation2 + $0x3b8] sm:$0xff] %v936
      %989 = vst [vmem:[#allocation2 + $0x3c0] sm:$0xff] %v937
      %990 = vst [vmem:[#allocation2 + $0x3c8] sm:$0xff] %v938
      %991 = vst [vmem:[#allocation2 + $0x3d0] sm:$0xff] %v939
      %992 = vst [vmem:[#allocation2 + $0x3d8] sm:$0xff] %v940
      %993 = vst [vmem:[#allocation2 + $0x3e0] sm:$0xff] %v941
      %994 = vst [vmem:[#allocation2 + $0x3e8] sm:$0xff] %v942
      %995 = vst [vmem:[#allocation2 + $0x3f0] sm:$0xff] %v943
      %996 = vst [vmem:[#allocation2 + $0x3f8] sm:$0xff] %v944
      %997 = vst [vmem:[#allocation2 + $0x400] sm:$0xff] %v945
      %998 = vst [vmem:[#allocation2 + $0x408] sm:$0xff] %v946
      %v999 = vld [vmem:[%s192] sm:$0xff]
      %v1000 = vld [vmem:[%s192 + $0x8] sm:$0xff]
      %v1001 = vld [vmem:[%s192 + $0x10] sm:$0xff]
      %v1002 = vld [vmem:[%s192 + $0x18] sm:$0xff]
      %v1003 = vld [vmem:[%s192 + $0x20] sm:$0xff]
      %v1004 = vld [vmem:[%s192 + $0x28] sm:$0xff]
      %v1005 = vld [vmem:[%s192 + $0x30] sm:$0xff]
      %v1006 = vld [vmem:[%s192 + $0x38] sm:$0xff]
      %v1007 = vld [vmem:[%s192 + $0x40] sm:$0xff]
      %v1008 = vld [vmem:[%s192 + $0x48] sm:$0xff]
      %v1009 = vld [vmem:[%s192 + $0x50] sm:$0xff]
      %v1010 = vld [vmem:[%s192 + $0x58] sm:$0xff]
      %v1011 = vld [vmem:[%s192 + $0x60] sm:$0xff]
      %v1012 = vld [vmem:[%s192 + $0x68] sm:$0xff]
      %v1013 = vld [vmem:[%s192 + $0x70] sm:$0xff]
      %v1014 = vld [vmem:[%s192 + $0x78] sm:$0xff]
      %v1015 = vld [vmem:[%s192 + $0x80] sm:$0xff]
      %v1016 = vld [vmem:[%s192 + $0x88] sm:$0xff]
      %v1017 = vld [vmem:[%s192 + $0x90] sm:$0xff]
      %v1018 = vld [vmem:[%s192 + $0x98] sm:$0xff]
      %v1019 = vld [vmem:[%s192 + $0xa0] sm:$0xff]
      %v1020 = vld [vmem:[%s192 + $0xa8] sm:$0xff]
      %v1021 = vld [vmem:[%s192 + $0xb0] sm:$0xff]
      %v1022 = vld [vmem:[%s192 + $0xb8] sm:$0xff]
      %v1023 = vld [vmem:[%s192 + $0xc0] sm:$0xff]
      %v1024 = vld [vmem:[%s192 + $0xc8] sm:$0xff]
      %v1025 = vld [vmem:[%s192 + $0xd0] sm:$0xff]
      %1053 = vrot.lane.b32.xlu0 %v999, 108
      %v1054 = vpop.permute.xlu0 %1053
      %1055 = vrot.lane.b32.xlu0 %v1000, 108
      %v1056 = vpop.permute.xlu0 %1055
      %1057 = vrot.lane.b32.xlu0 %v1001, 108
      %v1058 = vpop.permute.xlu0 %1057
      %1059 = vrot.lane.b32.xlu0 %v1002, 108
      %v1060 = vpop.permute.xlu0 %1059
      %1061 = vrot.lane.b32.xlu0 %v1003, 108
      %v1062 = vpop.permute.xlu0 %1061
      %1063 = vrot.lane.b32.xlu0 %v1004, 108
      %v1064 = vpop.permute.xlu0 %1063
      %1065 = vrot.lane.b32.xlu0 %v1005, 108
      %v1066 = vpop.permute.xlu0 %1065
      %1067 = vrot.lane.b32.xlu0 %v1006, 108
      %v1068 = vpop.permute.xlu0 %1067
      %1069 = vrot.lane.b32.xlu0 %v1007, 108
      %v1070 = vpop.permute.xlu0 %1069
      %1071 = vrot.lane.b32.xlu0 %v1008, 108
      %v1072 = vpop.permute.xlu0 %1071
      %1073 = vrot.lane.b32.xlu0 %v1009, 108
      %v1074 = vpop.permute.xlu0 %1073
      %1075 = vrot.lane.b32.xlu0 %v1010, 108
      %v1076 = vpop.permute.xlu0 %1075
      %1077 = vrot.lane.b32.xlu0 %v1011, 108
      %v1078 = vpop.permute.xlu0 %1077
      %1079 = vrot.lane.b32.xlu0 %v1012, 108
      %v1080 = vpop.permute.xlu0 %1079
      %1081 = vrot.lane.b32.xlu0 %v1013, 108
      %v1082 = vpop.permute.xlu0 %1081
      %1083 = vrot.lane.b32.xlu0 %v1014, 108
      %v1084 = vpop.permute.xlu0 %1083
      %1085 = vrot.lane.b32.xlu0 %v1015, 108
      %v1086 = vpop.permute.xlu0 %1085
      %1087 = vrot.lane.b32.xlu0 %v1016, 108
      %v1088 = vpop.permute.xlu0 %1087
      %1089 = vrot.lane.b32.xlu0 %v1017, 108
      %v1090 = vpop.permute.xlu0 %1089
      %1091 = vrot.lane.b32.xlu0 %v1018, 108
      %v1092 = vpop.permute.xlu0 %1091
      %1093 = vrot.lane.b32.xlu0 %v1019, 108
      %v1094 = vpop.permute.xlu0 %1093
      %1095 = vrot.lane.b32.xlu0 %v1020, 108
      %v1096 = vpop.permute.xlu0 %1095
      %1097 = vrot.lane.b32.xlu0 %v1021, 108
      %v1098 = vpop.permute.xlu0 %1097
      %1099 = vrot.lane.b32.xlu0 %v1022, 108
      %v1100 = vpop.permute.xlu0 %1099
      %1101 = vrot.lane.b32.xlu0 %v1023, 108
      %v1102 = vpop.permute.xlu0 %1101
      %1103 = vrot.lane.b32.xlu0 %v1024, 108
      %v1104 = vpop.permute.xlu0 %1103
      %1105 = vrot.lane.b32.xlu0 %v1025, 108
      %v1106 = vpop.permute.xlu0 %1105
      %vm1107 = vcmask 883712
      %v1108 = vsel %vm1107, %v1054, %v1056
      %v1109 = vsel %vm1107, %v1056, %v1058
      %v1110 = vsel %vm1107, %v1058, %v1060
      %v1111 = vsel %vm1107, %v1060, %v1062
      %v1112 = vsel %vm1107, %v1062, %v1064
      %v1113 = vsel %vm1107, %v1064, %v1066
      %v1114 = vsel %vm1107, %v1066, %v1068
      %v1115 = vsel %vm1107, %v1068, %v1070
      %v1116 = vsel %vm1107, %v1070, %v1072
      %v1117 = vsel %vm1107, %v1072, %v1074
      %v1118 = vsel %vm1107, %v1074, %v1076
      %v1119 = vsel %vm1107, %v1076, %v1078
      %v1120 = vsel %vm1107, %v1078, %v1080
      %v1121 = vsel %vm1107, %v1080, %v1082
      %v1122 = vsel %vm1107, %v1082, %v1084
      %v1123 = vsel %vm1107, %v1084, %v1086
      %v1124 = vsel %vm1107, %v1086, %v1088
      %v1125 = vsel %vm1107, %v1088, %v1090
      %v1126 = vsel %vm1107, %v1090, %v1092
      %v1127 = vsel %vm1107, %v1092, %v1094
      %v1128 = vsel %vm1107, %v1094, %v1096
      %v1129 = vsel %vm1107, %v1096, %v1098
      %v1130 = vsel %vm1107, %v1098, %v1100
      %v1131 = vsel %vm1107, %v1100, %v1102
      %v1132 = vsel %vm1107, %v1102, %v1104
      %v1133 = vsel %vm1107, %v1104, %v1106
      %1160 = vst [vmem:[#allocation2 + $0x410] sm:$0xff] %v1108
      %1161 = vst [vmem:[#allocation2 + $0x418] sm:$0xff] %v1109
      %1162 = vst [vmem:[#allocation2 + $0x420] sm:$0xff] %v1110
      %1163 = vst [vmem:[#allocation2 + $0x428] sm:$0xff] %v1111
      %1164 = vst [vmem:[#allocation2 + $0x430] sm:$0xff] %v1112
      %1165 = vst [vmem:[#allocation2 + $0x438] sm:$0xff] %v1113
      %1166 = vst [vmem:[#allocation2 + $0x440] sm:$0xff] %v1114
      %1167 = vst [vmem:[#allocation2 + $0x448] sm:$0xff] %v1115
      %1168 = vst [vmem:[#allocation2 + $0x450] sm:$0xff] %v1116
      %1169 = vst [vmem:[#allocation2 + $0x458] sm:$0xff] %v1117
      %1170 = vst [vmem:[#allocation2 + $0x460] sm:$0xff] %v1118
      %1171 = vst [vmem:[#allocation2 + $0x468] sm:$0xff] %v1119
      %1172 = vst [vmem:[#allocation2 + $0x470] sm:$0xff] %v1120
      %1173 = vst [vmem:[#allocation2 + $0x478] sm:$0xff] %v1121
      %1174 = vst [vmem:[#allocation2 + $0x480] sm:$0xff] %v1122
      %1175 = vst [vmem:[#allocation2 + $0x488] sm:$0xff] %v1123
      %1176 = vst [vmem:[#allocation2 + $0x490] sm:$0xff] %v1124
      %1177 = vst [vmem:[#allocation2 + $0x498] sm:$0xff] %v1125
      %1178 = vst [vmem:[#allocation2 + $0x4a0] sm:$0xff] %v1126
      %1179 = vst [vmem:[#allocation2 + $0x4a8] sm:$0xff] %v1127
      %1180 = vst [vmem:[#allocation2 + $0x4b0] sm:$0xff] %v1128
      %1181 = vst [vmem:[#allocation2 + $0x4b8] sm:$0xff] %v1129
      %1182 = vst [vmem:[#allocation2 + $0x4c0] sm:$0xff] %v1130
      %1183 = vst [vmem:[#allocation2 + $0x4c8] sm:$0xff] %v1131
      %1184 = vst [vmem:[#allocation2 + $0x4d0] sm:$0xff] %v1132
      %1185 = vst [vmem:[#allocation2 + $0x4d8] sm:$0xff] %v1133
      %v1186 = vld [vmem:[%s192] sm:$0xff]
      %v1187 = vld [vmem:[%s192 + $0x8] sm:$0xff]
      %v1188 = vld [vmem:[%s192 + $0x10] sm:$0xff]
      %v1189 = vld [vmem:[%s192 + $0x18] sm:$0xff]
      %v1190 = vld [vmem:[%s192 + $0x20] sm:$0xff]
      %v1191 = vld [vmem:[%s192 + $0x28] sm:$0xff]
      %v1192 = vld [vmem:[%s192 + $0x30] sm:$0xff]
      %v1193 = vld [vmem:[%s192 + $0x38] sm:$0xff]
      %v1194 = vld [vmem:[%s192 + $0x40] sm:$0xff]
      %v1195 = vld [vmem:[%s192 + $0x48] sm:$0xff]
      %v1196 = vld [vmem:[%s192 + $0x50] sm:$0xff]
      %v1197 = vld [vmem:[%s192 + $0x58] sm:$0xff]
      %v1198 = vld [vmem:[%s192 + $0x60] sm:$0xff]
      %v1199 = vld [vmem:[%s192 + $0x68] sm:$0xff]
      %v1200 = vld [vmem:[%s192 + $0x70] sm:$0xff]
      %v1201 = vld [vmem:[%s192 + $0x78] sm:$0xff]
      %v1202 = vld [vmem:[%s192 + $0x80] sm:$0xff]
      %v1203 = vld [vmem:[%s192 + $0x88] sm:$0xff]
      %v1204 = vld [vmem:[%s192 + $0x90] sm:$0xff]
      %v1205 = vld [vmem:[%s192 + $0x98] sm:$0xff]
      %v1206 = vld [vmem:[%s192 + $0xa0] sm:$0xff]
      %v1207 = vld [vmem:[%s192 + $0xa8] sm:$0xff]
      %v1208 = vld [vmem:[%s192 + $0xb0] sm:$0xff]
      %v1209 = vld [vmem:[%s192 + $0xb8] sm:$0xff]
      %v1210 = vld [vmem:[%s192 + $0xc0] sm:$0xff]
      %v1211 = vld [vmem:[%s192 + $0xc8] sm:$0xff]
      %v1212 = vld [vmem:[%s192 + $0xd0] sm:$0xff]
      %1240 = vrot.lane.b32.xlu0 %v1186, 92
      %v1241 = vpop.permute.xlu0 %1240
      %1242 = vrot.lane.b32.xlu0 %v1187, 92
      %v1243 = vpop.permute.xlu0 %1242
      %1244 = vrot.lane.b32.xlu0 %v1188, 92
      %v1245 = vpop.permute.xlu0 %1244
      %1246 = vrot.lane.b32.xlu0 %v1189, 92
      %v1247 = vpop.permute.xlu0 %1246
      %1248 = vrot.lane.b32.xlu0 %v1190, 92
      %v1249 = vpop.permute.xlu0 %1248
      %1250 = vrot.lane.b32.xlu0 %v1191, 92
      %v1251 = vpop.permute.xlu0 %1250
      %1252 = vrot.lane.b32.xlu0 %v1192, 92
      %v1253 = vpop.permute.xlu0 %1252
      %1254 = vrot.lane.b32.xlu0 %v1193, 92
      %v1255 = vpop.permute.xlu0 %1254
      %1256 = vrot.lane.b32.xlu0 %v1194, 92
      %v1257 = vpop.permute.xlu0 %1256
      %1258 = vrot.lane.b32.xlu0 %v1195, 92
      %v1259 = vpop.permute.xlu0 %1258
      %1260 = vrot.lane.b32.xlu0 %v1196, 92
      %v1261 = vpop.permute.xlu0 %1260
      %1262 = vrot.lane.b32.xlu0 %v1197, 92
      %v1263 = vpop.permute.xlu0 %1262
      %1264 = vrot.lane.b32.xlu0 %v1198, 92
      %v1265 = vpop.permute.xlu0 %1264
      %1266 = vrot.lane.b32.xlu0 %v1199, 92
      %v1267 = vpop.permute.xlu0 %1266
      %1268 = vrot.lane.b32.xlu0 %v1200, 92
      %v1269 = vpop.permute.xlu0 %1268
      %1270 = vrot.lane.b32.xlu0 %v1201, 92
      %v1271 = vpop.permute.xlu0 %1270
      %1272 = vrot.lane.b32.xlu0 %v1202, 92
      %v1273 = vpop.permute.xlu0 %1272
      %1274 = vrot.lane.b32.xlu0 %v1203, 92
      %v1275 = vpop.permute.xlu0 %1274
      %1276 = vrot.lane.b32.xlu0 %v1204, 92
      %v1277 = vpop.permute.xlu0 %1276
      %1278 = vrot.lane.b32.xlu0 %v1205, 92
      %v1279 = vpop.permute.xlu0 %1278
      %1280 = vrot.lane.b32.xlu0 %v1206, 92
      %v1281 = vpop.permute.xlu0 %1280
      %1282 = vrot.lane.b32.xlu0 %v1207, 92
      %v1283 = vpop.permute.xlu0 %1282
      %1284 = vrot.lane.b32.xlu0 %v1208, 92
      %v1285 = vpop.permute.xlu0 %1284
      %1286 = vrot.lane.b32.xlu0 %v1209, 92
      %v1287 = vpop.permute.xlu0 %1286
      %1288 = vrot.lane.b32.xlu0 %v1210, 92
      %v1289 = vpop.permute.xlu0 %1288
      %1290 = vrot.lane.b32.xlu0 %v1211, 92
      %v1291 = vpop.permute.xlu0 %1290
      %1292 = vrot.lane.b32.xlu0 %v1212, 92
      %v1293 = vpop.permute.xlu0 %1292
      %vm1294 = vcmask 752640
      %v1295 = vsel %vm1294, %v1241, %v1243
      %v1296 = vsel %vm1294, %v1243, %v1245
      %v1297 = vsel %vm1294, %v1245, %v1247
      %v1298 = vsel %vm1294, %v1247, %v1249
      %v1299 = vsel %vm1294, %v1249, %v1251
      %v1300 = vsel %vm1294, %v1251, %v1253
      %v1301 = vsel %vm1294, %v1253, %v1255
      %v1302 = vsel %vm1294, %v1255, %v1257
      %v1303 = vsel %vm1294, %v1257, %v1259
      %v1304 = vsel %vm1294, %v1259, %v1261
      %v1305 = vsel %vm1294, %v1261, %v1263
      %v1306 = vsel %vm1294, %v1263, %v1265
      %v1307 = vsel %vm1294, %v1265, %v1267
      %v1308 = vsel %vm1294, %v1267, %v1269
      %v1309 = vsel %vm1294, %v1269, %v1271
      %v1310 = vsel %vm1294, %v1271, %v1273
      %v1311 = vsel %vm1294, %v1273, %v1275
      %v1312 = vsel %vm1294, %v1275, %v1277
      %v1313 = vsel %vm1294, %v1277, %v1279
      %v1314 = vsel %vm1294, %v1279, %v1281
      %v1315 = vsel %vm1294, %v1281, %v1283
      %v1316 = vsel %vm1294, %v1283, %v1285
      %v1317 = vsel %vm1294, %v1285, %v1287
      %v1318 = vsel %vm1294, %v1287, %v1289
      %v1319 = vsel %vm1294, %v1289, %v1291
      %v1320 = vsel %vm1294, %v1291, %v1293
      %1347 = vst [vmem:[#allocation2 + $0x4e0] sm:$0xff] %v1295
      %1348 = vst [vmem:[#allocation2 + $0x4e8] sm:$0xff] %v1296
      %1349 = vst [vmem:[#allocation2 + $0x4f0] sm:$0xff] %v1297
      %1350 = vst [vmem:[#allocation2 + $0x4f8] sm:$0xff] %v1298
      %1351 = vst [vmem:[#allocation2 + $0x500] sm:$0xff] %v1299
      %1352 = vst [vmem:[#allocation2 + $0x508] sm:$0xff] %v1300
      %1353 = vst [vmem:[#allocation2 + $0x510] sm:$0xff] %v1301
      %1354 = vst [vmem:[#allocation2 + $0x518] sm:$0xff] %v1302
      %1355 = vst [vmem:[#allocation2 + $0x520] sm:$0xff] %v1303
      %1356 = vst [vmem:[#allocation2 + $0x528] sm:$0xff] %v1304
      %1357 = vst [vmem:[#allocation2 + $0x530] sm:$0xff] %v1305
      %1358 = vst [vmem:[#allocation2 + $0x538] sm:$0xff] %v1306
      %1359 = vst [vmem:[#allocation2 + $0x540] sm:$0xff] %v1307
      %1360 = vst [vmem:[#allocation2 + $0x548] sm:$0xff] %v1308
      %1361 = vst [vmem:[#allocation2 + $0x550] sm:$0xff] %v1309
      %1362 = vst [vmem:[#allocation2 + $0x558] sm:$0xff] %v1310
      %1363 = vst [vmem:[#allocation2 + $0x560] sm:$0xff] %v1311
      %1364 = vst [vmem:[#allocation2 + $0x568] sm:$0xff] %v1312
      %1365 = vst [vmem:[#allocation2 + $0x570] sm:$0xff] %v1313
      %1366 = vst [vmem:[#allocation2 + $0x578] sm:$0xff] %v1314
      %1367 = vst [vmem:[#allocation2 + $0x580] sm:$0xff] %v1315
      %1368 = vst [vmem:[#allocation2 + $0x588] sm:$0xff] %v1316
      %1369 = vst [vmem:[#allocation2 + $0x590] sm:$0xff] %v1317
      %1370 = vst [vmem:[#allocation2 + $0x598] sm:$0xff] %v1318
      %1371 = vst [vmem:[#allocation2 + $0x5a0] sm:$0xff] %v1319
      %1372 = vst [vmem:[#allocation2 + $0x5a8] sm:$0xff] %v1320
      %v1373 = vld [vmem:[%s192] sm:$0xff]
      %v1374 = vld [vmem:[%s192 + $0x8] sm:$0xff]
      %v1375 = vld [vmem:[%s192 + $0x10] sm:$0xff]
      %v1376 = vld [vmem:[%s192 + $0x18] sm:$0xff]
      %v1377 = vld [vmem:[%s192 + $0x20] sm:$0xff]
      %v1378 = vld [vmem:[%s192 + $0x28] sm:$0xff]
      %v1379 = vld [vmem:[%s192 + $0x30] sm:$0xff]
      %v1380 = vld [vmem:[%s192 + $0x38] sm:$0xff]
      %v1381 = vld [vmem:[%s192 + $0x40] sm:$0xff]
      %v1382 = vld [vmem:[%s192 + $0x48] sm:$0xff]
      %v1383 = vld [vmem:[%s192 + $0x50] sm:$0xff]
      %v1384 = vld [vmem:[%s192 + $0x58] sm:$0xff]
      %v1385 = vld [vmem:[%s192 + $0x60] sm:$0xff]
      %v1386 = vld [vmem:[%s192 + $0x68] sm:$0xff]
      %v1387 = vld [vmem:[%s192 + $0x70] sm:$0xff]
      %v1388 = vld [vmem:[%s192 + $0x78] sm:$0xff]
      %v1389 = vld [vmem:[%s192 + $0x80] sm:$0xff]
      %v1390 = vld [vmem:[%s192 + $0x88] sm:$0xff]
      %v1391 = vld [vmem:[%s192 + $0x90] sm:$0xff]
      %v1392 = vld [vmem:[%s192 + $0x98] sm:$0xff]
      %v1393 = vld [vmem:[%s192 + $0xa0] sm:$0xff]
      %v1394 = vld [vmem:[%s192 + $0xa8] sm:$0xff]
      %v1395 = vld [vmem:[%s192 + $0xb0] sm:$0xff]
      %v1396 = vld [vmem:[%s192 + $0xb8] sm:$0xff]
      %v1397 = vld [vmem:[%s192 + $0xc0] sm:$0xff]
      %v1398 = vld [vmem:[%s192 + $0xc8] sm:$0xff]
      %v1399 = vld [vmem:[%s192 + $0xd0] sm:$0xff]
      %1427 = vrot.lane.b32.xlu0 %v1373, 91
      %v1428 = vpop.permute.xlu0 %1427
      %1429 = vrot.lane.b32.xlu0 %v1374, 91
      %v1430 = vpop.permute.xlu0 %1429
      %1431 = vrot.lane.b32.xlu0 %v1375, 91
      %v1432 = vpop.permute.xlu0 %1431
      %1433 = vrot.lane.b32.xlu0 %v1376, 91
      %v1434 = vpop.permute.xlu0 %1433
      %1435 = vrot.lane.b32.xlu0 %v1377, 91
      %v1436 = vpop.permute.xlu0 %1435
      %1437 = vrot.lane.b32.xlu0 %v1378, 91
      %v1438 = vpop.permute.xlu0 %1437
      %1439 = vrot.lane.b32.xlu0 %v1379, 91
      %v1440 = vpop.permute.xlu0 %1439
      %1441 = vrot.lane.b32.xlu0 %v1380, 91
      %v1442 = vpop.permute.xlu0 %1441
      %1443 = vrot.lane.b32.xlu0 %v1381, 91
      %v1444 = vpop.permute.xlu0 %1443
      %1445 = vrot.lane.b32.xlu0 %v1382, 91
      %v1446 = vpop.permute.xlu0 %1445
      %1447 = vrot.lane.b32.xlu0 %v1383, 91
      %v1448 = vpop.permute.xlu0 %1447
      %1449 = vrot.lane.b32.xlu0 %v1384, 91
      %v1450 = vpop.permute.xlu0 %1449
      %1451 = vrot.lane.b32.xlu0 %v1385, 91
      %v1452 = vpop.permute.xlu0 %1451
      %1453 = vrot.lane.b32.xlu0 %v1386, 91
      %v1454 = vpop.permute.xlu0 %1453
      %1455 = vrot.lane.b32.xlu0 %v1387, 91
      %v1456 = vpop.permute.xlu0 %1455
      %1457 = vrot.lane.b32.xlu0 %v1388, 91
      %v1458 = vpop.permute.xlu0 %1457
      %1459 = vrot.lane.b32.xlu0 %v1389, 91
      %v1460 = vpop.permute.xlu0 %1459
      %1461 = vrot.lane.b32.xlu0 %v1390, 91
      %v1462 = vpop.permute.xlu0 %1461
      %1463 = vrot.lane.b32.xlu0 %v1391, 91
      %v1464 = vpop.permute.xlu0 %1463
      %1465 = vrot.lane.b32.xlu0 %v1392, 91
      %v1466 = vpop.permute.xlu0 %1465
      %1467 = vrot.lane.b32.xlu0 %v1393, 91
      %v1468 = vpop.permute.xlu0 %1467
      %1469 = vrot.lane.b32.xlu0 %v1394, 91
      %v1470 = vpop.permute.xlu0 %1469
      %1471 = vrot.lane.b32.xlu0 %v1395, 91
      %v1472 = vpop.permute.xlu0 %1471
      %1473 = vrot.lane.b32.xlu0 %v1396, 91
      %v1474 = vpop.permute.xlu0 %1473
      %1475 = vrot.lane.b32.xlu0 %v1397, 91
      %v1476 = vpop.permute.xlu0 %1475
      %1477 = vrot.lane.b32.xlu0 %v1398, 91
      %v1478 = vpop.permute.xlu0 %1477
      %1479 = vrot.lane.b32.xlu0 %v1399, 91
      %v1480 = vpop.permute.xlu0 %1479
      %vm1481 = vcmask 744448
      %v1482 = vsel %vm1481, %v1428, %v1430
      %v1483 = vsel %vm1481, %v1430, %v1432
      %v1484 = vsel %vm1481, %v1432, %v1434
      %v1485 = vsel %vm1481, %v1434, %v1436
      %v1486 = vsel %vm1481, %v1436, %v1438
      %v1487 = vsel %vm1481, %v1438, %v1440
      %v1488 = vsel %vm1481, %v1440, %v1442
      %v1489 = vsel %vm1481, %v1442, %v1444
      %v1490 = vsel %vm1481, %v1444, %v1446
      %v1491 = vsel %vm1481, %v1446, %v1448
      %v1492 = vsel %vm1481, %v1448, %v1450
      %v1493 = vsel %vm1481, %v1450, %v1452
      %v1494 = vsel %vm1481, %v1452, %v1454
      %v1495 = vsel %vm1481, %v1454, %v1456
      %v1496 = vsel %vm1481, %v1456, %v1458
      %v1497 = vsel %vm1481, %v1458, %v1460
      %v1498 = vsel %vm1481, %v1460, %v1462
      %v1499 = vsel %vm1481, %v1462, %v1464
      %v1500 = vsel %vm1481, %v1464, %v1466
      %v1501 = vsel %vm1481, %v1466, %v1468
      %v1502 = vsel %vm1481, %v1468, %v1470
      %v1503 = vsel %vm1481, %v1470, %v1472
      %v1504 = vsel %vm1481, %v1472, %v1474
      %v1505 = vsel %vm1481, %v1474, %v1476
      %v1506 = vsel %vm1481, %v1476, %v1478
      %v1507 = vsel %vm1481, %v1478, %v1480
      %1534 = vst [vmem:[#allocation2 + $0x5b0] sm:$0xff] %v1482
      %1535 = vst [vmem:[#allocation2 + $0x5b8] sm:$0xff] %v1483
      %1536 = vst [vmem:[#allocation2 + $0x5c0] sm:$0xff] %v1484
      %1537 = vst [vmem:[#allocation2 + $0x5c8] sm:$0xff] %v1485
      %1538 = vst [vmem:[#allocation2 + $0x5d0] sm:$0xff] %v1486
      %1539 = vst [vmem:[#allocation2 + $0x5d8] sm:$0xff] %v1487
      %1540 = vst [vmem:[#allocation2 + $0x5e0] sm:$0xff] %v1488
      %1541 = vst [vmem:[#allocation2 + $0x5e8] sm:$0xff] %v1489
      %1542 = vst [vmem:[#allocation2 + $0x5f0] sm:$0xff] %v1490
      %1543 = vst [vmem:[#allocation2 + $0x5f8] sm:$0xff] %v1491
      %1544 = vst [vmem:[#allocation2 + $0x600] sm:$0xff] %v1492
      %1545 = vst [vmem:[#allocation2 + $0x608] sm:$0xff] %v1493
      %1546 = vst [vmem:[#allocation2 + $0x610] sm:$0xff] %v1494
      %1547 = vst [vmem:[#allocation2 + $0x618] sm:$0xff] %v1495
      %1548 = vst [vmem:[#allocation2 + $0x620] sm:$0xff] %v1496
      %1549 = vst [vmem:[#allocation2 + $0x628] sm:$0xff] %v1497
      %1550 = vst [vmem:[#allocation2 + $0x630] sm:$0xff] %v1498
      %1551 = vst [vmem:[#allocation2 + $0x638] sm:$0xff] %v1499
      %1552 = vst [vmem:[#allocation2 + $0x640] sm:$0xff] %v1500
      %1553 = vst [vmem:[#allocation2 + $0x648] sm:$0xff] %v1501
      %1554 = vst [vmem:[#allocation2 + $0x650] sm:$0xff] %v1502
      %1555 = vst [vmem:[#allocation2 + $0x658] sm:$0xff] %v1503
      %1556 = vst [vmem:[#allocation2 + $0x660] sm:$0xff] %v1504
      %1557 = vst [vmem:[#allocation2 + $0x668] sm:$0xff] %v1505
      %1558 = vst [vmem:[#allocation2 + $0x670] sm:$0xff] %v1506
      %1559 = vst [vmem:[#allocation2 + $0x678] sm:$0xff] %v1507
      %v1560 = vld [vmem:[%s192] sm:$0xff]
      %v1561 = vld [vmem:[%s192 + $0x8] sm:$0xff]
      %v1562 = vld [vmem:[%s192 + $0x10] sm:$0xff]
      %v1563 = vld [vmem:[%s192 + $0x18] sm:$0xff]
      %v1564 = vld [vmem:[%s192 + $0x20] sm:$0xff]
      %v1565 = vld [vmem:[%s192 + $0x28] sm:$0xff]
      %v1566 = vld [vmem:[%s192 + $0x30] sm:$0xff]
      %v1567 = vld [vmem:[%s192 + $0x38] sm:$0xff]
      %v1568 = vld [vmem:[%s192 + $0x40] sm:$0xff]
      %v1569 = vld [vmem:[%s192 + $0x48] sm:$0xff]
      %v1570 = vld [vmem:[%s192 + $0x50] sm:$0xff]
      %v1571 = vld [vmem:[%s192 + $0x58] sm:$0xff]
      %v1572 = vld [vmem:[%s192 + $0x60] sm:$0xff]
      %v1573 = vld [vmem:[%s192 + $0x68] sm:$0xff]
      %v1574 = vld [vmem:[%s192 + $0x70] sm:$0xff]
      %v1575 = vld [vmem:[%s192 + $0x78] sm:$0xff]
      %v1576 = vld [vmem:[%s192 + $0x80] sm:$0xff]
      %v1577 = vld [vmem:[%s192 + $0x88] sm:$0xff]
      %v1578 = vld [vmem:[%s192 + $0x90] sm:$0xff]
      %v1579 = vld [vmem:[%s192 + $0x98] sm:$0xff]
      %v1580 = vld [vmem:[%s192 + $0xa0] sm:$0xff]
      %v1581 = vld [vmem:[%s192 + $0xa8] sm:$0xff]
      %v1582 = vld [vmem:[%s192 + $0xb0] sm:$0xff]
      %v1583 = vld [vmem:[%s192 + $0xb8] sm:$0xff]
      %v1584 = vld [vmem:[%s192 + $0xc0] sm:$0xff]
      %v1585 = vld [vmem:[%s192 + $0xc8] sm:$0xff]
      %v1586 = vld [vmem:[%s192 + $0xd0] sm:$0xff]
      %1614 = vrot.lane.b32.xlu0 %v1560, 90
      %v1615 = vpop.permute.xlu0 %1614
      %1616 = vrot.lane.b32.xlu0 %v1561, 90
      %v1617 = vpop.permute.xlu0 %1616
      %1618 = vrot.lane.b32.xlu0 %v1562, 90
      %v1619 = vpop.permute.xlu0 %1618
      %1620 = vrot.lane.b32.xlu0 %v1563, 90
      %v1621 = vpop.permute.xlu0 %1620
      %1622 = vrot.lane.b32.xlu0 %v1564, 90
      %v1623 = vpop.permute.xlu0 %1622
      %1624 = vrot.lane.b32.xlu0 %v1565, 90
      %v1625 = vpop.permute.xlu0 %1624
      %1626 = vrot.lane.b32.xlu0 %v1566, 90
      %v1627 = vpop.permute.xlu0 %1626
      %1628 = vrot.lane.b32.xlu0 %v1567, 90
      %v1629 = vpop.permute.xlu0 %1628
      %1630 = vrot.lane.b32.xlu0 %v1568, 90
      %v1631 = vpop.permute.xlu0 %1630
      %1632 = vrot.lane.b32.xlu0 %v1569, 90
      %v1633 = vpop.permute.xlu0 %1632
      %1634 = vrot.lane.b32.xlu0 %v1570, 90
      %v1635 = vpop.permute.xlu0 %1634
      %1636 = vrot.lane.b32.xlu0 %v1571, 90
      %v1637 = vpop.permute.xlu0 %1636
      %1638 = vrot.lane.b32.xlu0 %v1572, 90
      %v1639 = vpop.permute.xlu0 %1638
      %1640 = vrot.lane.b32.xlu0 %v1573, 90
      %v1641 = vpop.permute.xlu0 %1640
      %1642 = vrot.lane.b32.xlu0 %v1574, 90
      %v1643 = vpop.permute.xlu0 %1642
      %1644 = vrot.lane.b32.xlu0 %v1575, 90
      %v1645 = vpop.permute.xlu0 %1644
      %1646 = vrot.lane.b32.xlu0 %v1576, 90
      %v1647 = vpop.permute.xlu0 %1646
      %1648 = vrot.lane.b32.xlu0 %v1577, 90
      %v1649 = vpop.permute.xlu0 %1648
      %1650 = vrot.lane.b32.xlu0 %v1578, 90
      %v1651 = vpop.permute.xlu0 %1650
      %1652 = vrot.lane.b32.xlu0 %v1579, 90
      %v1653 = vpop.permute.xlu0 %1652
      %1654 = vrot.lane.b32.xlu0 %v1580, 90
      %v1655 = vpop.permute.xlu0 %1654
      %1656 = vrot.lane.b32.xlu0 %v1581, 90
      %v1657 = vpop.permute.xlu0 %1656
      %1658 = vrot.lane.b32.xlu0 %v1582, 90
      %v1659 = vpop.permute.xlu0 %1658
      %1660 = vrot.lane.b32.xlu0 %v1583, 90
      %v1661 = vpop.permute.xlu0 %1660
      %1662 = vrot.lane.b32.xlu0 %v1584, 90
      %v1663 = vpop.permute.xlu0 %1662
      %1664 = vrot.lane.b32.xlu0 %v1585, 90
      %v1665 = vpop.permute.xlu0 %1664
      %1666 = vrot.lane.b32.xlu0 %v1586, 90
      %v1667 = vpop.permute.xlu0 %1666
      %vm1668 = vcmask 736256
      %v1669 = vsel %vm1668, %v1615, %v1617
      %v1670 = vsel %vm1668, %v1617, %v1619
      %v1671 = vsel %vm1668, %v1619, %v1621
      %v1672 = vsel %vm1668, %v1621, %v1623
      %v1673 = vsel %vm1668, %v1623, %v1625
      %v1674 = vsel %vm1668, %v1625, %v1627
      %v1675 = vsel %vm1668, %v1627, %v1629
      %v1676 = vsel %vm1668, %v1629, %v1631
      %v1677 = vsel %vm1668, %v1631, %v1633
      %v1678 = vsel %vm1668, %v1633, %v1635
      %v1679 = vsel %vm1668, %v1635, %v1637
      %v1680 = vsel %vm1668, %v1637, %v1639
      %v1681 = vsel %vm1668, %v1639, %v1641
      %v1682 = vsel %vm1668, %v1641, %v1643
      %v1683 = vsel %vm1668, %v1643, %v1645
      %v1684 = vsel %vm1668, %v1645, %v1647
      %v1685 = vsel %vm1668, %v1647, %v1649
      %v1686 = vsel %vm1668, %v1649, %v1651
      %v1687 = vsel %vm1668, %v1651, %v1653
      %v1688 = vsel %vm1668, %v1653, %v1655
      %v1689 = vsel %vm1668, %v1655, %v1657
      %v1690 = vsel %vm1668, %v1657, %v1659
      %v1691 = vsel %vm1668, %v1659, %v1661
      %v1692 = vsel %vm1668, %v1661, %v1663
      %v1693 = vsel %vm1668, %v1663, %v1665
      %v1694 = vsel %vm1668, %v1665, %v1667
      %1721 = vst [vmem:[#allocation2 + $0x680] sm:$0xff] %v1669
      %1722 = vst [vmem:[#allocation2 + $0x688] sm:$0xff] %v1670
      %1723 = vst [vmem:[#allocation2 + $0x690] sm:$0xff] %v1671
      %1724 = vst [vmem:[#allocation2 + $0x698] sm:$0xff] %v1672
      %1725 = vst [vmem:[#allocation2 + $0x6a0] sm:$0xff] %v1673
      %1726 = vst [vmem:[#allocation2 + $0x6a8] sm:$0xff] %v1674
      %1727 = vst [vmem:[#allocation2 + $0x6b0] sm:$0xff] %v1675
      %1728 = vst [vmem:[#allocation2 + $0x6b8] sm:$0xff] %v1676
      %1729 = vst [vmem:[#allocation2 + $0x6c0] sm:$0xff] %v1677
      %1730 = vst [vmem:[#allocation2 + $0x6c8] sm:$0xff] %v1678
      %1731 = vst [vmem:[#allocation2 + $0x6d0] sm:$0xff] %v1679
      %1732 = vst [vmem:[#allocation2 + $0x6d8] sm:$0xff] %v1680
      %1733 = vst [vmem:[#allocation2 + $0x6e0] sm:$0xff] %v1681
      %1734 = vst [vmem:[#allocation2 + $0x6e8] sm:$0xff] %v1682
      %1735 = vst [vmem:[#allocation2 + $0x6f0] sm:$0xff] %v1683
      %1736 = vst [vmem:[#allocation2 + $0x6f8] sm:$0xff] %v1684
      %1737 = vst [vmem:[#allocation2 + $0x700] sm:$0xff] %v1685
      %1738 = vst [vmem:[#allocation2 + $0x708] sm:$0xff] %v1686
      %1739 = vst [vmem:[#allocation2 + $0x710] sm:$0xff] %v1687
      %1740 = vst [vmem:[#allocation2 + $0x718] sm:$0xff] %v1688
      %1741 = vst [vmem:[#allocation2 + $0x720] sm:$0xff] %v1689
      %1742 = vst [vmem:[#allocation2 + $0x728] sm:$0xff] %v1690
      %1743 = vst [vmem:[#allocation2 + $0x730] sm:$0xff] %v1691
      %1744 = vst [vmem:[#allocation2 + $0x738] sm:$0xff] %v1692
      %1745 = vst [vmem:[#allocation2 + $0x740] sm:$0xff] %v1693
      %1746 = vst [vmem:[#allocation2 + $0x748] sm:$0xff] %v1694
      %v1747 = vld [vmem:[%s192 + $0x10] sm:$0xff]
      %v1748 = vld [vmem:[%s192 + $0x18] sm:$0xff]
      %v1749 = vld [vmem:[%s192 + $0x20] sm:$0xff]
      %v1750 = vld [vmem:[%s192 + $0x28] sm:$0xff]
      %v1751 = vld [vmem:[%s192 + $0x30] sm:$0xff]
      %v1752 = vld [vmem:[%s192 + $0x38] sm:$0xff]
      %v1753 = vld [vmem:[%s192 + $0x40] sm:$0xff]
      %v1754 = vld [vmem:[%s192 + $0x48] sm:$0xff]
      %v1755 = vld [vmem:[%s192 + $0x50] sm:$0xff]
      %v1756 = vld [vmem:[%s192 + $0x58] sm:$0xff]
      %v1757 = vld [vmem:[%s192 + $0x60] sm:$0xff]
      %v1758 = vld [vmem:[%s192 + $0x68] sm:$0xff]
      %v1759 = vld [vmem:[%s192 + $0x70] sm:$0xff]
      %v1760 = vld [vmem:[%s192 + $0x78] sm:$0xff]
      %v1761 = vld [vmem:[%s192 + $0x80] sm:$0xff]
      %v1762 = vld [vmem:[%s192 + $0x88] sm:$0xff]
      %v1763 = vld [vmem:[%s192 + $0x90] sm:$0xff]
      %v1764 = vld [vmem:[%s192 + $0x98] sm:$0xff]
      %v1765 = vld [vmem:[%s192 + $0xa0] sm:$0xff]
      %v1766 = vld [vmem:[%s192 + $0xa8] sm:$0xff]
      %v1767 = vld [vmem:[%s192 + $0xb0] sm:$0xff]
      %v1768 = vld [vmem:[%s192 + $0xb8] sm:$0xff]
      %v1769 = vld [vmem:[%s192 + $0xc0] sm:$0xff]
      %v1770 = vld [vmem:[%s192 + $0xc8] sm:$0xff]
      %v1771 = vld [vmem:[%s192 + $0xd0] sm:$0xff]
      %v1772 = vld [vmem:[%s192 + $0xd8] sm:$0xff]
      %v1773 = vld [vmem:[%s192 + $0xe0] sm:$0xff]
      %1801 = vrot.lane.b32.xlu0 %v1747, 60
      %v1802 = vpop.permute.xlu0 %1801
      %1803 = vrot.lane.b32.xlu0 %v1748, 60
      %v1804 = vpop.permute.xlu0 %1803
      %1805 = vrot.lane.b32.xlu0 %v1749, 60
      %v1806 = vpop.permute.xlu0 %1805
      %1807 = vrot.lane.b32.xlu0 %v1750, 60
      %v1808 = vpop.permute.xlu0 %1807
      %1809 = vrot.lane.b32.xlu0 %v1751, 60
      %v1810 = vpop.permute.xlu0 %1809
      %1811 = vrot.lane.b32.xlu0 %v1752, 60
      %v1812 = vpop.permute.xlu0 %1811
      %1813 = vrot.lane.b32.xlu0 %v1753, 60
      %v1814 = vpop.permute.xlu0 %1813
      %1815 = vrot.lane.b32.xlu0 %v1754, 60
      %v1816 = vpop.permute.xlu0 %1815
      %1817 = vrot.lane.b32.xlu0 %v1755, 60
      %v1818 = vpop.permute.xlu0 %1817
      %1819 = vrot.lane.b32.xlu0 %v1756, 60
      %v1820 = vpop.permute.xlu0 %1819
      %1821 = vrot.lane.b32.xlu0 %v1757, 60
      %v1822 = vpop.permute.xlu0 %1821
      %1823 = vrot.lane.b32.xlu0 %v1758, 60
      %v1824 = vpop.permute.xlu0 %1823
      %1825 = vrot.lane.b32.xlu0 %v1759, 60
      %v1826 = vpop.permute.xlu0 %1825
      %1827 = vrot.lane.b32.xlu0 %v1760, 60
      %v1828 = vpop.permute.xlu0 %1827
      %1829 = vrot.lane.b32.xlu0 %v1761, 60
      %v1830 = vpop.permute.xlu0 %1829
      %1831 = vrot.lane.b32.xlu0 %v1762, 60
      %v1832 = vpop.permute.xlu0 %1831
      %1833 = vrot.lane.b32.xlu0 %v1763, 60
      %v1834 = vpop.permute.xlu0 %1833
      %1835 = vrot.lane.b32.xlu0 %v1764, 60
      %v1836 = vpop.permute.xlu0 %1835
      %1837 = vrot.lane.b32.xlu0 %v1765, 60
      %v1838 = vpop.permute.xlu0 %1837
      %1839 = vrot.lane.b32.xlu0 %v1766, 60
      %v1840 = vpop.permute.xlu0 %1839
      %1841 = vrot.lane.b32.xlu0 %v1767, 60
      %v1842 = vpop.permute.xlu0 %1841
      %1843 = vrot.lane.b32.xlu0 %v1768, 60
      %v1844 = vpop.permute.xlu0 %1843
      %1845 = vrot.lane.b32.xlu0 %v1769, 60
      %v1846 = vpop.permute.xlu0 %1845
      %1847 = vrot.lane.b32.xlu0 %v1770, 60
      %v1848 = vpop.permute.xlu0 %1847
      %1849 = vrot.lane.b32.xlu0 %v1771, 60
      %v1850 = vpop.permute.xlu0 %1849
      %1851 = vrot.lane.b32.xlu0 %v1772, 60
      %v1852 = vpop.permute.xlu0 %1851
      %1853 = vrot.lane.b32.xlu0 %v1773, 60
      %v1854 = vpop.permute.xlu0 %1853
      %vm1855 = vcmask 490496
      %v1856 = vsel %vm1855, %v1802, %v1804
      %v1857 = vsel %vm1855, %v1804, %v1806
      %v1858 = vsel %vm1855, %v1806, %v1808
      %v1859 = vsel %vm1855, %v1808, %v1810
      %v1860 = vsel %vm1855, %v1810, %v1812
      %v1861 = vsel %vm1855, %v1812, %v1814
      %v1862 = vsel %vm1855, %v1814, %v1816
      %v1863 = vsel %vm1855, %v1816, %v1818
      %v1864 = vsel %vm1855, %v1818, %v1820
      %v1865 = vsel %vm1855, %v1820, %v1822
      %v1866 = vsel %vm1855, %v1822, %v1824
      %v1867 = vsel %vm1855, %v1824, %v1826
      %v1868 = vsel %vm1855, %v1826, %v1828
      %v1869 = vsel %vm1855, %v1828, %v1830
      %v1870 = vsel %vm1855, %v1830, %v1832
      %v1871 = vsel %vm1855, %v1832, %v1834
      %v1872 = vsel %vm1855, %v1834, %v1836
      %v1873 = vsel %vm1855, %v1836, %v1838
      %v1874 = vsel %vm1855, %v1838, %v1840
      %v1875 = vsel %vm1855, %v1840, %v1842
      %v1876 = vsel %vm1855, %v1842, %v1844
      %v1877 = vsel %vm1855, %v1844, %v1846
      %v1878 = vsel %vm1855, %v1846, %v1848
      %v1879 = vsel %vm1855, %v1848, %v1850
      %v1880 = vsel %vm1855, %v1850, %v1852
      %v1881 = vsel %vm1855, %v1852, %v1854
      %1908 = vst [vmem:[#allocation2 + $0x750] sm:$0xff] %v1856
      %1909 = vst [vmem:[#allocation2 + $0x758] sm:$0xff] %v1857
      %1910 = vst [vmem:[#allocation2 + $0x760] sm:$0xff] %v1858
      %1911 = vst [vmem:[#allocation2 + $0x768] sm:$0xff] %v1859
      %1912 = vst [vmem:[#allocation2 + $0x770] sm:$0xff] %v1860
      %1913 = vst [vmem:[#allocation2 + $0x778] sm:$0xff] %v1861
      %1914 = vst [vmem:[#allocation2 + $0x780] sm:$0xff] %v1862
      %1915 = vst [vmem:[#allocation2 + $0x788] sm:$0xff] %v1863
      %1916 = vst [vmem:[#allocation2 + $0x790] sm:$0xff] %v1864
      %1917 = vst [vmem:[#allocation2 + $0x798] sm:$0xff] %v1865
      %1918 = vst [vmem:[#allocation2 + $0x7a0] sm:$0xff] %v1866
      %1919 = vst [vmem:[#allocation2 + $0x7a8] sm:$0xff] %v1867
      %1920 = vst [vmem:[#allocation2 + $0x7b0] sm:$0xff] %v1868
      %1921 = vst [vmem:[#allocation2 + $0x7b8] sm:$0xff] %v1869
      %1922 = vst [vmem:[#allocation2 + $0x7c0] sm:$0xff] %v1870
      %1923 = vst [vmem:[#allocation2 + $0x7c8] sm:$0xff] %v1871
      %1924 = vst [vmem:[#allocation2 + $0x7d0] sm:$0xff] %v1872
      %1925 = vst [vmem:[#allocation2 + $0x7d8] sm:$0xff] %v1873
      %1926 = vst [vmem:[#allocation2 + $0x7e0] sm:$0xff] %v1874
      %1927 = vst [vmem:[#allocation2 + $0x7e8] sm:$0xff] %v1875
      %1928 = vst [vmem:[#allocation2 + $0x7f0] sm:$0xff] %v1876
      %1929 = vst [vmem:[#allocation2 + $0x7f8] sm:$0xff] %v1877
      %1930 = vst [vmem:[#allocation2 + $0x800] sm:$0xff] %v1878
      %1931 = vst [vmem:[#allocation2 + $0x808] sm:$0xff] %v1879
      %1932 = vst [vmem:[#allocation2 + $0x810] sm:$0xff] %v1880
      %1933 = vst [vmem:[#allocation2 + $0x818] sm:$0xff] %v1881
      %v1934 = vld [vmem:[%s192 + $0x10] sm:$0xff]
      %v1935 = vld [vmem:[%s192 + $0x18] sm:$0xff]
      %v1936 = vld [vmem:[%s192 + $0x20] sm:$0xff]
      %v1937 = vld [vmem:[%s192 + $0x28] sm:$0xff]
      %v1938 = vld [vmem:[%s192 + $0x30] sm:$0xff]
      %v1939 = vld [vmem:[%s192 + $0x38] sm:$0xff]
      %v1940 = vld [vmem:[%s192 + $0x40] sm:$0xff]
      %v1941 = vld [vmem:[%s192 + $0x48] sm:$0xff]
      %v1942 = vld [vmem:[%s192 + $0x50] sm:$0xff]
      %v1943 = vld [vmem:[%s192 + $0x58] sm:$0xff]
      %v1944 = vld [vmem:[%s192 + $0x60] sm:$0xff]
      %v1945 = vld [vmem:[%s192 + $0x68] sm:$0xff]
      %v1946 = vld [vmem:[%s192 + $0x70] sm:$0xff]
      %v1947 = vld [vmem:[%s192 + $0x78] sm:$0xff]
      %v1948 = vld [vmem:[%s192 + $0x80] sm:$0xff]
      %v1949 = vld [vmem:[%s192 + $0x88] sm:$0xff]
      %v1950 = vld [vmem:[%s192 + $0x90] sm:$0xff]
      %v1951 = vld [vmem:[%s192 + $0x98] sm:$0xff]
      %v1952 = vld [vmem:[%s192 + $0xa0] sm:$0xff]
      %v1953 = vld [vmem:[%s192 + $0xa8] sm:$0xff]
      %v1954 = vld [vmem:[%s192 + $0xb0] sm:$0xff]
      %v1955 = vld [vmem:[%s192 + $0xb8] sm:$0xff]
      %v1956 = vld [vmem:[%s192 + $0xc0] sm:$0xff]
      %v1957 = vld [vmem:[%s192 + $0xc8] sm:$0xff]
      %v1958 = vld [vmem:[%s192 + $0xd0] sm:$0xff]
      %v1959 = vld [vmem:[%s192 + $0xd8] sm:$0xff]
      %v1960 = vld [vmem:[%s192 + $0xe0] sm:$0xff]
      %1988 = vrot.lane.b32.xlu0 %v1934, 59
      %v1989 = vpop.permute.xlu0 %1988
      %1990 = vrot.lane.b32.xlu0 %v1935, 59
      %v1991 = vpop.permute.xlu0 %1990
      %1992 = vrot.lane.b32.xlu0 %v1936, 59
      %v1993 = vpop.permute.xlu0 %1992
      %1994 = vrot.lane.b32.xlu0 %v1937, 59
      %v1995 = vpop.permute.xlu0 %1994
      %1996 = vrot.lane.b32.xlu0 %v1938, 59
      %v1997 = vpop.permute.xlu0 %1996
      %1998 = vrot.lane.b32.xlu0 %v1939, 59
      %v1999 = vpop.permute.xlu0 %1998
      %2000 = vrot.lane.b32.xlu0 %v1940, 59
      %v2001 = vpop.permute.xlu0 %2000
      %2002 = vrot.lane.b32.xlu0 %v1941, 59
      %v2003 = vpop.permute.xlu0 %2002
      %2004 = vrot.lane.b32.xlu0 %v1942, 59
      %v2005 = vpop.permute.xlu0 %2004
      %2006 = vrot.lane.b32.xlu0 %v1943, 59
      %v2007 = vpop.permute.xlu0 %2006
      %2008 = vrot.lane.b32.xlu0 %v1944, 59
      %v2009 = vpop.permute.xlu0 %2008
      %2010 = vrot.lane.b32.xlu0 %v1945, 59
      %v2011 = vpop.permute.xlu0 %2010
      %2012 = vrot.lane.b32.xlu0 %v1946, 59
      %v2013 = vpop.permute.xlu0 %2012
      %2014 = vrot.lane.b32.xlu0 %v1947, 59
      %v2015 = vpop.permute.xlu0 %2014
      %2016 = vrot.lane.b32.xlu0 %v1948, 59
      %v2017 = vpop.permute.xlu0 %2016
      %2018 = vrot.lane.b32.xlu0 %v1949, 59
      %v2019 = vpop.permute.xlu0 %2018
      %2020 = vrot.lane.b32.xlu0 %v1950, 59
      %v2021 = vpop.permute.xlu0 %2020
      %2022 = vrot.lane.b32.xlu0 %v1951, 59
      %v2023 = vpop.permute.xlu0 %2022
      %2024 = vrot.lane.b32.xlu0 %v1952, 59
      %v2025 = vpop.permute.xlu0 %2024
      %2026 = vrot.lane.b32.xlu0 %v1953, 59
      %v2027 = vpop.permute.xlu0 %2026
      %2028 = vrot.lane.b32.xlu0 %v1954, 59
      %v2029 = vpop.permute.xlu0 %2028
      %2030 = vrot.lane.b32.xlu0 %v1955, 59
      %v2031 = vpop.permute.xlu0 %2030
      %2032 = vrot.lane.b32.xlu0 %v1956, 59
      %v2033 = vpop.permute.xlu0 %2032
      %2034 = vrot.lane.b32.xlu0 %v1957, 59
      %v2035 = vpop.permute.xlu0 %2034
      %2036 = vrot.lane.b32.xlu0 %v1958, 59
      %v2037 = vpop.permute.xlu0 %2036
      %2038 = vrot.lane.b32.xlu0 %v1959, 59
      %v2039 = vpop.permute.xlu0 %2038
      %2040 = vrot.lane.b32.xlu0 %v1960, 59
      %v2041 = vpop.permute.xlu0 %2040
      %vm2042 = vcmask 482304
      %v2043 = vsel %vm2042, %v1989, %v1991
      %v2044 = vsel %vm2042, %v1991, %v1993
      %v2045 = vsel %vm2042, %v1993, %v1995
      %v2046 = vsel %vm2042, %v1995, %v1997
      %v2047 = vsel %vm2042, %v1997, %v1999
      %v2048 = vsel %vm2042, %v1999, %v2001
      %v2049 = vsel %vm2042, %v2001, %v2003
      %v2050 = vsel %vm2042, %v2003, %v2005
      %v2051 = vsel %vm2042, %v2005, %v2007
      %v2052 = vsel %vm2042, %v2007, %v2009
      %v2053 = vsel %vm2042, %v2009, %v2011
      %v2054 = vsel %vm2042, %v2011, %v2013
      %v2055 = vsel %vm2042, %v2013, %v2015
      %v2056 = vsel %vm2042, %v2015, %v2017
      %v2057 = vsel %vm2042, %v2017, %v2019
      %v2058 = vsel %vm2042, %v2019, %v2021
      %v2059 = vsel %vm2042, %v2021, %v2023
      %v2060 = vsel %vm2042, %v2023, %v2025
      %v2061 = vsel %vm2042, %v2025, %v2027
      %v2062 = vsel %vm2042, %v2027, %v2029
      %v2063 = vsel %vm2042, %v2029, %v2031
      %v2064 = vsel %vm2042, %v2031, %v2033
      %v2065 = vsel %vm2042, %v2033, %v2035
      %v2066 = vsel %vm2042, %v2035, %v2037
      %v2067 = vsel %vm2042, %v2037, %v2039
      %v2068 = vsel %vm2042, %v2039, %v2041
      %2095 = vst [vmem:[#allocation2 + $0x820] sm:$0xff] %v2043
      %2096 = vst [vmem:[#allocation2 + $0x828] sm:$0xff] %v2044
      %2097 = vst [vmem:[#allocation2 + $0x830] sm:$0xff] %v2045
      %2098 = vst [vmem:[#allocation2 + $0x838] sm:$0xff] %v2046
      %2099 = vst [vmem:[#allocation2 + $0x840] sm:$0xff] %v2047
      %2100 = vst [vmem:[#allocation2 + $0x848] sm:$0xff] %v2048
      %2101 = vst [vmem:[#allocation2 + $0x850] sm:$0xff] %v2049
      %2102 = vst [vmem:[#allocation2 + $0x858] sm:$0xff] %v2050
      %2103 = vst [vmem:[#allocation2 + $0x860] sm:$0xff] %v2051
      %2104 = vst [vmem:[#allocation2 + $0x868] sm:$0xff] %v2052
      %2105 = vst [vmem:[#allocation2 + $0x870] sm:$0xff] %v2053
      %2106 = vst [vmem:[#allocation2 + $0x878] sm:$0xff] %v2054
      %2107 = vst [vmem:[#allocation2 + $0x880] sm:$0xff] %v2055
      %2108 = vst [vmem:[#allocation2 + $0x888] sm:$0xff] %v2056
      %2109 = vst [vmem:[#allocation2 + $0x890] sm:$0xff] %v2057
      %2110 = vst [vmem:[#allocation2 + $0x898] sm:$0xff] %v2058
      %2111 = vst [vmem:[#allocation2 + $0x8a0] sm:$0xff] %v2059
      %2112 = vst [vmem:[#allocation2 + $0x8a8] sm:$0xff] %v2060
      %2113 = vst [vmem:[#allocation2 + $0x8b0] sm:$0xff] %v2061
      %2114 = vst [vmem:[#allocation2 + $0x8b8] sm:$0xff] %v2062
      %2115 = vst [vmem:[#allocation2 + $0x8c0] sm:$0xff] %v2063
      %2116 = vst [vmem:[#allocation2 + $0x8c8] sm:$0xff] %v2064
      %2117 = vst [vmem:[#allocation2 + $0x8d0] sm:$0xff] %v2065
      %2118 = vst [vmem:[#allocation2 + $0x8d8] sm:$0xff] %v2066
      %2119 = vst [vmem:[#allocation2 + $0x8e0] sm:$0xff] %v2067
      %2120 = vst [vmem:[#allocation2 + $0x8e8] sm:$0xff] %v2068
      %v2121 = vld [vmem:[%s192 + $0x10] sm:$0xff]
      %v2122 = vld [vmem:[%s192 + $0x18] sm:$0xff]
      %v2123 = vld [vmem:[%s192 + $0x20] sm:$0xff]
      %v2124 = vld [vmem:[%s192 + $0x28] sm:$0xff]
      %v2125 = vld [vmem:[%s192 + $0x30] sm:$0xff]
      %v2126 = vld [vmem:[%s192 + $0x38] sm:$0xff]
      %v2127 = vld [vmem:[%s192 + $0x40] sm:$0xff]
      %v2128 = vld [vmem:[%s192 + $0x48] sm:$0xff]
      %v2129 = vld [vmem:[%s192 + $0x50] sm:$0xff]
      %v2130 = vld [vmem:[%s192 + $0x58] sm:$0xff]
      %v2131 = vld [vmem:[%s192 + $0x60] sm:$0xff]
      %v2132 = vld [vmem:[%s192 + $0x68] sm:$0xff]
      %v2133 = vld [vmem:[%s192 + $0x70] sm:$0xff]
      %v2134 = vld [vmem:[%s192 + $0x78] sm:$0xff]
      %v2135 = vld [vmem:[%s192 + $0x80] sm:$0xff]
      %v2136 = vld [vmem:[%s192 + $0x88] sm:$0xff]
      %v2137 = vld [vmem:[%s192 + $0x90] sm:$0xff]
      %v2138 = vld [vmem:[%s192 + $0x98] sm:$0xff]
      %v2139 = vld [vmem:[%s192 + $0xa0] sm:$0xff]
      %v2140 = vld [vmem:[%s192 + $0xa8] sm:$0xff]
      %v2141 = vld [vmem:[%s192 + $0xb0] sm:$0xff]
      %v2142 = vld [vmem:[%s192 + $0xb8] sm:$0xff]
      %v2143 = vld [vmem:[%s192 + $0xc0] sm:$0xff]
      %v2144 = vld [vmem:[%s192 + $0xc8] sm:$0xff]
      %v2145 = vld [vmem:[%s192 + $0xd0] sm:$0xff]
      %v2146 = vld [vmem:[%s192 + $0xd8] sm:$0xff]
      %v2147 = vld [vmem:[%s192 + $0xe0] sm:$0xff]
      %2175 = vrot.lane.b32.xlu0 %v2121, 58
      %v2176 = vpop.permute.xlu0 %2175
      %2177 = vrot.lane.b32.xlu0 %v2122, 58
      %v2178 = vpop.permute.xlu0 %2177
      %2179 = vrot.lane.b32.xlu0 %v2123, 58
      %v2180 = vpop.permute.xlu0 %2179
      %2181 = vrot.lane.b32.xlu0 %v2124, 58
      %v2182 = vpop.permute.xlu0 %2181
      %2183 = vrot.lane.b32.xlu0 %v2125, 58
      %v2184 = vpop.permute.xlu0 %2183
      %2185 = vrot.lane.b32.xlu0 %v2126, 58
      %v2186 = vpop.permute.xlu0 %2185
      %2187 = vrot.lane.b32.xlu0 %v2127, 58
      %v2188 = vpop.permute.xlu0 %2187
      %2189 = vrot.lane.b32.xlu0 %v2128, 58
      %v2190 = vpop.permute.xlu0 %2189
      %2191 = vrot.lane.b32.xlu0 %v2129, 58
      %v2192 = vpop.permute.xlu0 %2191
      %2193 = vrot.lane.b32.xlu0 %v2130, 58
      %v2194 = vpop.permute.xlu0 %2193
      %2195 = vrot.lane.b32.xlu0 %v2131, 58
      %v2196 = vpop.permute.xlu0 %2195
      %2197 = vrot.lane.b32.xlu0 %v2132, 58
      %v2198 = vpop.permute.xlu0 %2197
      %2199 = vrot.lane.b32.xlu0 %v2133, 58
      %v2200 = vpop.permute.xlu0 %2199
      %2201 = vrot.lane.b32.xlu0 %v2134, 58
      %v2202 = vpop.permute.xlu0 %2201
      %2203 = vrot.lane.b32.xlu0 %v2135, 58
      %v2204 = vpop.permute.xlu0 %2203
      %2205 = vrot.lane.b32.xlu0 %v2136, 58
      %v2206 = vpop.permute.xlu0 %2205
      %2207 = vrot.lane.b32.xlu0 %v2137, 58
      %v2208 = vpop.permute.xlu0 %2207
      %2209 = vrot.lane.b32.xlu0 %v2138, 58
      %v2210 = vpop.permute.xlu0 %2209
      %2211 = vrot.lane.b32.xlu0 %v2139, 58
      %v2212 = vpop.permute.xlu0 %2211
      %2213 = vrot.lane.b32.xlu0 %v2140, 58
      %v2214 = vpop.permute.xlu0 %2213
      %2215 = vrot.lane.b32.xlu0 %v2141, 58
      %v2216 = vpop.permute.xlu0 %2215
      %2217 = vrot.lane.b32.xlu0 %v2142, 58
      %v2218 = vpop.permute.xlu0 %2217
      %2219 = vrot.lane.b32.xlu0 %v2143, 58
      %v2220 = vpop.permute.xlu0 %2219
      %2221 = vrot.lane.b32.xlu0 %v2144, 58
      %v2222 = vpop.permute.xlu0 %2221
      %2223 = vrot.lane.b32.xlu0 %v2145, 58
      %v2224 = vpop.permute.xlu0 %2223
      %2225 = vrot.lane.b32.xlu0 %v2146, 58
      %v2226 = vpop.permute.xlu0 %2225
      %2227 = vrot.lane.b32.xlu0 %v2147, 58
      %v2228 = vpop.permute.xlu0 %2227
      %vm2229 = vcmask 474112
      %v2230 = vsel %vm2229, %v2176, %v2178
      %v2231 = vsel %vm2229, %v2178, %v2180
      %v2232 = vsel %vm2229, %v2180, %v2182
      %v2233 = vsel %vm2229, %v2182, %v2184
      %v2234 = vsel %vm2229, %v2184, %v2186
      %v2235 = vsel %vm2229, %v2186, %v2188
      %v2236 = vsel %vm2229, %v2188, %v2190
      %v2237 = vsel %vm2229, %v2190, %v2192
      %v2238 = vsel %vm2229, %v2192, %v2194
      %v2239 = vsel %vm2229, %v2194, %v2196
      %v2240 = vsel %vm2229, %v2196, %v2198
      %v2241 = vsel %vm2229, %v2198, %v2200
      %v2242 = vsel %vm2229, %v2200, %v2202
      %v2243 = vsel %vm2229, %v2202, %v2204
      %v2244 = vsel %vm2229, %v2204, %v2206
      %v2245 = vsel %vm2229, %v2206, %v2208
      %v2246 = vsel %vm2229, %v2208, %v2210
      %v2247 = vsel %vm2229, %v2210, %v2212
      %v2248 = vsel %vm2229, %v2212, %v2214
      %v2249 = vsel %vm2229, %v2214, %v2216
      %v2250 = vsel %vm2229, %v2216, %v2218
      %v2251 = vsel %vm2229, %v2218, %v2220
      %v2252 = vsel %vm2229, %v2220, %v2222
      %v2253 = vsel %vm2229, %v2222, %v2224
      %v2254 = vsel %vm2229, %v2224, %v2226
      %v2255 = vsel %vm2229, %v2226, %v2228
      %2282 = vst [vmem:[#allocation2 + $0x8f0] sm:$0xff] %v2230
      %2283 = vst [vmem:[#allocation2 + $0x8f8] sm:$0xff] %v2231
      %2284 = vst [vmem:[#allocation2 + $0x900] sm:$0xff] %v2232
      %2285 = vst [vmem:[#allocation2 + $0x908] sm:$0xff] %v2233
      %2286 = vst [vmem:[#allocation2 + $0x910] sm:$0xff] %v2234
      %2287 = vst [vmem:[#allocation2 + $0x918] sm:$0xff] %v2235
      %2288 = vst [vmem:[#allocation2 + $0x920] sm:$0xff] %v2236
      %2289 = vst [vmem:[#allocation2 + $0x928] sm:$0xff] %v2237
      %2290 = vst [vmem:[#allocation2 + $0x930] sm:$0xff] %v2238
      %2291 = vst [vmem:[#allocation2 + $0x938] sm:$0xff] %v2239
      %2292 = vst [vmem:[#allocation2 + $0x940] sm:$0xff] %v2240
      %2293 = vst [vmem:[#allocation2 + $0x948] sm:$0xff] %v2241
      %2294 = vst [vmem:[#allocation2 + $0x950] sm:$0xff] %v2242
      %2295 = vst [vmem:[#allocation2 + $0x958] sm:$0xff] %v2243
      %2296 = vst [vmem:[#allocation2 + $0x960] sm:$0xff] %v2244
      %2297 = vst [vmem:[#allocation2 + $0x968] sm:$0xff] %v2245
      %2298 = vst [vmem:[#allocation2 + $0x970] sm:$0xff] %v2246
      %2299 = vst [vmem:[#allocation2 + $0x978] sm:$0xff] %v2247
      %2300 = vst [vmem:[#allocation2 + $0x980] sm:$0xff] %v2248
      %2301 = vst [vmem:[#allocation2 + $0x988] sm:$0xff] %v2249
      %2302 = vst [vmem:[#allocation2 + $0x990] sm:$0xff] %v2250
      %2303 = vst [vmem:[#allocation2 + $0x998] sm:$0xff] %v2251
      %2304 = vst [vmem:[#allocation2 + $0x9a0] sm:$0xff] %v2252
      %2305 = vst [vmem:[#allocation2 + $0x9a8] sm:$0xff] %v2253
      %2306 = vst [vmem:[#allocation2 + $0x9b0] sm:$0xff] %v2254
      %2307 = vst [vmem:[#allocation2 + $0x9b8] sm:$0xff] %v2255
      %v2308 = vld [vmem:[%s192 + $0x10] sm:$0xff]
      %v2309 = vld [vmem:[%s192 + $0x18] sm:$0xff]
      %v2310 = vld [vmem:[%s192 + $0x20] sm:$0xff]
      %v2311 = vld [vmem:[%s192 + $0x28] sm:$0xff]
      %v2312 = vld [vmem:[%s192 + $0x30] sm:$0xff]
      %v2313 = vld [vmem:[%s192 + $0x38] sm:$0xff]
      %v2314 = vld [vmem:[%s192 + $0x40] sm:$0xff]
      %v2315 = vld [vmem:[%s192 + $0x48] sm:$0xff]
      %v2316 = vld [vmem:[%s192 + $0x50] sm:$0xff]
      %v2317 = vld [vmem:[%s192 + $0x58] sm:$0xff]
      %v2318 = vld [vmem:[%s192 + $0x60] sm:$0xff]
      %v2319 = vld [vmem:[%s192 + $0x68] sm:$0xff]
      %v2320 = vld [vmem:[%s192 + $0x70] sm:$0xff]
      %v2321 = vld [vmem:[%s192 + $0x78] sm:$0xff]
      %v2322 = vld [vmem:[%s192 + $0x80] sm:$0xff]
      %v2323 = vld [vmem:[%s192 + $0x88] sm:$0xff]
      %v2324 = vld [vmem:[%s192 + $0x90] sm:$0xff]
      %v2325 = vld [vmem:[%s192 + $0x98] sm:$0xff]
      %v2326 = vld [vmem:[%s192 + $0xa0] sm:$0xff]
      %v2327 = vld [vmem:[%s192 + $0xa8] sm:$0xff]
      %v2328 = vld [vmem:[%s192 + $0xb0] sm:$0xff]
      %v2329 = vld [vmem:[%s192 + $0xb8] sm:$0xff]
      %v2330 = vld [vmem:[%s192 + $0xc0] sm:$0xff]
      %v2331 = vld [vmem:[%s192 + $0xc8] sm:$0xff]
      %v2332 = vld [vmem:[%s192 + $0xd0] sm:$0xff]
      %v2333 = vld [vmem:[%s192 + $0xd8] sm:$0xff]
      %v2334 = vld [vmem:[%s192 + $0xe0] sm:$0xff]
      %2362 = vrot.lane.b32.xlu0 %v2308, 42
      %v2363 = vpop.permute.xlu0 %2362
      %2364 = vrot.lane.b32.xlu0 %v2309, 42
      %v2365 = vpop.permute.xlu0 %2364
      %2366 = vrot.lane.b32.xlu0 %v2310, 42
      %v2367 = vpop.permute.xlu0 %2366
      %2368 = vrot.lane.b32.xlu0 %v2311, 42
      %v2369 = vpop.permute.xlu0 %2368
      %2370 = vrot.lane.b32.xlu0 %v2312, 42
      %v2371 = vpop.permute.xlu0 %2370
      %2372 = vrot.lane.b32.xlu0 %v2313, 42
      %v2373 = vpop.permute.xlu0 %2372
      %2374 = vrot.lane.b32.xlu0 %v2314, 42
      %v2375 = vpop.permute.xlu0 %2374
      %2376 = vrot.lane.b32.xlu0 %v2315, 42
      %v2377 = vpop.permute.xlu0 %2376
      %2378 = vrot.lane.b32.xlu0 %v2316, 42
      %v2379 = vpop.permute.xlu0 %2378
      %2380 = vrot.lane.b32.xlu0 %v2317, 42
      %v2381 = vpop.permute.xlu0 %2380
      %2382 = vrot.lane.b32.xlu0 %v2318, 42
      %v2383 = vpop.permute.xlu0 %2382
      %2384 = vrot.lane.b32.xlu0 %v2319, 42
      %v2385 = vpop.permute.xlu0 %2384
      %2386 = vrot.lane.b32.xlu0 %v2320, 42
      %v2387 = vpop.permute.xlu0 %2386
      %2388 = vrot.lane.b32.xlu0 %v2321, 42
      %v2389 = vpop.permute.xlu0 %2388
      %2390 = vrot.lane.b32.xlu0 %v2322, 42
      %v2391 = vpop.permute.xlu0 %2390
      %2392 = vrot.lane.b32.xlu0 %v2323, 42
      %v2393 = vpop.permute.xlu0 %2392
      %2394 = vrot.lane.b32.xlu0 %v2324, 42
      %v2395 = vpop.permute.xlu0 %2394
      %2396 = vrot.lane.b32.xlu0 %v2325, 42
      %v2397 = vpop.permute.xlu0 %2396
      %2398 = vrot.lane.b32.xlu0 %v2326, 42
      %v2399 = vpop.permute.xlu0 %2398
      %2400 = vrot.lane.b32.xlu0 %v2327, 42
      %v2401 = vpop.permute.xlu0 %2400
      %2402 = vrot.lane.b32.xlu0 %v2328, 42
      %v2403 = vpop.permute.xlu0 %2402
      %2404 = vrot.lane.b32.xlu0 %v2329, 42
      %v2405 = vpop.permute.xlu0 %2404
      %2406 = vrot.lane.b32.xlu0 %v2330, 42
      %v2407 = vpop.permute.xlu0 %2406
      %2408 = vrot.lane.b32.xlu0 %v2331, 42
      %v2409 = vpop.permute.xlu0 %2408
      %2410 = vrot.lane.b32.xlu0 %v2332, 42
      %v2411 = vpop.permute.xlu0 %2410
      %2412 = vrot.lane.b32.xlu0 %v2333, 42
      %v2413 = vpop.permute.xlu0 %2412
      %2414 = vrot.lane.b32.xlu0 %v2334, 42
      %v2415 = vpop.permute.xlu0 %2414
      %vm2416 = vcmask 343040
      %v2417 = vsel %vm2416, %v2363, %v2365
      %v2418 = vsel %vm2416, %v2365, %v2367
      %v2419 = vsel %vm2416, %v2367, %v2369
      %v2420 = vsel %vm2416, %v2369, %v2371
      %v2421 = vsel %vm2416, %v2371, %v2373
      %v2422 = vsel %vm2416, %v2373, %v2375
      %v2423 = vsel %vm2416, %v2375, %v2377
      %v2424 = vsel %vm2416, %v2377, %v2379
      %v2425 = vsel %vm2416, %v2379, %v2381
      %v2426 = vsel %vm2416, %v2381, %v2383
      %v2427 = vsel %vm2416, %v2383, %v2385
      %v2428 = vsel %vm2416, %v2385, %v2387
      %v2429 = vsel %vm2416, %v2387, %v2389
      %v2430 = vsel %vm2416, %v2389, %v2391
      %v2431 = vsel %vm2416, %v2391, %v2393
      %v2432 = vsel %vm2416, %v2393, %v2395
      %v2433 = vsel %vm2416, %v2395, %v2397
      %v2434 = vsel %vm2416, %v2397, %v2399
      %v2435 = vsel %vm2416, %v2399, %v2401
      %v2436 = vsel %vm2416, %v2401, %v2403
      %v2437 = vsel %vm2416, %v2403, %v2405
      %v2438 = vsel %vm2416, %v2405, %v2407
      %v2439 = vsel %vm2416, %v2407, %v2409
      %v2440 = vsel %vm2416, %v2409, %v2411
      %v2441 = vsel %vm2416, %v2411, %v2413
      %v2442 = vsel %vm2416, %v2413, %v2415
      %2469 = vst [vmem:[#allocation2 + $0x9c0] sm:$0xff] %v2417
      %2470 = vst [vmem:[#allocation2 + $0x9c8] sm:$0xff] %v2418
      %2471 = vst [vmem:[#allocation2 + $0x9d0] sm:$0xff] %v2419
      %2472 = vst [vmem:[#allocation2 + $0x9d8] sm:$0xff] %v2420
      %2473 = vst [vmem:[#allocation2 + $0x9e0] sm:$0xff] %v2421
      %2474 = vst [vmem:[#allocation2 + $0x9e8] sm:$0xff] %v2422
      %2475 = vst [vmem:[#allocation2 + $0x9f0] sm:$0xff] %v2423
      %2476 = vst [vmem:[#allocation2 + $0x9f8] sm:$0xff] %v2424
      %2477 = vst [vmem:[#allocation2 + $0xa00] sm:$0xff] %v2425
      %2478 = vst [vmem:[#allocation2 + $0xa08] sm:$0xff] %v2426
      %2479 = vst [vmem:[#allocation2 + $0xa10] sm:$0xff] %v2427
      %2480 = vst [vmem:[#allocation2 + $0xa18] sm:$0xff] %v2428
      %2481 = vst [vmem:[#allocation2 + $0xa20] sm:$0xff] %v2429
      %2482 = vst [vmem:[#allocation2 + $0xa28] sm:$0xff] %v2430
      %2483 = vst [vmem:[#allocation2 + $0xa30] sm:$0xff] %v2431
      %2484 = vst [vmem:[#allocation2 + $0xa38] sm:$0xff] %v2432
      %2485 = vst [vmem:[#allocation2 + $0xa40] sm:$0xff] %v2433
      %2486 = vst [vmem:[#allocation2 + $0xa48] sm:$0xff] %v2434
      %2487 = vst [vmem:[#allocation2 + $0xa50] sm:$0xff] %v2435
      %2488 = vst [vmem:[#allocation2 + $0xa58] sm:$0xff] %v2436
      %2489 = vst [vmem:[#allocation2 + $0xa60] sm:$0xff] %v2437
      %2490 = vst [vmem:[#allocation2 + $0xa68] sm:$0xff] %v2438
      %2491 = vst [vmem:[#allocation2 + $0xa70] sm:$0xff] %v2439
      %2492 = vst [vmem:[#allocation2 + $0xa78] sm:$0xff] %v2440
      %2493 = vst [vmem:[#allocation2 + $0xa80] sm:$0xff] %v2441
      %2494 = vst [vmem:[#allocation2 + $0xa88] sm:$0xff] %v2442
      %v2495 = vld [vmem:[%s192 + $0x10] sm:$0xff]
      %v2496 = vld [vmem:[%s192 + $0x18] sm:$0xff]
      %v2497 = vld [vmem:[%s192 + $0x20] sm:$0xff]
      %v2498 = vld [vmem:[%s192 + $0x28] sm:$0xff]
      %v2499 = vld [vmem:[%s192 + $0x30] sm:$0xff]
      %v2500 = vld [vmem:[%s192 + $0x38] sm:$0xff]
      %v2501 = vld [vmem:[%s192 + $0x40] sm:$0xff]
      %v2502 = vld [vmem:[%s192 + $0x48] sm:$0xff]
      %v2503 = vld [vmem:[%s192 + $0x50] sm:$0xff]
      %v2504 = vld [vmem:[%s192 + $0x58] sm:$0xff]
      %v2505 = vld [vmem:[%s192 + $0x60] sm:$0xff]
      %v2506 = vld [vmem:[%s192 + $0x68] sm:$0xff]
      %v2507 = vld [vmem:[%s192 + $0x70] sm:$0xff]
      %v2508 = vld [vmem:[%s192 + $0x78] sm:$0xff]
      %v2509 = vld [vmem:[%s192 + $0x80] sm:$0xff]
      %v2510 = vld [vmem:[%s192 + $0x88] sm:$0xff]
      %v2511 = vld [vmem:[%s192 + $0x90] sm:$0xff]
      %v2512 = vld [vmem:[%s192 + $0x98] sm:$0xff]
      %v2513 = vld [vmem:[%s192 + $0xa0] sm:$0xff]
      %v2514 = vld [vmem:[%s192 + $0xa8] sm:$0xff]
      %v2515 = vld [vmem:[%s192 + $0xb0] sm:$0xff]
      %v2516 = vld [vmem:[%s192 + $0xb8] sm:$0xff]
      %v2517 = vld [vmem:[%s192 + $0xc0] sm:$0xff]
      %v2518 = vld [vmem:[%s192 + $0xc8] sm:$0xff]
      %v2519 = vld [vmem:[%s192 + $0xd0] sm:$0xff]
      %v2520 = vld [vmem:[%s192 + $0xd8] sm:$0xff]
      %v2521 = vld [vmem:[%s192 + $0xe0] sm:$0xff]
      %2549 = vrot.lane.b32.xlu0 %v2495, 41
      %v2550 = vpop.permute.xlu0 %2549
      %2551 = vrot.lane.b32.xlu0 %v2496, 41
      %v2552 = vpop.permute.xlu0 %2551
      %2553 = vrot.lane.b32.xlu0 %v2497, 41
      %v2554 = vpop.permute.xlu0 %2553
      %2555 = vrot.lane.b32.xlu0 %v2498, 41
      %v2556 = vpop.permute.xlu0 %2555
      %2557 = vrot.lane.b32.xlu0 %v2499, 41
      %v2558 = vpop.permute.xlu0 %2557
      %2559 = vrot.lane.b32.xlu0 %v2500, 41
      %v2560 = vpop.permute.xlu0 %2559
      %2561 = vrot.lane.b32.xlu0 %v2501, 41
      %v2562 = vpop.permute.xlu0 %2561
      %2563 = vrot.lane.b32.xlu0 %v2502, 41
      %v2564 = vpop.permute.xlu0 %2563
      %2565 = vrot.lane.b32.xlu0 %v2503, 41
      %v2566 = vpop.permute.xlu0 %2565
      %2567 = vrot.lane.b32.xlu0 %v2504, 41
      %v2568 = vpop.permute.xlu0 %2567
      %2569 = vrot.lane.b32.xlu0 %v2505, 41
      %v2570 = vpop.permute.xlu0 %2569
      %2571 = vrot.lane.b32.xlu0 %v2506, 41
      %v2572 = vpop.permute.xlu0 %2571
      %2573 = vrot.lane.b32.xlu0 %v2507, 41
      %v2574 = vpop.permute.xlu0 %2573
      %2575 = vrot.lane.b32.xlu0 %v2508, 41
      %v2576 = vpop.permute.xlu0 %2575
      %2577 = vrot.lane.b32.xlu0 %v2509, 41
      %v2578 = vpop.permute.xlu0 %2577
      %2579 = vrot.lane.b32.xlu0 %v2510, 41
      %v2580 = vpop.permute.xlu0 %2579
      %2581 = vrot.lane.b32.xlu0 %v2511, 41
      %v2582 = vpop.permute.xlu0 %2581
      %2583 = vrot.lane.b32.xlu0 %v2512, 41
      %v2584 = vpop.permute.xlu0 %2583
      %2585 = vrot.lane.b32.xlu0 %v2513, 41
      %v2586 = vpop.permute.xlu0 %2585
      %2587 = vrot.lane.b32.xlu0 %v2514, 41
      %v2588 = vpop.permute.xlu0 %2587
      %2589 = vrot.lane.b32.xlu0 %v2515, 41
      %v2590 = vpop.permute.xlu0 %2589
      %2591 = vrot.lane.b32.xlu0 %v2516, 41
      %v2592 = vpop.permute.xlu0 %2591
      %2593 = vrot.lane.b32.xlu0 %v2517, 41
      %v2594 = vpop.permute.xlu0 %2593
      %2595 = vrot.lane.b32.xlu0 %v2518, 41
      %v2596 = vpop.permute.xlu0 %2595
      %2597 = vrot.lane.b32.xlu0 %v2519, 41
      %v2598 = vpop.permute.xlu0 %2597
      %2599 = vrot.lane.b32.xlu0 %v2520, 41
      %v2600 = vpop.permute.xlu0 %2599
      %2601 = vrot.lane.b32.xlu0 %v2521, 41
      %v2602 = vpop.permute.xlu0 %2601
      %vm2603 = vcmask 334848
      %v2604 = vsel %vm2603, %v2550, %v2552
      %v2605 = vsel %vm2603, %v2552, %v2554
      %v2606 = vsel %vm2603, %v2554, %v2556
      %v2607 = vsel %vm2603, %v2556, %v2558
      %v2608 = vsel %vm2603, %v2558, %v2560
      %v2609 = vsel %vm2603, %v2560, %v2562
      %v2610 = vsel %vm2603, %v2562, %v2564
      %v2611 = vsel %vm2603, %v2564, %v2566
      %v2612 = vsel %vm2603, %v2566, %v2568
      %v2613 = vsel %vm2603, %v2568, %v2570
      %v2614 = vsel %vm2603, %v2570, %v2572
      %v2615 = vsel %vm2603, %v2572, %v2574
      %v2616 = vsel %vm2603, %v2574, %v2576
      %v2617 = vsel %vm2603, %v2576, %v2578
      %v2618 = vsel %vm2603, %v2578, %v2580
      %v2619 = vsel %vm2603, %v2580, %v2582
      %v2620 = vsel %vm2603, %v2582, %v2584
      %v2621 = vsel %vm2603, %v2584, %v2586
      %v2622 = vsel %vm2603, %v2586, %v2588
      %v2623 = vsel %vm2603, %v2588, %v2590
      %v2624 = vsel %vm2603, %v2590, %v2592
      %v2625 = vsel %vm2603, %v2592, %v2594
      %v2626 = vsel %vm2603, %v2594, %v2596
      %v2627 = vsel %vm2603, %v2596, %v2598
      %v2628 = vsel %vm2603, %v2598, %v2600
      %v2629 = vsel %vm2603, %v2600, %v2602
      %2656 = vst [vmem:[#allocation2 + $0xa90] sm:$0xff] %v2604
      %2657 = vst [vmem:[#allocation2 + $0xa98] sm:$0xff] %v2605
      %2658 = vst [vmem:[#allocation2 + $0xaa0] sm:$0xff] %v2606
      %2659 = vst [vmem:[#allocation2 + $0xaa8] sm:$0xff] %v2607
      %2660 = vst [vmem:[#allocation2 + $0xab0] sm:$0xff] %v2608
      %2661 = vst [vmem:[#allocation2 + $0xab8] sm:$0xff] %v2609
      %2662 = vst [vmem:[#allocation2 + $0xac0] sm:$0xff] %v2610
      %2663 = vst [vmem:[#allocation2 + $0xac8] sm:$0xff] %v2611
      %2664 = vst [vmem:[#allocation2 + $0xad0] sm:$0xff] %v2612
      %2665 = vst [vmem:[#allocation2 + $0xad8] sm:$0xff] %v2613
      %2666 = vst [vmem:[#allocation2 + $0xae0] sm:$0xff] %v2614
      %2667 = vst [vmem:[#allocation2 + $0xae8] sm:$0xff] %v2615
      %2668 = vst [vmem:[#allocation2 + $0xaf0] sm:$0xff] %v2616
      %2669 = vst [vmem:[#allocation2 + $0xaf8] sm:$0xff] %v2617
      %2670 = vst [vmem:[#allocation2 + $0xb00] sm:$0xff] %v2618
      %2671 = vst [vmem:[#allocation2 + $0xb08] sm:$0xff] %v2619
      %2672 = vst [vmem:[#allocation2 + $0xb10] sm:$0xff] %v2620
      %2673 = vst [vmem:[#allocation2 + $0xb18] sm:$0xff] %v2621
      %2674 = vst [vmem:[#allocation2 + $0xb20] sm:$0xff] %v2622
      %2675 = vst [vmem:[#allocation2 + $0xb28] sm:$0xff] %v2623
      %2676 = vst [vmem:[#allocation2 + $0xb30] sm:$0xff] %v2624
      %2677 = vst [vmem:[#allocation2 + $0xb38] sm:$0xff] %v2625
      %2678 = vst [vmem:[#allocation2 + $0xb40] sm:$0xff] %v2626
      %2679 = vst [vmem:[#allocation2 + $0xb48] sm:$0xff] %v2627
      %2680 = vst [vmem:[#allocation2 + $0xb50] sm:$0xff] %v2628
      %2681 = vst [vmem:[#allocation2 + $0xb58] sm:$0xff] %v2629
      %v2682 = vld [vmem:[%s192 + $0x10] sm:$0xff]
      %v2683 = vld [vmem:[%s192 + $0x18] sm:$0xff]
      %v2684 = vld [vmem:[%s192 + $0x20] sm:$0xff]
      %v2685 = vld [vmem:[%s192 + $0x28] sm:$0xff]
      %v2686 = vld [vmem:[%s192 + $0x30] sm:$0xff]
      %v2687 = vld [vmem:[%s192 + $0x38] sm:$0xff]
      %v2688 = vld [vmem:[%s192 + $0x40] sm:$0xff]
      %v2689 = vld [vmem:[%s192 + $0x48] sm:$0xff]
      %v2690 = vld [vmem:[%s192 + $0x50] sm:$0xff]
      %v2691 = vld [vmem:[%s192 + $0x58] sm:$0xff]
      %v2692 = vld [vmem:[%s192 + $0x60] sm:$0xff]
      %v2693 = vld [vmem:[%s192 + $0x68] sm:$0xff]
      %v2694 = vld [vmem:[%s192 + $0x70] sm:$0xff]
      %v2695 = vld [vmem:[%s192 + $0x78] sm:$0xff]
      %v2696 = vld [vmem:[%s192 + $0x80] sm:$0xff]
      %v2697 = vld [vmem:[%s192 + $0x88] sm:$0xff]
      %v2698 = vld [vmem:[%s192 + $0x90] sm:$0xff]
      %v2699 = vld [vmem:[%s192 + $0x98] sm:$0xff]
      %v2700 = vld [vmem:[%s192 + $0xa0] sm:$0xff]
      %v2701 = vld [vmem:[%s192 + $0xa8] sm:$0xff]
      %v2702 = vld [vmem:[%s192 + $0xb0] sm:$0xff]
      %v2703 = vld [vmem:[%s192 + $0xb8] sm:$0xff]
      %v2704 = vld [vmem:[%s192 + $0xc0] sm:$0xff]
      %v2705 = vld [vmem:[%s192 + $0xc8] sm:$0xff]
      %v2706 = vld [vmem:[%s192 + $0xd0] sm:$0xff]
      %v2707 = vld [vmem:[%s192 + $0xd8] sm:$0xff]
      %v2708 = vld [vmem:[%s192 + $0xe0] sm:$0xff]
      %2736 = vrot.lane.b32.xlu0 %v2682, 40
      %v2737 = vpop.permute.xlu0 %2736
      %2738 = vrot.lane.b32.xlu0 %v2683, 40
      %v2739 = vpop.permute.xlu0 %2738
      %2740 = vrot.lane.b32.xlu0 %v2684, 40
      %v2741 = vpop.permute.xlu0 %2740
      %2742 = vrot.lane.b32.xlu0 %v2685, 40
      %v2743 = vpop.permute.xlu0 %2742
      %2744 = vrot.lane.b32.xlu0 %v2686, 40
      %v2745 = vpop.permute.xlu0 %2744
      %2746 = vrot.lane.b32.xlu0 %v2687, 40
      %v2747 = vpop.permute.xlu0 %2746
      %2748 = vrot.lane.b32.xlu0 %v2688, 40
      %v2749 = vpop.permute.xlu0 %2748
      %2750 = vrot.lane.b32.xlu0 %v2689, 40
      %v2751 = vpop.permute.xlu0 %2750
      %2752 = vrot.lane.b32.xlu0 %v2690, 40
      %v2753 = vpop.permute.xlu0 %2752
      %2754 = vrot.lane.b32.xlu0 %v2691, 40
      %v2755 = vpop.permute.xlu0 %2754
      %2756 = vrot.lane.b32.xlu0 %v2692, 40
      %v2757 = vpop.permute.xlu0 %2756
      %2758 = vrot.lane.b32.xlu0 %v2693, 40
      %v2759 = vpop.permute.xlu0 %2758
      %2760 = vrot.lane.b32.xlu0 %v2694, 40
      %v2761 = vpop.permute.xlu0 %2760
      %2762 = vrot.lane.b32.xlu0 %v2695, 40
      %v2763 = vpop.permute.xlu0 %2762
      %2764 = vrot.lane.b32.xlu0 %v2696, 40
      %v2765 = vpop.permute.xlu0 %2764
      %2766 = vrot.lane.b32.xlu0 %v2697, 40
      %v2767 = vpop.permute.xlu0 %2766
      %2768 = vrot.lane.b32.xlu0 %v2698, 40
      %v2769 = vpop.permute.xlu0 %2768
      %2770 = vrot.lane.b32.xlu0 %v2699, 40
      %v2771 = vpop.permute.xlu0 %2770
      %2772 = vrot.lane.b32.xlu0 %v2700, 40
      %v2773 = vpop.permute.xlu0 %2772
      %2774 = vrot.lane.b32.xlu0 %v2701, 40
      %v2775 = vpop.permute.xlu0 %2774
      %2776 = vrot.lane.b32.xlu0 %v2702, 40
      %v2777 = vpop.permute.xlu0 %2776
      %2778 = vrot.lane.b32.xlu0 %v2703, 40
      %v2779 = vpop.permute.xlu0 %2778
      %2780 = vrot.lane.b32.xlu0 %v2704, 40
      %v2781 = vpop.permute.xlu0 %2780
      %2782 = vrot.lane.b32.xlu0 %v2705, 40
      %v2783 = vpop.permute.xlu0 %2782
      %2784 = vrot.lane.b32.xlu0 %v2706, 40
      %v2785 = vpop.permute.xlu0 %2784
      %2786 = vrot.lane.b32.xlu0 %v2707, 40
      %v2787 = vpop.permute.xlu0 %2786
      %2788 = vrot.lane.b32.xlu0 %v2708, 40
      %v2789 = vpop.permute.xlu0 %2788
      %vm2790 = vcmask 326656
      %v2791 = vsel %vm2790, %v2737, %v2739
      %v2792 = vsel %vm2790, %v2739, %v2741
      %v2793 = vsel %vm2790, %v2741, %v2743
      %v2794 = vsel %vm2790, %v2743, %v2745
      %v2795 = vsel %vm2790, %v2745, %v2747
      %v2796 = vsel %vm2790, %v2747, %v2749
      %v2797 = vsel %vm2790, %v2749, %v2751
      %v2798 = vsel %vm2790, %v2751, %v2753
      %v2799 = vsel %vm2790, %v2753, %v2755
      %v2800 = vsel %vm2790, %v2755, %v2757
      %v2801 = vsel %vm2790, %v2757, %v2759
      %v2802 = vsel %vm2790, %v2759, %v2761
      %v2803 = vsel %vm2790, %v2761, %v2763
      %v2804 = vsel %vm2790, %v2763, %v2765
      %v2805 = vsel %vm2790, %v2765, %v2767
      %v2806 = vsel %vm2790, %v2767, %v2769
      %v2807 = vsel %vm2790, %v2769, %v2771
      %v2808 = vsel %vm2790, %v2771, %v2773
      %v2809 = vsel %vm2790, %v2773, %v2775
      %v2810 = vsel %vm2790, %v2775, %v2777
      %v2811 = vsel %vm2790, %v2777, %v2779
      %v2812 = vsel %vm2790, %v2779, %v2781
      %v2813 = vsel %vm2790, %v2781, %v2783
      %v2814 = vsel %vm2790, %v2783, %v2785
      %v2815 = vsel %vm2790, %v2785, %v2787
      %v2816 = vsel %vm2790, %v2787, %v2789
      %2843 = vst [vmem:[#allocation2 + $0xb60] sm:$0xff] %v2791
      %2844 = vst [vmem:[#allocation2 + $0xb68] sm:$0xff] %v2792
      %2845 = vst [vmem:[#allocation2 + $0xb70] sm:$0xff] %v2793
      %2846 = vst [vmem:[#allocation2 + $0xb78] sm:$0xff] %v2794
      %2847 = vst [vmem:[#allocation2 + $0xb80] sm:$0xff] %v2795
      %2848 = vst [vmem:[#allocation2 + $0xb88] sm:$0xff] %v2796
      %2849 = vst [vmem:[#allocation2 + $0xb90] sm:$0xff] %v2797
      %2850 = vst [vmem:[#allocation2 + $0xb98] sm:$0xff] %v2798
      %2851 = vst [vmem:[#allocation2 + $0xba0] sm:$0xff] %v2799
      %2852 = vst [vmem:[#allocation2 + $0xba8] sm:$0xff] %v2800
      %2853 = vst [vmem:[#allocation2 + $0xbb0] sm:$0xff] %v2801
      %2854 = vst [vmem:[#allocation2 + $0xbb8] sm:$0xff] %v2802
      %2855 = vst [vmem:[#allocation2 + $0xbc0] sm:$0xff] %v2803
      %2856 = vst [vmem:[#allocation2 + $0xbc8] sm:$0xff] %v2804
      %2857 = vst [vmem:[#allocation2 + $0xbd0] sm:$0xff] %v2805
      %2858 = vst [vmem:[#allocation2 + $0xbd8] sm:$0xff] %v2806
      %2859 = vst [vmem:[#allocation2 + $0xbe0] sm:$0xff] %v2807
      %2860 = vst [vmem:[#allocation2 + $0xbe8] sm:$0xff] %v2808
      %2861 = vst [vmem:[#allocation2 + $0xbf0] sm:$0xff] %v2809
      %2862 = vst [vmem:[#allocation2 + $0xbf8] sm:$0xff] %v2810
      %2863 = vst [vmem:[#allocation2 + $0xc00] sm:$0xff] %v2811
      %2864 = vst [vmem:[#allocation2 + $0xc08] sm:$0xff] %v2812
      %2865 = vst [vmem:[#allocation2 + $0xc10] sm:$0xff] %v2813
      %2866 = vst [vmem:[#allocation2 + $0xc18] sm:$0xff] %v2814
      %2867 = vst [vmem:[#allocation2 + $0xc20] sm:$0xff] %v2815
      %2868 = vst [vmem:[#allocation2 + $0xc28] sm:$0xff] %v2816
      %v2869 = vld [vmem:[%s192 + $0x10] sm:$0xff]
      %v2870 = vld [vmem:[%s192 + $0x18] sm:$0xff]
      %v2871 = vld [vmem:[%s192 + $0x20] sm:$0xff]
      %v2872 = vld [vmem:[%s192 + $0x28] sm:$0xff]
      %v2873 = vld [vmem:[%s192 + $0x30] sm:$0xff]
      %v2874 = vld [vmem:[%s192 + $0x38] sm:$0xff]
      %v2875 = vld [vmem:[%s192 + $0x40] sm:$0xff]
      %v2876 = vld [vmem:[%s192 + $0x48] sm:$0xff]
      %v2877 = vld [vmem:[%s192 + $0x50] sm:$0xff]
      %v2878 = vld [vmem:[%s192 + $0x58] sm:$0xff]
      %v2879 = vld [vmem:[%s192 + $0x60] sm:$0xff]
      %v2880 = vld [vmem:[%s192 + $0x68] sm:$0xff]
      %v2881 = vld [vmem:[%s192 + $0x70] sm:$0xff]
      %v2882 = vld [vmem:[%s192 + $0x78] sm:$0xff]
      %v2883 = vld [vmem:[%s192 + $0x80] sm:$0xff]
      %v2884 = vld [vmem:[%s192 + $0x88] sm:$0xff]
      %v2885 = vld [vmem:[%s192 + $0x90] sm:$0xff]
      %v2886 = vld [vmem:[%s192 + $0x98] sm:$0xff]
      %v2887 = vld [vmem:[%s192 + $0xa0] sm:$0xff]
      %v2888 = vld [vmem:[%s192 + $0xa8] sm:$0xff]
      %v2889 = vld [vmem:[%s192 + $0xb0] sm:$0xff]
      %v2890 = vld [vmem:[%s192 + $0xb8] sm:$0xff]
      %v2891 = vld [vmem:[%s192 + $0xc0] sm:$0xff]
      %v2892 = vld [vmem:[%s192 + $0xc8] sm:$0xff]
      %v2893 = vld [vmem:[%s192 + $0xd0] sm:$0xff]
      %v2894 = vld [vmem:[%s192 + $0xd8] sm:$0xff]
      %v2895 = vld [vmem:[%s192 + $0xe0] sm:$0xff]
      %2923 = vrot.lane.b32.xlu0 %v2869, 24
      %v2924 = vpop.permute.xlu0 %2923
      %2925 = vrot.lane.b32.xlu0 %v2870, 24
      %v2926 = vpop.permute.xlu0 %2925
      %2927 = vrot.lane.b32.xlu0 %v2871, 24
      %v2928 = vpop.permute.xlu0 %2927
      %2929 = vrot.lane.b32.xlu0 %v2872, 24
      %v2930 = vpop.permute.xlu0 %2929
      %2931 = vrot.lane.b32.xlu0 %v2873, 24
      %v2932 = vpop.permute.xlu0 %2931
      %2933 = vrot.lane.b32.xlu0 %v2874, 24
      %v2934 = vpop.permute.xlu0 %2933
      %2935 = vrot.lane.b32.xlu0 %v2875, 24
      %v2936 = vpop.permute.xlu0 %2935
      %2937 = vrot.lane.b32.xlu0 %v2876, 24
      %v2938 = vpop.permute.xlu0 %2937
      %2939 = vrot.lane.b32.xlu0 %v2877, 24
      %v2940 = vpop.permute.xlu0 %2939
      %2941 = vrot.lane.b32.xlu0 %v2878, 24
      %v2942 = vpop.permute.xlu0 %2941
      %2943 = vrot.lane.b32.xlu0 %v2879, 24
      %v2944 = vpop.permute.xlu0 %2943
      %2945 = vrot.lane.b32.xlu0 %v2880, 24
      %v2946 = vpop.permute.xlu0 %2945
      %2947 = vrot.lane.b32.xlu0 %v2881, 24
      %v2948 = vpop.permute.xlu0 %2947
      %2949 = vrot.lane.b32.xlu0 %v2882, 24
      %v2950 = vpop.permute.xlu0 %2949
      %2951 = vrot.lane.b32.xlu0 %v2883, 24
      %v2952 = vpop.permute.xlu0 %2951
      %2953 = vrot.lane.b32.xlu0 %v2884, 24
      %v2954 = vpop.permute.xlu0 %2953
      %2955 = vrot.lane.b32.xlu0 %v2885, 24
      %v2956 = vpop.permute.xlu0 %2955
      %2957 = vrot.lane.b32.xlu0 %v2886, 24
      %v2958 = vpop.permute.xlu0 %2957
      %2959 = vrot.lane.b32.xlu0 %v2887, 24
      %v2960 = vpop.permute.xlu0 %2959
      %2961 = vrot.lane.b32.xlu0 %v2888, 24
      %v2962 = vpop.permute.xlu0 %2961
      %2963 = vrot.lane.b32.xlu0 %v2889, 24
      %v2964 = vpop.permute.xlu0 %2963
      %2965 = vrot.lane.b32.xlu0 %v2890, 24
      %v2966 = vpop.permute.xlu0 %2965
      %2967 = vrot.lane.b32.xlu0 %v2891, 24
      %v2968 = vpop.permute.xlu0 %2967
      %2969 = vrot.lane.b32.xlu0 %v2892, 24
      %v2970 = vpop.permute.xlu0 %2969
      %2971 = vrot.lane.b32.xlu0 %v2893, 24
      %v2972 = vpop.permute.xlu0 %2971
      %2973 = vrot.lane.b32.xlu0 %v2894, 24
      %v2974 = vpop.permute.xlu0 %2973
      %2975 = vrot.lane.b32.xlu0 %v2895, 24
      %v2976 = vpop.permute.xlu0 %2975
      %vm2977 = vcmask 195584
      %v2978 = vsel %vm2977, %v2924, %v2926
      %v2979 = vsel %vm2977, %v2926, %v2928
      %v2980 = vsel %vm2977, %v2928, %v2930
      %v2981 = vsel %vm2977, %v2930, %v2932
      %v2982 = vsel %vm2977, %v2932, %v2934
      %v2983 = vsel %vm2977, %v2934, %v2936
      %v2984 = vsel %vm2977, %v2936, %v2938
      %v2985 = vsel %vm2977, %v2938, %v2940
      %v2986 = vsel %vm2977, %v2940, %v2942
      %v2987 = vsel %vm2977, %v2942, %v2944
      %v2988 = vsel %vm2977, %v2944, %v2946
      %v2989 = vsel %vm2977, %v2946, %v2948
      %v2990 = vsel %vm2977, %v2948, %v2950
      %v2991 = vsel %vm2977, %v2950, %v2952
      %v2992 = vsel %vm2977, %v2952, %v2954
      %v2993 = vsel %vm2977, %v2954, %v2956
      %v2994 = vsel %vm2977, %v2956, %v2958
      %v2995 = vsel %vm2977, %v2958, %v2960
      %v2996 = vsel %vm2977, %v2960, %v2962
      %v2997 = vsel %vm2977, %v2962, %v2964
      %v2998 = vsel %vm2977, %v2964, %v2966
      %v2999 = vsel %vm2977, %v2966, %v2968
      %v3000 = vsel %vm2977, %v2968, %v2970
      %v3001 = vsel %vm2977, %v2970, %v2972
      %v3002 = vsel %vm2977, %v2972, %v2974
      %v3003 = vsel %vm2977, %v2974, %v2976
      %3030 = vst [vmem:[#allocation2 + $0xc30] sm:$0xff] %v2978
      %3031 = vst [vmem:[#allocation2 + $0xc38] sm:$0xff] %v2979
      %3032 = vst [vmem:[#allocation2 + $0xc40] sm:$0xff] %v2980
      %3033 = vst [vmem:[#allocation2 + $0xc48] sm:$0xff] %v2981
      %3034 = vst [vmem:[#allocation2 + $0xc50] sm:$0xff] %v2982
      %3035 = vst [vmem:[#allocation2 + $0xc58] sm:$0xff] %v2983
      %3036 = vst [vmem:[#allocation2 + $0xc60] sm:$0xff] %v2984
      %3037 = vst [vmem:[#allocation2 + $0xc68] sm:$0xff] %v2985
      %3038 = vst [vmem:[#allocation2 + $0xc70] sm:$0xff] %v2986
      %3039 = vst [vmem:[#allocation2 + $0xc78] sm:$0xff] %v2987
      %3040 = vst [vmem:[#allocation2 + $0xc80] sm:$0xff] %v2988
      %3041 = vst [vmem:[#allocation2 + $0xc88] sm:$0xff] %v2989
      %3042 = vst [vmem:[#allocation2 + $0xc90] sm:$0xff] %v2990
      %3043 = vst [vmem:[#allocation2 + $0xc98] sm:$0xff] %v2991
      %3044 = vst [vmem:[#allocation2 + $0xca0] sm:$0xff] %v2992
      %3045 = vst [vmem:[#allocation2 + $0xca8] sm:$0xff] %v2993
      %3046 = vst [vmem:[#allocation2 + $0xcb0] sm:$0xff] %v2994
      %3047 = vst [vmem:[#allocation2 + $0xcb8] sm:$0xff] %v2995
      %3048 = vst [vmem:[#allocation2 + $0xcc0] sm:$0xff] %v2996
      %3049 = vst [vmem:[#allocation2 + $0xcc8] sm:$0xff] %v2997
      %3050 = vst [vmem:[#allocation2 + $0xcd0] sm:$0xff] %v2998
      %3051 = vst [vmem:[#allocation2 + $0xcd8] sm:$0xff] %v2999
      %3052 = vst [vmem:[#allocation2 + $0xce0] sm:$0xff] %v3000
      %3053 = vst [vmem:[#allocation2 + $0xce8] sm:$0xff] %v3001
      %3054 = vst [vmem:[#allocation2 + $0xcf0] sm:$0xff] %v3002
      %3055 = vst [vmem:[#allocation2 + $0xcf8] sm:$0xff] %v3003
      %v3056 = vld [vmem:[%s192 + $0x10] sm:$0xff]
      %v3057 = vld [vmem:[%s192 + $0x18] sm:$0xff]
      %v3058 = vld [vmem:[%s192 + $0x20] sm:$0xff]
      %v3059 = vld [vmem:[%s192 + $0x28] sm:$0xff]
      %v3060 = vld [vmem:[%s192 + $0x30] sm:$0xff]
      %v3061 = vld [vmem:[%s192 + $0x38] sm:$0xff]
      %v3062 = vld [vmem:[%s192 + $0x40] sm:$0xff]
      %v3063 = vld [vmem:[%s192 + $0x48] sm:$0xff]
      %v3064 = vld [vmem:[%s192 + $0x50] sm:$0xff]
      %v3065 = vld [vmem:[%s192 + $0x58] sm:$0xff]
      %v3066 = vld [vmem:[%s192 + $0x60] sm:$0xff]
      %v3067 = vld [vmem:[%s192 + $0x68] sm:$0xff]
      %v3068 = vld [vmem:[%s192 + $0x70] sm:$0xff]
      %v3069 = vld [vmem:[%s192 + $0x78] sm:$0xff]
      %v3070 = vld [vmem:[%s192 + $0x80] sm:$0xff]
      %v3071 = vld [vmem:[%s192 + $0x88] sm:$0xff]
      %v3072 = vld [vmem:[%s192 + $0x90] sm:$0xff]
      %v3073 = vld [vmem:[%s192 + $0x98] sm:$0xff]
      %v3074 = vld [vmem:[%s192 + $0xa0] sm:$0xff]
      %v3075 = vld [vmem:[%s192 + $0xa8] sm:$0xff]
      %v3076 = vld [vmem:[%s192 + $0xb0] sm:$0xff]
      %v3077 = vld [vmem:[%s192 + $0xb8] sm:$0xff]
      %v3078 = vld [vmem:[%s192 + $0xc0] sm:$0xff]
      %v3079 = vld [vmem:[%s192 + $0xc8] sm:$0xff]
      %v3080 = vld [vmem:[%s192 + $0xd0] sm:$0xff]
      %v3081 = vld [vmem:[%s192 + $0xd8] sm:$0xff]
      %v3082 = vld [vmem:[%s192 + $0xe0] sm:$0xff]
      %3110 = vrot.lane.b32.xlu0 %v3056, 23
      %v3111 = vpop.permute.xlu0 %3110
      %3112 = vrot.lane.b32.xlu0 %v3057, 23
      %v3113 = vpop.permute.xlu0 %3112
      %3114 = vrot.lane.b32.xlu0 %v3058, 23
      %v3115 = vpop.permute.xlu0 %3114
      %3116 = vrot.lane.b32.xlu0 %v3059, 23
      %v3117 = vpop.permute.xlu0 %3116
      %3118 = vrot.lane.b32.xlu0 %v3060, 23
      %v3119 = vpop.permute.xlu0 %3118
      %3120 = vrot.lane.b32.xlu0 %v3061, 23
      %v3121 = vpop.permute.xlu0 %3120
      %3122 = vrot.lane.b32.xlu0 %v3062, 23
      %v3123 = vpop.permute.xlu0 %3122
      %3124 = vrot.lane.b32.xlu0 %v3063, 23
      %v3125 = vpop.permute.xlu0 %3124
      %3126 = vrot.lane.b32.xlu0 %v3064, 23
      %v3127 = vpop.permute.xlu0 %3126
      %3128 = vrot.lane.b32.xlu0 %v3065, 23
      %v3129 = vpop.permute.xlu0 %3128
      %3130 = vrot.lane.b32.xlu0 %v3066, 23
      %v3131 = vpop.permute.xlu0 %3130
      %3132 = vrot.lane.b32.xlu0 %v3067, 23
      %v3133 = vpop.permute.xlu0 %3132
      %3134 = vrot.lane.b32.xlu0 %v3068, 23
      %v3135 = vpop.permute.xlu0 %3134
      %3136 = vrot.lane.b32.xlu0 %v3069, 23
      %v3137 = vpop.permute.xlu0 %3136
      %3138 = vrot.lane.b32.xlu0 %v3070, 23
      %v3139 = vpop.permute.xlu0 %3138
      %3140 = vrot.lane.b32.xlu0 %v3071, 23
      %v3141 = vpop.permute.xlu0 %3140
      %3142 = vrot.lane.b32.xlu0 %v3072, 23
      %v3143 = vpop.permute.xlu0 %3142
      %3144 = vrot.lane.b32.xlu0 %v3073, 23
      %v3145 = vpop.permute.xlu0 %3144
      %3146 = vrot.lane.b32.xlu0 %v3074, 23
      %v3147 = vpop.permute.xlu0 %3146
      %3148 = vrot.lane.b32.xlu0 %v3075, 23
      %v3149 = vpop.permute.xlu0 %3148
      %3150 = vrot.lane.b32.xlu0 %v3076, 23
      %v3151 = vpop.permute.xlu0 %3150
      %3152 = vrot.lane.b32.xlu0 %v3077, 23
      %v3153 = vpop.permute.xlu0 %3152
      %3154 = vrot.lane.b32.xlu0 %v3078, 23
      %v3155 = vpop.permute.xlu0 %3154
      %3156 = vrot.lane.b32.xlu0 %v3079, 23
      %v3157 = vpop.permute.xlu0 %3156
      %3158 = vrot.lane.b32.xlu0 %v3080, 23
      %v3159 = vpop.permute.xlu0 %3158
      %3160 = vrot.lane.b32.xlu0 %v3081, 23
      %v3161 = vpop.permute.xlu0 %3160
      %3162 = vrot.lane.b32.xlu0 %v3082, 23
      %v3163 = vpop.permute.xlu0 %3162
      %vm3164 = vcmask 187392
      %v3165 = vsel %vm3164, %v3111, %v3113
      %v3166 = vsel %vm3164, %v3113, %v3115
      %v3167 = vsel %vm3164, %v3115, %v3117
      %v3168 = vsel %vm3164, %v3117, %v3119
      %v3169 = vsel %vm3164, %v3119, %v3121
      %v3170 = vsel %vm3164, %v3121, %v3123
      %v3171 = vsel %vm3164, %v3123, %v3125
      %v3172 = vsel %vm3164, %v3125, %v3127
      %v3173 = vsel %vm3164, %v3127, %v3129
      %v3174 = vsel %vm3164, %v3129, %v3131
      %v3175 = vsel %vm3164, %v3131, %v3133
      %v3176 = vsel %vm3164, %v3133, %v3135
      %v3177 = vsel %vm3164, %v3135, %v3137
      %v3178 = vsel %vm3164, %v3137, %v3139
      %v3179 = vsel %vm3164, %v3139, %v3141
      %v3180 = vsel %vm3164, %v3141, %v3143
      %v3181 = vsel %vm3164, %v3143, %v3145
      %v3182 = vsel %vm3164, %v3145, %v3147
      %v3183 = vsel %vm3164, %v3147, %v3149
      %v3184 = vsel %vm3164, %v3149, %v3151
      %v3185 = vsel %vm3164, %v3151, %v3153
      %v3186 = vsel %vm3164, %v3153, %v3155
      %v3187 = vsel %vm3164, %v3155, %v3157
      %v3188 = vsel %vm3164, %v3157, %v3159
      %v3189 = vsel %vm3164, %v3159, %v3161
      %v3190 = vsel %vm3164, %v3161, %v3163
      %3217 = vst [vmem:[#allocation2 + $0xd00] sm:$0xff] %v3165
      %3218 = vst [vmem:[#allocation2 + $0xd08] sm:$0xff] %v3166
      %3219 = vst [vmem:[#allocation2 + $0xd10] sm:$0xff] %v3167
      %3220 = vst [vmem:[#allocation2 + $0xd18] sm:$0xff] %v3168
      %3221 = vst [vmem:[#allocation2 + $0xd20] sm:$0xff] %v3169
      %3222 = vst [vmem:[#allocation2 + $0xd28] sm:$0xff] %v3170
      %3223 = vst [vmem:[#allocation2 + $0xd30] sm:$0xff] %v3171
      %3224 = vst [vmem:[#allocation2 + $0xd38] sm:$0xff] %v3172
      %3225 = vst [vmem:[#allocation2 + $0xd40] sm:$0xff] %v3173
      %3226 = vst [vmem:[#allocation2 + $0xd48] sm:$0xff] %v3174
      %3227 = vst [vmem:[#allocation2 + $0xd50] sm:$0xff] %v3175
      %3228 = vst [vmem:[#allocation2 + $0xd58] sm:$0xff] %v3176
      %3229 = vst [vmem:[#allocation2 + $0xd60] sm:$0xff] %v3177
      %3230 = vst [vmem:[#allocation2 + $0xd68] sm:$0xff] %v3178
      %3231 = vst [vmem:[#allocation2 + $0xd70] sm:$0xff] %v3179
      %3232 = vst [vmem:[#allocation2 + $0xd78] sm:$0xff] %v3180
      %3233 = vst [vmem:[#allocation2 + $0xd80] sm:$0xff] %v3181
      %3234 = vst [vmem:[#allocation2 + $0xd88] sm:$0xff] %v3182
      %3235 = vst [vmem:[#allocation2 + $0xd90] sm:$0xff] %v3183
      %3236 = vst [vmem:[#allocation2 + $0xd98] sm:$0xff] %v3184
      %3237 = vst [vmem:[#allocation2 + $0xda0] sm:$0xff] %v3185
      %3238 = vst [vmem:[#allocation2 + $0xda8] sm:$0xff] %v3186
      %3239 = vst [vmem:[#allocation2 + $0xdb0] sm:$0xff] %v3187
      %3240 = vst [vmem:[#allocation2 + $0xdb8] sm:$0xff] %v3188
      %3241 = vst [vmem:[#allocation2 + $0xdc0] sm:$0xff] %v3189
      %3242 = vst [vmem:[#allocation2 + $0xdc8] sm:$0xff] %v3190
      %v3243 = vld [vmem:[%s192 + $0x10] sm:$0xff]
      %v3244 = vld [vmem:[%s192 + $0x18] sm:$0xff]
      %v3245 = vld [vmem:[%s192 + $0x20] sm:$0xff]
      %v3246 = vld [vmem:[%s192 + $0x28] sm:$0xff]
      %v3247 = vld [vmem:[%s192 + $0x30] sm:$0xff]
      %v3248 = vld [vmem:[%s192 + $0x38] sm:$0xff]
      %v3249 = vld [vmem:[%s192 + $0x40] sm:$0xff]
      %v3250 = vld [vmem:[%s192 + $0x48] sm:$0xff]
      %v3251 = vld [vmem:[%s192 + $0x50] sm:$0xff]
      %v3252 = vld [vmem:[%s192 + $0x58] sm:$0xff]
      %v3253 = vld [vmem:[%s192 + $0x60] sm:$0xff]
      %v3254 = vld [vmem:[%s192 + $0x68] sm:$0xff]
      %v3255 = vld [vmem:[%s192 + $0x70] sm:$0xff]
      %v3256 = vld [vmem:[%s192 + $0x78] sm:$0xff]
      %v3257 = vld [vmem:[%s192 + $0x80] sm:$0xff]
      %v3258 = vld [vmem:[%s192 + $0x88] sm:$0xff]
      %v3259 = vld [vmem:[%s192 + $0x90] sm:$0xff]
      %v3260 = vld [vmem:[%s192 + $0x98] sm:$0xff]
      %v3261 = vld [vmem:[%s192 + $0xa0] sm:$0xff]
      %v3262 = vld [vmem:[%s192 + $0xa8] sm:$0xff]
      %v3263 = vld [vmem:[%s192 + $0xb0] sm:$0xff]
      %v3264 = vld [vmem:[%s192 + $0xb8] sm:$0xff]
      %v3265 = vld [vmem:[%s192 + $0xc0] sm:$0xff]
      %v3266 = vld [vmem:[%s192 + $0xc8] sm:$0xff]
      %v3267 = vld [vmem:[%s192 + $0xd0] sm:$0xff]
      %v3268 = vld [vmem:[%s192 + $0xd8] sm:$0xff]
      %v3269 = vld [vmem:[%s192 + $0xe0] sm:$0xff]
      %3297 = vrot.lane.b32.xlu0 %v3243, 22
      %v3298 = vpop.permute.xlu0 %3297
      %3299 = vrot.lane.b32.xlu0 %v3244, 22
      %v3300 = vpop.permute.xlu0 %3299
      %3301 = vrot.lane.b32.xlu0 %v3245, 22
      %v3302 = vpop.permute.xlu0 %3301
      %3303 = vrot.lane.b32.xlu0 %v3246, 22
      %v3304 = vpop.permute.xlu0 %3303
      %3305 = vrot.lane.b32.xlu0 %v3247, 22
      %v3306 = vpop.permute.xlu0 %3305
      %3307 = vrot.lane.b32.xlu0 %v3248, 22
      %v3308 = vpop.permute.xlu0 %3307
      %3309 = vrot.lane.b32.xlu0 %v3249, 22
      %v3310 = vpop.permute.xlu0 %3309
      %3311 = vrot.lane.b32.xlu0 %v3250, 22
      %v3312 = vpop.permute.xlu0 %3311
      %3313 = vrot.lane.b32.xlu0 %v3251, 22
      %v3314 = vpop.permute.xlu0 %3313
      %3315 = vrot.lane.b32.xlu0 %v3252, 22
      %v3316 = vpop.permute.xlu0 %3315
      %3317 = vrot.lane.b32.xlu0 %v3253, 22
      %v3318 = vpop.permute.xlu0 %3317
      %3319 = vrot.lane.b32.xlu0 %v3254, 22
      %v3320 = vpop.permute.xlu0 %3319
      %3321 = vrot.lane.b32.xlu0 %v3255, 22
      %v3322 = vpop.permute.xlu0 %3321
      %3323 = vrot.lane.b32.xlu0 %v3256, 22
      %v3324 = vpop.permute.xlu0 %3323
      %3325 = vrot.lane.b32.xlu0 %v3257, 22
      %v3326 = vpop.permute.xlu0 %3325
      %3327 = vrot.lane.b32.xlu0 %v3258, 22
      %v3328 = vpop.permute.xlu0 %3327
      %3329 = vrot.lane.b32.xlu0 %v3259, 22
      %v3330 = vpop.permute.xlu0 %3329
      %3331 = vrot.lane.b32.xlu0 %v3260, 22
      %v3332 = vpop.permute.xlu0 %3331
      %3333 = vrot.lane.b32.xlu0 %v3261, 22
      %v3334 = vpop.permute.xlu0 %3333
      %3335 = vrot.lane.b32.xlu0 %v3262, 22
      %v3336 = vpop.permute.xlu0 %3335
      %3337 = vrot.lane.b32.xlu0 %v3263, 22
      %v3338 = vpop.permute.xlu0 %3337
      %3339 = vrot.lane.b32.xlu0 %v3264, 22
      %v3340 = vpop.permute.xlu0 %3339
      %3341 = vrot.lane.b32.xlu0 %v3265, 22
      %v3342 = vpop.permute.xlu0 %3341
      %3343 = vrot.lane.b32.xlu0 %v3266, 22
      %v3344 = vpop.permute.xlu0 %3343
      %3345 = vrot.lane.b32.xlu0 %v3267, 22
      %v3346 = vpop.permute.xlu0 %3345
      %3347 = vrot.lane.b32.xlu0 %v3268, 22
      %v3348 = vpop.permute.xlu0 %3347
      %3349 = vrot.lane.b32.xlu0 %v3269, 22
      %v3350 = vpop.permute.xlu0 %3349
      %vm3351 = vcmask 179200
      %v3352 = vsel %vm3351, %v3298, %v3300
      %v3353 = vsel %vm3351, %v3300, %v3302
      %v3354 = vsel %vm3351, %v3302, %v3304
      %v3355 = vsel %vm3351, %v3304, %v3306
      %v3356 = vsel %vm3351, %v3306, %v3308
      %v3357 = vsel %vm3351, %v3308, %v3310
      %v3358 = vsel %vm3351, %v3310, %v3312
      %v3359 = vsel %vm3351, %v3312, %v3314
      %v3360 = vsel %vm3351, %v3314, %v3316
      %v3361 = vsel %vm3351, %v3316, %v3318
      %v3362 = vsel %vm3351, %v3318, %v3320
      %v3363 = vsel %vm3351, %v3320, %v3322
      %v3364 = vsel %vm3351, %v3322, %v3324
      %v3365 = vsel %vm3351, %v3324, %v3326
      %v3366 = vsel %vm3351, %v3326, %v3328
      %v3367 = vsel %vm3351, %v3328, %v3330
      %v3368 = vsel %vm3351, %v3330, %v3332
      %v3369 = vsel %vm3351, %v3332, %v3334
      %v3370 = vsel %vm3351, %v3334, %v3336
      %v3371 = vsel %vm3351, %v3336, %v3338
      %v3372 = vsel %vm3351, %v3338, %v3340
      %v3373 = vsel %vm3351, %v3340, %v3342
      %v3374 = vsel %vm3351, %v3342, %v3344
      %v3375 = vsel %vm3351, %v3344, %v3346
      %v3376 = vsel %vm3351, %v3346, %v3348
      %v3377 = vsel %vm3351, %v3348, %v3350
      %3404 = vst [vmem:[#allocation2 + $0xdd0] sm:$0xff] %v3352
      %3405 = vst [vmem:[#allocation2 + $0xdd8] sm:$0xff] %v3353
      %3406 = vst [vmem:[#allocation2 + $0xde0] sm:$0xff] %v3354
      %3407 = vst [vmem:[#allocation2 + $0xde8] sm:$0xff] %v3355
      %3408 = vst [vmem:[#allocation2 + $0xdf0] sm:$0xff] %v3356
      %3409 = vst [vmem:[#allocation2 + $0xdf8] sm:$0xff] %v3357
      %3410 = vst [vmem:[#allocation2 + $0xe00] sm:$0xff] %v3358
      %3411 = vst [vmem:[#allocation2 + $0xe08] sm:$0xff] %v3359
      %3412 = vst [vmem:[#allocation2 + $0xe10] sm:$0xff] %v3360
      %3413 = vst [vmem:[#allocation2 + $0xe18] sm:$0xff] %v3361
      %3414 = vst [vmem:[#allocation2 + $0xe20] sm:$0xff] %v3362
      %3415 = vst [vmem:[#allocation2 + $0xe28] sm:$0xff] %v3363
      %3416 = vst [vmem:[#allocation2 + $0xe30] sm:$0xff] %v3364
      %3417 = vst [vmem:[#allocation2 + $0xe38] sm:$0xff] %v3365
      %3418 = vst [vmem:[#allocation2 + $0xe40] sm:$0xff] %v3366
      %3419 = vst [vmem:[#allocation2 + $0xe48] sm:$0xff] %v3367
      %3420 = vst [vmem:[#allocation2 + $0xe50] sm:$0xff] %v3368
      %3421 = vst [vmem:[#allocation2 + $0xe58] sm:$0xff] %v3369
      %3422 = vst [vmem:[#allocation2 + $0xe60] sm:$0xff] %v3370
      %3423 = vst [vmem:[#allocation2 + $0xe68] sm:$0xff] %v3371
      %3424 = vst [vmem:[#allocation2 + $0xe70] sm:$0xff] %v3372
      %3425 = vst [vmem:[#allocation2 + $0xe78] sm:$0xff] %v3373
      %3426 = vst [vmem:[#allocation2 + $0xe80] sm:$0xff] %v3374
      %3427 = vst [vmem:[#allocation2 + $0xe88] sm:$0xff] %v3375
      %3428 = vst [vmem:[#allocation2 + $0xe90] sm:$0xff] %v3376
      %3429 = vst [vmem:[#allocation2 + $0xe98] sm:$0xff] %v3377
      %v3430 = vld [vmem:[%s192 + $0x28] sm:$0xff]
      %v3431 = vld [vmem:[%s192 + $0x30] sm:$0xff]
      %v3432 = vld [vmem:[%s192 + $0x38] sm:$0xff]
      %v3433 = vld [vmem:[%s192 + $0x40] sm:$0xff]
      %v3434 = vld [vmem:[%s192 + $0x48] sm:$0xff]
      %v3435 = vld [vmem:[%s192 + $0x50] sm:$0xff]
      %v3436 = vld [vmem:[%s192 + $0x58] sm:$0xff]
      %v3437 = vld [vmem:[%s192 + $0x60] sm:$0xff]
      %v3438 = vld [vmem:[%s192 + $0x68] sm:$0xff]
      %v3439 = vld [vmem:[%s192 + $0x70] sm:$0xff]
      %v3440 = vld [vmem:[%s192 + $0x78] sm:$0xff]
      %v3441 = vld [vmem:[%s192 + $0x80] sm:$0xff]
      %v3442 = vld [vmem:[%s192 + $0x88] sm:$0xff]
      %v3443 = vld [vmem:[%s192 + $0x90] sm:$0xff]
      %v3444 = vld [vmem:[%s192 + $0x98] sm:$0xff]
      %v3445 = vld [vmem:[%s192 + $0xa0] sm:$0xff]
      %v3446 = vld [vmem:[%s192 + $0xa8] sm:$0xff]
      %v3447 = vld [vmem:[%s192 + $0xb0] sm:$0xff]
      %v3448 = vld [vmem:[%s192 + $0xb8] sm:$0xff]
      %v3449 = vld [vmem:[%s192 + $0xc0] sm:$0xff]
      %v3450 = vld [vmem:[%s192 + $0xc8] sm:$0xff]
      %v3451 = vld [vmem:[%s192 + $0xd0] sm:$0xff]
      %v3452 = vld [vmem:[%s192 + $0xd8] sm:$0xff]
      %v3453 = vld [vmem:[%s192 + $0xe0] sm:$0xff]
      %v3454 = vld [vmem:[%s192 + $0xe8] sm:$0xff]
      %v3455 = vld [vmem:[%s192 + $0xf0] sm:$0xff]
      %v3456 = vld [vmem:[%s192 + $0xf8] sm:$0xff]
      %3484 = vrot.lane.b32.xlu0 %v3430, 120
      %v3485 = vpop.permute.xlu0 %3484
      %3486 = vrot.lane.b32.xlu0 %v3431, 120
      %v3487 = vpop.permute.xlu0 %3486
      %3488 = vrot.lane.b32.xlu0 %v3432, 120
      %v3489 = vpop.permute.xlu0 %3488
      %3490 = vrot.lane.b32.xlu0 %v3433, 120
      %v3491 = vpop.permute.xlu0 %3490
      %3492 = vrot.lane.b32.xlu0 %v3434, 120
      %v3493 = vpop.permute.xlu0 %3492
      %3494 = vrot.lane.b32.xlu0 %v3435, 120
      %v3495 = vpop.permute.xlu0 %3494
      %3496 = vrot.lane.b32.xlu0 %v3436, 120
      %v3497 = vpop.permute.xlu0 %3496
      %3498 = vrot.lane.b32.xlu0 %v3437, 120
      %v3499 = vpop.permute.xlu0 %3498
      %3500 = vrot.lane.b32.xlu0 %v3438, 120
      %v3501 = vpop.permute.xlu0 %3500
      %3502 = vrot.lane.b32.xlu0 %v3439, 120
      %v3503 = vpop.permute.xlu0 %3502
      %3504 = vrot.lane.b32.xlu0 %v3440, 120
      %v3505 = vpop.permute.xlu0 %3504
      %3506 = vrot.lane.b32.xlu0 %v3441, 120
      %v3507 = vpop.permute.xlu0 %3506
      %3508 = vrot.lane.b32.xlu0 %v3442, 120
      %v3509 = vpop.permute.xlu0 %3508
      %3510 = vrot.lane.b32.xlu0 %v3443, 120
      %v3511 = vpop.permute.xlu0 %3510
      %3512 = vrot.lane.b32.xlu0 %v3444, 120
      %v3513 = vpop.permute.xlu0 %3512
      %3514 = vrot.lane.b32.xlu0 %v3445, 120
      %v3515 = vpop.permute.xlu0 %3514
      %3516 = vrot.lane.b32.xlu0 %v3446, 120
      %v3517 = vpop.permute.xlu0 %3516
      %3518 = vrot.lane.b32.xlu0 %v3447, 120
      %v3519 = vpop.permute.xlu0 %3518
      %3520 = vrot.lane.b32.xlu0 %v3448, 120
      %v3521 = vpop.permute.xlu0 %3520
      %3522 = vrot.lane.b32.xlu0 %v3449, 120
      %v3523 = vpop.permute.xlu0 %3522
      %3524 = vrot.lane.b32.xlu0 %v3450, 120
      %v3525 = vpop.permute.xlu0 %3524
      %3526 = vrot.lane.b32.xlu0 %v3451, 120
      %v3527 = vpop.permute.xlu0 %3526
      %3528 = vrot.lane.b32.xlu0 %v3452, 120
      %v3529 = vpop.permute.xlu0 %3528
      %3530 = vrot.lane.b32.xlu0 %v3453, 120
      %v3531 = vpop.permute.xlu0 %3530
      %3532 = vrot.lane.b32.xlu0 %v3454, 120
      %v3533 = vpop.permute.xlu0 %3532
      %3534 = vrot.lane.b32.xlu0 %v3455, 120
      %v3535 = vpop.permute.xlu0 %3534
      %3536 = vrot.lane.b32.xlu0 %v3456, 120
      %v3537 = vpop.permute.xlu0 %3536
      %vm3538 = vcmask 982016
      %v3539 = vsel %vm3538, %v3485, %v3487
      %v3540 = vsel %vm3538, %v3487, %v3489
      %v3541 = vsel %vm3538, %v3489, %v3491
      %v3542 = vsel %vm3538, %v3491, %v3493
      %v3543 = vsel %vm3538, %v3493, %v3495
      %v3544 = vsel %vm3538, %v3495, %v3497
      %v3545 = vsel %vm3538, %v3497, %v3499
      %v3546 = vsel %vm3538, %v3499, %v3501
      %v3547 = vsel %vm3538, %v3501, %v3503
      %v3548 = vsel %vm3538, %v3503, %v3505
      %v3549 = vsel %vm3538, %v3505, %v3507
      %v3550 = vsel %vm3538, %v3507, %v3509
      %v3551 = vsel %vm3538, %v3509, %v3511
      %v3552 = vsel %vm3538, %v3511, %v3513
      %v3553 = vsel %vm3538, %v3513, %v3515
      %v3554 = vsel %vm3538, %v3515, %v3517
      %v3555 = vsel %vm3538, %v3517, %v3519
      %v3556 = vsel %vm3538, %v3519, %v3521
      %v3557 = vsel %vm3538, %v3521, %v3523
      %v3558 = vsel %vm3538, %v3523, %v3525
      %v3559 = vsel %vm3538, %v3525, %v3527
      %v3560 = vsel %vm3538, %v3527, %v3529
      %v3561 = vsel %vm3538, %v3529, %v3531
      %v3562 = vsel %vm3538, %v3531, %v3533
      %v3563 = vsel %vm3538, %v3533, %v3535
      %v3564 = vsel %vm3538, %v3535, %v3537
      %3591 = vst [vmem:[#allocation2 + $0xea0] sm:$0xff] %v3539
      %3592 = vst [vmem:[#allocation2 + $0xea8] sm:$0xff] %v3540
      %3593 = vst [vmem:[#allocation2 + $0xeb0] sm:$0xff] %v3541
      %3594 = vst [vmem:[#allocation2 + $0xeb8] sm:$0xff] %v3542
      %3595 = vst [vmem:[#allocation2 + $0xec0] sm:$0xff] %v3543
      %3596 = vst [vmem:[#allocation2 + $0xec8] sm:$0xff] %v3544
      %3597 = vst [vmem:[#allocation2 + $0xed0] sm:$0xff] %v3545
      %3598 = vst [vmem:[#allocation2 + $0xed8] sm:$0xff] %v3546
      %3599 = vst [vmem:[#allocation2 + $0xee0] sm:$0xff] %v3547
      %3600 = vst [vmem:[#allocation2 + $0xee8] sm:$0xff] %v3548
      %3601 = vst [vmem:[#allocation2 + $0xef0] sm:$0xff] %v3549
      %3602 = vst [vmem:[#allocation2 + $0xef8] sm:$0xff] %v3550
      %3603 = vst [vmem:[#allocation2 + $0xf00] sm:$0xff] %v3551
      %3604 = vst [vmem:[#allocation2 + $0xf08] sm:$0xff] %v3552
      %3605 = vst [vmem:[#allocation2 + $0xf10] sm:$0xff] %v3553
      %3606 = vst [vmem:[#allocation2 + $0xf18] sm:$0xff] %v3554
      %3607 = vst [vmem:[#allocation2 + $0xf20] sm:$0xff] %v3555
      %3608 = vst [vmem:[#allocation2 + $0xf28] sm:$0xff] %v3556
      %3609 = vst [vmem:[#allocation2 + $0xf30] sm:$0xff] %v3557
      %3610 = vst [vmem:[#allocation2 + $0xf38] sm:$0xff] %v3558
      %3611 = vst [vmem:[#allocation2 + $0xf40] sm:$0xff] %v3559
      %3612 = vst [vmem:[#allocation2 + $0xf48] sm:$0xff] %v3560
      %3613 = vst [vmem:[#allocation2 + $0xf50] sm:$0xff] %v3561
      %3614 = vst [vmem:[#allocation2 + $0xf58] sm:$0xff] %v3562
      %3615 = vst [vmem:[#allocation2 + $0xf60] sm:$0xff] %v3563
      %3616 = vst [vmem:[#allocation2 + $0xf68] sm:$0xff] %v3564
      %v3617 = vld [vmem:[%s192 + $0x28] sm:$0xff]
      %v3618 = vld [vmem:[%s192 + $0x30] sm:$0xff]
      %v3619 = vld [vmem:[%s192 + $0x38] sm:$0xff]
      %v3620 = vld [vmem:[%s192 + $0x40] sm:$0xff]
      %v3621 = vld [vmem:[%s192 + $0x48] sm:$0xff]
      %v3622 = vld [vmem:[%s192 + $0x50] sm:$0xff]
      %v3623 = vld [vmem:[%s192 + $0x58] sm:$0xff]
      %v3624 = vld [vmem:[%s192 + $0x60] sm:$0xff]
      %v3625 = vld [vmem:[%s192 + $0x68] sm:$0xff]
      %v3626 = vld [vmem:[%s192 + $0x70] sm:$0xff]
      %v3627 = vld [vmem:[%s192 + $0x78] sm:$0xff]
      %v3628 = vld [vmem:[%s192 + $0x80] sm:$0xff]
      %v3629 = vld [vmem:[%s192 + $0x88] sm:$0xff]
      %v3630 = vld [vmem:[%s192 + $0x90] sm:$0xff]
      %v3631 = vld [vmem:[%s192 + $0x98] sm:$0xff]
      %v3632 = vld [vmem:[%s192 + $0xa0] sm:$0xff]
      %v3633 = vld [vmem:[%s192 + $0xa8] sm:$0xff]
      %v3634 = vld [vmem:[%s192 + $0xb0] sm:$0xff]
      %v3635 = vld [vmem:[%s192 + $0xb8] sm:$0xff]
      %v3636 = vld [vmem:[%s192 + $0xc0] sm:$0xff]
      %v3637 = vld [vmem:[%s192 + $0xc8] sm:$0xff]
      %v3638 = vld [vmem:[%s192 + $0xd0] sm:$0xff]
      %v3639 = vld [vmem:[%s192 + $0xd8] sm:$0xff]
      %v3640 = vld [vmem:[%s192 + $0xe0] sm:$0xff]
      %v3641 = vld [vmem:[%s192 + $0xe8] sm:$0xff]
      %v3642 = vld [vmem:[%s192 + $0xf0] sm:$0xff]
      %v3643 = vld [vmem:[%s192 + $0xf8] sm:$0xff]
      %3671 = vrot.lane.b32.xlu0 %v3617, 119
      %v3672 = vpop.permute.xlu0 %3671
      %3673 = vrot.lane.b32.xlu0 %v3618, 119
      %v3674 = vpop.permute.xlu0 %3673
      %3675 = vrot.lane.b32.xlu0 %v3619, 119
      %v3676 = vpop.permute.xlu0 %3675
      %3677 = vrot.lane.b32.xlu0 %v3620, 119
      %v3678 = vpop.permute.xlu0 %3677
      %3679 = vrot.lane.b32.xlu0 %v3621, 119
      %v3680 = vpop.permute.xlu0 %3679
      %3681 = vrot.lane.b32.xlu0 %v3622, 119
      %v3682 = vpop.permute.xlu0 %3681
      %3683 = vrot.lane.b32.xlu0 %v3623, 119
      %v3684 = vpop.permute.xlu0 %3683
      %3685 = vrot.lane.b32.xlu0 %v3624, 119
      %v3686 = vpop.permute.xlu0 %3685
      %3687 = vrot.lane.b32.xlu0 %v3625, 119
      %v3688 = vpop.permute.xlu0 %3687
      %3689 = vrot.lane.b32.xlu0 %v3626, 119
      %v3690 = vpop.permute.xlu0 %3689
      %3691 = vrot.lane.b32.xlu0 %v3627, 119
      %v3692 = vpop.permute.xlu0 %3691
      %3693 = vrot.lane.b32.xlu0 %v3628, 119
      %v3694 = vpop.permute.xlu0 %3693
      %3695 = vrot.lane.b32.xlu0 %v3629, 119
      %v3696 = vpop.permute.xlu0 %3695
      %3697 = vrot.lane.b32.xlu0 %v3630, 119
      %v3698 = vpop.permute.xlu0 %3697
      %3699 = vrot.lane.b32.xlu0 %v3631, 119
      %v3700 = vpop.permute.xlu0 %3699
      %3701 = vrot.lane.b32.xlu0 %v3632, 119
      %v3702 = vpop.permute.xlu0 %3701
      %3703 = vrot.lane.b32.xlu0 %v3633, 119
      %v3704 = vpop.permute.xlu0 %3703
      %3705 = vrot.lane.b32.xlu0 %v3634, 119
      %v3706 = vpop.permute.xlu0 %3705
      %3707 = vrot.lane.b32.xlu0 %v3635, 119
      %v3708 = vpop.permute.xlu0 %3707
      %3709 = vrot.lane.b32.xlu0 %v3636, 119
      %v3710 = vpop.permute.xlu0 %3709
      %3711 = vrot.lane.b32.xlu0 %v3637, 119
      %v3712 = vpop.permute.xlu0 %3711
      %3713 = vrot.lane.b32.xlu0 %v3638, 119
      %v3714 = vpop.permute.xlu0 %3713
      %3715 = vrot.lane.b32.xlu0 %v3639, 119
      %v3716 = vpop.permute.xlu0 %3715
      %3717 = vrot.lane.b32.xlu0 %v3640, 119
      %v3718 = vpop.permute.xlu0 %3717
      %3719 = vrot.lane.b32.xlu0 %v3641, 119
      %v3720 = vpop.permute.xlu0 %3719
      %3721 = vrot.lane.b32.xlu0 %v3642, 119
      %v3722 = vpop.permute.xlu0 %3721
      %3723 = vrot.lane.b32.xlu0 %v3643, 119
      %v3724 = vpop.permute.xlu0 %3723
      %vm3725 = vcmask 973824
      %v3726 = vsel %vm3725, %v3672, %v3674
      %v3727 = vsel %vm3725, %v3674, %v3676
      %v3728 = vsel %vm3725, %v3676, %v3678
      %v3729 = vsel %vm3725, %v3678, %v3680
      %v3730 = vsel %vm3725, %v3680, %v3682
      %v3731 = vsel %vm3725, %v3682, %v3684
      %v3732 = vsel %vm3725, %v3684, %v3686
      %v3733 = vsel %vm3725, %v3686, %v3688
      %v3734 = vsel %vm3725, %v3688, %v3690
      %v3735 = vsel %vm3725, %v3690, %v3692
      %v3736 = vsel %vm3725, %v3692, %v3694
      %v3737 = vsel %vm3725, %v3694, %v3696
      %v3738 = vsel %vm3725, %v3696, %v3698
      %v3739 = vsel %vm3725, %v3698, %v3700
      %v3740 = vsel %vm3725, %v3700, %v3702
      %v3741 = vsel %vm3725, %v3702, %v3704
      %v3742 = vsel %vm3725, %v3704, %v3706
      %v3743 = vsel %vm3725, %v3706, %v3708
      %v3744 = vsel %vm3725, %v3708, %v3710
      %v3745 = vsel %vm3725, %v3710, %v3712
      %v3746 = vsel %vm3725, %v3712, %v3714
      %v3747 = vsel %vm3725, %v3714, %v3716
      %v3748 = vsel %vm3725, %v3716, %v3718
      %v3749 = vsel %vm3725, %v3718, %v3720
      %v3750 = vsel %vm3725, %v3720, %v3722
      %v3751 = vsel %vm3725, %v3722, %v3724
      %3778 = vst [vmem:[#allocation2 + $0xf70] sm:$0xff] %v3726
      %3779 = vst [vmem:[#allocation2 + $0xf78] sm:$0xff] %v3727
      %3780 = vst [vmem:[#allocation2 + $0xf80] sm:$0xff] %v3728
      %3781 = vst [vmem:[#allocation2 + $0xf88] sm:$0xff] %v3729
      %3782 = vst [vmem:[#allocation2 + $0xf90] sm:$0xff] %v3730
      %3783 = vst [vmem:[#allocation2 + $0xf98] sm:$0xff] %v3731
      %3784 = vst [vmem:[#allocation2 + $0xfa0] sm:$0xff] %v3732
      %3785 = vst [vmem:[#allocation2 + $0xfa8] sm:$0xff] %v3733
      %3786 = vst [vmem:[#allocation2 + $0xfb0] sm:$0xff] %v3734
      %3787 = vst [vmem:[#allocation2 + $0xfb8] sm:$0xff] %v3735
      %3788 = vst [vmem:[#allocation2 + $0xfc0] sm:$0xff] %v3736
      %3789 = vst [vmem:[#allocation2 + $0xfc8] sm:$0xff] %v3737
      %3790 = vst [vmem:[#allocation2 + $0xfd0] sm:$0xff] %v3738
      %3791 = vst [vmem:[#allocation2 + $0xfd8] sm:$0xff] %v3739
      %3792 = vst [vmem:[#allocation2 + $0xfe0] sm:$0xff] %v3740
      %3793 = vst [vmem:[#allocation2 + $0xfe8] sm:$0xff] %v3741
      %3794 = vst [vmem:[#allocation2 + $0xff0] sm:$0xff] %v3742
      %3795 = vst [vmem:[#allocation2 + $0xff8] sm:$0xff] %v3743
      %3796 = vst [vmem:[#allocation2 + $0x1000] sm:$0xff] %v3744
      %3797 = vst [vmem:[#allocation2 + $0x1008] sm:$0xff] %v3745
      %3798 = vst [vmem:[#allocation2 + $0x1010] sm:$0xff] %v3746
      %3799 = vst [vmem:[#allocation2 + $0x1018] sm:$0xff] %v3747
      %3800 = vst [vmem:[#allocation2 + $0x1020] sm:$0xff] %v3748
      %3801 = vst [vmem:[#allocation2 + $0x1028] sm:$0xff] %v3749
      %3802 = vst [vmem:[#allocation2 + $0x1030] sm:$0xff] %v3750
      %3803 = vst [vmem:[#allocation2 + $0x1038] sm:$0xff] %v3751
      %v3804 = vld [vmem:[%s192 + $0x28] sm:$0xff]
      %v3805 = vld [vmem:[%s192 + $0x30] sm:$0xff]
      %v3806 = vld [vmem:[%s192 + $0x38] sm:$0xff]
      %v3807 = vld [vmem:[%s192 + $0x40] sm:$0xff]
      %v3808 = vld [vmem:[%s192 + $0x48] sm:$0xff]
      %v3809 = vld [vmem:[%s192 + $0x50] sm:$0xff]
      %v3810 = vld [vmem:[%s192 + $0x58] sm:$0xff]
      %v3811 = vld [vmem:[%s192 + $0x60] sm:$0xff]
      %v3812 = vld [vmem:[%s192 + $0x68] sm:$0xff]
      %v3813 = vld [vmem:[%s192 + $0x70] sm:$0xff]
      %v3814 = vld [vmem:[%s192 + $0x78] sm:$0xff]
      %v3815 = vld [vmem:[%s192 + $0x80] sm:$0xff]
      %v3816 = vld [vmem:[%s192 + $0x88] sm:$0xff]
      %v3817 = vld [vmem:[%s192 + $0x90] sm:$0xff]
      %v3818 = vld [vmem:[%s192 + $0x98] sm:$0xff]
      %v3819 = vld [vmem:[%s192 + $0xa0] sm:$0xff]
      %v3820 = vld [vmem:[%s192 + $0xa8] sm:$0xff]
      %v3821 = vld [vmem:[%s192 + $0xb0] sm:$0xff]
      %v3822 = vld [vmem:[%s192 + $0xb8] sm:$0xff]
      %v3823 = vld [vmem:[%s192 + $0xc0] sm:$0xff]
      %v3824 = vld [vmem:[%s192 + $0xc8] sm:$0xff]
      %v3825 = vld [vmem:[%s192 + $0xd0] sm:$0xff]
      %v3826 = vld [vmem:[%s192 + $0xd8] sm:$0xff]
      %v3827 = vld [vmem:[%s192 + $0xe0] sm:$0xff]
      %v3828 = vld [vmem:[%s192 + $0xe8] sm:$0xff]
      %v3829 = vld [vmem:[%s192 + $0xf0] sm:$0xff]
      %v3830 = vld [vmem:[%s192 + $0xf8] sm:$0xff]
      %3858 = vrot.lane.b32.xlu0 %v3804, 118
      %v3859 = vpop.permute.xlu0 %3858
      %3860 = vrot.lane.b32.xlu0 %v3805, 118
      %v3861 = vpop.permute.xlu0 %3860
      %3862 = vrot.lane.b32.xlu0 %v3806, 118
      %v3863 = vpop.permute.xlu0 %3862
      %3864 = vrot.lane.b32.xlu0 %v3807, 118
      %v3865 = vpop.permute.xlu0 %3864
      %3866 = vrot.lane.b32.xlu0 %v3808, 118
      %v3867 = vpop.permute.xlu0 %3866
      %3868 = vrot.lane.b32.xlu0 %v3809, 118
      %v3869 = vpop.permute.xlu0 %3868
      %3870 = vrot.lane.b32.xlu0 %v3810, 118
      %v3871 = vpop.permute.xlu0 %3870
      %3872 = vrot.lane.b32.xlu0 %v3811, 118
      %v3873 = vpop.permute.xlu0 %3872
      %3874 = vrot.lane.b32.xlu0 %v3812, 118
      %v3875 = vpop.permute.xlu0 %3874
      %3876 = vrot.lane.b32.xlu0 %v3813, 118
      %v3877 = vpop.permute.xlu0 %3876
      %3878 = vrot.lane.b32.xlu0 %v3814, 118
      %v3879 = vpop.permute.xlu0 %3878
      %3880 = vrot.lane.b32.xlu0 %v3815, 118
      %v3881 = vpop.permute.xlu0 %3880
      %3882 = vrot.lane.b32.xlu0 %v3816, 118
      %v3883 = vpop.permute.xlu0 %3882
      %3884 = vrot.lane.b32.xlu0 %v3817, 118
      %v3885 = vpop.permute.xlu0 %3884
      %3886 = vrot.lane.b32.xlu0 %v3818, 118
      %v3887 = vpop.permute.xlu0 %3886
      %3888 = vrot.lane.b32.xlu0 %v3819, 118
      %v3889 = vpop.permute.xlu0 %3888
      %3890 = vrot.lane.b32.xlu0 %v3820, 118
      %v3891 = vpop.permute.xlu0 %3890
      %3892 = vrot.lane.b32.xlu0 %v3821, 118
      %v3893 = vpop.permute.xlu0 %3892
      %3894 = vrot.lane.b32.xlu0 %v3822, 118
      %v3895 = vpop.permute.xlu0 %3894
      %3896 = vrot.lane.b32.xlu0 %v3823, 118
      %v3897 = vpop.permute.xlu0 %3896
      %3898 = vrot.lane.b32.xlu0 %v3824, 118
      %v3899 = vpop.permute.xlu0 %3898
      %3900 = vrot.lane.b32.xlu0 %v3825, 118
      %v3901 = vpop.permute.xlu0 %3900
      %3902 = vrot.lane.b32.xlu0 %v3826, 118
      %v3903 = vpop.permute.xlu0 %3902
      %3904 = vrot.lane.b32.xlu0 %v3827, 118
      %v3905 = vpop.permute.xlu0 %3904
      %3906 = vrot.lane.b32.xlu0 %v3828, 118
      %v3907 = vpop.permute.xlu0 %3906
      %3908 = vrot.lane.b32.xlu0 %v3829, 118
      %v3909 = vpop.permute.xlu0 %3908
      %3910 = vrot.lane.b32.xlu0 %v3830, 118
      %v3911 = vpop.permute.xlu0 %3910
      %vm3912 = vcmask 965632
      %v3913 = vsel %vm3912, %v3859, %v3861
      %v3914 = vsel %vm3912, %v3861, %v3863
      %v3915 = vsel %vm3912, %v3863, %v3865
      %v3916 = vsel %vm3912, %v3865, %v3867
      %v3917 = vsel %vm3912, %v3867, %v3869
      %v3918 = vsel %vm3912, %v3869, %v3871
      %v3919 = vsel %vm3912, %v3871, %v3873
      %v3920 = vsel %vm3912, %v3873, %v3875
      %v3921 = vsel %vm3912, %v3875, %v3877
      %v3922 = vsel %vm3912, %v3877, %v3879
      %v3923 = vsel %vm3912, %v3879, %v3881
      %v3924 = vsel %vm3912, %v3881, %v3883
      %v3925 = vsel %vm3912, %v3883, %v3885
      %v3926 = vsel %vm3912, %v3885, %v3887
      %v3927 = vsel %vm3912, %v3887, %v3889
      %v3928 = vsel %vm3912, %v3889, %v3891
      %v3929 = vsel %vm3912, %v3891, %v3893
      %v3930 = vsel %vm3912, %v3893, %v3895
      %v3931 = vsel %vm3912, %v3895, %v3897
      %v3932 = vsel %vm3912, %v3897, %v3899
      %v3933 = vsel %vm3912, %v3899, %v3901
      %v3934 = vsel %vm3912, %v3901, %v3903
      %v3935 = vsel %vm3912, %v3903, %v3905
      %v3936 = vsel %vm3912, %v3905, %v3907
      %v3937 = vsel %vm3912, %v3907, %v3909
      %v3938 = vsel %vm3912, %v3909, %v3911
      %3965 = vst [vmem:[#allocation2 + $0x1040] sm:$0xff] %v3913
      %3966 = vst [vmem:[#allocation2 + $0x1048] sm:$0xff] %v3914
      %3967 = vst [vmem:[#allocation2 + $0x1050] sm:$0xff] %v3915
      %3968 = vst [vmem:[#allocation2 + $0x1058] sm:$0xff] %v3916
      %3969 = vst [vmem:[#allocation2 + $0x1060] sm:$0xff] %v3917
      %3970 = vst [vmem:[#allocation2 + $0x1068] sm:$0xff] %v3918
      %3971 = vst [vmem:[#allocation2 + $0x1070] sm:$0xff] %v3919
      %3972 = vst [vmem:[#allocation2 + $0x1078] sm:$0xff] %v3920
      %3973 = vst [vmem:[#allocation2 + $0x1080] sm:$0xff] %v3921
      %3974 = vst [vmem:[#allocation2 + $0x1088] sm:$0xff] %v3922
      %3975 = vst [vmem:[#allocation2 + $0x1090] sm:$0xff] %v3923
      %3976 = vst [vmem:[#allocation2 + $0x1098] sm:$0xff] %v3924
      %3977 = vst [vmem:[#allocation2 + $0x10a0] sm:$0xff] %v3925
      %3978 = vst [vmem:[#allocation2 + $0x10a8] sm:$0xff] %v3926
      %3979 = vst [vmem:[#allocation2 + $0x10b0] sm:$0xff] %v3927
      %3980 = vst [vmem:[#allocation2 + $0x10b8] sm:$0xff] %v3928
      %3981 = vst [vmem:[#allocation2 + $0x10c0] sm:$0xff] %v3929
      %3982 = vst [vmem:[#allocation2 + $0x10c8] sm:$0xff] %v3930
      %3983 = vst [vmem:[#allocation2 + $0x10d0] sm:$0xff] %v3931
      %3984 = vst [vmem:[#allocation2 + $0x10d8] sm:$0xff] %v3932
      %3985 = vst [vmem:[#allocation2 + $0x10e0] sm:$0xff] %v3933
      %3986 = vst [vmem:[#allocation2 + $0x10e8] sm:$0xff] %v3934
      %3987 = vst [vmem:[#allocation2 + $0x10f0] sm:$0xff] %v3935
      %3988 = vst [vmem:[#allocation2 + $0x10f8] sm:$0xff] %v3936
      %3989 = vst [vmem:[#allocation2 + $0x1100] sm:$0xff] %v3937
      %3990 = vst [vmem:[#allocation2 + $0x1108] sm:$0xff] %v3938
      %v3991 = vld [vmem:[%s192 + $0x28] sm:$0xff]
      %v3992 = vld [vmem:[%s192 + $0x30] sm:$0xff]
      %v3993 = vld [vmem:[%s192 + $0x38] sm:$0xff]
      %v3994 = vld [vmem:[%s192 + $0x40] sm:$0xff]
      %v3995 = vld [vmem:[%s192 + $0x48] sm:$0xff]
      %v3996 = vld [vmem:[%s192 + $0x50] sm:$0xff]
      %v3997 = vld [vmem:[%s192 + $0x58] sm:$0xff]
      %v3998 = vld [vmem:[%s192 + $0x60] sm:$0xff]
      %v3999 = vld [vmem:[%s192 + $0x68] sm:$0xff]
      %v4000 = vld [vmem:[%s192 + $0x70] sm:$0xff]
      %v4001 = vld [vmem:[%s192 + $0x78] sm:$0xff]
      %v4002 = vld [vmem:[%s192 + $0x80] sm:$0xff]
      %v4003 = vld [vmem:[%s192 + $0x88] sm:$0xff]
      %v4004 = vld [vmem:[%s192 + $0x90] sm:$0xff]
      %v4005 = vld [vmem:[%s192 + $0x98] sm:$0xff]
      %v4006 = vld [vmem:[%s192 + $0xa0] sm:$0xff]
      %v4007 = vld [vmem:[%s192 + $0xa8] sm:$0xff]
      %v4008 = vld [vmem:[%s192 + $0xb0] sm:$0xff]
      %v4009 = vld [vmem:[%s192 + $0xb8] sm:$0xff]
      %v4010 = vld [vmem:[%s192 + $0xc0] sm:$0xff]
      %v4011 = vld [vmem:[%s192 + $0xc8] sm:$0xff]
      %v4012 = vld [vmem:[%s192 + $0xd0] sm:$0xff]
      %v4013 = vld [vmem:[%s192 + $0xd8] sm:$0xff]
      %v4014 = vld [vmem:[%s192 + $0xe0] sm:$0xff]
      %v4015 = vld [vmem:[%s192 + $0xe8] sm:$0xff]
      %v4016 = vld [vmem:[%s192 + $0xf0] sm:$0xff]
      %v4017 = vld [vmem:[%s192 + $0xf8] sm:$0xff]
      %4045 = vrot.lane.b32.xlu0 %v3991, 102
      %v4046 = vpop.permute.xlu0 %4045
      %4047 = vrot.lane.b32.xlu0 %v3992, 102
      %v4048 = vpop.permute.xlu0 %4047
      %4049 = vrot.lane.b32.xlu0 %v3993, 102
      %v4050 = vpop.permute.xlu0 %4049
      %4051 = vrot.lane.b32.xlu0 %v3994, 102
      %v4052 = vpop.permute.xlu0 %4051
      %4053 = vrot.lane.b32.xlu0 %v3995, 102
      %v4054 = vpop.permute.xlu0 %4053
      %4055 = vrot.lane.b32.xlu0 %v3996, 102
      %v4056 = vpop.permute.xlu0 %4055
      %4057 = vrot.lane.b32.xlu0 %v3997, 102
      %v4058 = vpop.permute.xlu0 %4057
      %4059 = vrot.lane.b32.xlu0 %v3998, 102
      %v4060 = vpop.permute.xlu0 %4059
      %4061 = vrot.lane.b32.xlu0 %v3999, 102
      %v4062 = vpop.permute.xlu0 %4061
      %4063 = vrot.lane.b32.xlu0 %v4000, 102
      %v4064 = vpop.permute.xlu0 %4063
      %4065 = vrot.lane.b32.xlu0 %v4001, 102
      %v4066 = vpop.permute.xlu0 %4065
      %4067 = vrot.lane.b32.xlu0 %v4002, 102
      %v4068 = vpop.permute.xlu0 %4067
      %4069 = vrot.lane.b32.xlu0 %v4003, 102
      %v4070 = vpop.permute.xlu0 %4069
      %4071 = vrot.lane.b32.xlu0 %v4004, 102
      %v4072 = vpop.permute.xlu0 %4071
      %4073 = vrot.lane.b32.xlu0 %v4005, 102
      %v4074 = vpop.permute.xlu0 %4073
      %4075 = vrot.lane.b32.xlu0 %v4006, 102
      %v4076 = vpop.permute.xlu0 %4075
      %4077 = vrot.lane.b32.xlu0 %v4007, 102
      %v4078 = vpop.permute.xlu0 %4077
      %4079 = vrot.lane.b32.xlu0 %v4008, 102
      %v4080 = vpop.permute.xlu0 %4079
      %4081 = vrot.lane.b32.xlu0 %v4009, 102
      %v4082 = vpop.permute.xlu0 %4081
      %4083 = vrot.lane.b32.xlu0 %v4010, 102
      %v4084 = vpop.permute.xlu0 %4083
      %4085 = vrot.lane.b32.xlu0 %v4011, 102
      %v4086 = vpop.permute.xlu0 %4085
      %4087 = vrot.lane.b32.xlu0 %v4012, 102
      %v4088 = vpop.permute.xlu0 %4087
      %4089 = vrot.lane.b32.xlu0 %v4013, 102
      %v4090 = vpop.permute.xlu0 %4089
      %4091 = vrot.lane.b32.xlu0 %v4014, 102
      %v4092 = vpop.permute.xlu0 %4091
      %4093 = vrot.lane.b32.xlu0 %v4015, 102
      %v4094 = vpop.permute.xlu0 %4093
      %4095 = vrot.lane.b32.xlu0 %v4016, 102
      %v4096 = vpop.permute.xlu0 %4095
      %4097 = vrot.lane.b32.xlu0 %v4017, 102
      %v4098 = vpop.permute.xlu0 %4097
      %vm4099 = vcmask 834560
      %v4100 = vsel %vm4099, %v4046, %v4048
      %v4101 = vsel %vm4099, %v4048, %v4050
      %v4102 = vsel %vm4099, %v4050, %v4052
      %v4103 = vsel %vm4099, %v4052, %v4054
      %v4104 = vsel %vm4099, %v4054, %v4056
      %v4105 = vsel %vm4099, %v4056, %v4058
      %v4106 = vsel %vm4099, %v4058, %v4060
      %v4107 = vsel %vm4099, %v4060, %v4062
      %v4108 = vsel %vm4099, %v4062, %v4064
      %v4109 = vsel %vm4099, %v4064, %v4066
      %v4110 = vsel %vm4099, %v4066, %v4068
      %v4111 = vsel %vm4099, %v4068, %v4070
      %v4112 = vsel %vm4099, %v4070, %v4072
      %v4113 = vsel %vm4099, %v4072, %v4074
      %v4114 = vsel %vm4099, %v4074, %v4076
      %v4115 = vsel %vm4099, %v4076, %v4078
      %v4116 = vsel %vm4099, %v4078, %v4080
      %v4117 = vsel %vm4099, %v4080, %v4082
      %v4118 = vsel %vm4099, %v4082, %v4084
      %v4119 = vsel %vm4099, %v4084, %v4086
      %v4120 = vsel %vm4099, %v4086, %v4088
      %v4121 = vsel %vm4099, %v4088, %v4090
      %v4122 = vsel %vm4099, %v4090, %v4092
      %v4123 = vsel %vm4099, %v4092, %v4094
      %v4124 = vsel %vm4099, %v4094, %v4096
      %v4125 = vsel %vm4099, %v4096, %v4098
      %4152 = vst [vmem:[#allocation2 + $0x1110] sm:$0xff] %v4100
      %4153 = vst [vmem:[#allocation2 + $0x1118] sm:$0xff] %v4101
      %4154 = vst [vmem:[#allocation2 + $0x1120] sm:$0xff] %v4102
      %4155 = vst [vmem:[#allocation2 + $0x1128] sm:$0xff] %v4103
      %4156 = vst [vmem:[#allocation2 + $0x1130] sm:$0xff] %v4104
      %4157 = vst [vmem:[#allocation2 + $0x1138] sm:$0xff] %v4105
      %4158 = vst [vmem:[#allocation2 + $0x1140] sm:$0xff] %v4106
      %4159 = vst [vmem:[#allocation2 + $0x1148] sm:$0xff] %v4107
      %4160 = vst [vmem:[#allocation2 + $0x1150] sm:$0xff] %v4108
      %4161 = vst [vmem:[#allocation2 + $0x1158] sm:$0xff] %v4109
      %4162 = vst [vmem:[#allocation2 + $0x1160] sm:$0xff] %v4110
      %4163 = vst [vmem:[#allocation2 + $0x1168] sm:$0xff] %v4111
      %4164 = vst [vmem:[#allocation2 + $0x1170] sm:$0xff] %v4112
      %4165 = vst [vmem:[#allocation2 + $0x1178] sm:$0xff] %v4113
      %4166 = vst [vmem:[#allocation2 + $0x1180] sm:$0xff] %v4114
      %4167 = vst [vmem:[#allocation2 + $0x1188] sm:$0xff] %v4115
      %4168 = vst [vmem:[#allocation2 + $0x1190] sm:$0xff] %v4116
      %4169 = vst [vmem:[#allocation2 + $0x1198] sm:$0xff] %v4117
      %4170 = vst [vmem:[#allocation2 + $0x11a0] sm:$0xff] %v4118
      %4171 = vst [vmem:[#allocation2 + $0x11a8] sm:$0xff] %v4119
      %4172 = vst [vmem:[#allocation2 + $0x11b0] sm:$0xff] %v4120
      %4173 = vst [vmem:[#allocation2 + $0x11b8] sm:$0xff] %v4121
      %4174 = vst [vmem:[#allocation2 + $0x11c0] sm:$0xff] %v4122
      %4175 = vst [vmem:[#allocation2 + $0x11c8] sm:$0xff] %v4123
      %4176 = vst [vmem:[#allocation2 + $0x11d0] sm:$0xff] %v4124
      %4177 = vst [vmem:[#allocation2 + $0x11d8] sm:$0xff] %v4125
      %v4178 = vld [vmem:[%s192 + $0x28] sm:$0xff]
      %v4179 = vld [vmem:[%s192 + $0x30] sm:$0xff]
      %v4180 = vld [vmem:[%s192 + $0x38] sm:$0xff]
      %v4181 = vld [vmem:[%s192 + $0x40] sm:$0xff]
      %v4182 = vld [vmem:[%s192 + $0x48] sm:$0xff]
      %v4183 = vld [vmem:[%s192 + $0x50] sm:$0xff]
      %v4184 = vld [vmem:[%s192 + $0x58] sm:$0xff]
      %v4185 = vld [vmem:[%s192 + $0x60] sm:$0xff]
      %v4186 = vld [vmem:[%s192 + $0x68] sm:$0xff]
      %v4187 = vld [vmem:[%s192 + $0x70] sm:$0xff]
      %v4188 = vld [vmem:[%s192 + $0x78] sm:$0xff]
      %v4189 = vld [vmem:[%s192 + $0x80] sm:$0xff]
      %v4190 = vld [vmem:[%s192 + $0x88] sm:$0xff]
      %v4191 = vld [vmem:[%s192 + $0x90] sm:$0xff]
      %v4192 = vld [vmem:[%s192 + $0x98] sm:$0xff]
      %v4193 = vld [vmem:[%s192 + $0xa0] sm:$0xff]
      %v4194 = vld [vmem:[%s192 + $0xa8] sm:$0xff]
      %v4195 = vld [vmem:[%s192 + $0xb0] sm:$0xff]
      %v4196 = vld [vmem:[%s192 + $0xb8] sm:$0xff]
      %v4197 = vld [vmem:[%s192 + $0xc0] sm:$0xff]
      %v4198 = vld [vmem:[%s192 + $0xc8] sm:$0xff]
      %v4199 = vld [vmem:[%s192 + $0xd0] sm:$0xff]
      %v4200 = vld [vmem:[%s192 + $0xd8] sm:$0xff]
      %v4201 = vld [vmem:[%s192 + $0xe0] sm:$0xff]
      %v4202 = vld [vmem:[%s192 + $0xe8] sm:$0xff]
      %v4203 = vld [vmem:[%s192 + $0xf0] sm:$0xff]
      %v4204 = vld [vmem:[%s192 + $0xf8] sm:$0xff]
      %4232 = vrot.lane.b32.xlu0 %v4178, 101
      %v4233 = vpop.permute.xlu0 %4232
      %4234 = vrot.lane.b32.xlu0 %v4179, 101
      %v4235 = vpop.permute.xlu0 %4234
      %4236 = vrot.lane.b32.xlu0 %v4180, 101
      %v4237 = vpop.permute.xlu0 %4236
      %4238 = vrot.lane.b32.xlu0 %v4181, 101
      %v4239 = vpop.permute.xlu0 %4238
      %4240 = vrot.lane.b32.xlu0 %v4182, 101
      %v4241 = vpop.permute.xlu0 %4240
      %4242 = vrot.lane.b32.xlu0 %v4183, 101
      %v4243 = vpop.permute.xlu0 %4242
      %4244 = vrot.lane.b32.xlu0 %v4184, 101
      %v4245 = vpop.permute.xlu0 %4244
      %4246 = vrot.lane.b32.xlu0 %v4185, 101
      %v4247 = vpop.permute.xlu0 %4246
      %4248 = vrot.lane.b32.xlu0 %v4186, 101
      %v4249 = vpop.permute.xlu0 %4248
      %4250 = vrot.lane.b32.xlu0 %v4187, 101
      %v4251 = vpop.permute.xlu0 %4250
      %4252 = vrot.lane.b32.xlu0 %v4188, 101
      %v4253 = vpop.permute.xlu0 %4252
      %4254 = vrot.lane.b32.xlu0 %v4189, 101
      %v4255 = vpop.permute.xlu0 %4254
      %4256 = vrot.lane.b32.xlu0 %v4190, 101
      %v4257 = vpop.permute.xlu0 %4256
      %4258 = vrot.lane.b32.xlu0 %v4191, 101
      %v4259 = vpop.permute.xlu0 %4258
      %4260 = vrot.lane.b32.xlu0 %v4192, 101
      %v4261 = vpop.permute.xlu0 %4260
      %4262 = vrot.lane.b32.xlu0 %v4193, 101
      %v4263 = vpop.permute.xlu0 %4262
      %4264 = vrot.lane.b32.xlu0 %v4194, 101
      %v4265 = vpop.permute.xlu0 %4264
      %4266 = vrot.lane.b32.xlu0 %v4195, 101
      %v4267 = vpop.permute.xlu0 %4266
      %4268 = vrot.lane.b32.xlu0 %v4196, 101
      %v4269 = vpop.permute.xlu0 %4268
      %4270 = vrot.lane.b32.xlu0 %v4197, 101
      %v4271 = vpop.permute.xlu0 %4270
      %4272 = vrot.lane.b32.xlu0 %v4198, 101
      %v4273 = vpop.permute.xlu0 %4272
      %4274 = vrot.lane.b32.xlu0 %v4199, 101
      %v4275 = vpop.permute.xlu0 %4274
      %4276 = vrot.lane.b32.xlu0 %v4200, 101
      %v4277 = vpop.permute.xlu0 %4276
      %4278 = vrot.lane.b32.xlu0 %v4201, 101
      %v4279 = vpop.permute.xlu0 %4278
      %4280 = vrot.lane.b32.xlu0 %v4202, 101
      %v4281 = vpop.permute.xlu0 %4280
      %4282 = vrot.lane.b32.xlu0 %v4203, 101
      %v4283 = vpop.permute.xlu0 %4282
      %4284 = vrot.lane.b32.xlu0 %v4204, 101
      %v4285 = vpop.permute.xlu0 %4284
      %vm4286 = vcmask 826368
      %v4287 = vsel %vm4286, %v4233, %v4235
      %v4288 = vsel %vm4286, %v4235, %v4237
      %v4289 = vsel %vm4286, %v4237, %v4239
      %v4290 = vsel %vm4286, %v4239, %v4241
      %v4291 = vsel %vm4286, %v4241, %v4243
      %v4292 = vsel %vm4286, %v4243, %v4245
      %v4293 = vsel %vm4286, %v4245, %v4247
      %v4294 = vsel %vm4286, %v4247, %v4249
      %v4295 = vsel %vm4286, %v4249, %v4251
      %v4296 = vsel %vm4286, %v4251, %v4253
      %v4297 = vsel %vm4286, %v4253, %v4255
      %v4298 = vsel %vm4286, %v4255, %v4257
      %v4299 = vsel %vm4286, %v4257, %v4259
      %v4300 = vsel %vm4286, %v4259, %v4261
      %v4301 = vsel %vm4286, %v4261, %v4263
      %v4302 = vsel %vm4286, %v4263, %v4265
      %v4303 = vsel %vm4286, %v4265, %v4267
      %v4304 = vsel %vm4286, %v4267, %v4269
      %v4305 = vsel %vm4286, %v4269, %v4271
      %v4306 = vsel %vm4286, %v4271, %v4273
      %v4307 = vsel %vm4286, %v4273, %v4275
      %v4308 = vsel %vm4286, %v4275, %v4277
      %v4309 = vsel %vm4286, %v4277, %v4279
      %v4310 = vsel %vm4286, %v4279, %v4281
      %v4311 = vsel %vm4286, %v4281, %v4283
      %v4312 = vsel %vm4286, %v4283, %v4285
      %4339 = vst [vmem:[#allocation2 + $0x11e0] sm:$0xff] %v4287
      %4340 = vst [vmem:[#allocation2 + $0x11e8] sm:$0xff] %v4288
      %4341 = vst [vmem:[#allocation2 + $0x11f0] sm:$0xff] %v4289
      %4342 = vst [vmem:[#allocation2 + $0x11f8] sm:$0xff] %v4290
      %4343 = vst [vmem:[#allocation2 + $0x1200] sm:$0xff] %v4291
      %4344 = vst [vmem:[#allocation2 + $0x1208] sm:$0xff] %v4292
      %4345 = vst [vmem:[#allocation2 + $0x1210] sm:$0xff] %v4293
      %4346 = vst [vmem:[#allocation2 + $0x1218] sm:$0xff] %v4294
      %4347 = vst [vmem:[#allocation2 + $0x1220] sm:$0xff] %v4295
      %4348 = vst [vmem:[#allocation2 + $0x1228] sm:$0xff] %v4296
      %4349 = vst [vmem:[#allocation2 + $0x1230] sm:$0xff] %v4297
      %4350 = vst [vmem:[#allocation2 + $0x1238] sm:$0xff] %v4298
      %4351 = vst [vmem:[#allocation2 + $0x1240] sm:$0xff] %v4299
      %4352 = vst [vmem:[#allocation2 + $0x1248] sm:$0xff] %v4300
      %4353 = vst [vmem:[#allocation2 + $0x1250] sm:$0xff] %v4301
      %4354 = vst [vmem:[#allocation2 + $0x1258] sm:$0xff] %v4302
      %4355 = vst [vmem:[#allocation2 + $0x1260] sm:$0xff] %v4303
      %4356 = vst [vmem:[#allocation2 + $0x1268] sm:$0xff] %v4304
      %4357 = vst [vmem:[#allocation2 + $0x1270] sm:$0xff] %v4305
      %4358 = vst [vmem:[#allocation2 + $0x1278] sm:$0xff] %v4306
      %4359 = vst [vmem:[#allocation2 + $0x1280] sm:$0xff] %v4307
      %4360 = vst [vmem:[#allocation2 + $0x1288] sm:$0xff] %v4308
      %4361 = vst [vmem:[#allocation2 + $0x1290] sm:$0xff] %v4309
      %4362 = vst [vmem:[#allocation2 + $0x1298] sm:$0xff] %v4310
      %4363 = vst [vmem:[#allocation2 + $0x12a0] sm:$0xff] %v4311
      %4364 = vst [vmem:[#allocation2 + $0x12a8] sm:$0xff] %v4312
      %v4365 = vld [vmem:[%s192 + $0x28] sm:$0xff]
      %v4366 = vld [vmem:[%s192 + $0x30] sm:$0xff]
      %v4367 = vld [vmem:[%s192 + $0x38] sm:$0xff]
      %v4368 = vld [vmem:[%s192 + $0x40] sm:$0xff]
      %v4369 = vld [vmem:[%s192 + $0x48] sm:$0xff]
      %v4370 = vld [vmem:[%s192 + $0x50] sm:$0xff]
      %v4371 = vld [vmem:[%s192 + $0x58] sm:$0xff]
      %v4372 = vld [vmem:[%s192 + $0x60] sm:$0xff]
      %v4373 = vld [vmem:[%s192 + $0x68] sm:$0xff]
      %v4374 = vld [vmem:[%s192 + $0x70] sm:$0xff]
      %v4375 = vld [vmem:[%s192 + $0x78] sm:$0xff]
      %v4376 = vld [vmem:[%s192 + $0x80] sm:$0xff]
      %v4377 = vld [vmem:[%s192 + $0x88] sm:$0xff]
      %v4378 = vld [vmem:[%s192 + $0x90] sm:$0xff]
      %v4379 = vld [vmem:[%s192 + $0x98] sm:$0xff]
      %v4380 = vld [vmem:[%s192 + $0xa0] sm:$0xff]
      %v4381 = vld [vmem:[%s192 + $0xa8] sm:$0xff]
      %v4382 = vld [vmem:[%s192 + $0xb0] sm:$0xff]
      %v4383 = vld [vmem:[%s192 + $0xb8] sm:$0xff]
      %v4384 = vld [vmem:[%s192 + $0xc0] sm:$0xff]
      %v4385 = vld [vmem:[%s192 + $0xc8] sm:$0xff]
      %v4386 = vld [vmem:[%s192 + $0xd0] sm:$0xff]
      %v4387 = vld [vmem:[%s192 + $0xd8] sm:$0xff]
      %v4388 = vld [vmem:[%s192 + $0xe0] sm:$0xff]
      %v4389 = vld [vmem:[%s192 + $0xe8] sm:$0xff]
      %v4390 = vld [vmem:[%s192 + $0xf0] sm:$0xff]
      %v4391 = vld [vmem:[%s192 + $0xf8] sm:$0xff]
      %4419 = vrot.lane.b32.xlu0 %v4365, 100
      %v4420 = vpop.permute.xlu0 %4419
      %4421 = vrot.lane.b32.xlu0 %v4366, 100
      %v4422 = vpop.permute.xlu0 %4421
      %4423 = vrot.lane.b32.xlu0 %v4367, 100
      %v4424 = vpop.permute.xlu0 %4423
      %4425 = vrot.lane.b32.xlu0 %v4368, 100
      %v4426 = vpop.permute.xlu0 %4425
      %4427 = vrot.lane.b32.xlu0 %v4369, 100
      %v4428 = vpop.permute.xlu0 %4427
      %4429 = vrot.lane.b32.xlu0 %v4370, 100
      %v4430 = vpop.permute.xlu0 %4429
      %4431 = vrot.lane.b32.xlu0 %v4371, 100
      %v4432 = vpop.permute.xlu0 %4431
      %4433 = vrot.lane.b32.xlu0 %v4372, 100
      %v4434 = vpop.permute.xlu0 %4433
      %4435 = vrot.lane.b32.xlu0 %v4373, 100
      %v4436 = vpop.permute.xlu0 %4435
      %4437 = vrot.lane.b32.xlu0 %v4374, 100
      %v4438 = vpop.permute.xlu0 %4437
      %4439 = vrot.lane.b32.xlu0 %v4375, 100
      %v4440 = vpop.permute.xlu0 %4439
      %4441 = vrot.lane.b32.xlu0 %v4376, 100
      %v4442 = vpop.permute.xlu0 %4441
      %4443 = vrot.lane.b32.xlu0 %v4377, 100
      %v4444 = vpop.permute.xlu0 %4443
      %4445 = vrot.lane.b32.xlu0 %v4378, 100
      %v4446 = vpop.permute.xlu0 %4445
      %4447 = vrot.lane.b32.xlu0 %v4379, 100
      %v4448 = vpop.permute.xlu0 %4447
      %4449 = vrot.lane.b32.xlu0 %v4380, 100
      %v4450 = vpop.permute.xlu0 %4449
      %4451 = vrot.lane.b32.xlu0 %v4381, 100
      %v4452 = vpop.permute.xlu0 %4451
      %4453 = vrot.lane.b32.xlu0 %v4382, 100
      %v4454 = vpop.permute.xlu0 %4453
      %4455 = vrot.lane.b32.xlu0 %v4383, 100
      %v4456 = vpop.permute.xlu0 %4455
      %4457 = vrot.lane.b32.xlu0 %v4384, 100
      %v4458 = vpop.permute.xlu0 %4457
      %4459 = vrot.lane.b32.xlu0 %v4385, 100
      %v4460 = vpop.permute.xlu0 %4459
      %4461 = vrot.lane.b32.xlu0 %v4386, 100
      %v4462 = vpop.permute.xlu0 %4461
      %4463 = vrot.lane.b32.xlu0 %v4387, 100
      %v4464 = vpop.permute.xlu0 %4463
      %4465 = vrot.lane.b32.xlu0 %v4388, 100
      %v4466 = vpop.permute.xlu0 %4465
      %4467 = vrot.lane.b32.xlu0 %v4389, 100
      %v4468 = vpop.permute.xlu0 %4467
      %4469 = vrot.lane.b32.xlu0 %v4390, 100
      %v4470 = vpop.permute.xlu0 %4469
      %4471 = vrot.lane.b32.xlu0 %v4391, 100
      %v4472 = vpop.permute.xlu0 %4471
      %vm4473 = vcmask 818176
      %v4474 = vsel %vm4473, %v4420, %v4422
      %v4475 = vsel %vm4473, %v4422, %v4424
      %v4476 = vsel %vm4473, %v4424, %v4426
      %v4477 = vsel %vm4473, %v4426, %v4428
      %v4478 = vsel %vm4473, %v4428, %v4430
      %v4479 = vsel %vm4473, %v4430, %v4432
      %v4480 = vsel %vm4473, %v4432, %v4434
      %v4481 = vsel %vm4473, %v4434, %v4436
      %v4482 = vsel %vm4473, %v4436, %v4438
      %v4483 = vsel %vm4473, %v4438, %v4440
      %v4484 = vsel %vm4473, %v4440, %v4442
      %v4485 = vsel %vm4473, %v4442, %v4444
      %v4486 = vsel %vm4473, %v4444, %v4446
      %v4487 = vsel %vm4473, %v4446, %v4448
      %v4488 = vsel %vm4473, %v4448, %v4450
      %v4489 = vsel %vm4473, %v4450, %v4452
      %v4490 = vsel %vm4473, %v4452, %v4454
      %v4491 = vsel %vm4473, %v4454, %v4456
      %v4492 = vsel %vm4473, %v4456, %v4458
      %v4493 = vsel %vm4473, %v4458, %v4460
      %v4494 = vsel %vm4473, %v4460, %v4462
      %v4495 = vsel %vm4473, %v4462, %v4464
      %v4496 = vsel %vm4473, %v4464, %v4466
      %v4497 = vsel %vm4473, %v4466, %v4468
      %v4498 = vsel %vm4473, %v4468, %v4470
      %v4499 = vsel %vm4473, %v4470, %v4472
      %4526 = vst [vmem:[#allocation2 + $0x12b0] sm:$0xff] %v4474
      %4527 = vst [vmem:[#allocation2 + $0x12b8] sm:$0xff] %v4475
      %4528 = vst [vmem:[#allocation2 + $0x12c0] sm:$0xff] %v4476
      %4529 = vst [vmem:[#allocation2 + $0x12c8] sm:$0xff] %v4477
      %4530 = vst [vmem:[#allocation2 + $0x12d0] sm:$0xff] %v4478
      %4531 = vst [vmem:[#allocation2 + $0x12d8] sm:$0xff] %v4479
      %4532 = vst [vmem:[#allocation2 + $0x12e0] sm:$0xff] %v4480
      %4533 = vst [vmem:[#allocation2 + $0x12e8] sm:$0xff] %v4481
      %4534 = vst [vmem:[#allocation2 + $0x12f0] sm:$0xff] %v4482
      %4535 = vst [vmem:[#allocation2 + $0x12f8] sm:$0xff] %v4483
      %4536 = vst [vmem:[#allocation2 + $0x1300] sm:$0xff] %v4484
      %4537 = vst [vmem:[#allocation2 + $0x1308] sm:$0xff] %v4485
      %4538 = vst [vmem:[#allocation2 + $0x1310] sm:$0xff] %v4486
      %4539 = vst [vmem:[#allocation2 + $0x1318] sm:$0xff] %v4487
      %4540 = vst [vmem:[#allocation2 + $0x1320] sm:$0xff] %v4488
      %4541 = vst [vmem:[#allocation2 + $0x1328] sm:$0xff] %v4489
      %4542 = vst [vmem:[#allocation2 + $0x1330] sm:$0xff] %v4490
      %4543 = vst [vmem:[#allocation2 + $0x1338] sm:$0xff] %v4491
      %4544 = vst [vmem:[#allocation2 + $0x1340] sm:$0xff] %v4492
      %4545 = vst [vmem:[#allocation2 + $0x1348] sm:$0xff] %v4493
      %4546 = vst [vmem:[#allocation2 + $0x1350] sm:$0xff] %v4494
      %4547 = vst [vmem:[#allocation2 + $0x1358] sm:$0xff] %v4495
      %4548 = vst [vmem:[#allocation2 + $0x1360] sm:$0xff] %v4496
      %4549 = vst [vmem:[#allocation2 + $0x1368] sm:$0xff] %v4497
      %4550 = vst [vmem:[#allocation2 + $0x1370] sm:$0xff] %v4498
      %4551 = vst [vmem:[#allocation2 + $0x1378] sm:$0xff] %v4499
      %v4552 = vld [vmem:[%s192 + $0x28] sm:$0xff]
      %v4553 = vld [vmem:[%s192 + $0x30] sm:$0xff]
      %v4554 = vld [vmem:[%s192 + $0x38] sm:$0xff]
      %v4555 = vld [vmem:[%s192 + $0x40] sm:$0xff]
      %v4556 = vld [vmem:[%s192 + $0x48] sm:$0xff]
      %v4557 = vld [vmem:[%s192 + $0x50] sm:$0xff]
      %v4558 = vld [vmem:[%s192 + $0x58] sm:$0xff]
      %v4559 = vld [vmem:[%s192 + $0x60] sm:$0xff]
      %v4560 = vld [vmem:[%s192 + $0x68] sm:$0xff]
      %v4561 = vld [vmem:[%s192 + $0x70] sm:$0xff]
      %v4562 = vld [vmem:[%s192 + $0x78] sm:$0xff]
      %v4563 = vld [vmem:[%s192 + $0x80] sm:$0xff]
      %v4564 = vld [vmem:[%s192 + $0x88] sm:$0xff]
      %v4565 = vld [vmem:[%s192 + $0x90] sm:$0xff]
      %v4566 = vld [vmem:[%s192 + $0x98] sm:$0xff]
      %v4567 = vld [vmem:[%s192 + $0xa0] sm:$0xff]
      %v4568 = vld [vmem:[%s192 + $0xa8] sm:$0xff]
      %v4569 = vld [vmem:[%s192 + $0xb0] sm:$0xff]
      %v4570 = vld [vmem:[%s192 + $0xb8] sm:$0xff]
      %v4571 = vld [vmem:[%s192 + $0xc0] sm:$0xff]
      %v4572 = vld [vmem:[%s192 + $0xc8] sm:$0xff]
      %v4573 = vld [vmem:[%s192 + $0xd0] sm:$0xff]
      %v4574 = vld [vmem:[%s192 + $0xd8] sm:$0xff]
      %v4575 = vld [vmem:[%s192 + $0xe0] sm:$0xff]
      %v4576 = vld [vmem:[%s192 + $0xe8] sm:$0xff]
      %v4577 = vld [vmem:[%s192 + $0xf0] sm:$0xff]
      %v4578 = vld [vmem:[%s192 + $0xf8] sm:$0xff]
      %4606 = vrot.lane.b32.xlu0 %v4552, 84
      %v4607 = vpop.permute.xlu0 %4606
      %4608 = vrot.lane.b32.xlu0 %v4553, 84
      %v4609 = vpop.permute.xlu0 %4608
      %4610 = vrot.lane.b32.xlu0 %v4554, 84
      %v4611 = vpop.permute.xlu0 %4610
      %4612 = vrot.lane.b32.xlu0 %v4555, 84
      %v4613 = vpop.permute.xlu0 %4612
      %4614 = vrot.lane.b32.xlu0 %v4556, 84
      %v4615 = vpop.permute.xlu0 %4614
      %4616 = vrot.lane.b32.xlu0 %v4557, 84
      %v4617 = vpop.permute.xlu0 %4616
      %4618 = vrot.lane.b32.xlu0 %v4558, 84
      %v4619 = vpop.permute.xlu0 %4618
      %4620 = vrot.lane.b32.xlu0 %v4559, 84
      %v4621 = vpop.permute.xlu0 %4620
      %4622 = vrot.lane.b32.xlu0 %v4560, 84
      %v4623 = vpop.permute.xlu0 %4622
      %4624 = vrot.lane.b32.xlu0 %v4561, 84
      %v4625 = vpop.permute.xlu0 %4624
      %4626 = vrot.lane.b32.xlu0 %v4562, 84
      %v4627 = vpop.permute.xlu0 %4626
      %4628 = vrot.lane.b32.xlu0 %v4563, 84
      %v4629 = vpop.permute.xlu0 %4628
      %4630 = vrot.lane.b32.xlu0 %v4564, 84
      %v4631 = vpop.permute.xlu0 %4630
      %4632 = vrot.lane.b32.xlu0 %v4565, 84
      %v4633 = vpop.permute.xlu0 %4632
      %4634 = vrot.lane.b32.xlu0 %v4566, 84
      %v4635 = vpop.permute.xlu0 %4634
      %4636 = vrot.lane.b32.xlu0 %v4567, 84
      %v4637 = vpop.permute.xlu0 %4636
      %4638 = vrot.lane.b32.xlu0 %v4568, 84
      %v4639 = vpop.permute.xlu0 %4638
      %4640 = vrot.lane.b32.xlu0 %v4569, 84
      %v4641 = vpop.permute.xlu0 %4640
      %4642 = vrot.lane.b32.xlu0 %v4570, 84
      %v4643 = vpop.permute.xlu0 %4642
      %4644 = vrot.lane.b32.xlu0 %v4571, 84
      %v4645 = vpop.permute.xlu0 %4644
      %4646 = vrot.lane.b32.xlu0 %v4572, 84
      %v4647 = vpop.permute.xlu0 %4646
      %4648 = vrot.lane.b32.xlu0 %v4573, 84
      %v4649 = vpop.permute.xlu0 %4648
      %4650 = vrot.lane.b32.xlu0 %v4574, 84
      %v4651 = vpop.permute.xlu0 %4650
      %4652 = vrot.lane.b32.xlu0 %v4575, 84
      %v4653 = vpop.permute.xlu0 %4652
      %4654 = vrot.lane.b32.xlu0 %v4576, 84
      %v4655 = vpop.permute.xlu0 %4654
      %4656 = vrot.lane.b32.xlu0 %v4577, 84
      %v4657 = vpop.permute.xlu0 %4656
      %4658 = vrot.lane.b32.xlu0 %v4578, 84
      %v4659 = vpop.permute.xlu0 %4658
      %vm4660 = vcmask 687104
      %v4661 = vsel %vm4660, %v4607, %v4609
      %v4662 = vsel %vm4660, %v4609, %v4611
      %v4663 = vsel %vm4660, %v4611, %v4613
      %v4664 = vsel %vm4660, %v4613, %v4615
      %v4665 = vsel %vm4660, %v4615, %v4617
      %v4666 = vsel %vm4660, %v4617, %v4619
      %v4667 = vsel %vm4660, %v4619, %v4621
      %v4668 = vsel %vm4660, %v4621, %v4623
      %v4669 = vsel %vm4660, %v4623, %v4625
      %v4670 = vsel %vm4660, %v4625, %v4627
      %v4671 = vsel %vm4660, %v4627, %v4629
      %v4672 = vsel %vm4660, %v4629, %v4631
      %v4673 = vsel %vm4660, %v4631, %v4633
      %v4674 = vsel %vm4660, %v4633, %v4635
      %v4675 = vsel %vm4660, %v4635, %v4637
      %v4676 = vsel %vm4660, %v4637, %v4639
      %v4677 = vsel %vm4660, %v4639, %v4641
      %v4678 = vsel %vm4660, %v4641, %v4643
      %v4679 = vsel %vm4660, %v4643, %v4645
      %v4680 = vsel %vm4660, %v4645, %v4647
      %v4681 = vsel %vm4660, %v4647, %v4649
      %v4682 = vsel %vm4660, %v4649, %v4651
      %v4683 = vsel %vm4660, %v4651, %v4653
      %v4684 = vsel %vm4660, %v4653, %v4655
      %v4685 = vsel %vm4660, %v4655, %v4657
      %v4686 = vsel %vm4660, %v4657, %v4659
      %4713 = vst [vmem:[#allocation2 + $0x1380] sm:$0xff] %v4661
      %4714 = vst [vmem:[#allocation2 + $0x1388] sm:$0xff] %v4662
      %4715 = vst [vmem:[#allocation2 + $0x1390] sm:$0xff] %v4663
      %4716 = vst [vmem:[#allocation2 + $0x1398] sm:$0xff] %v4664
      %4717 = vst [vmem:[#allocation2 + $0x13a0] sm:$0xff] %v4665
      %4718 = vst [vmem:[#allocation2 + $0x13a8] sm:$0xff] %v4666
      %4719 = vst [vmem:[#allocation2 + $0x13b0] sm:$0xff] %v4667
      %4720 = vst [vmem:[#allocation2 + $0x13b8] sm:$0xff] %v4668
      %4721 = vst [vmem:[#allocation2 + $0x13c0] sm:$0xff] %v4669
      %4722 = vst [vmem:[#allocation2 + $0x13c8] sm:$0xff] %v4670
      %4723 = vst [vmem:[#allocation2 + $0x13d0] sm:$0xff] %v4671
      %4724 = vst [vmem:[#allocation2 + $0x13d8] sm:$0xff] %v4672
      %4725 = vst [vmem:[#allocation2 + $0x13e0] sm:$0xff] %v4673
      %4726 = vst [vmem:[#allocation2 + $0x13e8] sm:$0xff] %v4674
      %4727 = vst [vmem:[#allocation2 + $0x13f0] sm:$0xff] %v4675
      %4728 = vst [vmem:[#allocation2 + $0x13f8] sm:$0xff] %v4676
      %4729 = vst [vmem:[#allocation2 + $0x1400] sm:$0xff] %v4677
      %4730 = vst [vmem:[#allocation2 + $0x1408] sm:$0xff] %v4678
      %4731 = vst [vmem:[#allocation2 + $0x1410] sm:$0xff] %v4679
      %4732 = vst [vmem:[#allocation2 + $0x1418] sm:$0xff] %v4680
      %4733 = vst [vmem:[#allocation2 + $0x1420] sm:$0xff] %v4681
      %4734 = vst [vmem:[#allocation2 + $0x1428] sm:$0xff] %v4682
      %4735 = vst [vmem:[#allocation2 + $0x1430] sm:$0xff] %v4683
      %4736 = vst [vmem:[#allocation2 + $0x1438] sm:$0xff] %v4684
      %4737 = vst [vmem:[#allocation2 + $0x1440] sm:$0xff] %v4685
      %4738 = vst [vmem:[#allocation2 + $0x1448] sm:$0xff] %v4686
      %v4739 = vld [vmem:[%s192 + $0x28] sm:$0xff]
      %v4740 = vld [vmem:[%s192 + $0x30] sm:$0xff]
      %v4741 = vld [vmem:[%s192 + $0x38] sm:$0xff]
      %v4742 = vld [vmem:[%s192 + $0x40] sm:$0xff]
      %v4743 = vld [vmem:[%s192 + $0x48] sm:$0xff]
      %v4744 = vld [vmem:[%s192 + $0x50] sm:$0xff]
      %v4745 = vld [vmem:[%s192 + $0x58] sm:$0xff]
      %v4746 = vld [vmem:[%s192 + $0x60] sm:$0xff]
      %v4747 = vld [vmem:[%s192 + $0x68] sm:$0xff]
      %v4748 = vld [vmem:[%s192 + $0x70] sm:$0xff]
      %v4749 = vld [vmem:[%s192 + $0x78] sm:$0xff]
      %v4750 = vld [vmem:[%s192 + $0x80] sm:$0xff]
      %v4751 = vld [vmem:[%s192 + $0x88] sm:$0xff]
      %v4752 = vld [vmem:[%s192 + $0x90] sm:$0xff]
      %v4753 = vld [vmem:[%s192 + $0x98] sm:$0xff]
      %v4754 = vld [vmem:[%s192 + $0xa0] sm:$0xff]
      %v4755 = vld [vmem:[%s192 + $0xa8] sm:$0xff]
      %v4756 = vld [vmem:[%s192 + $0xb0] sm:$0xff]
      %v4757 = vld [vmem:[%s192 + $0xb8] sm:$0xff]
      %v4758 = vld [vmem:[%s192 + $0xc0] sm:$0xff]
      %v4759 = vld [vmem:[%s192 + $0xc8] sm:$0xff]
      %v4760 = vld [vmem:[%s192 + $0xd0] sm:$0xff]
      %v4761 = vld [vmem:[%s192 + $0xd8] sm:$0xff]
      %v4762 = vld [vmem:[%s192 + $0xe0] sm:$0xff]
      %v4763 = vld [vmem:[%s192 + $0xe8] sm:$0xff]
      %v4764 = vld [vmem:[%s192 + $0xf0] sm:$0xff]
      %v4765 = vld [vmem:[%s192 + $0xf8] sm:$0xff]
      %4793 = vrot.lane.b32.xlu0 %v4739, 83
      %v4794 = vpop.permute.xlu0 %4793
      %4795 = vrot.lane.b32.xlu0 %v4740, 83
      %v4796 = vpop.permute.xlu0 %4795
      %4797 = vrot.lane.b32.xlu0 %v4741, 83
      %v4798 = vpop.permute.xlu0 %4797
      %4799 = vrot.lane.b32.xlu0 %v4742, 83
      %v4800 = vpop.permute.xlu0 %4799
      %4801 = vrot.lane.b32.xlu0 %v4743, 83
      %v4802 = vpop.permute.xlu0 %4801
      %4803 = vrot.lane.b32.xlu0 %v4744, 83
      %v4804 = vpop.permute.xlu0 %4803
      %4805 = vrot.lane.b32.xlu0 %v4745, 83
      %v4806 = vpop.permute.xlu0 %4805
      %4807 = vrot.lane.b32.xlu0 %v4746, 83
      %v4808 = vpop.permute.xlu0 %4807
      %4809 = vrot.lane.b32.xlu0 %v4747, 83
      %v4810 = vpop.permute.xlu0 %4809
      %4811 = vrot.lane.b32.xlu0 %v4748, 83
      %v4812 = vpop.permute.xlu0 %4811
      %4813 = vrot.lane.b32.xlu0 %v4749, 83
      %v4814 = vpop.permute.xlu0 %4813
      %4815 = vrot.lane.b32.xlu0 %v4750, 83
      %v4816 = vpop.permute.xlu0 %4815
      %4817 = vrot.lane.b32.xlu0 %v4751, 83
      %v4818 = vpop.permute.xlu0 %4817
      %4819 = vrot.lane.b32.xlu0 %v4752, 83
      %v4820 = vpop.permute.xlu0 %4819
      %4821 = vrot.lane.b32.xlu0 %v4753, 83
      %v4822 = vpop.permute.xlu0 %4821
      %4823 = vrot.lane.b32.xlu0 %v4754, 83
      %v4824 = vpop.permute.xlu0 %4823
      %4825 = vrot.lane.b32.xlu0 %v4755, 83
      %v4826 = vpop.permute.xlu0 %4825
      %4827 = vrot.lane.b32.xlu0 %v4756, 83
      %v4828 = vpop.permute.xlu0 %4827
      %4829 = vrot.lane.b32.xlu0 %v4757, 83
      %v4830 = vpop.permute.xlu0 %4829
      %4831 = vrot.lane.b32.xlu0 %v4758, 83
      %v4832 = vpop.permute.xlu0 %4831
      %4833 = vrot.lane.b32.xlu0 %v4759, 83
      %v4834 = vpop.permute.xlu0 %4833
      %4835 = vrot.lane.b32.xlu0 %v4760, 83
      %v4836 = vpop.permute.xlu0 %4835
      %4837 = vrot.lane.b32.xlu0 %v4761, 83
      %v4838 = vpop.permute.xlu0 %4837
      %4839 = vrot.lane.b32.xlu0 %v4762, 83
      %v4840 = vpop.permute.xlu0 %4839
      %4841 = vrot.lane.b32.xlu0 %v4763, 83
      %v4842 = vpop.permute.xlu0 %4841
      %4843 = vrot.lane.b32.xlu0 %v4764, 83
      %v4844 = vpop.permute.xlu0 %4843
      %4845 = vrot.lane.b32.xlu0 %v4765, 83
      %v4846 = vpop.permute.xlu0 %4845
      %vm4847 = vcmask 678912
      %v4848 = vsel %vm4847, %v4794, %v4796
      %v4849 = vsel %vm4847, %v4796, %v4798
      %v4850 = vsel %vm4847, %v4798, %v4800
      %v4851 = vsel %vm4847, %v4800, %v4802
      %v4852 = vsel %vm4847, %v4802, %v4804
      %v4853 = vsel %vm4847, %v4804, %v4806
      %v4854 = vsel %vm4847, %v4806, %v4808
      %v4855 = vsel %vm4847, %v4808, %v4810
      %v4856 = vsel %vm4847, %v4810, %v4812
      %v4857 = vsel %vm4847, %v4812, %v4814
      %v4858 = vsel %vm4847, %v4814, %v4816
      %v4859 = vsel %vm4847, %v4816, %v4818
      %v4860 = vsel %vm4847, %v4818, %v4820
      %v4861 = vsel %vm4847, %v4820, %v4822
      %v4862 = vsel %vm4847, %v4822, %v4824
      %v4863 = vsel %vm4847, %v4824, %v4826
      %v4864 = vsel %vm4847, %v4826, %v4828
      %v4865 = vsel %vm4847, %v4828, %v4830
      %v4866 = vsel %vm4847, %v4830, %v4832
      %v4867 = vsel %vm4847, %v4832, %v4834
      %v4868 = vsel %vm4847, %v4834, %v4836
      %v4869 = vsel %vm4847, %v4836, %v4838
      %v4870 = vsel %vm4847, %v4838, %v4840
      %v4871 = vsel %vm4847, %v4840, %v4842
      %v4872 = vsel %vm4847, %v4842, %v4844
      %v4873 = vsel %vm4847, %v4844, %v4846
      %4900 = vst [vmem:[#allocation2 + $0x1450] sm:$0xff] %v4848
      %4901 = vst [vmem:[#allocation2 + $0x1458] sm:$0xff] %v4849
      %4902 = vst [vmem:[#allocation2 + $0x1460] sm:$0xff] %v4850
      %4903 = vst [vmem:[#allocation2 + $0x1468] sm:$0xff] %v4851
      %4904 = vst [vmem:[#allocation2 + $0x1470] sm:$0xff] %v4852
      %4905 = vst [vmem:[#allocation2 + $0x1478] sm:$0xff] %v4853
      %4906 = vst [vmem:[#allocation2 + $0x1480] sm:$0xff] %v4854
      %4907 = vst [vmem:[#allocation2 + $0x1488] sm:$0xff] %v4855
      %4908 = vst [vmem:[#allocation2 + $0x1490] sm:$0xff] %v4856
      %4909 = vst [vmem:[#allocation2 + $0x1498] sm:$0xff] %v4857
      %4910 = vst [vmem:[#allocation2 + $0x14a0] sm:$0xff] %v4858
      %4911 = vst [vmem:[#allocation2 + $0x14a8] sm:$0xff] %v4859
      %4912 = vst [vmem:[#allocation2 + $0x14b0] sm:$0xff] %v4860
      %4913 = vst [vmem:[#allocation2 + $0x14b8] sm:$0xff] %v4861
      %4914 = vst [vmem:[#allocation2 + $0x14c0] sm:$0xff] %v4862
      %4915 = vst [vmem:[#allocation2 + $0x14c8] sm:$0xff] %v4863
      %4916 = vst [vmem:[#allocation2 + $0x14d0] sm:$0xff] %v4864
      %4917 = vst [vmem:[#allocation2 + $0x14d8] sm:$0xff] %v4865
      %4918 = vst [vmem:[#allocation2 + $0x14e0] sm:$0xff] %v4866
      %4919 = vst [vmem:[#allocation2 + $0x14e8] sm:$0xff] %v4867
      %4920 = vst [vmem:[#allocation2 + $0x14f0] sm:$0xff] %v4868
      %4921 = vst [vmem:[#allocation2 + $0x14f8] sm:$0xff] %v4869
      %4922 = vst [vmem:[#allocation2 + $0x1500] sm:$0xff] %v4870
      %4923 = vst [vmem:[#allocation2 + $0x1508] sm:$0xff] %v4871
      %4924 = vst [vmem:[#allocation2 + $0x1510] sm:$0xff] %v4872
      %4925 = vst [vmem:[#allocation2 + $0x1518] sm:$0xff] %v4873
      %v4926 = vld [vmem:[%s192 + $0x28] sm:$0xff]
      %v4927 = vld [vmem:[%s192 + $0x30] sm:$0xff]
      %v4928 = vld [vmem:[%s192 + $0x38] sm:$0xff]
      %v4929 = vld [vmem:[%s192 + $0x40] sm:$0xff]
      %v4930 = vld [vmem:[%s192 + $0x48] sm:$0xff]
      %v4931 = vld [vmem:[%s192 + $0x50] sm:$0xff]
      %v4932 = vld [vmem:[%s192 + $0x58] sm:$0xff]
      %v4933 = vld [vmem:[%s192 + $0x60] sm:$0xff]
      %v4934 = vld [vmem:[%s192 + $0x68] sm:$0xff]
      %v4935 = vld [vmem:[%s192 + $0x70] sm:$0xff]
      %v4936 = vld [vmem:[%s192 + $0x78] sm:$0xff]
      %v4937 = vld [vmem:[%s192 + $0x80] sm:$0xff]
      %v4938 = vld [vmem:[%s192 + $0x88] sm:$0xff]
      %v4939 = vld [vmem:[%s192 + $0x90] sm:$0xff]
      %v4940 = vld [vmem:[%s192 + $0x98] sm:$0xff]
      %v4941 = vld [vmem:[%s192 + $0xa0] sm:$0xff]
      %v4942 = vld [vmem:[%s192 + $0xa8] sm:$0xff]
      %v4943 = vld [vmem:[%s192 + $0xb0] sm:$0xff]
      %v4944 = vld [vmem:[%s192 + $0xb8] sm:$0xff]
      %v4945 = vld [vmem:[%s192 + $0xc0] sm:$0xff]
      %v4946 = vld [vmem:[%s192 + $0xc8] sm:$0xff]
      %v4947 = vld [vmem:[%s192 + $0xd0] sm:$0xff]
      %v4948 = vld [vmem:[%s192 + $0xd8] sm:$0xff]
      %v4949 = vld [vmem:[%s192 + $0xe0] sm:$0xff]
      %v4950 = vld [vmem:[%s192 + $0xe8] sm:$0xff]
      %v4951 = vld [vmem:[%s192 + $0xf0] sm:$0xff]
      %v4952 = vld [vmem:[%s192 + $0xf8] sm:$0xff]
      %4980 = vrot.lane.b32.xlu0 %v4926, 82
      %v4981 = vpop.permute.xlu0 %4980
      %4982 = vrot.lane.b32.xlu0 %v4927, 82
      %v4983 = vpop.permute.xlu0 %4982
      %4984 = vrot.lane.b32.xlu0 %v4928, 82
      %v4985 = vpop.permute.xlu0 %4984
      %4986 = vrot.lane.b32.xlu0 %v4929, 82
      %v4987 = vpop.permute.xlu0 %4986
      %4988 = vrot.lane.b32.xlu0 %v4930, 82
      %v4989 = vpop.permute.xlu0 %4988
      %4990 = vrot.lane.b32.xlu0 %v4931, 82
      %v4991 = vpop.permute.xlu0 %4990
      %4992 = vrot.lane.b32.xlu0 %v4932, 82
      %v4993 = vpop.permute.xlu0 %4992
      %4994 = vrot.lane.b32.xlu0 %v4933, 82
      %v4995 = vpop.permute.xlu0 %4994
      %4996 = vrot.lane.b32.xlu0 %v4934, 82
      %v4997 = vpop.permute.xlu0 %4996
      %4998 = vrot.lane.b32.xlu0 %v4935, 82
      %v4999 = vpop.permute.xlu0 %4998
      %5000 = vrot.lane.b32.xlu0 %v4936, 82
      %v5001 = vpop.permute.xlu0 %5000
      %5002 = vrot.lane.b32.xlu0 %v4937, 82
      %v5003 = vpop.permute.xlu0 %5002
      %5004 = vrot.lane.b32.xlu0 %v4938, 82
      %v5005 = vpop.permute.xlu0 %5004
      %5006 = vrot.lane.b32.xlu0 %v4939, 82
      %v5007 = vpop.permute.xlu0 %5006
      %5008 = vrot.lane.b32.xlu0 %v4940, 82
      %v5009 = vpop.permute.xlu0 %5008
      %5010 = vrot.lane.b32.xlu0 %v4941, 82
      %v5011 = vpop.permute.xlu0 %5010
      %5012 = vrot.lane.b32.xlu0 %v4942, 82
      %v5013 = vpop.permute.xlu0 %5012
      %5014 = vrot.lane.b32.xlu0 %v4943, 82
      %v5015 = vpop.permute.xlu0 %5014
      %5016 = vrot.lane.b32.xlu0 %v4944, 82
      %v5017 = vpop.permute.xlu0 %5016
      %5018 = vrot.lane.b32.xlu0 %v4945, 82
      %v5019 = vpop.permute.xlu0 %5018
      %5020 = vrot.lane.b32.xlu0 %v4946, 82
      %v5021 = vpop.permute.xlu0 %5020
      %5022 = vrot.lane.b32.xlu0 %v4947, 82
      %v5023 = vpop.permute.xlu0 %5022
      %5024 = vrot.lane.b32.xlu0 %v4948, 82
      %v5025 = vpop.permute.xlu0 %5024
      %5026 = vrot.lane.b32.xlu0 %v4949, 82
      %v5027 = vpop.permute.xlu0 %5026
      %5028 = vrot.lane.b32.xlu0 %v4950, 82
      %v5029 = vpop.permute.xlu0 %5028
      %5030 = vrot.lane.b32.xlu0 %v4951, 82
      %v5031 = vpop.permute.xlu0 %5030
      %5032 = vrot.lane.b32.xlu0 %v4952, 82
      %v5033 = vpop.permute.xlu0 %5032
      %vm5034 = vcmask 670720
      %v5035 = vsel %vm5034, %v4981, %v4983
      %v5036 = vsel %vm5034, %v4983, %v4985
      %v5037 = vsel %vm5034, %v4985, %v4987
      %v5038 = vsel %vm5034, %v4987, %v4989
      %v5039 = vsel %vm5034, %v4989, %v4991
      %v5040 = vsel %vm5034, %v4991, %v4993
      %v5041 = vsel %vm5034, %v4993, %v4995
      %v5042 = vsel %vm5034, %v4995, %v4997
      %v5043 = vsel %vm5034, %v4997, %v4999
      %v5044 = vsel %vm5034, %v4999, %v5001
      %v5045 = vsel %vm5034, %v5001, %v5003
      %v5046 = vsel %vm5034, %v5003, %v5005
      %v5047 = vsel %vm5034, %v5005, %v5007
      %v5048 = vsel %vm5034, %v5007, %v5009
      %v5049 = vsel %vm5034, %v5009, %v5011
      %v5050 = vsel %vm5034, %v5011, %v5013
      %v5051 = vsel %vm5034, %v5013, %v5015
      %v5052 = vsel %vm5034, %v5015, %v5017
      %v5053 = vsel %vm5034, %v5017, %v5019
      %v5054 = vsel %vm5034, %v5019, %v5021
      %v5055 = vsel %vm5034, %v5021, %v5023
      %v5056 = vsel %vm5034, %v5023, %v5025
      %v5057 = vsel %vm5034, %v5025, %v5027
      %v5058 = vsel %vm5034, %v5027, %v5029
      %v5059 = vsel %vm5034, %v5029, %v5031
      %v5060 = vsel %vm5034, %v5031, %v5033
      %5087 = vst [vmem:[#allocation2 + $0x1520] sm:$0xff] %v5035
      %5088 = vst [vmem:[#allocation2 + $0x1528] sm:$0xff] %v5036
      %5089 = vst [vmem:[#allocation2 + $0x1530] sm:$0xff] %v5037
      %5090 = vst [vmem:[#allocation2 + $0x1538] sm:$0xff] %v5038
      %5091 = vst [vmem:[#allocation2 + $0x1540] sm:$0xff] %v5039
      %5092 = vst [vmem:[#allocation2 + $0x1548] sm:$0xff] %v5040
      %5093 = vst [vmem:[#allocation2 + $0x1550] sm:$0xff] %v5041
      %5094 = vst [vmem:[#allocation2 + $0x1558] sm:$0xff] %v5042
      %5095 = vst [vmem:[#allocation2 + $0x1560] sm:$0xff] %v5043
      %5096 = vst [vmem:[#allocation2 + $0x1568] sm:$0xff] %v5044
      %5097 = vst [vmem:[#allocation2 + $0x1570] sm:$0xff] %v5045
      %5098 = vst [vmem:[#allocation2 + $0x1578] sm:$0xff] %v5046
      %5099 = vst [vmem:[#allocation2 + $0x1580] sm:$0xff] %v5047
      %5100 = vst [vmem:[#allocation2 + $0x1588] sm:$0xff] %v5048
      %5101 = vst [vmem:[#allocation2 + $0x1590] sm:$0xff] %v5049
      %5102 = vst [vmem:[#allocation2 + $0x1598] sm:$0xff] %v5050
      %5103 = vst [vmem:[#allocation2 + $0x15a0] sm:$0xff] %v5051
      %5104 = vst [vmem:[#allocation2 + $0x15a8] sm:$0xff] %v5052
      %5105 = vst [vmem:[#allocation2 + $0x15b0] sm:$0xff] %v5053
      %5106 = vst [vmem:[#allocation2 + $0x15b8] sm:$0xff] %v5054
      %5107 = vst [vmem:[#allocation2 + $0x15c0] sm:$0xff] %v5055
      %5108 = vst [vmem:[#allocation2 + $0x15c8] sm:$0xff] %v5056
      %5109 = vst [vmem:[#allocation2 + $0x15d0] sm:$0xff] %v5057
      %5110 = vst [vmem:[#allocation2 + $0x15d8] sm:$0xff] %v5058
      %5111 = vst [vmem:[#allocation2 + $0x15e0] sm:$0xff] %v5059
      %5112 = vst [vmem:[#allocation2 + $0x15e8] sm:$0xff] %v5060
      %v5113 = vld [vmem:[%s1] sm:$0xff]
      %v5114 = vld [vmem:[#allocation2] sm:$0xff]
      %v5115 = vld [vmem:[#allocation2 + $0x8] sm:$0xff]
      %v5116 = vld [vmem:[#allocation2 + $0x10] sm:$0xff]
      %v5117 = vld [vmem:[#allocation2 + $0x18] sm:$0xff]
      %v5118 = vld [vmem:[#allocation2 + $0x20] sm:$0xff]
      %v5119 = vld [vmem:[#allocation2 + $0x28] sm:$0xff]
      %v5120 = vld [vmem:[#allocation2 + $0x30] sm:$0xff]
      %v5121 = vld [vmem:[#allocation2 + $0x38] sm:$0xff]
      %v5122 = vld [vmem:[#allocation2 + $0x40] sm:$0xff]
      %v5123 = vld [vmem:[#allocation2 + $0x48] sm:$0xff]
      %v5124 = vld [vmem:[#allocation2 + $0x50] sm:$0xff]
      %v5125 = vld [vmem:[#allocation2 + $0x58] sm:$0xff]
      %v5126 = vld [vmem:[#allocation2 + $0x60] sm:$0xff]
      %v5127 = vld [vmem:[#allocation2 + $0x68] sm:$0xff]
      %v5128 = vld [vmem:[#allocation2 + $0x70] sm:$0xff]
      %v5129 = vld [vmem:[#allocation2 + $0x78] sm:$0xff]
      %v5130 = vld [vmem:[#allocation2 + $0x80] sm:$0xff]
      %v5131 = vld [vmem:[#allocation2 + $0x88] sm:$0xff]
      %v5132 = vld [vmem:[#allocation2 + $0x90] sm:$0xff]
      %v5133 = vld [vmem:[#allocation2 + $0x98] sm:$0xff]
      %v5134 = vld [vmem:[#allocation2 + $0xa0] sm:$0xff]
      %v5135 = vld [vmem:[#allocation2 + $0xa8] sm:$0xff]
      %v5136 = vld [vmem:[#allocation2 + $0xb0] sm:$0xff]
      %v5137 = vld [vmem:[#allocation2 + $0xb8] sm:$0xff]
      %v5138 = vld [vmem:[#allocation2 + $0xc0] sm:$0xff]
      %v5139 = vld [vmem:[#allocation2 + $0xc8] sm:$0xff]
      %v5140 = vld [vmem:[#allocation2 + $0xd0] sm:$0xff]
      %v5141 = vld [vmem:[#allocation2 + $0xd8] sm:$0xff]
      %v5142 = vld [vmem:[#allocation2 + $0xe0] sm:$0xff]
      %v5143 = vld [vmem:[#allocation2 + $0xe8] sm:$0xff]
      %v5144 = vld [vmem:[#allocation2 + $0xf0] sm:$0xff]
      %v5145 = vld [vmem:[#allocation2 + $0xf8] sm:$0xff]
      %v5146 = vld [vmem:[#allocation2 + $0x100] sm:$0xff]
      %v5147 = vld [vmem:[#allocation2 + $0x108] sm:$0xff]
      %v5148 = vld [vmem:[#allocation2 + $0x110] sm:$0xff]
      %v5149 = vld [vmem:[#allocation2 + $0x118] sm:$0xff]
      %v5150 = vld [vmem:[#allocation2 + $0x120] sm:$0xff]
      %v5151 = vld [vmem:[#allocation2 + $0x128] sm:$0xff]
      %v5152 = vld [vmem:[#allocation2 + $0x130] sm:$0xff]
      %v5153 = vld [vmem:[#allocation2 + $0x138] sm:$0xff]
      %v5154 = vld [vmem:[#allocation2 + $0x140] sm:$0xff]
      %v5155 = vld [vmem:[#allocation2 + $0x148] sm:$0xff]
      %v5156 = vld [vmem:[#allocation2 + $0x150] sm:$0xff]
      %v5157 = vld [vmem:[#allocation2 + $0x158] sm:$0xff]
      %v5158 = vld [vmem:[#allocation2 + $0x160] sm:$0xff]
      %v5159 = vld [vmem:[#allocation2 + $0x168] sm:$0xff]
      %v5160 = vld [vmem:[#allocation2 + $0x170] sm:$0xff]
      %v5161 = vld [vmem:[#allocation2 + $0x178] sm:$0xff]
      %v5162 = vld [vmem:[#allocation2 + $0x180] sm:$0xff]
      %v5163 = vld [vmem:[#allocation2 + $0x188] sm:$0xff]
      %v5164 = vld [vmem:[#allocation2 + $0x190] sm:$0xff]
      %v5165 = vld [vmem:[#allocation2 + $0x198] sm:$0xff]
      %v5166 = vld [vmem:[#allocation2 + $0x1a0] sm:$0xff]
      %v5167 = vld [vmem:[#allocation2 + $0x1a8] sm:$0xff]
      %v5168 = vld [vmem:[#allocation2 + $0x1b0] sm:$0xff]
      %v5169 = vld [vmem:[#allocation2 + $0x1b8] sm:$0xff]
      %v5170 = vld [vmem:[#allocation2 + $0x1c0] sm:$0xff]
      %v5171 = vld [vmem:[#allocation2 + $0x1c8] sm:$0xff]
      %v5172 = vld [vmem:[#allocation2 + $0x1d0] sm:$0xff]
      %v5173 = vld [vmem:[#allocation2 + $0x1d8] sm:$0xff]
      %v5174 = vld [vmem:[#allocation2 + $0x1e0] sm:$0xff]
      %v5175 = vld [vmem:[#allocation2 + $0x1e8] sm:$0xff]
      %v5176 = vld [vmem:[#allocation2 + $0x1f0] sm:$0xff]
      %v5177 = vld [vmem:[#allocation2 + $0x1f8] sm:$0xff]
      %v5178 = vld [vmem:[#allocation2 + $0x200] sm:$0xff]
      %v5179 = vld [vmem:[#allocation2 + $0x208] sm:$0xff]
      %v5180 = vld [vmem:[#allocation2 + $0x210] sm:$0xff]
      %v5181 = vld [vmem:[#allocation2 + $0x218] sm:$0xff]
      %v5182 = vld [vmem:[#allocation2 + $0x220] sm:$0xff]
      %v5183 = vld [vmem:[#allocation2 + $0x228] sm:$0xff]
      %v5184 = vld [vmem:[#allocation2 + $0x230] sm:$0xff]
      %v5185 = vld [vmem:[#allocation2 + $0x238] sm:$0xff]
      %v5186 = vld [vmem:[#allocation2 + $0x240] sm:$0xff]
      %v5187 = vld [vmem:[#allocation2 + $0x248] sm:$0xff]
      %v5188 = vld [vmem:[#allocation2 + $0x250] sm:$0xff]
      %v5189 = vld [vmem:[#allocation2 + $0x258] sm:$0xff]
      %v5190 = vld [vmem:[#allocation2 + $0x260] sm:$0xff]
      %v5191 = vld [vmem:[#allocation2 + $0x268] sm:$0xff]
      %v5192 = vld [vmem:[#allocation2 + $0x270] sm:$0xff]
      %v5193 = vld [vmem:[#allocation2 + $0x278] sm:$0xff]
      %v5194 = vld [vmem:[#allocation2 + $0x280] sm:$0xff]
      %v5195 = vld [vmem:[#allocation2 + $0x288] sm:$0xff]
      %v5196 = vld [vmem:[#allocation2 + $0x290] sm:$0xff]
      %v5197 = vld [vmem:[#allocation2 + $0x298] sm:$0xff]
      %v5198 = vld [vmem:[#allocation2 + $0x2a0] sm:$0xff]
      %v5199 = vld [vmem:[#allocation2 + $0x2a8] sm:$0xff]
      %v5200 = vld [vmem:[#allocation2 + $0x2b0] sm:$0xff]
      %v5201 = vld [vmem:[#allocation2 + $0x2b8] sm:$0xff]
      %v5202 = vld [vmem:[#allocation2 + $0x2c0] sm:$0xff]
      %v5203 = vld [vmem:[#allocation2 + $0x2c8] sm:$0xff]
      %v5204 = vld [vmem:[#allocation2 + $0x2d0] sm:$0xff]
      %v5205 = vld [vmem:[#allocation2 + $0x2d8] sm:$0xff]
      %v5206 = vld [vmem:[#allocation2 + $0x2e0] sm:$0xff]
      %v5207 = vld [vmem:[#allocation2 + $0x2e8] sm:$0xff]
      %v5208 = vld [vmem:[#allocation2 + $0x2f0] sm:$0xff]
      %v5209 = vld [vmem:[#allocation2 + $0x2f8] sm:$0xff]
      %v5210 = vld [vmem:[#allocation2 + $0x300] sm:$0xff]
      %v5211 = vld [vmem:[#allocation2 + $0x308] sm:$0xff]
      %v5212 = vld [vmem:[#allocation2 + $0x310] sm:$0xff]
      %v5213 = vld [vmem:[#allocation2 + $0x318] sm:$0xff]
      %v5214 = vld [vmem:[#allocation2 + $0x320] sm:$0xff]
      %v5215 = vld [vmem:[#allocation2 + $0x328] sm:$0xff]
      %v5216 = vld [vmem:[#allocation2 + $0x330] sm:$0xff]
      %v5217 = vld [vmem:[#allocation2 + $0x338] sm:$0xff]
      %v5218 = vld [vmem:[#allocation2 + $0x340] sm:$0xff]
      %v5219 = vld [vmem:[#allocation2 + $0x348] sm:$0xff]
      %v5220 = vld [vmem:[#allocation2 + $0x350] sm:$0xff]
      %v5221 = vld [vmem:[#allocation2 + $0x358] sm:$0xff]
      %v5222 = vld [vmem:[#allocation2 + $0x360] sm:$0xff]
      %v5223 = vld [vmem:[#allocation2 + $0x368] sm:$0xff]
      %v5224 = vld [vmem:[#allocation2 + $0x370] sm:$0xff]
      %v5225 = vld [vmem:[#allocation2 + $0x378] sm:$0xff]
      %v5226 = vld [vmem:[#allocation2 + $0x380] sm:$0xff]
      %v5227 = vld [vmem:[#allocation2 + $0x388] sm:$0xff]
      %v5228 = vld [vmem:[#allocation2 + $0x390] sm:$0xff]
      %v5229 = vld [vmem:[#allocation2 + $0x398] sm:$0xff]
      %v5230 = vld [vmem:[#allocation2 + $0x3a0] sm:$0xff]
      %v5231 = vld [vmem:[#allocation2 + $0x3a8] sm:$0xff]
      %v5232 = vld [vmem:[#allocation2 + $0x3b0] sm:$0xff]
      %v5233 = vld [vmem:[#allocation2 + $0x3b8] sm:$0xff]
      %v5234 = vld [vmem:[#allocation2 + $0x3c0] sm:$0xff]
      %v5235 = vld [vmem:[#allocation2 + $0x3c8] sm:$0xff]
      %v5236 = vld [vmem:[#allocation2 + $0x3d0] sm:$0xff]
      %v5237 = vld [vmem:[#allocation2 + $0x3d8] sm:$0xff]
      %v5238 = vld [vmem:[#allocation2 + $0x3e0] sm:$0xff]
      %v5239 = vld [vmem:[#allocation2 + $0x3e8] sm:$0xff]
      %v5240 = vld [vmem:[#allocation2 + $0x3f0] sm:$0xff]
      %v5241 = vld [vmem:[#allocation2 + $0x3f8] sm:$0xff]
      %v5242 = vld [vmem:[#allocation2 + $0x400] sm:$0xff]
      %v5243 = vld [vmem:[#allocation2 + $0x408] sm:$0xff]
      %v5244 = vld [vmem:[#allocation2 + $0x410] sm:$0xff]
      %v5245 = vld [vmem:[#allocation2 + $0x418] sm:$0xff]
      %v5246 = vld [vmem:[#allocation2 + $0x420] sm:$0xff]
      %v5247 = vld [vmem:[#allocation2 + $0x428] sm:$0xff]
      %v5248 = vld [vmem:[#allocation2 + $0x430] sm:$0xff]
      %v5249 = vld [vmem:[#allocation2 + $0x438] sm:$0xff]
      %v5250 = vld [vmem:[#allocation2 + $0x440] sm:$0xff]
      %v5251 = vld [vmem:[#allocation2 + $0x448] sm:$0xff]
      %v5252 = vld [vmem:[#allocation2 + $0x450] sm:$0xff]
      %v5253 = vld [vmem:[#allocation2 + $0x458] sm:$0xff]
      %v5254 = vld [vmem:[#allocation2 + $0x460] sm:$0xff]
      %v5255 = vld [vmem:[#allocation2 + $0x468] sm:$0xff]
      %v5256 = vld [vmem:[#allocation2 + $0x470] sm:$0xff]
      %v5257 = vld [vmem:[#allocation2 + $0x478] sm:$0xff]
      %v5258 = vld [vmem:[#allocation2 + $0x480] sm:$0xff]
      %v5259 = vld [vmem:[#allocation2 + $0x488] sm:$0xff]
      %v5260 = vld [vmem:[#allocation2 + $0x490] sm:$0xff]
      %v5261 = vld [vmem:[#allocation2 + $0x498] sm:$0xff]
      %v5262 = vld [vmem:[#allocation2 + $0x4a0] sm:$0xff]
      %v5263 = vld [vmem:[#allocation2 + $0x4a8] sm:$0xff]
      %v5264 = vld [vmem:[#allocation2 + $0x4b0] sm:$0xff]
      %v5265 = vld [vmem:[#allocation2 + $0x4b8] sm:$0xff]
      %v5266 = vld [vmem:[#allocation2 + $0x4c0] sm:$0xff]
      %v5267 = vld [vmem:[#allocation2 + $0x4c8] sm:$0xff]
      %v5268 = vld [vmem:[#allocation2 + $0x4d0] sm:$0xff]
      %v5269 = vld [vmem:[#allocation2 + $0x4d8] sm:$0xff]
      %v5270 = vld [vmem:[#allocation2 + $0x4e0] sm:$0xff]
      %v5271 = vld [vmem:[#allocation2 + $0x4e8] sm:$0xff]
      %v5272 = vld [vmem:[#allocation2 + $0x4f0] sm:$0xff]
      %v5273 = vld [vmem:[#allocation2 + $0x4f8] sm:$0xff]
      %v5274 = vld [vmem:[#allocation2 + $0x500] sm:$0xff]
      %v5275 = vld [vmem:[#allocation2 + $0x508] sm:$0xff]
      %v5276 = vld [vmem:[#allocation2 + $0x510] sm:$0xff]
      %v5277 = vld [vmem:[#allocation2 + $0x518] sm:$0xff]
      %v5278 = vld [vmem:[#allocation2 + $0x520] sm:$0xff]
      %v5279 = vld [vmem:[#allocation2 + $0x528] sm:$0xff]
      %v5280 = vld [vmem:[#allocation2 + $0x530] sm:$0xff]
      %v5281 = vld [vmem:[#allocation2 + $0x538] sm:$0xff]
      %v5282 = vld [vmem:[#allocation2 + $0x540] sm:$0xff]
      %v5283 = vld [vmem:[#allocation2 + $0x548] sm:$0xff]
      %v5284 = vld [vmem:[#allocation2 + $0x550] sm:$0xff]
      %v5285 = vld [vmem:[#allocation2 + $0x558] sm:$0xff]
      %v5286 = vld [vmem:[#allocation2 + $0x560] sm:$0xff]
      %v5287 = vld [vmem:[#allocation2 + $0x568] sm:$0xff]
      %v5288 = vld [vmem:[#allocation2 + $0x570] sm:$0xff]
      %v5289 = vld [vmem:[#allocation2 + $0x578] sm:$0xff]
      %v5290 = vld [vmem:[#allocation2 + $0x580] sm:$0xff]
      %v5291 = vld [vmem:[#allocation2 + $0x588] sm:$0xff]
      %v5292 = vld [vmem:[#allocation2 + $0x590] sm:$0xff]
      %v5293 = vld [vmem:[#allocation2 + $0x598] sm:$0xff]
      %v5294 = vld [vmem:[#allocation2 + $0x5a0] sm:$0xff]
      %v5295 = vld [vmem:[#allocation2 + $0x5a8] sm:$0xff]
      %v5296 = vld [vmem:[#allocation2 + $0x5b0] sm:$0xff]
      %v5297 = vld [vmem:[#allocation2 + $0x5b8] sm:$0xff]
      %v5298 = vld [vmem:[#allocation2 + $0x5c0] sm:$0xff]
      %v5299 = vld [vmem:[#allocation2 + $0x5c8] sm:$0xff]
      %v5300 = vld [vmem:[#allocation2 + $0x5d0] sm:$0xff]
      %v5301 = vld [vmem:[#allocation2 + $0x5d8] sm:$0xff]
      %v5302 = vld [vmem:[#allocation2 + $0x5e0] sm:$0xff]
      %v5303 = vld [vmem:[#allocation2 + $0x5e8] sm:$0xff]
      %v5304 = vld [vmem:[#allocation2 + $0x5f0] sm:$0xff]
      %v5305 = vld [vmem:[#allocation2 + $0x5f8] sm:$0xff]
      %v5306 = vld [vmem:[#allocation2 + $0x600] sm:$0xff]
      %v5307 = vld [vmem:[#allocation2 + $0x608] sm:$0xff]
      %v5308 = vld [vmem:[#allocation2 + $0x610] sm:$0xff]
      %v5309 = vld [vmem:[#allocation2 + $0x618] sm:$0xff]
      %v5310 = vld [vmem:[#allocation2 + $0x620] sm:$0xff]
      %v5311 = vld [vmem:[#allocation2 + $0x628] sm:$0xff]
      %v5312 = vld [vmem:[#allocation2 + $0x630] sm:$0xff]
      %v5313 = vld [vmem:[#allocation2 + $0x638] sm:$0xff]
      %v5314 = vld [vmem:[#allocation2 + $0x640] sm:$0xff]
      %v5315 = vld [vmem:[#allocation2 + $0x648] sm:$0xff]
      %v5316 = vld [vmem:[#allocation2 + $0x650] sm:$0xff]
      %v5317 = vld [vmem:[#allocation2 + $0x658] sm:$0xff]
      %v5318 = vld [vmem:[#allocation2 + $0x660] sm:$0xff]
      %v5319 = vld [vmem:[#allocation2 + $0x668] sm:$0xff]
      %v5320 = vld [vmem:[#allocation2 + $0x670] sm:$0xff]
      %v5321 = vld [vmem:[#allocation2 + $0x678] sm:$0xff]
      %v5322 = vld [vmem:[#allocation2 + $0x680] sm:$0xff]
      %v5323 = vld [vmem:[#allocation2 + $0x688] sm:$0xff]
      %v5324 = vld [vmem:[#allocation2 + $0x690] sm:$0xff]
      %v5325 = vld [vmem:[#allocation2 + $0x698] sm:$0xff]
      %v5326 = vld [vmem:[#allocation2 + $0x6a0] sm:$0xff]
      %v5327 = vld [vmem:[#allocation2 + $0x6a8] sm:$0xff]
      %v5328 = vld [vmem:[#allocation2 + $0x6b0] sm:$0xff]
      %v5329 = vld [vmem:[#allocation2 + $0x6b8] sm:$0xff]
      %v5330 = vld [vmem:[#allocation2 + $0x6c0] sm:$0xff]
      %v5331 = vld [vmem:[#allocation2 + $0x6c8] sm:$0xff]
      %v5332 = vld [vmem:[#allocation2 + $0x6d0] sm:$0xff]
      %v5333 = vld [vmem:[#allocation2 + $0x6d8] sm:$0xff]
      %v5334 = vld [vmem:[#allocation2 + $0x6e0] sm:$0xff]
      %v5335 = vld [vmem:[#allocation2 + $0x6e8] sm:$0xff]
      %v5336 = vld [vmem:[#allocation2 + $0x6f0] sm:$0xff]
      %v5337 = vld [vmem:[#allocation2 + $0x6f8] sm:$0xff]
      %v5338 = vld [vmem:[#allocation2 + $0x700] sm:$0xff]
      %v5339 = vld [vmem:[#allocation2 + $0x708] sm:$0xff]
      %v5340 = vld [vmem:[#allocation2 + $0x710] sm:$0xff]
      %v5341 = vld [vmem:[#allocation2 + $0x718] sm:$0xff]
      %v5342 = vld [vmem:[#allocation2 + $0x720] sm:$0xff]
      %v5343 = vld [vmem:[#allocation2 + $0x728] sm:$0xff]
      %v5344 = vld [vmem:[#allocation2 + $0x730] sm:$0xff]
      %v5345 = vld [vmem:[#allocation2 + $0x738] sm:$0xff]
      %v5346 = vld [vmem:[#allocation2 + $0x740] sm:$0xff]
      %v5347 = vld [vmem:[#allocation2 + $0x748] sm:$0xff]
      %v5348 = vld [vmem:[#allocation2 + $0x750] sm:$0xff]
      %v5349 = vld [vmem:[#allocation2 + $0x758] sm:$0xff]
      %v5350 = vld [vmem:[#allocation2 + $0x760] sm:$0xff]
      %v5351 = vld [vmem:[#allocation2 + $0x768] sm:$0xff]
      %v5352 = vld [vmem:[#allocation2 + $0x770] sm:$0xff]
      %v5353 = vld [vmem:[#allocation2 + $0x778] sm:$0xff]
      %v5354 = vld [vmem:[#allocation2 + $0x780] sm:$0xff]
      %v5355 = vld [vmem:[#allocation2 + $0x788] sm:$0xff]
      %v5356 = vld [vmem:[#allocation2 + $0x790] sm:$0xff]
      %v5357 = vld [vmem:[#allocation2 + $0x798] sm:$0xff]
      %v5358 = vld [vmem:[#allocation2 + $0x7a0] sm:$0xff]
      %v5359 = vld [vmem:[#allocation2 + $0x7a8] sm:$0xff]
      %v5360 = vld [vmem:[#allocation2 + $0x7b0] sm:$0xff]
      %v5361 = vld [vmem:[#allocation2 + $0x7b8] sm:$0xff]
      %v5362 = vld [vmem:[#allocation2 + $0x7c0] sm:$0xff]
      %v5363 = vld [vmem:[#allocation2 + $0x7c8] sm:$0xff]
      %v5364 = vld [vmem:[#allocation2 + $0x7d0] sm:$0xff]
      %v5365 = vld [vmem:[#allocation2 + $0x7d8] sm:$0xff]
      %v5366 = vld [vmem:[#allocation2 + $0x7e0] sm:$0xff]
      %v5367 = vld [vmem:[#allocation2 + $0x7e8] sm:$0xff]
      %v5368 = vld [vmem:[#allocation2 + $0x7f0] sm:$0xff]
      %v5369 = vld [vmem:[#allocation2 + $0x7f8] sm:$0xff]
      %v5370 = vld [vmem:[#allocation2 + $0x800] sm:$0xff]
      %v5371 = vld [vmem:[#allocation2 + $0x808] sm:$0xff]
      %v5372 = vld [vmem:[#allocation2 + $0x810] sm:$0xff]
      %v5373 = vld [vmem:[#allocation2 + $0x818] sm:$0xff]
      %v5374 = vld [vmem:[#allocation2 + $0x820] sm:$0xff]
      %v5375 = vld [vmem:[#allocation2 + $0x828] sm:$0xff]
      %v5376 = vld [vmem:[#allocation2 + $0x830] sm:$0xff]
      %v5377 = vld [vmem:[#allocation2 + $0x838] sm:$0xff]
      %v5378 = vld [vmem:[#allocation2 + $0x840] sm:$0xff]
      %v5379 = vld [vmem:[#allocation2 + $0x848] sm:$0xff]
      %v5380 = vld [vmem:[#allocation2 + $0x850] sm:$0xff]
      %v5381 = vld [vmem:[#allocation2 + $0x858] sm:$0xff]
      %v5382 = vld [vmem:[#allocation2 + $0x860] sm:$0xff]
      %v5383 = vld [vmem:[#allocation2 + $0x868] sm:$0xff]
      %v5384 = vld [vmem:[#allocation2 + $0x870] sm:$0xff]
      %v5385 = vld [vmem:[#allocation2 + $0x878] sm:$0xff]
      %v5386 = vld [vmem:[#allocation2 + $0x880] sm:$0xff]
      %v5387 = vld [vmem:[#allocation2 + $0x888] sm:$0xff]
      %v5388 = vld [vmem:[#allocation2 + $0x890] sm:$0xff]
      %v5389 = vld [vmem:[#allocation2 + $0x898] sm:$0xff]
      %v5390 = vld [vmem:[#allocation2 + $0x8a0] sm:$0xff]
      %v5391 = vld [vmem:[#allocation2 + $0x8a8] sm:$0xff]
      %v5392 = vld [vmem:[#allocation2 + $0x8b0] sm:$0xff]
      %v5393 = vld [vmem:[#allocation2 + $0x8b8] sm:$0xff]
      %v5394 = vld [vmem:[#allocation2 + $0x8c0] sm:$0xff]
      %v5395 = vld [vmem:[#allocation2 + $0x8c8] sm:$0xff]
      %v5396 = vld [vmem:[#allocation2 + $0x8d0] sm:$0xff]
      %v5397 = vld [vmem:[#allocation2 + $0x8d8] sm:$0xff]
      %v5398 = vld [vmem:[#allocation2 + $0x8e0] sm:$0xff]
      %v5399 = vld [vmem:[#allocation2 + $0x8e8] sm:$0xff]
      %v5400 = vld [vmem:[#allocation2 + $0x8f0] sm:$0xff]
      %v5401 = vld [vmem:[#allocation2 + $0x8f8] sm:$0xff]
      %v5402 = vld [vmem:[#allocation2 + $0x900] sm:$0xff]
      %v5403 = vld [vmem:[#allocation2 + $0x908] sm:$0xff]
      %v5404 = vld [vmem:[#allocation2 + $0x910] sm:$0xff]
      %v5405 = vld [vmem:[#allocation2 + $0x918] sm:$0xff]
      %v5406 = vld [vmem:[#allocation2 + $0x920] sm:$0xff]
      %v5407 = vld [vmem:[#allocation2 + $0x928] sm:$0xff]
      %v5408 = vld [vmem:[#allocation2 + $0x930] sm:$0xff]
      %v5409 = vld [vmem:[#allocation2 + $0x938] sm:$0xff]
      %v5410 = vld [vmem:[#allocation2 + $0x940] sm:$0xff]
      %v5411 = vld [vmem:[#allocation2 + $0x948] sm:$0xff]
      %v5412 = vld [vmem:[#allocation2 + $0x950] sm:$0xff]
      %v5413 = vld [vmem:[#allocation2 + $0x958] sm:$0xff]
      %v5414 = vld [vmem:[#allocation2 + $0x960] sm:$0xff]
      %v5415 = vld [vmem:[#allocation2 + $0x968] sm:$0xff]
      %v5416 = vld [vmem:[#allocation2 + $0x970] sm:$0xff]
      %v5417 = vld [vmem:[#allocation2 + $0x978] sm:$0xff]
      %v5418 = vld [vmem:[#allocation2 + $0x980] sm:$0xff]
      %v5419 = vld [vmem:[#allocation2 + $0x988] sm:$0xff]
      %v5420 = vld [vmem:[#allocation2 + $0x990] sm:$0xff]
      %v5421 = vld [vmem:[#allocation2 + $0x998] sm:$0xff]
      %v5422 = vld [vmem:[#allocation2 + $0x9a0] sm:$0xff]
      %v5423 = vld [vmem:[#allocation2 + $0x9a8] sm:$0xff]
      %v5424 = vld [vmem:[#allocation2 + $0x9b0] sm:$0xff]
      %v5425 = vld [vmem:[#allocation2 + $0x9b8] sm:$0xff]
      %v5426 = vld [vmem:[#allocation2 + $0x9c0] sm:$0xff]
      %v5427 = vld [vmem:[#allocation2 + $0x9c8] sm:$0xff]
      %v5428 = vld [vmem:[#allocation2 + $0x9d0] sm:$0xff]
      %v5429 = vld [vmem:[#allocation2 + $0x9d8] sm:$0xff]
      %v5430 = vld [vmem:[#allocation2 + $0x9e0] sm:$0xff]
      %v5431 = vld [vmem:[#allocation2 + $0x9e8] sm:$0xff]
      %v5432 = vld [vmem:[#allocation2 + $0x9f0] sm:$0xff]
      %v5433 = vld [vmem:[#allocation2 + $0x9f8] sm:$0xff]
      %v5434 = vld [vmem:[#allocation2 + $0xa00] sm:$0xff]
      %v5435 = vld [vmem:[#allocation2 + $0xa08] sm:$0xff]
      %v5436 = vld [vmem:[#allocation2 + $0xa10] sm:$0xff]
      %v5437 = vld [vmem:[#allocation2 + $0xa18] sm:$0xff]
      %v5438 = vld [vmem:[#allocation2 + $0xa20] sm:$0xff]
      %v5439 = vld [vmem:[#allocation2 + $0xa28] sm:$0xff]
      %v5440 = vld [vmem:[#allocation2 + $0xa30] sm:$0xff]
      %v5441 = vld [vmem:[#allocation2 + $0xa38] sm:$0xff]
      %v5442 = vld [vmem:[#allocation2 + $0xa40] sm:$0xff]
      %v5443 = vld [vmem:[#allocation2 + $0xa48] sm:$0xff]
      %v5444 = vld [vmem:[#allocation2 + $0xa50] sm:$0xff]
      %v5445 = vld [vmem:[#allocation2 + $0xa58] sm:$0xff]
      %v5446 = vld [vmem:[#allocation2 + $0xa60] sm:$0xff]
      %v5447 = vld [vmem:[#allocation2 + $0xa68] sm:$0xff]
      %v5448 = vld [vmem:[#allocation2 + $0xa70] sm:$0xff]
      %v5449 = vld [vmem:[#allocation2 + $0xa78] sm:$0xff]
      %v5450 = vld [vmem:[#allocation2 + $0xa80] sm:$0xff]
      %v5451 = vld [vmem:[#allocation2 + $0xa88] sm:$0xff]
      %v5452 = vld [vmem:[#allocation2 + $0xa90] sm:$0xff]
      %v5453 = vld [vmem:[#allocation2 + $0xa98] sm:$0xff]
      %v5454 = vld [vmem:[#allocation2 + $0xaa0] sm:$0xff]
      %v5455 = vld [vmem:[#allocation2 + $0xaa8] sm:$0xff]
      %v5456 = vld [vmem:[#allocation2 + $0xab0] sm:$0xff]
      %v5457 = vld [vmem:[#allocation2 + $0xab8] sm:$0xff]
      %v5458 = vld [vmem:[#allocation2 + $0xac0] sm:$0xff]
      %v5459 = vld [vmem:[#allocation2 + $0xac8] sm:$0xff]
      %v5460 = vld [vmem:[#allocation2 + $0xad0] sm:$0xff]
      %v5461 = vld [vmem:[#allocation2 + $0xad8] sm:$0xff]
      %v5462 = vld [vmem:[#allocation2 + $0xae0] sm:$0xff]
      %v5463 = vld [vmem:[#allocation2 + $0xae8] sm:$0xff]
      %v5464 = vld [vmem:[#allocation2 + $0xaf0] sm:$0xff]
      %v5465 = vld [vmem:[#allocation2 + $0xaf8] sm:$0xff]
      %v5466 = vld [vmem:[#allocation2 + $0xb00] sm:$0xff]
      %v5467 = vld [vmem:[#allocation2 + $0xb08] sm:$0xff]
      %v5468 = vld [vmem:[#allocation2 + $0xb10] sm:$0xff]
      %v5469 = vld [vmem:[#allocation2 + $0xb18] sm:$0xff]
      %v5470 = vld [vmem:[#allocation2 + $0xb20] sm:$0xff]
      %v5471 = vld [vmem:[#allocation2 + $0xb28] sm:$0xff]
      %v5472 = vld [vmem:[#allocation2 + $0xb30] sm:$0xff]
      %v5473 = vld [vmem:[#allocation2 + $0xb38] sm:$0xff]
      %v5474 = vld [vmem:[#allocation2 + $0xb40] sm:$0xff]
      %v5475 = vld [vmem:[#allocation2 + $0xb48] sm:$0xff]
      %v5476 = vld [vmem:[#allocation2 + $0xb50] sm:$0xff]
      %v5477 = vld [vmem:[#allocation2 + $0xb58] sm:$0xff]
      %v5478 = vld [vmem:[#allocation2 + $0xb60] sm:$0xff]
      %v5479 = vld [vmem:[#allocation2 + $0xb68] sm:$0xff]
      %v5480 = vld [vmem:[#allocation2 + $0xb70] sm:$0xff]
      %v5481 = vld [vmem:[#allocation2 + $0xb78] sm:$0xff]
      %v5482 = vld [vmem:[#allocation2 + $0xb80] sm:$0xff]
      %v5483 = vld [vmem:[#allocation2 + $0xb88] sm:$0xff]
      %v5484 = vld [vmem:[#allocation2 + $0xb90] sm:$0xff]
      %v5485 = vld [vmem:[#allocation2 + $0xb98] sm:$0xff]
      %v5486 = vld [vmem:[#allocation2 + $0xba0] sm:$0xff]
      %v5487 = vld [vmem:[#allocation2 + $0xba8] sm:$0xff]
      %v5488 = vld [vmem:[#allocation2 + $0xbb0] sm:$0xff]
      %v5489 = vld [vmem:[#allocation2 + $0xbb8] sm:$0xff]
      %v5490 = vld [vmem:[#allocation2 + $0xbc0] sm:$0xff]
      %v5491 = vld [vmem:[#allocation2 + $0xbc8] sm:$0xff]
      %v5492 = vld [vmem:[#allocation2 + $0xbd0] sm:$0xff]
      %v5493 = vld [vmem:[#allocation2 + $0xbd8] sm:$0xff]
      %v5494 = vld [vmem:[#allocation2 + $0xbe0] sm:$0xff]
      %v5495 = vld [vmem:[#allocation2 + $0xbe8] sm:$0xff]
      %v5496 = vld [vmem:[#allocation2 + $0xbf0] sm:$0xff]
      %v5497 = vld [vmem:[#allocation2 + $0xbf8] sm:$0xff]
      %v5498 = vld [vmem:[#allocation2 + $0xc00] sm:$0xff]
      %v5499 = vld [vmem:[#allocation2 + $0xc08] sm:$0xff]
      %v5500 = vld [vmem:[#allocation2 + $0xc10] sm:$0xff]
      %v5501 = vld [vmem:[#allocation2 + $0xc18] sm:$0xff]
      %v5502 = vld [vmem:[#allocation2 + $0xc20] sm:$0xff]
      %v5503 = vld [vmem:[#allocation2 + $0xc28] sm:$0xff]
      %v5504 = vld [vmem:[#allocation2 + $0xc30] sm:$0xff]
      %v5505 = vld [vmem:[#allocation2 + $0xc38] sm:$0xff]
      %v5506 = vld [vmem:[#allocation2 + $0xc40] sm:$0xff]
      %v5507 = vld [vmem:[#allocation2 + $0xc48] sm:$0xff]
      %v5508 = vld [vmem:[#allocation2 + $0xc50] sm:$0xff]
      %v5509 = vld [vmem:[#allocation2 + $0xc58] sm:$0xff]
      %v5510 = vld [vmem:[#allocation2 + $0xc60] sm:$0xff]
      %v5511 = vld [vmem:[#allocation2 + $0xc68] sm:$0xff]
      %v5512 = vld [vmem:[#allocation2 + $0xc70] sm:$0xff]
      %v5513 = vld [vmem:[#allocation2 + $0xc78] sm:$0xff]
      %v5514 = vld [vmem:[#allocation2 + $0xc80] sm:$0xff]
      %v5515 = vld [vmem:[#allocation2 + $0xc88] sm:$0xff]
      %v5516 = vld [vmem:[#allocation2 + $0xc90] sm:$0xff]
      %v5517 = vld [vmem:[#allocation2 + $0xc98] sm:$0xff]
      %v5518 = vld [vmem:[#allocation2 + $0xca0] sm:$0xff]
      %v5519 = vld [vmem:[#allocation2 + $0xca8] sm:$0xff]
      %v5520 = vld [vmem:[#allocation2 + $0xcb0] sm:$0xff]
      %v5521 = vld [vmem:[#allocation2 + $0xcb8] sm:$0xff]
      %v5522 = vld [vmem:[#allocation2 + $0xcc0] sm:$0xff]
      %v5523 = vld [vmem:[#allocation2 + $0xcc8] sm:$0xff]
      %v5524 = vld [vmem:[#allocation2 + $0xcd0] sm:$0xff]
      %v5525 = vld [vmem:[#allocation2 + $0xcd8] sm:$0xff]
      %v5526 = vld [vmem:[#allocation2 + $0xce0] sm:$0xff]
      %v5527 = vld [vmem:[#allocation2 + $0xce8] sm:$0xff]
      %v5528 = vld [vmem:[#allocation2 + $0xcf0] sm:$0xff]
      %v5529 = vld [vmem:[#allocation2 + $0xcf8] sm:$0xff]
      %v5530 = vld [vmem:[#allocation2 + $0xd00] sm:$0xff]
      %v5531 = vld [vmem:[#allocation2 + $0xd08] sm:$0xff]
      %v5532 = vld [vmem:[#allocation2 + $0xd10] sm:$0xff]
      %v5533 = vld [vmem:[#allocation2 + $0xd18] sm:$0xff]
      %v5534 = vld [vmem:[#allocation2 + $0xd20] sm:$0xff]
      %v5535 = vld [vmem:[#allocation2 + $0xd28] sm:$0xff]
      %v5536 = vld [vmem:[#allocation2 + $0xd30] sm:$0xff]
      %v5537 = vld [vmem:[#allocation2 + $0xd38] sm:$0xff]
      %v5538 = vld [vmem:[#allocation2 + $0xd40] sm:$0xff]
      %v5539 = vld [vmem:[#allocation2 + $0xd48] sm:$0xff]
      %v5540 = vld [vmem:[#allocation2 + $0xd50] sm:$0xff]
      %v5541 = vld [vmem:[#allocation2 + $0xd58] sm:$0xff]
      %v5542 = vld [vmem:[#allocation2 + $0xd60] sm:$0xff]
      %v5543 = vld [vmem:[#allocation2 + $0xd68] sm:$0xff]
      %v5544 = vld [vmem:[#allocation2 + $0xd70] sm:$0xff]
      %v5545 = vld [vmem:[#allocation2 + $0xd78] sm:$0xff]
      %v5546 = vld [vmem:[#allocation2 + $0xd80] sm:$0xff]
      %v5547 = vld [vmem:[#allocation2 + $0xd88] sm:$0xff]
      %v5548 = vld [vmem:[#allocation2 + $0xd90] sm:$0xff]
      %v5549 = vld [vmem:[#allocation2 + $0xd98] sm:$0xff]
      %v5550 = vld [vmem:[#allocation2 + $0xda0] sm:$0xff]
      %v5551 = vld [vmem:[#allocation2 + $0xda8] sm:$0xff]
      %v5552 = vld [vmem:[#allocation2 + $0xdb0] sm:$0xff]
      %v5553 = vld [vmem:[#allocation2 + $0xdb8] sm:$0xff]
      %v5554 = vld [vmem:[#allocation2 + $0xdc0] sm:$0xff]
      %v5555 = vld [vmem:[#allocation2 + $0xdc8] sm:$0xff]
      %v5556 = vld [vmem:[#allocation2 + $0xdd0] sm:$0xff]
      %v5557 = vld [vmem:[#allocation2 + $0xdd8] sm:$0xff]
      %v5558 = vld [vmem:[#allocation2 + $0xde0] sm:$0xff]
      %v5559 = vld [vmem:[#allocation2 + $0xde8] sm:$0xff]
      %v5560 = vld [vmem:[#allocation2 + $0xdf0] sm:$0xff]
      %v5561 = vld [vmem:[#allocation2 + $0xdf8] sm:$0xff]
      %v5562 = vld [vmem:[#allocation2 + $0xe00] sm:$0xff]
      %v5563 = vld [vmem:[#allocation2 + $0xe08] sm:$0xff]
      %v5564 = vld [vmem:[#allocation2 + $0xe10] sm:$0xff]
      %v5565 = vld [vmem:[#allocation2 + $0xe18] sm:$0xff]
      %v5566 = vld [vmem:[#allocation2 + $0xe20] sm:$0xff]
      %v5567 = vld [vmem:[#allocation2 + $0xe28] sm:$0xff]
      %v5568 = vld [vmem:[#allocation2 + $0xe30] sm:$0xff]
      %v5569 = vld [vmem:[#allocation2 + $0xe38] sm:$0xff]
      %v5570 = vld [vmem:[#allocation2 + $0xe40] sm:$0xff]
      %v5571 = vld [vmem:[#allocation2 + $0xe48] sm:$0xff]
      %v5572 = vld [vmem:[#allocation2 + $0xe50] sm:$0xff]
      %v5573 = vld [vmem:[#allocation2 + $0xe58] sm:$0xff]
      %v5574 = vld [vmem:[#allocation2 + $0xe60] sm:$0xff]
      %v5575 = vld [vmem:[#allocation2 + $0xe68] sm:$0xff]
      %v5576 = vld [vmem:[#allocation2 + $0xe70] sm:$0xff]
      %v5577 = vld [vmem:[#allocation2 + $0xe78] sm:$0xff]
      %v5578 = vld [vmem:[#allocation2 + $0xe80] sm:$0xff]
      %v5579 = vld [vmem:[#allocation2 + $0xe88] sm:$0xff]
      %v5580 = vld [vmem:[#allocation2 + $0xe90] sm:$0xff]
      %v5581 = vld [vmem:[#allocation2 + $0xe98] sm:$0xff]
      %v5582 = vld [vmem:[#allocation2 + $0xea0] sm:$0xff]
      %v5583 = vld [vmem:[#allocation2 + $0xea8] sm:$0xff]
      %v5584 = vld [vmem:[#allocation2 + $0xeb0] sm:$0xff]
      %v5585 = vld [vmem:[#allocation2 + $0xeb8] sm:$0xff]
      %v5586 = vld [vmem:[#allocation2 + $0xec0] sm:$0xff]
      %v5587 = vld [vmem:[#allocation2 + $0xec8] sm:$0xff]
      %v5588 = vld [vmem:[#allocation2 + $0xed0] sm:$0xff]
      %v5589 = vld [vmem:[#allocation2 + $0xed8] sm:$0xff]
      %v5590 = vld [vmem:[#allocation2 + $0xee0] sm:$0xff]
      %v5591 = vld [vmem:[#allocation2 + $0xee8] sm:$0xff]
      %v5592 = vld [vmem:[#allocation2 + $0xef0] sm:$0xff]
      %v5593 = vld [vmem:[#allocation2 + $0xef8] sm:$0xff]
      %v5594 = vld [vmem:[#allocation2 + $0xf00] sm:$0xff]
      %v5595 = vld [vmem:[#allocation2 + $0xf08] sm:$0xff]
      %v5596 = vld [vmem:[#allocation2 + $0xf10] sm:$0xff]
      %v5597 = vld [vmem:[#allocation2 + $0xf18] sm:$0xff]
      %v5598 = vld [vmem:[#allocation2 + $0xf20] sm:$0xff]
      %v5599 = vld [vmem:[#allocation2 + $0xf28] sm:$0xff]
      %v5600 = vld [vmem:[#allocation2 + $0xf30] sm:$0xff]
      %v5601 = vld [vmem:[#allocation2 + $0xf38] sm:$0xff]
      %v5602 = vld [vmem:[#allocation2 + $0xf40] sm:$0xff]
      %v5603 = vld [vmem:[#allocation2 + $0xf48] sm:$0xff]
      %v5604 = vld [vmem:[#allocation2 + $0xf50] sm:$0xff]
      %v5605 = vld [vmem:[#allocation2 + $0xf58] sm:$0xff]
      %v5606 = vld [vmem:[#allocation2 + $0xf60] sm:$0xff]
      %v5607 = vld [vmem:[#allocation2 + $0xf68] sm:$0xff]
      %v5608 = vld [vmem:[#allocation2 + $0xf70] sm:$0xff]
      %v5609 = vld [vmem:[#allocation2 + $0xf78] sm:$0xff]
      %v5610 = vld [vmem:[#allocation2 + $0xf80] sm:$0xff]
      %v5611 = vld [vmem:[#allocation2 + $0xf88] sm:$0xff]
      %v5612 = vld [vmem:[#allocation2 + $0xf90] sm:$0xff]
      %v5613 = vld [vmem:[#allocation2 + $0xf98] sm:$0xff]
      %v5614 = vld [vmem:[#allocation2 + $0xfa0] sm:$0xff]
      %v5615 = vld [vmem:[#allocation2 + $0xfa8] sm:$0xff]
      %v5616 = vld [vmem:[#allocation2 + $0xfb0] sm:$0xff]
      %v5617 = vld [vmem:[#allocation2 + $0xfb8] sm:$0xff]
      %v5618 = vld [vmem:[#allocation2 + $0xfc0] sm:$0xff]
      %v5619 = vld [vmem:[#allocation2 + $0xfc8] sm:$0xff]
      %v5620 = vld [vmem:[#allocation2 + $0xfd0] sm:$0xff]
      %v5621 = vld [vmem:[#allocation2 + $0xfd8] sm:$0xff]
      %v5622 = vld [vmem:[#allocation2 + $0xfe0] sm:$0xff]
      %v5623 = vld [vmem:[#allocation2 + $0xfe8] sm:$0xff]
      %v5624 = vld [vmem:[#allocation2 + $0xff0] sm:$0xff]
      %v5625 = vld [vmem:[#allocation2 + $0xff8] sm:$0xff]
      %v5626 = vld [vmem:[#allocation2 + $0x1000] sm:$0xff]
      %v5627 = vld [vmem:[#allocation2 + $0x1008] sm:$0xff]
      %v5628 = vld [vmem:[#allocation2 + $0x1010] sm:$0xff]
      %v5629 = vld [vmem:[#allocation2 + $0x1018] sm:$0xff]
      %v5630 = vld [vmem:[#allocation2 + $0x1020] sm:$0xff]
      %v5631 = vld [vmem:[#allocation2 + $0x1028] sm:$0xff]
      %v5632 = vld [vmem:[#allocation2 + $0x1030] sm:$0xff]
      %v5633 = vld [vmem:[#allocation2 + $0x1038] sm:$0xff]
      %v5634 = vld [vmem:[#allocation2 + $0x1040] sm:$0xff]
      %v5635 = vld [vmem:[#allocation2 + $0x1048] sm:$0xff]
      %v5636 = vld [vmem:[#allocation2 + $0x1050] sm:$0xff]
      %v5637 = vld [vmem:[#allocation2 + $0x1058] sm:$0xff]
      %v5638 = vld [vmem:[#allocation2 + $0x1060] sm:$0xff]
      %v5639 = vld [vmem:[#allocation2 + $0x1068] sm:$0xff]
      %v5640 = vld [vmem:[#allocation2 + $0x1070] sm:$0xff]
      %v5641 = vld [vmem:[#allocation2 + $0x1078] sm:$0xff]
      %v5642 = vld [vmem:[#allocation2 + $0x1080] sm:$0xff]
      %v5643 = vld [vmem:[#allocation2 + $0x1088] sm:$0xff]
      %v5644 = vld [vmem:[#allocation2 + $0x1090] sm:$0xff]
      %v5645 = vld [vmem:[#allocation2 + $0x1098] sm:$0xff]
      %v5646 = vld [vmem:[#allocation2 + $0x10a0] sm:$0xff]
      %v5647 = vld [vmem:[#allocation2 + $0x10a8] sm:$0xff]
      %v5648 = vld [vmem:[#allocation2 + $0x10b0] sm:$0xff]
      %v5649 = vld [vmem:[#allocation2 + $0x10b8] sm:$0xff]
      %v5650 = vld [vmem:[#allocation2 + $0x10c0] sm:$0xff]
      %v5651 = vld [vmem:[#allocation2 + $0x10c8] sm:$0xff]
      %v5652 = vld [vmem:[#allocation2 + $0x10d0] sm:$0xff]
      %v5653 = vld [vmem:[#allocation2 + $0x10d8] sm:$0xff]
      %v5654 = vld [vmem:[#allocation2 + $0x10e0] sm:$0xff]
      %v5655 = vld [vmem:[#allocation2 + $0x10e8] sm:$0xff]
      %v5656 = vld [vmem:[#allocation2 + $0x10f0] sm:$0xff]
      %v5657 = vld [vmem:[#allocation2 + $0x10f8] sm:$0xff]
      %v5658 = vld [vmem:[#allocation2 + $0x1100] sm:$0xff]
      %v5659 = vld [vmem:[#allocation2 + $0x1108] sm:$0xff]
      %v5660 = vld [vmem:[#allocation2 + $0x1110] sm:$0xff]
      %v5661 = vld [vmem:[#allocation2 + $0x1118] sm:$0xff]
      %v5662 = vld [vmem:[#allocation2 + $0x1120] sm:$0xff]
      %v5663 = vld [vmem:[#allocation2 + $0x1128] sm:$0xff]
      %v5664 = vld [vmem:[#allocation2 + $0x1130] sm:$0xff]
      %v5665 = vld [vmem:[#allocation2 + $0x1138] sm:$0xff]
      %v5666 = vld [vmem:[#allocation2 + $0x1140] sm:$0xff]
      %v5667 = vld [vmem:[#allocation2 + $0x1148] sm:$0xff]
      %v5668 = vld [vmem:[#allocation2 + $0x1150] sm:$0xff]
      %v5669 = vld [vmem:[#allocation2 + $0x1158] sm:$0xff]
      %v5670 = vld [vmem:[#allocation2 + $0x1160] sm:$0xff]
      %v5671 = vld [vmem:[#allocation2 + $0x1168] sm:$0xff]
      %v5672 = vld [vmem:[#allocation2 + $0x1170] sm:$0xff]
      %v5673 = vld [vmem:[#allocation2 + $0x1178] sm:$0xff]
      %v5674 = vld [vmem:[#allocation2 + $0x1180] sm:$0xff]
      %v5675 = vld [vmem:[#allocation2 + $0x1188] sm:$0xff]
      %v5676 = vld [vmem:[#allocation2 + $0x1190] sm:$0xff]
      %v5677 = vld [vmem:[#allocation2 + $0x1198] sm:$0xff]
      %v5678 = vld [vmem:[#allocation2 + $0x11a0] sm:$0xff]
      %v5679 = vld [vmem:[#allocation2 + $0x11a8] sm:$0xff]
      %v5680 = vld [vmem:[#allocation2 + $0x11b0] sm:$0xff]
      %v5681 = vld [vmem:[#allocation2 + $0x11b8] sm:$0xff]
      %v5682 = vld [vmem:[#allocation2 + $0x11c0] sm:$0xff]
      %v5683 = vld [vmem:[#allocation2 + $0x11c8] sm:$0xff]
      %v5684 = vld [vmem:[#allocation2 + $0x11d0] sm:$0xff]
      %v5685 = vld [vmem:[#allocation2 + $0x11d8] sm:$0xff]
      %v5686 = vld [vmem:[#allocation2 + $0x11e0] sm:$0xff]
      %v5687 = vld [vmem:[#allocation2 + $0x11e8] sm:$0xff]
      %v5688 = vld [vmem:[#allocation2 + $0x11f0] sm:$0xff]
      %v5689 = vld [vmem:[#allocation2 + $0x11f8] sm:$0xff]
      %v5690 = vld [vmem:[#allocation2 + $0x1200] sm:$0xff]
      %v5691 = vld [vmem:[#allocation2 + $0x1208] sm:$0xff]
      %v5692 = vld [vmem:[#allocation2 + $0x1210] sm:$0xff]
      %v5693 = vld [vmem:[#allocation2 + $0x1218] sm:$0xff]
      %v5694 = vld [vmem:[#allocation2 + $0x1220] sm:$0xff]
      %v5695 = vld [vmem:[#allocation2 + $0x1228] sm:$0xff]
      %v5696 = vld [vmem:[#allocation2 + $0x1230] sm:$0xff]
      %v5697 = vld [vmem:[#allocation2 + $0x1238] sm:$0xff]
      %v5698 = vld [vmem:[#allocation2 + $0x1240] sm:$0xff]
      %v5699 = vld [vmem:[#allocation2 + $0x1248] sm:$0xff]
      %v5700 = vld [vmem:[#allocation2 + $0x1250] sm:$0xff]
      %v5701 = vld [vmem:[#allocation2 + $0x1258] sm:$0xff]
      %v5702 = vld [vmem:[#allocation2 + $0x1260] sm:$0xff]
      %v5703 = vld [vmem:[#allocation2 + $0x1268] sm:$0xff]
      %v5704 = vld [vmem:[#allocation2 + $0x1270] sm:$0xff]
      %v5705 = vld [vmem:[#allocation2 + $0x1278] sm:$0xff]
      %v5706 = vld [vmem:[#allocation2 + $0x1280] sm:$0xff]
      %v5707 = vld [vmem:[#allocation2 + $0x1288] sm:$0xff]
      %v5708 = vld [vmem:[#allocation2 + $0x1290] sm:$0xff]
      %v5709 = vld [vmem:[#allocation2 + $0x1298] sm:$0xff]
      %v5710 = vld [vmem:[#allocation2 + $0x12a0] sm:$0xff]
      %v5711 = vld [vmem:[#allocation2 + $0x12a8] sm:$0xff]
      %v5712 = vld [vmem:[#allocation2 + $0x12b0] sm:$0xff]
      %v5713 = vld [vmem:[#allocation2 + $0x12b8] sm:$0xff]
      %v5714 = vld [vmem:[#allocation2 + $0x12c0] sm:$0xff]
      %v5715 = vld [vmem:[#allocation2 + $0x12c8] sm:$0xff]
      %v5716 = vld [vmem:[#allocation2 + $0x12d0] sm:$0xff]
      %v5717 = vld [vmem:[#allocation2 + $0x12d8] sm:$0xff]
      %v5718 = vld [vmem:[#allocation2 + $0x12e0] sm:$0xff]
      %v5719 = vld [vmem:[#allocation2 + $0x12e8] sm:$0xff]
      %v5720 = vld [vmem:[#allocation2 + $0x12f0] sm:$0xff]
      %v5721 = vld [vmem:[#allocation2 + $0x12f8] sm:$0xff]
      %v5722 = vld [vmem:[#allocation2 + $0x1300] sm:$0xff]
      %v5723 = vld [vmem:[#allocation2 + $0x1308] sm:$0xff]
      %v5724 = vld [vmem:[#allocation2 + $0x1310] sm:$0xff]
      %v5725 = vld [vmem:[#allocation2 + $0x1318] sm:$0xff]
      %v5726 = vld [vmem:[#allocation2 + $0x1320] sm:$0xff]
      %v5727 = vld [vmem:[#allocation2 + $0x1328] sm:$0xff]
      %v5728 = vld [vmem:[#allocation2 + $0x1330] sm:$0xff]
      %v5729 = vld [vmem:[#allocation2 + $0x1338] sm:$0xff]
      %v5730 = vld [vmem:[#allocation2 + $0x1340] sm:$0xff]
      %v5731 = vld [vmem:[#allocation2 + $0x1348] sm:$0xff]
      %v5732 = vld [vmem:[#allocation2 + $0x1350] sm:$0xff]
      %v5733 = vld [vmem:[#allocation2 + $0x1358] sm:$0xff]
      %v5734 = vld [vmem:[#allocation2 + $0x1360] sm:$0xff]
      %v5735 = vld [vmem:[#allocation2 + $0x1368] sm:$0xff]
      %v5736 = vld [vmem:[#allocation2 + $0x1370] sm:$0xff]
      %v5737 = vld [vmem:[#allocation2 + $0x1378] sm:$0xff]
      %v5738 = vld [vmem:[#allocation2 + $0x1380] sm:$0xff]
      %v5739 = vld [vmem:[#allocation2 + $0x1388] sm:$0xff]
      %v5740 = vld [vmem:[#allocation2 + $0x1390] sm:$0xff]
      %v5741 = vld [vmem:[#allocation2 + $0x1398] sm:$0xff]
      %v5742 = vld [vmem:[#allocation2 + $0x13a0] sm:$0xff]
      %v5743 = vld [vmem:[#allocation2 + $0x13a8] sm:$0xff]
      %v5744 = vld [vmem:[#allocation2 + $0x13b0] sm:$0xff]
      %v5745 = vld [vmem:[#allocation2 + $0x13b8] sm:$0xff]
      %v5746 = vld [vmem:[#allocation2 + $0x13c0] sm:$0xff]
      %v5747 = vld [vmem:[#allocation2 + $0x13c8] sm:$0xff]
      %v5748 = vld [vmem:[#allocation2 + $0x13d0] sm:$0xff]
      %v5749 = vld [vmem:[#allocation2 + $0x13d8] sm:$0xff]
      %v5750 = vld [vmem:[#allocation2 + $0x13e0] sm:$0xff]
      %v5751 = vld [vmem:[#allocation2 + $0x13e8] sm:$0xff]
      %v5752 = vld [vmem:[#allocation2 + $0x13f0] sm:$0xff]
      %v5753 = vld [vmem:[#allocation2 + $0x13f8] sm:$0xff]
      %v5754 = vld [vmem:[#allocation2 + $0x1400] sm:$0xff]
      %v5755 = vld [vmem:[#allocation2 + $0x1408] sm:$0xff]
      %v5756 = vld [vmem:[#allocation2 + $0x1410] sm:$0xff]
      %v5757 = vld [vmem:[#allocation2 + $0x1418] sm:$0xff]
      %v5758 = vld [vmem:[#allocation2 + $0x1420] sm:$0xff]
      %v5759 = vld [vmem:[#allocation2 + $0x1428] sm:$0xff]
      %v5760 = vld [vmem:[#allocation2 + $0x1430] sm:$0xff]
      %v5761 = vld [vmem:[#allocation2 + $0x1438] sm:$0xff]
      %v5762 = vld [vmem:[#allocation2 + $0x1440] sm:$0xff]
      %v5763 = vld [vmem:[#allocation2 + $0x1448] sm:$0xff]
      %v5764 = vld [vmem:[#allocation2 + $0x1450] sm:$0xff]
      %v5765 = vld [vmem:[#allocation2 + $0x1458] sm:$0xff]
      %v5766 = vld [vmem:[#allocation2 + $0x1460] sm:$0xff]
      %v5767 = vld [vmem:[#allocation2 + $0x1468] sm:$0xff]
      %v5768 = vld [vmem:[#allocation2 + $0x1470] sm:$0xff]
      %v5769 = vld [vmem:[#allocation2 + $0x1478] sm:$0xff]
      %v5770 = vld [vmem:[#allocation2 + $0x1480] sm:$0xff]
      %v5771 = vld [vmem:[#allocation2 + $0x1488] sm:$0xff]
      %v5772 = vld [vmem:[#allocation2 + $0x1490] sm:$0xff]
      %v5773 = vld [vmem:[#allocation2 + $0x1498] sm:$0xff]
      %v5774 = vld [vmem:[#allocation2 + $0x14a0] sm:$0xff]
      %v5775 = vld [vmem:[#allocation2 + $0x14a8] sm:$0xff]
      %v5776 = vld [vmem:[#allocation2 + $0x14b0] sm:$0xff]
      %v5777 = vld [vmem:[#allocation2 + $0x14b8] sm:$0xff]
      %v5778 = vld [vmem:[#allocation2 + $0x14c0] sm:$0xff]
      %v5779 = vld [vmem:[#allocation2 + $0x14c8] sm:$0xff]
      %v5780 = vld [vmem:[#allocation2 + $0x14d0] sm:$0xff]
      %v5781 = vld [vmem:[#allocation2 + $0x14d8] sm:$0xff]
      %v5782 = vld [vmem:[#allocation2 + $0x14e0] sm:$0xff]
      %v5783 = vld [vmem:[#allocation2 + $0x14e8] sm:$0xff]
      %v5784 = vld [vmem:[#allocation2 + $0x14f0] sm:$0xff]
      %v5785 = vld [vmem:[#allocation2 + $0x14f8] sm:$0xff]
      %v5786 = vld [vmem:[#allocation2 + $0x1500] sm:$0xff]
      %v5787 = vld [vmem:[#allocation2 + $0x1508] sm:$0xff]
      %v5788 = vld [vmem:[#allocation2 + $0x1510] sm:$0xff]
      %v5789 = vld [vmem:[#allocation2 + $0x1518] sm:$0xff]
      %v5790 = vld [vmem:[#allocation2 + $0x1520] sm:$0xff]
      %v5791 = vld [vmem:[#allocation2 + $0x1528] sm:$0xff]
      %v5792 = vld [vmem:[#allocation2 + $0x1530] sm:$0xff]
      %v5793 = vld [vmem:[#allocation2 + $0x1538] sm:$0xff]
      %v5794 = vld [vmem:[#allocation2 + $0x1540] sm:$0xff]
      %v5795 = vld [vmem:[#allocation2 + $0x1548] sm:$0xff]
      %v5796 = vld [vmem:[#allocation2 + $0x1550] sm:$0xff]
      %v5797 = vld [vmem:[#allocation2 + $0x1558] sm:$0xff]
      %v5798 = vld [vmem:[#allocation2 + $0x1560] sm:$0xff]
      %v5799 = vld [vmem:[#allocation2 + $0x1568] sm:$0xff]
      %v5800 = vld [vmem:[#allocation2 + $0x1570] sm:$0xff]
      %v5801 = vld [vmem:[#allocation2 + $0x1578] sm:$0xff]
      %v5802 = vld [vmem:[#allocation2 + $0x1580] sm:$0xff]
      %v5803 = vld [vmem:[#allocation2 + $0x1588] sm:$0xff]
      %v5804 = vld [vmem:[#allocation2 + $0x1590] sm:$0xff]
      %v5805 = vld [vmem:[#allocation2 + $0x1598] sm:$0xff]
      %v5806 = vld [vmem:[#allocation2 + $0x15a0] sm:$0xff]
      %v5807 = vld [vmem:[#allocation2 + $0x15a8] sm:$0xff]
      %v5808 = vld [vmem:[#allocation2 + $0x15b0] sm:$0xff]
      %v5809 = vld [vmem:[#allocation2 + $0x15b8] sm:$0xff]
      %v5810 = vld [vmem:[#allocation2 + $0x15c0] sm:$0xff]
      %v5811 = vld [vmem:[#allocation2 + $0x15c8] sm:$0xff]
      %v5812 = vld [vmem:[#allocation2 + $0x15d0] sm:$0xff]
      %v5813 = vld [vmem:[#allocation2 + $0x15d8] sm:$0xff]
      %v5814 = vld [vmem:[#allocation2 + $0x15e0] sm:$0xff]
      %v5815 = vld [vmem:[#allocation2 + $0x15e8] sm:$0xff]
      %v5816 = vpack.c.bf16 %v5140, %v5114
      %v5817 = vpack.c.bf16 %v5141, %v5115
      %v5818 = vpack.c.bf16 %v5142, %v5116
      %v5819 = vpack.c.bf16 %v5143, %v5117
      %v5820 = vpack.c.bf16 %v5144, %v5118
      %v5821 = vpack.c.bf16 %v5145, %v5119
      %v5822 = vpack.c.bf16 %v5146, %v5120
      %v5823 = vpack.c.bf16 %v5147, %v5121
      %v5824 = vpack.c.bf16 %v5148, %v5122
      %v5825 = vpack.c.bf16 %v5149, %v5123
      %v5826 = vpack.c.bf16 %v5150, %v5124
      %v5827 = vpack.c.bf16 %v5151, %v5125
      %v5828 = vpack.c.bf16 %v5152, %v5126
      %v5829 = vpack.c.bf16 %v5153, %v5127
      %v5830 = vpack.c.bf16 %v5154, %v5128
      %v5831 = vpack.c.bf16 %v5155, %v5129
      %v5832 = vpack.c.bf16 %v5156, %v5130
      %v5833 = vpack.c.bf16 %v5157, %v5131
      %v5834 = vpack.c.bf16 %v5158, %v5132
      %v5835 = vpack.c.bf16 %v5159, %v5133
      %v5836 = vpack.c.bf16 %v5160, %v5134
      %v5837 = vpack.c.bf16 %v5161, %v5135
      %v5838 = vpack.c.bf16 %v5162, %v5136
      %v5839 = vpack.c.bf16 %v5163, %v5137
      %v5840 = vpack.c.bf16 %v5164, %v5138
      %v5841 = vpack.c.bf16 %v5165, %v5139
      %v5842 = vpack.c.bf16 %v5192, %v5166
      %v5843 = vpack.c.bf16 %v5193, %v5167
      %v5844 = vpack.c.bf16 %v5194, %v5168
      %v5845 = vpack.c.bf16 %v5195, %v5169
      %v5846 = vpack.c.bf16 %v5196, %v5170
      %v5847 = vpack.c.bf16 %v5197, %v5171
      %v5848 = vpack.c.bf16 %v5198, %v5172
      %v5849 = vpack.c.bf16 %v5199, %v5173
      %v5850 = vpack.c.bf16 %v5200, %v5174
      %v5851 = vpack.c.bf16 %v5201, %v5175
      %v5852 = vpack.c.bf16 %v5202, %v5176
      %v5853 = vpack.c.bf16 %v5203, %v5177
      %v5854 = vpack.c.bf16 %v5204, %v5178
      %v5855 = vpack.c.bf16 %v5205, %v5179
      %v5856 = vpack.c.bf16 %v5206, %v5180
      %v5857 = vpack.c.bf16 %v5207, %v5181
      %v5858 = vpack.c.bf16 %v5208, %v5182
      %v5859 = vpack.c.bf16 %v5209, %v5183
      %v5860 = vpack.c.bf16 %v5210, %v5184
      %v5861 = vpack.c.bf16 %v5211, %v5185
      %v5862 = vpack.c.bf16 %v5212, %v5186
      %v5863 = vpack.c.bf16 %v5213, %v5187
      %v5864 = vpack.c.bf16 %v5214, %v5188
      %v5865 = vpack.c.bf16 %v5215, %v5189
      %v5866 = vpack.c.bf16 %v5216, %v5190
      %v5867 = vpack.c.bf16 %v5217, %v5191
      %v5868 = vpack.c.bf16 %v5244, %v5218
      %v5869 = vpack.c.bf16 %v5245, %v5219
      %v5870 = vpack.c.bf16 %v5246, %v5220
      %v5871 = vpack.c.bf16 %v5247, %v5221
      %v5872 = vpack.c.bf16 %v5248, %v5222
      %v5873 = vpack.c.bf16 %v5249, %v5223
      %v5874 = vpack.c.bf16 %v5250, %v5224
      %v5875 = vpack.c.bf16 %v5251, %v5225
      %v5876 = vpack.c.bf16 %v5252, %v5226
      %v5877 = vpack.c.bf16 %v5253, %v5227
      %v5878 = vpack.c.bf16 %v5254, %v5228
      %v5879 = vpack.c.bf16 %v5255, %v5229
      %v5880 = vpack.c.bf16 %v5256, %v5230
      %v5881 = vpack.c.bf16 %v5257, %v5231
      %v5882 = vpack.c.bf16 %v5258, %v5232
      %v5883 = vpack.c.bf16 %v5259, %v5233
      %v5884 = vpack.c.bf16 %v5260, %v5234
      %v5885 = vpack.c.bf16 %v5261, %v5235
      %v5886 = vpack.c.bf16 %v5262, %v5236
      %v5887 = vpack.c.bf16 %v5263, %v5237
      %v5888 = vpack.c.bf16 %v5264, %v5238
      %v5889 = vpack.c.bf16 %v5265, %v5239
      %v5890 = vpack.c.bf16 %v5266, %v5240
      %v5891 = vpack.c.bf16 %v5267, %v5241
      %v5892 = vpack.c.bf16 %v5268, %v5242
      %v5893 = vpack.c.bf16 %v5269, %v5243
      %v5894 = vpack.c.bf16 %v5296, %v5270
      %v5895 = vpack.c.bf16 %v5297, %v5271
      %v5896 = vpack.c.bf16 %v5298, %v5272
      %v5897 = vpack.c.bf16 %v5299, %v5273
      %v5898 = vpack.c.bf16 %v5300, %v5274
      %v5899 = vpack.c.bf16 %v5301, %v5275
      %v5900 = vpack.c.bf16 %v5302, %v5276
      %v5901 = vpack.c.bf16 %v5303, %v5277
      %v5902 = vpack.c.bf16 %v5304, %v5278
      %v5903 = vpack.c.bf16 %v5305, %v5279
      %v5904 = vpack.c.bf16 %v5306, %v5280
      %v5905 = vpack.c.bf16 %v5307, %v5281
      %v5906 = vpack.c.bf16 %v5308, %v5282
      %v5907 = vpack.c.bf16 %v5309, %v5283
      %v5908 = vpack.c.bf16 %v5310, %v5284
      %v5909 = vpack.c.bf16 %v5311, %v5285
      %v5910 = vpack.c.bf16 %v5312, %v5286
      %v5911 = vpack.c.bf16 %v5313, %v5287
      %v5912 = vpack.c.bf16 %v5314, %v5288
      %v5913 = vpack.c.bf16 %v5315, %v5289
      %v5914 = vpack.c.bf16 %v5316, %v5290
      %v5915 = vpack.c.bf16 %v5317, %v5291
      %v5916 = vpack.c.bf16 %v5318, %v5292
      %v5917 = vpack.c.bf16 %v5319, %v5293
      %v5918 = vpack.c.bf16 %v5320, %v5294
      %v5919 = vpack.c.bf16 %v5321, %v5295
      %v5920 = vpack.c.bf16 %v5348, %v5322
      %v5921 = vpack.c.bf16 %v5349, %v5323
      %v5922 = vpack.c.bf16 %v5350, %v5324
      %v5923 = vpack.c.bf16 %v5351, %v5325
      %v5924 = vpack.c.bf16 %v5352, %v5326
      %v5925 = vpack.c.bf16 %v5353, %v5327
      %v5926 = vpack.c.bf16 %v5354, %v5328
      %v5927 = vpack.c.bf16 %v5355, %v5329
      %v5928 = vpack.c.bf16 %v5356, %v5330
      %v5929 = vpack.c.bf16 %v5357, %v5331
      %v5930 = vpack.c.bf16 %v5358, %v5332
      %v5931 = vpack.c.bf16 %v5359, %v5333
      %v5932 = vpack.c.bf16 %v5360, %v5334
      %v5933 = vpack.c.bf16 %v5361, %v5335
      %v5934 = vpack.c.bf16 %v5362, %v5336
      %v5935 = vpack.c.bf16 %v5363, %v5337
      %v5936 = vpack.c.bf16 %v5364, %v5338
      %v5937 = vpack.c.bf16 %v5365, %v5339
      %v5938 = vpack.c.bf16 %v5366, %v5340
      %v5939 = vpack.c.bf16 %v5367, %v5341
      %v5940 = vpack.c.bf16 %v5368, %v5342
      %v5941 = vpack.c.bf16 %v5369, %v5343
      %v5942 = vpack.c.bf16 %v5370, %v5344
      %v5943 = vpack.c.bf16 %v5371, %v5345
      %v5944 = vpack.c.bf16 %v5372, %v5346
      %v5945 = vpack.c.bf16 %v5373, %v5347
      %v5946 = vpack.c.bf16 %v5400, %v5374
      %v5947 = vpack.c.bf16 %v5401, %v5375
      %v5948 = vpack.c.bf16 %v5402, %v5376
      %v5949 = vpack.c.bf16 %v5403, %v5377
      %v5950 = vpack.c.bf16 %v5404, %v5378
      %v5951 = vpack.c.bf16 %v5405, %v5379
      %v5952 = vpack.c.bf16 %v5406, %v5380
      %v5953 = vpack.c.bf16 %v5407, %v5381
      %v5954 = vpack.c.bf16 %v5408, %v5382
      %v5955 = vpack.c.bf16 %v5409, %v5383
      %v5956 = vpack.c.bf16 %v5410, %v5384
      %v5957 = vpack.c.bf16 %v5411, %v5385
      %v5958 = vpack.c.bf16 %v5412, %v5386
      %v5959 = vpack.c.bf16 %v5413, %v5387
      %v5960 = vpack.c.bf16 %v5414, %v5388
      %v5961 = vpack.c.bf16 %v5415, %v5389
      %v5962 = vpack.c.bf16 %v5416, %v5390
      %v5963 = vpack.c.bf16 %v5417, %v5391
      %v5964 = vpack.c.bf16 %v5418, %v5392
      %v5965 = vpack.c.bf16 %v5419, %v5393
      %v5966 = vpack.c.bf16 %v5420, %v5394
      %v5967 = vpack.c.bf16 %v5421, %v5395
      %v5968 = vpack.c.bf16 %v5422, %v5396
      %v5969 = vpack.c.bf16 %v5423, %v5397
      %v5970 = vpack.c.bf16 %v5424, %v5398
      %v5971 = vpack.c.bf16 %v5425, %v5399
      %v5972 = vpack.c.bf16 %v5452, %v5426
      %v5973 = vpack.c.bf16 %v5453, %v5427
      %v5974 = vpack.c.bf16 %v5454, %v5428
      %v5975 = vpack.c.bf16 %v5455, %v5429
      %v5976 = vpack.c.bf16 %v5456, %v5430
      %v5977 = vpack.c.bf16 %v5457, %v5431
      %v5978 = vpack.c.bf16 %v5458, %v5432
      %v5979 = vpack.c.bf16 %v5459, %v5433
      %v5980 = vpack.c.bf16 %v5460, %v5434
      %v5981 = vpack.c.bf16 %v5461, %v5435
      %v5982 = vpack.c.bf16 %v5462, %v5436
      %v5983 = vpack.c.bf16 %v5463, %v5437
      %v5984 = vpack.c.bf16 %v5464, %v5438
      %v5985 = vpack.c.bf16 %v5465, %v5439
      %v5986 = vpack.c.bf16 %v5466, %v5440
      %v5987 = vpack.c.bf16 %v5467, %v5441
      %v5988 = vpack.c.bf16 %v5468, %v5442
      %v5989 = vpack.c.bf16 %v5469, %v5443
      %v5990 = vpack.c.bf16 %v5470, %v5444
      %v5991 = vpack.c.bf16 %v5471, %v5445
      %v5992 = vpack.c.bf16 %v5472, %v5446
      %v5993 = vpack.c.bf16 %v5473, %v5447
      %v5994 = vpack.c.bf16 %v5474, %v5448
      %v5995 = vpack.c.bf16 %v5475, %v5449
      %v5996 = vpack.c.bf16 %v5476, %v5450
      %v5997 = vpack.c.bf16 %v5477, %v5451
      %v5998 = vpack.c.bf16 %v5504, %v5478
      %v5999 = vpack.c.bf16 %v5505, %v5479
      %v6000 = vpack.c.bf16 %v5506, %v5480
      %v6001 = vpack.c.bf16 %v5507, %v5481
      %v6002 = vpack.c.bf16 %v5508, %v5482
      %v6003 = vpack.c.bf16 %v5509, %v5483
      %v6004 = vpack.c.bf16 %v5510, %v5484
      %v6005 = vpack.c.bf16 %v5511, %v5485
      %v6006 = vpack.c.bf16 %v5512, %v5486
      %v6007 = vpack.c.bf16 %v5513, %v5487
      %v6008 = vpack.c.bf16 %v5514, %v5488
      %v6009 = vpack.c.bf16 %v5515, %v5489
      %v6010 = vpack.c.bf16 %v5516, %v5490
      %v6011 = vpack.c.bf16 %v5517, %v5491
      %v6012 = vpack.c.bf16 %v5518, %v5492
      %v6013 = vpack.c.bf16 %v5519, %v5493
      %v6014 = vpack.c.bf16 %v5520, %v5494
      %v6015 = vpack.c.bf16 %v5521, %v5495
      %v6016 = vpack.c.bf16 %v5522, %v5496
      %v6017 = vpack.c.bf16 %v5523, %v5497
      %v6018 = vpack.c.bf16 %v5524, %v5498
      %v6019 = vpack.c.bf16 %v5525, %v5499
      %v6020 = vpack.c.bf16 %v5526, %v5500
      %v6021 = vpack.c.bf16 %v5527, %v5501
      %v6022 = vpack.c.bf16 %v5528, %v5502
      %v6023 = vpack.c.bf16 %v5529, %v5503
      %v6024 = vpack.c.bf16 %v5556, %v5530
      %v6025 = vpack.c.bf16 %v5557, %v5531
      %v6026 = vpack.c.bf16 %v5558, %v5532
      %v6027 = vpack.c.bf16 %v5559, %v5533
      %v6028 = vpack.c.bf16 %v5560, %v5534
      %v6029 = vpack.c.bf16 %v5561, %v5535
      %v6030 = vpack.c.bf16 %v5562, %v5536
      %v6031 = vpack.c.bf16 %v5563, %v5537
      %v6032 = vpack.c.bf16 %v5564, %v5538
      %v6033 = vpack.c.bf16 %v5565, %v5539
      %v6034 = vpack.c.bf16 %v5566, %v5540
      %v6035 = vpack.c.bf16 %v5567, %v5541
      %v6036 = vpack.c.bf16 %v5568, %v5542
      %v6037 = vpack.c.bf16 %v5569, %v5543
      %v6038 = vpack.c.bf16 %v5570, %v5544
      %v6039 = vpack.c.bf16 %v5571, %v5545
      %v6040 = vpack.c.bf16 %v5572, %v5546
      %v6041 = vpack.c.bf16 %v5573, %v5547
      %v6042 = vpack.c.bf16 %v5574, %v5548
      %v6043 = vpack.c.bf16 %v5575, %v5549
      %v6044 = vpack.c.bf16 %v5576, %v5550
      %v6045 = vpack.c.bf16 %v5577, %v5551
      %v6046 = vpack.c.bf16 %v5578, %v5552
      %v6047 = vpack.c.bf16 %v5579, %v5553
      %v6048 = vpack.c.bf16 %v5580, %v5554
      %v6049 = vpack.c.bf16 %v5581, %v5555
      %v6050 = vpack.c.bf16 %v5608, %v5582
      %v6051 = vpack.c.bf16 %v5609, %v5583
      %v6052 = vpack.c.bf16 %v5610, %v5584
      %v6053 = vpack.c.bf16 %v5611, %v5585
      %v6054 = vpack.c.bf16 %v5612, %v5586
      %v6055 = vpack.c.bf16 %v5613, %v5587
      %v6056 = vpack.c.bf16 %v5614, %v5588
      %v6057 = vpack.c.bf16 %v5615, %v5589
      %v6058 = vpack.c.bf16 %v5616, %v5590
      %v6059 = vpack.c.bf16 %v5617, %v5591
      %v6060 = vpack.c.bf16 %v5618, %v5592
      %v6061 = vpack.c.bf16 %v5619, %v5593
      %v6062 = vpack.c.bf16 %v5620, %v5594
      %v6063 = vpack.c.bf16 %v5621, %v5595
      %v6064 = vpack.c.bf16 %v5622, %v5596
      %v6065 = vpack.c.bf16 %v5623, %v5597
      %v6066 = vpack.c.bf16 %v5624, %v5598
      %v6067 = vpack.c.bf16 %v5625, %v5599
      %v6068 = vpack.c.bf16 %v5626, %v5600
      %v6069 = vpack.c.bf16 %v5627, %v5601
      %v6070 = vpack.c.bf16 %v5628, %v5602
      %v6071 = vpack.c.bf16 %v5629, %v5603
      %v6072 = vpack.c.bf16 %v5630, %v5604
      %v6073 = vpack.c.bf16 %v5631, %v5605
      %v6074 = vpack.c.bf16 %v5632, %v5606
      %v6075 = vpack.c.bf16 %v5633, %v5607
      %v6076 = vpack.c.bf16 %v5660, %v5634
      %v6077 = vpack.c.bf16 %v5661, %v5635
      %v6078 = vpack.c.bf16 %v5662, %v5636
      %v6079 = vpack.c.bf16 %v5663, %v5637
      %v6080 = vpack.c.bf16 %v5664, %v5638
      %v6081 = vpack.c.bf16 %v5665, %v5639
      %v6082 = vpack.c.bf16 %v5666, %v5640
      %v6083 = vpack.c.bf16 %v5667, %v5641
      %v6084 = vpack.c.bf16 %v5668, %v5642
      %v6085 = vpack.c.bf16 %v5669, %v5643
      %v6086 = vpack.c.bf16 %v5670, %v5644
      %v6087 = vpack.c.bf16 %v5671, %v5645
      %v6088 = vpack.c.bf16 %v5672, %v5646
      %v6089 = vpack.c.bf16 %v5673, %v5647
      %v6090 = vpack.c.bf16 %v5674, %v5648
      %v6091 = vpack.c.bf16 %v5675, %v5649
      %v6092 = vpack.c.bf16 %v5676, %v5650
      %v6093 = vpack.c.bf16 %v5677, %v5651
      %v6094 = vpack.c.bf16 %v5678, %v5652
      %v6095 = vpack.c.bf16 %v5679, %v5653
      %v6096 = vpack.c.bf16 %v5680, %v5654
      %v6097 = vpack.c.bf16 %v5681, %v5655
      %v6098 = vpack.c.bf16 %v5682, %v5656
      %v6099 = vpack.c.bf16 %v5683, %v5657
      %v6100 = vpack.c.bf16 %v5684, %v5658
      %v6101 = vpack.c.bf16 %v5685, %v5659
      %v6102 = vpack.c.bf16 %v5712, %v5686
      %v6103 = vpack.c.bf16 %v5713, %v5687
      %v6104 = vpack.c.bf16 %v5714, %v5688
      %v6105 = vpack.c.bf16 %v5715, %v5689
      %v6106 = vpack.c.bf16 %v5716, %v5690
      %v6107 = vpack.c.bf16 %v5717, %v5691
      %v6108 = vpack.c.bf16 %v5718, %v5692
      %v6109 = vpack.c.bf16 %v5719, %v5693
      %v6110 = vpack.c.bf16 %v5720, %v5694
      %v6111 = vpack.c.bf16 %v5721, %v5695
      %v6112 = vpack.c.bf16 %v5722, %v5696
      %v6113 = vpack.c.bf16 %v5723, %v5697
      %v6114 = vpack.c.bf16 %v5724, %v5698
      %v6115 = vpack.c.bf16 %v5725, %v5699
      %v6116 = vpack.c.bf16 %v5726, %v5700
      %v6117 = vpack.c.bf16 %v5727, %v5701
      %v6118 = vpack.c.bf16 %v5728, %v5702
      %v6119 = vpack.c.bf16 %v5729, %v5703
      %v6120 = vpack.c.bf16 %v5730, %v5704
      %v6121 = vpack.c.bf16 %v5731, %v5705
      %v6122 = vpack.c.bf16 %v5732, %v5706
      %v6123 = vpack.c.bf16 %v5733, %v5707
      %v6124 = vpack.c.bf16 %v5734, %v5708
      %v6125 = vpack.c.bf16 %v5735, %v5709
      %v6126 = vpack.c.bf16 %v5736, %v5710
      %v6127 = vpack.c.bf16 %v5737, %v5711
      %v6128 = vpack.c.bf16 %v5764, %v5738
      %v6129 = vpack.c.bf16 %v5765, %v5739
      %v6130 = vpack.c.bf16 %v5766, %v5740
      %v6131 = vpack.c.bf16 %v5767, %v5741
      %v6132 = vpack.c.bf16 %v5768, %v5742
      %v6133 = vpack.c.bf16 %v5769, %v5743
      %v6134 = vpack.c.bf16 %v5770, %v5744
      %v6135 = vpack.c.bf16 %v5771, %v5745
      %v6136 = vpack.c.bf16 %v5772, %v5746
      %v6137 = vpack.c.bf16 %v5773, %v5747
      %v6138 = vpack.c.bf16 %v5774, %v5748
      %v6139 = vpack.c.bf16 %v5775, %v5749
      %v6140 = vpack.c.bf16 %v5776, %v5750
      %v6141 = vpack.c.bf16 %v5777, %v5751
      %v6142 = vpack.c.bf16 %v5778, %v5752
      %v6143 = vpack.c.bf16 %v5779, %v5753
      %v6144 = vpack.c.bf16 %v5780, %v5754
      %v6145 = vpack.c.bf16 %v5781, %v5755
      %v6146 = vpack.c.bf16 %v5782, %v5756
      %v6147 = vpack.c.bf16 %v5783, %v5757
      %v6148 = vpack.c.bf16 %v5784, %v5758
      %v6149 = vpack.c.bf16 %v5785, %v5759
      %v6150 = vpack.c.bf16 %v5786, %v5760
      %v6151 = vpack.c.bf16 %v5787, %v5761
      %v6152 = vpack.c.bf16 %v5788, %v5762
      %v6153 = vpack.c.bf16 %v5789, %v5763
      %v6154 = vpack.c.bf16 %v5790, %v5790
      %v6155 = vpack.c.bf16 %v5791, %v5791
      %v6156 = vpack.c.bf16 %v5792, %v5792
      %v6157 = vpack.c.bf16 %v5793, %v5793
      %v6158 = vpack.c.bf16 %v5794, %v5794
      %v6159 = vpack.c.bf16 %v5795, %v5795
      %v6160 = vpack.c.bf16 %v5796, %v5796
      %v6161 = vpack.c.bf16 %v5797, %v5797
      %v6162 = vpack.c.bf16 %v5798, %v5798
      %v6163 = vpack.c.bf16 %v5799, %v5799
      %v6164 = vpack.c.bf16 %v5800, %v5800
      %v6165 = vpack.c.bf16 %v5801, %v5801
      %v6166 = vpack.c.bf16 %v5802, %v5802
      %v6167 = vpack.c.bf16 %v5803, %v5803
      %v6168 = vpack.c.bf16 %v5804, %v5804
      %v6169 = vpack.c.bf16 %v5805, %v5805
      %v6170 = vpack.c.bf16 %v5806, %v5806
      %v6171 = vpack.c.bf16 %v5807, %v5807
      %v6172 = vpack.c.bf16 %v5808, %v5808
      %v6173 = vpack.c.bf16 %v5809, %v5809
      %v6174 = vpack.c.bf16 %v5810, %v5810
      %v6175 = vpack.c.bf16 %v5811, %v5811
      %v6176 = vpack.c.bf16 %v5812, %v5812
      %v6177 = vpack.c.bf16 %v5813, %v5813
      %v6178 = vpack.c.bf16 %v5814, %v5814
      %v6179 = vpack.c.bf16 %v5815, %v5815
      %v6180 = vld [vmem:[%s2] sm:$0xff]
      %6182 = vset.pattern.permute.xlu0 0
      %6183 = vperm.xlu0 %6182, %v6180
      %v6184 = vpop.permute.xlu0 %6183
      %v6187 = vunpack.c.l.b16 %v5113
      %v6188 = vunpack.c.h.b16 %v5113
      %v6189 = vpack.c.b16 %v6187, %v6187
      %v6190 = vpack.c.b16 %v6188, %v6188
      %vm6192 = vcmask 719872
      %v6194 = vsel %vm6192, %v6190, 0
      %vm6196 = vcmask 1043456
      %v6198 = vsel %vm6196, %v6154, 0
      %v6201 = vsel %vm6196, %v6155, 0
      %v6204 = vsel %vm6196, %v6156, 0
      %v6207 = vsel %vm6196, %v6157, 0
      %v6210 = vsel %vm6196, %v6158, 0
      %v6213 = vsel %vm6196, %v6159, 0
      %v6216 = vsel %vm6196, %v6160, 0
      %v6219 = vsel %vm6196, %v6161, 0
      %v6222 = vsel %vm6196, %v6162, 0
      %v6225 = vsel %vm6196, %v6163, 0
      %v6228 = vsel %vm6196, %v6164, 0
      %v6231 = vsel %vm6196, %v6165, 0
      %v6234 = vsel %vm6196, %v6166, 0
      %v6237 = vsel %vm6196, %v6167, 0
      %v6240 = vsel %vm6196, %v6168, 0
      %v6243 = vsel %vm6196, %v6169, 0
      %v6246 = vsel %vm6196, %v6170, 0
      %v6249 = vsel %vm6196, %v6171, 0
      %v6252 = vsel %vm6196, %v6172, 0
      %v6255 = vsel %vm6196, %v6173, 0
      %v6258 = vsel %vm6196, %v6174, 0
      %v6261 = vsel %vm6196, %v6175, 0
      %v6264 = vsel %vm6196, %v6176, 0
      %v6267 = vsel %vm6196, %v6177, 0
      %v6270 = vsel %vm6196, %v6178, 0
      %v6273 = vsel %vm6196, %v6179, 0
      %6275 = vmatprep.subr.bf16.mxu0 %v5817
      %6276 = vmatpush1.bf16.msra.mxu0 %v5816
      %6277 = vmatprep.subr.bf16.mxu0 %v5843
      %6278 = vmatpush1.bf16.msra.mxu0 %v5842
      %6279 = vmatprep.subr.bf16.mxu0 %v5869
      %6280 = vmatpush1.bf16.msra.mxu0 %v5868
      %6281 = vmatprep.subr.bf16.mxu0 %v5895
      %6282 = vmatpush1.bf16.msra.mxu0 %v5894
      %6283 = vmatprep.subr.bf16.mxu0 %v5921
      %6284 = vmatpush1.bf16.msra.mxu0 %v5920
      %6285 = vmatprep.subr.bf16.mxu0 %v5947
      %6286 = vmatpush1.bf16.msra.mxu0 %v5946
      %6287 = vmatprep.subr.bf16.mxu0 %v5973
      %6288 = vmatpush1.bf16.msra.mxu0 %v5972
      %6289 = vmatprep.subr.bf16.mxu0 %v5999
      %6290 = vmatpush1.bf16.msra.mxu0 %v5998
      %6291 = vmatprep.subr.bf16.mxu0 %v6025
      %6292 = vmatpush1.bf16.msra.mxu0 %v6024
      %6293 = vmatprep.subr.bf16.mxu0 %v6051
      %6294 = vmatpush1.bf16.msra.mxu0 %v6050
      %6295 = vmatprep.subr.bf16.mxu0 %v6077
      %6296 = vmatpush1.bf16.msra.mxu0 %v6076
      %6297 = vmatprep.subr.bf16.mxu0 %v6103
      %6298 = vmatpush1.bf16.msra.mxu0 %v6102
      %6299 = vmatprep.subr.bf16.mxu0 %v6129
      %6300 = vmatpush1.bf16.msra.mxu0 %v6128
      %6301 = vmatprep.subr.bf16.mxu0 %v6201
      %6302 = vmatpush1.bf16.msra.mxu0 %v6198
      %6303 = vmatprep.subr.bf16.mxu0 0
      %6304 = vmatpush1.bf16.msra.mxu0 0
      %6305 = vmatprep.subr.bf16.mxu0 0
      %6306 = vmatpush1.bf16.msra.mxu0 0
      %6307 = vmatprep.mubr.bf16.mxu0 %v6194
      %6308 = vmatmul.mubr.bf16.gmra.mrb[0].mxu0 %v6189
      %v6309 = vpop.f32.mrb[0].mxu0
      %v6310 = vadd.f32 %v6184, %v6309
      %v6311 = vpop.f32.mrb[0].mxu0
      %v6312 = vadd.f32 %v6184, %v6311
      %v6313 = vpop.f32.mrb[0].mxu0
      %v6314 = vpop.f32.mrb[0].mxu0
      %6315 = vdwg.mxu0
      %6316 = vmatprep.subr.bf16.mxu0 %v5819
      %6317 = vmatpush1.bf16.msra.mxu0 %v5818
      %6318 = vmatprep.subr.bf16.mxu0 %v5845
      %6319 = vmatpush1.bf16.msra.mxu0 %v5844
      %6320 = vmatprep.subr.bf16.mxu0 %v5871
      %6321 = vmatpush1.bf16.msra.mxu0 %v5870
      %6322 = vmatprep.subr.bf16.mxu0 %v5897
      %6323 = vmatpush1.bf16.msra.mxu0 %v5896
      %6324 = vmatprep.subr.bf16.mxu0 %v5923
      %6325 = vmatpush1.bf16.msra.mxu0 %v5922
      %6326 = vmatprep.subr.bf16.mxu0 %v5949
      %6327 = vmatpush1.bf16.msra.mxu0 %v5948
      %6328 = vmatprep.subr.bf16.mxu0 %v5975
      %6329 = vmatpush1.bf16.msra.mxu0 %v5974
      %6330 = vmatprep.subr.bf16.mxu0 %v6001
      %6331 = vmatpush1.bf16.msra.mxu0 %v6000
      %6332 = vmatprep.subr.bf16.mxu0 %v6027
      %6333 = vmatpush1.bf16.msra.mxu0 %v6026
      %6334 = vmatprep.subr.bf16.mxu0 %v6053
      %6335 = vmatpush1.bf16.msra.mxu0 %v6052
      %6336 = vmatprep.subr.bf16.mxu0 %v6079
      %6337 = vmatpush1.bf16.msra.mxu0 %v6078
      %6338 = vmatprep.subr.bf16.mxu0 %v6105
      %6339 = vmatpush1.bf16.msra.mxu0 %v6104
      %6340 = vmatprep.subr.bf16.mxu0 %v6131
      %6341 = vmatpush1.bf16.msra.mxu0 %v6130
      %6342 = vmatprep.subr.bf16.mxu0 %v6207
      %6343 = vmatpush1.bf16.msra.mxu0 %v6204
      %6344 = vmatprep.subr.bf16.mxu0 0
      %6345 = vmatpush1.bf16.msra.mxu0 0
      %6346 = vmatprep.subr.bf16.mxu0 0
      %6347 = vmatpush1.bf16.msra.mxu0 0
      %6348 = vmatprep.mubr.bf16.mxu0 %v6194
      %6349 = vmatmul.mubr.bf16.gmra.mrb[0].mxu0 %v6189
      %v6350 = vpop.f32.mrb[0].mxu0
      %v6351 = vadd.f32 %v6184, %v6350
      %v6352 = vpop.f32.mrb[0].mxu0
      %v6353 = vadd.f32 %v6184, %v6352
      %v6354 = vpop.f32.mrb[0].mxu0
      %v6355 = vpop.f32.mrb[0].mxu0
      %6356 = vdwg.mxu0
      %6357 = vmatprep.subr.bf16.mxu0 %v5821
      %6358 = vmatpush1.bf16.msra.mxu0 %v5820
      %6359 = vmatprep.subr.bf16.mxu0 %v5847
      %6360 = vmatpush1.bf16.msra.mxu0 %v5846
      %6361 = vmatprep.subr.bf16.mxu0 %v5873
      %6362 = vmatpush1.bf16.msra.mxu0 %v5872
      %6363 = vmatprep.subr.bf16.mxu0 %v5899
      %6364 = vmatpush1.bf16.msra.mxu0 %v5898
      %6365 = vmatprep.subr.bf16.mxu0 %v5925
      %6366 = vmatpush1.bf16.msra.mxu0 %v5924
      %6367 = vmatprep.subr.bf16.mxu0 %v5951
      %6368 = vmatpush1.bf16.msra.mxu0 %v5950
      %6369 = vmatprep.subr.bf16.mxu0 %v5977
      %6370 = vmatpush1.bf16.msra.mxu0 %v5976
      %6371 = vmatprep.subr.bf16.mxu0 %v6003
      %6372 = vmatpush1.bf16.msra.mxu0 %v6002
      %6373 = vmatprep.subr.bf16.mxu0 %v6029
      %6374 = vmatpush1.bf16.msra.mxu0 %v6028
      %6375 = vmatprep.subr.bf16.mxu0 %v6055
      %6376 = vmatpush1.bf16.msra.mxu0 %v6054
      %6377 = vmatprep.subr.bf16.mxu0 %v6081
      %6378 = vmatpush1.bf16.msra.mxu0 %v6080
      %6379 = vmatprep.subr.bf16.mxu0 %v6107
      %6380 = vmatpush1.bf16.msra.mxu0 %v6106
      %6381 = vmatprep.subr.bf16.mxu0 %v6133
      %6382 = vmatpush1.bf16.msra.mxu0 %v6132
      %6383 = vmatprep.subr.bf16.mxu0 %v6213
      %6384 = vmatpush1.bf16.msra.mxu0 %v6210
      %6385 = vmatprep.subr.bf16.mxu0 0
      %6386 = vmatpush1.bf16.msra.mxu0 0
      %6387 = vmatprep.subr.bf16.mxu0 0
      %6388 = vmatpush1.bf16.msra.mxu0 0
      %6389 = vmatprep.mubr.bf16.mxu0 %v6194
      %6390 = vmatmul.mubr.bf16.gmra.mrb[0].mxu0 %v6189
      %v6391 = vpop.f32.mrb[0].mxu0
      %v6392 = vadd.f32 %v6184, %v6391
      %v6393 = vpop.f32.mrb[0].mxu0
      %v6394 = vadd.f32 %v6184, %v6393
      %v6395 = vpop.f32.mrb[0].mxu0
      %v6396 = vpop.f32.mrb[0].mxu0
      %6397 = vdwg.mxu0
      %6398 = vmatprep.subr.bf16.mxu0 %v5823
      %6399 = vmatpush1.bf16.msra.mxu0 %v5822
      %6400 = vmatprep.subr.bf16.mxu0 %v5849
      %6401 = vmatpush1.bf16.msra.mxu0 %v5848
      %6402 = vmatprep.subr.bf16.mxu0 %v5875
      %6403 = vmatpush1.bf16.msra.mxu0 %v5874
      %6404 = vmatprep.subr.bf16.mxu0 %v5901
      %6405 = vmatpush1.bf16.msra.mxu0 %v5900
      %6406 = vmatprep.subr.bf16.mxu0 %v5927
      %6407 = vmatpush1.bf16.msra.mxu0 %v5926
      %6408 = vmatprep.subr.bf16.mxu0 %v5953
      %6409 = vmatpush1.bf16.msra.mxu0 %v5952
      %6410 = vmatprep.subr.bf16.mxu0 %v5979
      %6411 = vmatpush1.bf16.msra.mxu0 %v5978
      %6412 = vmatprep.subr.bf16.mxu0 %v6005
      %6413 = vmatpush1.bf16.msra.mxu0 %v6004
      %6414 = vmatprep.subr.bf16.mxu0 %v6031
      %6415 = vmatpush1.bf16.msra.mxu0 %v6030
      %6416 = vmatprep.subr.bf16.mxu0 %v6057
      %6417 = vmatpush1.bf16.msra.mxu0 %v6056
      %6418 = vmatprep.subr.bf16.mxu0 %v6083
      %6419 = vmatpush1.bf16.msra.mxu0 %v6082
      %6420 = vmatprep.subr.bf16.mxu0 %v6109
      %6421 = vmatpush1.bf16.msra.mxu0 %v6108
      %6422 = vmatprep.subr.bf16.mxu0 %v6135
      %6423 = vmatpush1.bf16.msra.mxu0 %v6134
      %6424 = vmatprep.subr.bf16.mxu0 %v6219
      %6425 = vmatpush1.bf16.msra.mxu0 %v6216
      %6426 = vmatprep.subr.bf16.mxu0 0
      %6427 = vmatpush1.bf16.msra.mxu0 0
      %6428 = vmatprep.subr.bf16.mxu0 0
      %6429 = vmatpush1.bf16.msra.mxu0 0
      %6430 = vmatprep.mubr.bf16.mxu0 %v6194
      %6431 = vmatmul.mubr.bf16.gmra.mrb[0].mxu0 %v6189
      %v6432 = vpop.f32.mrb[0].mxu0
      %v6433 = vadd.f32 %v6184, %v6432
      %v6434 = vpop.f32.mrb[0].mxu0
      %v6435 = vadd.f32 %v6184, %v6434
      %v6436 = vpop.f32.mrb[0].mxu0
      %v6437 = vpop.f32.mrb[0].mxu0
      %6438 = vdwg.mxu0
      %6439 = vmatprep.subr.bf16.mxu0 %v5825
      %6440 = vmatpush1.bf16.msra.mxu0 %v5824
      %6441 = vmatprep.subr.bf16.mxu0 %v5851
      %6442 = vmatpush1.bf16.msra.mxu0 %v5850
      %6443 = vmatprep.subr.bf16.mxu0 %v5877
      %6444 = vmatpush1.bf16.msra.mxu0 %v5876
      %6445 = vmatprep.subr.bf16.mxu0 %v5903
      %6446 = vmatpush1.bf16.msra.mxu0 %v5902
      %6447 = vmatprep.subr.bf16.mxu0 %v5929
      %6448 = vmatpush1.bf16.msra.mxu0 %v5928
      %6449 = vmatprep.subr.bf16.mxu0 %v5955
      %6450 = vmatpush1.bf16.msra.mxu0 %v5954
      %6451 = vmatprep.subr.bf16.mxu0 %v5981
      %6452 = vmatpush1.bf16.msra.mxu0 %v5980
      %6453 = vmatprep.subr.bf16.mxu0 %v6007
      %6454 = vmatpush1.bf16.msra.mxu0 %v6006
      %6455 = vmatprep.subr.bf16.mxu0 %v6033
      %6456 = vmatpush1.bf16.msra.mxu0 %v6032
      %6457 = vmatprep.subr.bf16.mxu0 %v6059
      %6458 = vmatpush1.bf16.msra.mxu0 %v6058
      %6459 = vmatprep.subr.bf16.mxu0 %v6085
      %6460 = vmatpush1.bf16.msra.mxu0 %v6084
      %6461 = vmatprep.subr.bf16.mxu0 %v6111
      %6462 = vmatpush1.bf16.msra.mxu0 %v6110
      %6463 = vmatprep.subr.bf16.mxu0 %v6137
      %6464 = vmatpush1.bf16.msra.mxu0 %v6136
      %6465 = vmatprep.subr.bf16.mxu0 %v6225
      %6466 = vmatpush1.bf16.msra.mxu0 %v6222
      %6467 = vmatprep.subr.bf16.mxu0 0
      %6468 = vmatpush1.bf16.msra.mxu0 0
      %6469 = vmatprep.subr.bf16.mxu0 0
      %6470 = vmatpush1.bf16.msra.mxu0 0
      %6471 = vmatprep.mubr.bf16.mxu0 %v6194
      %6472 = vmatmul.mubr.bf16.gmra.mrb[0].mxu0 %v6189
      %v6473 = vpop.f32.mrb[0].mxu0
      %v6474 = vadd.f32 %v6184, %v6473
      %v6475 = vpop.f32.mrb[0].mxu0
      %v6476 = vadd.f32 %v6184, %v6475
      %v6477 = vpop.f32.mrb[0].mxu0
      %v6478 = vpop.f32.mrb[0].mxu0
      %6479 = vdwg.mxu0
      %6480 = vmatprep.subr.bf16.mxu0 %v5827
      %6481 = vmatpush1.bf16.msra.mxu0 %v5826
      %6482 = vmatprep.subr.bf16.mxu0 %v5853
      %6483 = vmatpush1.bf16.msra.mxu0 %v5852
      %6484 = vmatprep.subr.bf16.mxu0 %v5879
      %6485 = vmatpush1.bf16.msra.mxu0 %v5878
      %6486 = vmatprep.subr.bf16.mxu0 %v5905
      %6487 = vmatpush1.bf16.msra.mxu0 %v5904
      %6488 = vmatprep.subr.bf16.mxu0 %v5931
      %6489 = vmatpush1.bf16.msra.mxu0 %v5930
      %6490 = vmatprep.subr.bf16.mxu0 %v5957
      %6491 = vmatpush1.bf16.msra.mxu0 %v5956
      %6492 = vmatprep.subr.bf16.mxu0 %v5983
      %6493 = vmatpush1.bf16.msra.mxu0 %v5982
      %6494 = vmatprep.subr.bf16.mxu0 %v6009
      %6495 = vmatpush1.bf16.msra.mxu0 %v6008
      %6496 = vmatprep.subr.bf16.mxu0 %v6035
      %6497 = vmatpush1.bf16.msra.mxu0 %v6034
      %6498 = vmatprep.subr.bf16.mxu0 %v6061
      %6499 = vmatpush1.bf16.msra.mxu0 %v6060
      %6500 = vmatprep.subr.bf16.mxu0 %v6087
      %6501 = vmatpush1.bf16.msra.mxu0 %v6086
      %6502 = vmatprep.subr.bf16.mxu0 %v6113
      %6503 = vmatpush1.bf16.msra.mxu0 %v6112
      %6504 = vmatprep.subr.bf16.mxu0 %v6139
      %6505 = vmatpush1.bf16.msra.mxu0 %v6138
      %6506 = vmatprep.subr.bf16.mxu0 %v6231
      %6507 = vmatpush1.bf16.msra.mxu0 %v6228
      %6508 = vmatprep.subr.bf16.mxu0 0
      %6509 = vmatpush1.bf16.msra.mxu0 0
      %6510 = vmatprep.subr.bf16.mxu0 0
      %6511 = vmatpush1.bf16.msra.mxu0 0
      %6512 = vmatprep.mubr.bf16.mxu0 %v6194
      %6513 = vmatmul.mubr.bf16.gmra.mrb[0].mxu0 %v6189
      %v6514 = vpop.f32.mrb[0].mxu0
      %v6515 = vadd.f32 %v6184, %v6514
      %v6516 = vpop.f32.mrb[0].mxu0
      %v6517 = vadd.f32 %v6184, %v6516
      %v6518 = vpop.f32.mrb[0].mxu0
      %v6519 = vpop.f32.mrb[0].mxu0
      %6520 = vdwg.mxu0
      %6521 = vmatprep.subr.bf16.mxu0 %v5829
      %6522 = vmatpush1.bf16.msra.mxu0 %v5828
      %6523 = vmatprep.subr.bf16.mxu0 %v5855
      %6524 = vmatpush1.bf16.msra.mxu0 %v5854
      %6525 = vmatprep.subr.bf16.mxu0 %v5881
      %6526 = vmatpush1.bf16.msra.mxu0 %v5880
      %6527 = vmatprep.subr.bf16.mxu0 %v5907
      %6528 = vmatpush1.bf16.msra.mxu0 %v5906
      %6529 = vmatprep.subr.bf16.mxu0 %v5933
      %6530 = vmatpush1.bf16.msra.mxu0 %v5932
      %6531 = vmatprep.subr.bf16.mxu0 %v5959
      %6532 = vmatpush1.bf16.msra.mxu0 %v5958
      %6533 = vmatprep.subr.bf16.mxu0 %v5985
      %6534 = vmatpush1.bf16.msra.mxu0 %v5984
      %6535 = vmatprep.subr.bf16.mxu0 %v6011
      %6536 = vmatpush1.bf16.msra.mxu0 %v6010
      %6537 = vmatprep.subr.bf16.mxu0 %v6037
      %6538 = vmatpush1.bf16.msra.mxu0 %v6036
      %6539 = vmatprep.subr.bf16.mxu0 %v6063
      %6540 = vmatpush1.bf16.msra.mxu0 %v6062
      %6541 = vmatprep.subr.bf16.mxu0 %v6089
      %6542 = vmatpush1.bf16.msra.mxu0 %v6088
      %6543 = vmatprep.subr.bf16.mxu0 %v6115
      %6544 = vmatpush1.bf16.msra.mxu0 %v6114
      %6545 = vmatprep.subr.bf16.mxu0 %v6141
      %6546 = vmatpush1.bf16.msra.mxu0 %v6140
      %6547 = vmatprep.subr.bf16.mxu0 %v6237
      %6548 = vmatpush1.bf16.msra.mxu0 %v6234
      %6549 = vmatprep.subr.bf16.mxu0 0
      %6550 = vmatpush1.bf16.msra.mxu0 0
      %6551 = vmatprep.subr.bf16.mxu0 0
      %6552 = vmatpush1.bf16.msra.mxu0 0
      %6553 = vmatprep.mubr.bf16.mxu0 %v6194
      %6554 = vmatmul.mubr.bf16.gmra.mrb[0].mxu0 %v6189
      %v6555 = vpop.f32.mrb[0].mxu0
      %v6556 = vadd.f32 %v6184, %v6555
      %v6557 = vpop.f32.mrb[0].mxu0
      %v6558 = vadd.f32 %v6184, %v6557
      %v6559 = vpop.f32.mrb[0].mxu0
      %v6560 = vpop.f32.mrb[0].mxu0
      %6561 = vdwg.mxu0
      %6562 = vmatprep.subr.bf16.mxu0 %v5831
      %6563 = vmatpush1.bf16.msra.mxu0 %v5830
      %6564 = vmatprep.subr.bf16.mxu0 %v5857
      %6565 = vmatpush1.bf16.msra.mxu0 %v5856
      %6566 = vmatprep.subr.bf16.mxu0 %v5883
      %6567 = vmatpush1.bf16.msra.mxu0 %v5882
      %6568 = vmatprep.subr.bf16.mxu0 %v5909
      %6569 = vmatpush1.bf16.msra.mxu0 %v5908
      %6570 = vmatprep.subr.bf16.mxu0 %v5935
      %6571 = vmatpush1.bf16.msra.mxu0 %v5934
      %6572 = vmatprep.subr.bf16.mxu0 %v5961
      %6573 = vmatpush1.bf16.msra.mxu0 %v5960
      %6574 = vmatprep.subr.bf16.mxu0 %v5987
      %6575 = vmatpush1.bf16.msra.mxu0 %v5986
      %6576 = vmatprep.subr.bf16.mxu0 %v6013
      %6577 = vmatpush1.bf16.msra.mxu0 %v6012
      %6578 = vmatprep.subr.bf16.mxu0 %v6039
      %6579 = vmatpush1.bf16.msra.mxu0 %v6038
      %6580 = vmatprep.subr.bf16.mxu0 %v6065
      %6581 = vmatpush1.bf16.msra.mxu0 %v6064
      %6582 = vmatprep.subr.bf16.mxu0 %v6091
      %6583 = vmatpush1.bf16.msra.mxu0 %v6090
      %6584 = vmatprep.subr.bf16.mxu0 %v6117
      %6585 = vmatpush1.bf16.msra.mxu0 %v6116
      %6586 = vmatprep.subr.bf16.mxu0 %v6143
      %6587 = vmatpush1.bf16.msra.mxu0 %v6142
      %6588 = vmatprep.subr.bf16.mxu0 %v6243
      %6589 = vmatpush1.bf16.msra.mxu0 %v6240
      %6590 = vmatprep.subr.bf16.mxu0 0
      %6591 = vmatpush1.bf16.msra.mxu0 0
      %6592 = vmatprep.subr.bf16.mxu0 0
      %6593 = vmatpush1.bf16.msra.mxu0 0
      %6594 = vmatprep.mubr.bf16.mxu0 %v6194
      %6595 = vmatmul.mubr.bf16.gmra.mrb[0].mxu0 %v6189
      %v6596 = vpop.f32.mrb[0].mxu0
      %v6597 = vadd.f32 %v6184, %v6596
      %v6598 = vpop.f32.mrb[0].mxu0
      %v6599 = vadd.f32 %v6184, %v6598
      %v6600 = vpop.f32.mrb[0].mxu0
      %v6601 = vpop.f32.mrb[0].mxu0
      %6602 = vdwg.mxu0
      %6603 = vmatprep.subr.bf16.mxu0 %v5833
      %6604 = vmatpush1.bf16.msra.mxu0 %v5832
      %6605 = vmatprep.subr.bf16.mxu0 %v5859
      %6606 = vmatpush1.bf16.msra.mxu0 %v5858
      %6607 = vmatprep.subr.bf16.mxu0 %v5885
      %6608 = vmatpush1.bf16.msra.mxu0 %v5884
      %6609 = vmatprep.subr.bf16.mxu0 %v5911
      %6610 = vmatpush1.bf16.msra.mxu0 %v5910
      %6611 = vmatprep.subr.bf16.mxu0 %v5937
      %6612 = vmatpush1.bf16.msra.mxu0 %v5936
      %6613 = vmatprep.subr.bf16.mxu0 %v5963
      %6614 = vmatpush1.bf16.msra.mxu0 %v5962
      %6615 = vmatprep.subr.bf16.mxu0 %v5989
      %6616 = vmatpush1.bf16.msra.mxu0 %v5988
      %6617 = vmatprep.subr.bf16.mxu0 %v6015
      %6618 = vmatpush1.bf16.msra.mxu0 %v6014
      %6619 = vmatprep.subr.bf16.mxu0 %v6041
      %6620 = vmatpush1.bf16.msra.mxu0 %v6040
      %6621 = vmatprep.subr.bf16.mxu0 %v6067
      %6622 = vmatpush1.bf16.msra.mxu0 %v6066
      %6623 = vmatprep.subr.bf16.mxu0 %v6093
      %6624 = vmatpush1.bf16.msra.mxu0 %v6092
      %6625 = vmatprep.subr.bf16.mxu0 %v6119
      %6626 = vmatpush1.bf16.msra.mxu0 %v6118
      %6627 = vmatprep.subr.bf16.mxu0 %v6145
      %6628 = vmatpush1.bf16.msra.mxu0 %v6144
      %6629 = vmatprep.subr.bf16.mxu0 %v6249
      %6630 = vmatpush1.bf16.msra.mxu0 %v6246
      %6631 = vmatprep.subr.bf16.mxu0 0
      %6632 = vmatpush1.bf16.msra.mxu0 0
      %6633 = vmatprep.subr.bf16.mxu0 0
      %6634 = vmatpush1.bf16.msra.mxu0 0
      %6635 = vmatprep.mubr.bf16.mxu0 %v6194
      %6636 = vmatmul.mubr.bf16.gmra.mrb[0].mxu0 %v6189
      %v6637 = vpop.f32.mrb[0].mxu0
      %v6638 = vadd.f32 %v6184, %v6637
      %v6639 = vpop.f32.mrb[0].mxu0
      %v6640 = vadd.f32 %v6184, %v6639
      %v6641 = vpop.f32.mrb[0].mxu0
      %v6642 = vpop.f32.mrb[0].mxu0
      %6643 = vdwg.mxu0
      %6644 = vmatprep.subr.bf16.mxu0 %v5835
      %6645 = vmatpush1.bf16.msra.mxu0 %v5834
      %6646 = vmatprep.subr.bf16.mxu0 %v5861
      %6647 = vmatpush1.bf16.msra.mxu0 %v5860
      %6648 = vmatprep.subr.bf16.mxu0 %v5887
      %6649 = vmatpush1.bf16.msra.mxu0 %v5886
      %6650 = vmatprep.subr.bf16.mxu0 %v5913
      %6651 = vmatpush1.bf16.msra.mxu0 %v5912
      %6652 = vmatprep.subr.bf16.mxu0 %v5939
      %6653 = vmatpush1.bf16.msra.mxu0 %v5938
      %6654 = vmatprep.subr.bf16.mxu0 %v5965
      %6655 = vmatpush1.bf16.msra.mxu0 %v5964
      %6656 = vmatprep.subr.bf16.mxu0 %v5991
      %6657 = vmatpush1.bf16.msra.mxu0 %v5990
      %6658 = vmatprep.subr.bf16.mxu0 %v6017
      %6659 = vmatpush1.bf16.msra.mxu0 %v6016
      %6660 = vmatprep.subr.bf16.mxu0 %v6043
      %6661 = vmatpush1.bf16.msra.mxu0 %v6042
      %6662 = vmatprep.subr.bf16.mxu0 %v6069
      %6663 = vmatpush1.bf16.msra.mxu0 %v6068
      %6664 = vmatprep.subr.bf16.mxu0 %v6095
      %6665 = vmatpush1.bf16.msra.mxu0 %v6094
      %6666 = vmatprep.subr.bf16.mxu0 %v6121
      %6667 = vmatpush1.bf16.msra.mxu0 %v6120
      %6668 = vmatprep.subr.bf16.mxu0 %v6147
      %6669 = vmatpush1.bf16.msra.mxu0 %v6146
      %6670 = vmatprep.subr.bf16.mxu0 %v6255
      %6671 = vmatpush1.bf16.msra.mxu0 %v6252
      %6672 = vmatprep.subr.bf16.mxu0 0
      %6673 = vmatpush1.bf16.msra.mxu0 0
      %6674 = vmatprep.subr.bf16.mxu0 0
      %6675 = vmatpush1.bf16.msra.mxu0 0
      %6676 = vmatprep.mubr.bf16.mxu0 %v6194
      %6677 = vmatmul.mubr.bf16.gmra.mrb[0].mxu0 %v6189
      %v6678 = vpop.f32.mrb[0].mxu0
      %v6679 = vadd.f32 %v6184, %v6678
      %v6680 = vpop.f32.mrb[0].mxu0
      %v6681 = vadd.f32 %v6184, %v6680
      %v6682 = vpop.f32.mrb[0].mxu0
      %v6683 = vpop.f32.mrb[0].mxu0
      %6684 = vdwg.mxu0
      %6685 = vmatprep.subr.bf16.mxu0 %v5837
      %6686 = vmatpush1.bf16.msra.mxu0 %v5836
      %6687 = vmatprep.subr.bf16.mxu0 %v5863
      %6688 = vmatpush1.bf16.msra.mxu0 %v5862
      %6689 = vmatprep.subr.bf16.mxu0 %v5889
      %6690 = vmatpush1.bf16.msra.mxu0 %v5888
      %6691 = vmatprep.subr.bf16.mxu0 %v5915
      %6692 = vmatpush1.bf16.msra.mxu0 %v5914
      %6693 = vmatprep.subr.bf16.mxu0 %v5941
      %6694 = vmatpush1.bf16.msra.mxu0 %v5940
      %6695 = vmatprep.subr.bf16.mxu0 %v5967
      %6696 = vmatpush1.bf16.msra.mxu0 %v5966
      %6697 = vmatprep.subr.bf16.mxu0 %v5993
      %6698 = vmatpush1.bf16.msra.mxu0 %v5992
      %6699 = vmatprep.subr.bf16.mxu0 %v6019
      %6700 = vmatpush1.bf16.msra.mxu0 %v6018
      %6701 = vmatprep.subr.bf16.mxu0 %v6045
      %6702 = vmatpush1.bf16.msra.mxu0 %v6044
      %6703 = vmatprep.subr.bf16.mxu0 %v6071
      %6704 = vmatpush1.bf16.msra.mxu0 %v6070
      %6705 = vmatprep.subr.bf16.mxu0 %v6097
      %6706 = vmatpush1.bf16.msra.mxu0 %v6096
      %6707 = vmatprep.subr.bf16.mxu0 %v6123
      %6708 = vmatpush1.bf16.msra.mxu0 %v6122
      %6709 = vmatprep.subr.bf16.mxu0 %v6149
      %6710 = vmatpush1.bf16.msra.mxu0 %v6148
      %6711 = vmatprep.subr.bf16.mxu0 %v6261
      %6712 = vmatpush1.bf16.msra.mxu0 %v6258
      %6713 = vmatprep.subr.bf16.mxu0 0
      %6714 = vmatpush1.bf16.msra.mxu0 0
      %6715 = vmatprep.subr.bf16.mxu0 0
      %6716 = vmatpush1.bf16.msra.mxu0 0
      %6717 = vmatprep.mubr.bf16.mxu0 %v6194
      %6718 = vmatmul.mubr.bf16.gmra.mrb[0].mxu0 %v6189
      %v6719 = vpop.f32.mrb[0].mxu0
      %v6720 = vadd.f32 %v6184, %v6719
      %v6721 = vpop.f32.mrb[0].mxu0
      %v6722 = vadd.f32 %v6184, %v6721
      %v6723 = vpop.f32.mrb[0].mxu0
      %v6724 = vpop.f32.mrb[0].mxu0
      %6725 = vdwg.mxu0
      %6726 = vmatprep.subr.bf16.mxu0 %v5839
      %6727 = vmatpush1.bf16.msra.mxu0 %v5838
      %6728 = vmatprep.subr.bf16.mxu0 %v5865
      %6729 = vmatpush1.bf16.msra.mxu0 %v5864
      %6730 = vmatprep.subr.bf16.mxu0 %v5891
      %6731 = vmatpush1.bf16.msra.mxu0 %v5890
      %6732 = vmatprep.subr.bf16.mxu0 %v5917
      %6733 = vmatpush1.bf16.msra.mxu0 %v5916
      %6734 = vmatprep.subr.bf16.mxu0 %v5943
      %6735 = vmatpush1.bf16.msra.mxu0 %v5942
      %6736 = vmatprep.subr.bf16.mxu0 %v5969
      %6737 = vmatpush1.bf16.msra.mxu0 %v5968
      %6738 = vmatprep.subr.bf16.mxu0 %v5995
      %6739 = vmatpush1.bf16.msra.mxu0 %v5994
      %6740 = vmatprep.subr.bf16.mxu0 %v6021
      %6741 = vmatpush1.bf16.msra.mxu0 %v6020
      %6742 = vmatprep.subr.bf16.mxu0 %v6047
      %6743 = vmatpush1.bf16.msra.mxu0 %v6046
      %6744 = vmatprep.subr.bf16.mxu0 %v6073
      %6745 = vmatpush1.bf16.msra.mxu0 %v6072
      %6746 = vmatprep.subr.bf16.mxu0 %v6099
      %6747 = vmatpush1.bf16.msra.mxu0 %v6098
      %6748 = vmatprep.subr.bf16.mxu0 %v6125
      %6749 = vmatpush1.bf16.msra.mxu0 %v6124
      %6750 = vmatprep.subr.bf16.mxu0 %v6151
      %6751 = vmatpush1.bf16.msra.mxu0 %v6150
      %6752 = vmatprep.subr.bf16.mxu0 %v6267
      %6753 = vmatpush1.bf16.msra.mxu0 %v6264
      %6754 = vmatprep.subr.bf16.mxu0 0
      %6755 = vmatpush1.bf16.msra.mxu0 0
      %6756 = vmatprep.subr.bf16.mxu0 0
      %6757 = vmatpush1.bf16.msra.mxu0 0
      %6758 = vmatprep.mubr.bf16.mxu0 %v6194
      %6759 = vmatmul.mubr.bf16.gmra.mrb[0].mxu0 %v6189
      %v6760 = vpop.f32.mrb[0].mxu0
      %v6761 = vadd.f32 %v6184, %v6760
      %v6762 = vpop.f32.mrb[0].mxu0
      %v6763 = vadd.f32 %v6184, %v6762
      %v6764 = vpop.f32.mrb[0].mxu0
      %v6765 = vpop.f32.mrb[0].mxu0
      %6766 = vdwg.mxu0
      %6767 = vmatprep.subr.bf16.mxu0 %v5841
      %6768 = vmatpush1.bf16.msra.mxu0 %v5840
      %6769 = vmatprep.subr.bf16.mxu0 %v5867
      %6770 = vmatpush1.bf16.msra.mxu0 %v5866
      %6771 = vmatprep.subr.bf16.mxu0 %v5893
      %6772 = vmatpush1.bf16.msra.mxu0 %v5892
      %6773 = vmatprep.subr.bf16.mxu0 %v5919
      %6774 = vmatpush1.bf16.msra.mxu0 %v5918
      %6775 = vmatprep.subr.bf16.mxu0 %v5945
      %6776 = vmatpush1.bf16.msra.mxu0 %v5944
      %6777 = vmatprep.subr.bf16.mxu0 %v5971
      %6778 = vmatpush1.bf16.msra.mxu0 %v5970
      %6779 = vmatprep.subr.bf16.mxu0 %v5997
      %6780 = vmatpush1.bf16.msra.mxu0 %v5996
      %6781 = vmatprep.subr.bf16.mxu0 %v6023
      %6782 = vmatpush1.bf16.msra.mxu0 %v6022
      %6783 = vmatprep.subr.bf16.mxu0 %v6049
      %6784 = vmatpush1.bf16.msra.mxu0 %v6048
      %6785 = vmatprep.subr.bf16.mxu0 %v6075
      %6786 = vmatpush1.bf16.msra.mxu0 %v6074
      %6787 = vmatprep.subr.bf16.mxu0 %v6101
      %6788 = vmatpush1.bf16.msra.mxu0 %v6100
      %6789 = vmatprep.subr.bf16.mxu0 %v6127
      %6790 = vmatpush1.bf16.msra.mxu0 %v6126
      %6791 = vmatprep.subr.bf16.mxu0 %v6153
      %6792 = vmatpush1.bf16.msra.mxu0 %v6152
      %6793 = vmatprep.subr.bf16.mxu0 %v6273
      %6794 = vmatpush1.bf16.msra.mxu0 %v6270
      %6795 = vmatprep.subr.bf16.mxu0 0
      %6796 = vmatpush1.bf16.msra.mxu0 0
      %6797 = vmatprep.subr.bf16.mxu0 0
      %6798 = vmatpush1.bf16.msra.mxu0 0
      %6799 = vmatprep.mubr.bf16.mxu0 %v6194
      %6800 = vmatmul.mubr.bf16.gmra.mrb[0].mxu0 %v6189
      %v6801 = vpop.f32.mrb[0].mxu0
      %v6802 = vadd.f32 %v6184, %v6801
      %v6803 = vpop.f32.mrb[0].mxu0
      %v6804 = vadd.f32 %v6184, %v6803
      %v6805 = vpop.f32.mrb[0].mxu0
      %v6806 = vpop.f32.mrb[0].mxu0
      %6807 = vdwg.mxu0
      %vm6808 = vcmp.ge.f32.partialorder %v6310, 0.0
      %vm6809 = vcmp.ge.f32.partialorder %v6312, 0.0
      %vm6810 = vcmp.ge.f32.partialorder %v6351, 0.0
      %vm6811 = vcmp.ge.f32.partialorder %v6353, 0.0
      %vm6812 = vcmp.ge.f32.partialorder %v6392, 0.0
      %vm6813 = vcmp.ge.f32.partialorder %v6394, 0.0
      %vm6814 = vcmp.ge.f32.partialorder %v6433, 0.0
      %vm6815 = vcmp.ge.f32.partialorder %v6435, 0.0
      %vm6816 = vcmp.ge.f32.partialorder %v6474, 0.0
      %vm6817 = vcmp.ge.f32.partialorder %v6476, 0.0
      %vm6818 = vcmp.ge.f32.partialorder %v6515, 0.0
      %vm6819 = vcmp.ge.f32.partialorder %v6517, 0.0
      %vm6820 = vcmp.ge.f32.partialorder %v6556, 0.0
      %vm6821 = vcmp.ge.f32.partialorder %v6558, 0.0
      %vm6822 = vcmp.ge.f32.partialorder %v6597, 0.0
      %vm6823 = vcmp.ge.f32.partialorder %v6599, 0.0
      %vm6824 = vcmp.ge.f32.partialorder %v6638, 0.0
      %vm6825 = vcmp.ge.f32.partialorder %v6640, 0.0
      %vm6826 = vcmp.ge.f32.partialorder %v6679, 0.0
      %vm6827 = vcmp.ge.f32.partialorder %v6681, 0.0
      %vm6828 = vcmp.ge.f32.partialorder %v6720, 0.0
      %vm6829 = vcmp.ge.f32.partialorder %v6722, 0.0
      %vm6830 = vcmp.ge.f32.partialorder %v6761, 0.0
      %vm6831 = vcmp.ge.f32.partialorder %v6763, 0.0
      %vm6832 = vcmp.ge.f32.partialorder %v6802, 0.0
      %vm6833 = vcmp.ge.f32.partialorder %v6804, 0.0
      %v6834 = vmul.f32 %v6310, 0.01
      %v6835 = vmul.f32 %v6312, 0.01
      %v6836 = vmul.f32 %v6351, 0.01
      %v6837 = vmul.f32 %v6353, 0.01
      %v6838 = vmul.f32 %v6392, 0.01
      %v6839 = vmul.f32 %v6394, 0.01
      %v6840 = vmul.f32 %v6433, 0.01
      %v6841 = vmul.f32 %v6435, 0.01
      %v6842 = vmul.f32 %v6474, 0.01
      %v6843 = vmul.f32 %v6476, 0.01
      %v6844 = vmul.f32 %v6515, 0.01
      %v6845 = vmul.f32 %v6517, 0.01
      %v6846 = vmul.f32 %v6556, 0.01
      %v6847 = vmul.f32 %v6558, 0.01
      %v6848 = vmul.f32 %v6597, 0.01
      %v6849 = vmul.f32 %v6599, 0.01
      %v6850 = vmul.f32 %v6638, 0.01
      %v6851 = vmul.f32 %v6640, 0.01
      %v6852 = vmul.f32 %v6679, 0.01
      %v6853 = vmul.f32 %v6681, 0.01
      %v6854 = vmul.f32 %v6720, 0.01
      %v6855 = vmul.f32 %v6722, 0.01
      %v6856 = vmul.f32 %v6761, 0.01
      %v6857 = vmul.f32 %v6763, 0.01
      %v6858 = vmul.f32 %v6802, 0.01
      %v6859 = vmul.f32 %v6804, 0.01
      %v6860 = vsel %vm6808, %v6310, %v6834
      %v6861 = vsel %vm6809, %v6312, %v6835
      %v6862 = vsel %vm6810, %v6351, %v6836
      %v6863 = vsel %vm6811, %v6353, %v6837
      %v6864 = vsel %vm6812, %v6392, %v6838
      %v6865 = vsel %vm6813, %v6394, %v6839
      %v6866 = vsel %vm6814, %v6433, %v6840
      %v6867 = vsel %vm6815, %v6435, %v6841
      %v6868 = vsel %vm6816, %v6474, %v6842
      %v6869 = vsel %vm6817, %v6476, %v6843
      %v6870 = vsel %vm6818, %v6515, %v6844
      %v6871 = vsel %vm6819, %v6517, %v6845
      %v6872 = vsel %vm6820, %v6556, %v6846
      %v6873 = vsel %vm6821, %v6558, %v6847
      %v6874 = vsel %vm6822, %v6597, %v6848
      %v6875 = vsel %vm6823, %v6599, %v6849
      %v6876 = vsel %vm6824, %v6638, %v6850
      %v6877 = vsel %vm6825, %v6640, %v6851
      %v6878 = vsel %vm6826, %v6679, %v6852
      %v6879 = vsel %vm6827, %v6681, %v6853
      %v6880 = vsel %vm6828, %v6720, %v6854
      %v6881 = vsel %vm6829, %v6722, %v6855
      %v6882 = vsel %vm6830, %v6761, %v6856
      %v6883 = vsel %vm6831, %v6763, %v6857
      %v6884 = vsel %vm6832, %v6802, %v6858
      %v6885 = vsel %vm6833, %v6804, %v6859
      %v6886 = vld [vmem:[%s3] sm:$0xff]
      %v6887 = vld [vmem:[%s3 + $0x8] sm:$0xff]
      %v6888 = vld [vmem:[%s3 + $0x10] sm:$0xff]
      %v6889 = vld [vmem:[%s3 + $0x18] sm:$0x3]
      %v6894 = vlaneseq
      %v6895 = vshrl.u32 %v6894, 7
      %v6896 = vsub.s32 0, %v6895
      %v6897 = vrot.slane %v6886, %v6896
      %v6898 = vlaneseq
      %v6899 = vshrl.u32 %v6898, 7
      %v6900 = vsub.s32 1, %v6899
      %v6901 = vrot.slane %v6886, %v6900
      %v6902 = vlaneseq
      %v6903 = vshrl.u32 %v6902, 7
      %v6904 = vsub.s32 2, %v6903
      %v6905 = vrot.slane %v6886, %v6904
      %v6906 = vlaneseq
      %v6907 = vshrl.u32 %v6906, 7
      %v6908 = vsub.s32 3, %v6907
      %v6909 = vrot.slane %v6886, %v6908
      %v6910 = vlaneseq
      %v6911 = vshrl.u32 %v6910, 7
      %v6912 = vsub.s32 4, %v6911
      %v6913 = vrot.slane %v6886, %v6912
      %v6914 = vlaneseq
      %v6915 = vshrl.u32 %v6914, 7
      %v6916 = vsub.s32 5, %v6915
      %v6917 = vrot.slane %v6886, %v6916
      %v6918 = vlaneseq
      %v6919 = vshrl.u32 %v6918, 7
      %v6920 = vsub.s32 6, %v6919
      %v6921 = vrot.slane %v6886, %v6920
      %v6922 = vlaneseq
      %v6923 = vshrl.u32 %v6922, 7
      %v6924 = vsub.s32 7, %v6923
      %v6925 = vrot.slane %v6886, %v6924
      %v6926 = vlaneseq
      %v6927 = vshrl.u32 %v6926, 7
      %v6928 = vsub.s32 0, %v6927
      %v6929 = vrot.slane %v6887, %v6928
      %v6930 = vlaneseq
      %v6931 = vshrl.u32 %v6930, 7
      %v6932 = vsub.s32 1, %v6931
      %v6933 = vrot.slane %v6887, %v6932
      %v6934 = vlaneseq
      %v6935 = vshrl.u32 %v6934, 7
      %v6936 = vsub.s32 2, %v6935
      %v6937 = vrot.slane %v6887, %v6936
      %v6938 = vlaneseq
      %v6939 = vshrl.u32 %v6938, 7
      %v6940 = vsub.s32 3, %v6939
      %v6941 = vrot.slane %v6887, %v6940
      %v6942 = vlaneseq
      %v6943 = vshrl.u32 %v6942, 7
      %v6944 = vsub.s32 4, %v6943
      %v6945 = vrot.slane %v6887, %v6944
      %v6946 = vlaneseq
      %v6947 = vshrl.u32 %v6946, 7
      %v6948 = vsub.s32 5, %v6947
      %v6949 = vrot.slane %v6887, %v6948
      %v6950 = vlaneseq
      %v6951 = vshrl.u32 %v6950, 7
      %v6952 = vsub.s32 6, %v6951
      %v6953 = vrot.slane %v6887, %v6952
      %v6954 = vlaneseq
      %v6955 = vshrl.u32 %v6954, 7
      %v6956 = vsub.s32 7, %v6955
      %v6957 = vrot.slane %v6887, %v6956
      %v6958 = vlaneseq
      %v6959 = vshrl.u32 %v6958, 7
      %v6960 = vsub.s32 0, %v6959
      %v6961 = vrot.slane %v6888, %v6960
      %v6962 = vlaneseq
      %v6963 = vshrl.u32 %v6962, 7
      %v6964 = vsub.s32 1, %v6963
      %v6965 = vrot.slane %v6888, %v6964
      %v6966 = vlaneseq
      %v6967 = vshrl.u32 %v6966, 7
      %v6968 = vsub.s32 2, %v6967
      %v6969 = vrot.slane %v6888, %v6968
      %v6970 = vlaneseq
      %v6971 = vshrl.u32 %v6970, 7
      %v6972 = vsub.s32 3, %v6971
      %v6973 = vrot.slane %v6888, %v6972
      %v6974 = vlaneseq
      %v6975 = vshrl.u32 %v6974, 7
      %v6976 = vsub.s32 4, %v6975
      %v6977 = vrot.slane %v6888, %v6976
      %v6978 = vlaneseq
      %v6979 = vshrl.u32 %v6978, 7
      %v6980 = vsub.s32 5, %v6979
      %v6981 = vrot.slane %v6888, %v6980
      %v6982 = vlaneseq
      %v6983 = vshrl.u32 %v6982, 7
      %v6984 = vsub.s32 6, %v6983
      %v6985 = vrot.slane %v6888, %v6984
      %v6986 = vlaneseq
      %v6987 = vshrl.u32 %v6986, 7
      %v6988 = vsub.s32 7, %v6987
      %v6989 = vrot.slane %v6888, %v6988
      %v6990 = vlaneseq
      %v6991 = vshrl.u32 %v6990, 7
      %v6992 = vsub.s32 0, %v6991
      %v6993 = vrot.slane %v6889, %v6992
      %v6994 = vlaneseq
      %v6995 = vshrl.u32 %v6994, 7
      %v6996 = vsub.s32 1, %v6995
      %v6997 = vrot.slane %v6889, %v6996
      %v7024 = vmul.f32 %v6860, %v6897
      %v7025 = vmul.f32 %v6861, %v6901
      %v7026 = vmul.f32 %v6862, %v6905
      %v7027 = vmul.f32 %v6863, %v6909
      %v7028 = vmul.f32 %v6864, %v6913
      %v7029 = vmul.f32 %v6865, %v6917
      %v7030 = vmul.f32 %v6866, %v6921
      %v7031 = vmul.f32 %v6867, %v6925
      %v7032 = vmul.f32 %v6868, %v6929
      %v7033 = vmul.f32 %v6869, %v6933
      %v7034 = vmul.f32 %v6870, %v6937
      %v7035 = vmul.f32 %v6871, %v6941
      %v7036 = vmul.f32 %v6872, %v6945
      %v7037 = vmul.f32 %v6873, %v6949
      %v7038 = vmul.f32 %v6874, %v6953
      %v7039 = vmul.f32 %v6875, %v6957
      %v7040 = vmul.f32 %v6876, %v6961
      %v7041 = vmul.f32 %v6877, %v6965
      %v7042 = vmul.f32 %v6878, %v6969
      %v7043 = vmul.f32 %v6879, %v6973
      %v7044 = vmul.f32 %v6880, %v6977
      %v7045 = vmul.f32 %v6881, %v6981
      %v7046 = vmul.f32 %v6882, %v6985
      %v7047 = vmul.f32 %v6883, %v6989
      %v7048 = vmul.f32 %v6884, %v6993
      %v7049 = vmul.f32 %v6885, %v6997
      %7050 = vst [vmem:[%s197] sm:$0xff] %v7024
      %7051 = vst [vmem:[%s197 + $0x8] sm:$0xff] %v7025
      %7052 = vst [vmem:[%s197 + $0x10] sm:$0xff] %v7026
      %7053 = vst [vmem:[%s197 + $0x18] sm:$0xff] %v7027
      %7054 = vst [vmem:[%s197 + $0x20] sm:$0xff] %v7028
      %7055 = vst [vmem:[%s197 + $0x28] sm:$0xff] %v7029
      %7056 = vst [vmem:[%s197 + $0x30] sm:$0xff] %v7030
      %7057 = vst [vmem:[%s197 + $0x38] sm:$0xff] %v7031
      %7058 = vst [vmem:[%s197 + $0x40] sm:$0xff] %v7032
      %7059 = vst [vmem:[%s197 + $0x48] sm:$0xff] %v7033
      %7060 = vst [vmem:[%s197 + $0x50] sm:$0xff] %v7034
      %7061 = vst [vmem:[%s197 + $0x58] sm:$0xff] %v7035
      %7062 = vst [vmem:[%s197 + $0x60] sm:$0xff] %v7036
      %7063 = vst [vmem:[%s197 + $0x68] sm:$0xff] %v7037
      %7064 = vst [vmem:[%s197 + $0x70] sm:$0xff] %v7038
      %7065 = vst [vmem:[%s197 + $0x78] sm:$0xff] %v7039
      %7066 = vst [vmem:[%s197 + $0x80] sm:$0xff] %v7040
      %7067 = vst [vmem:[%s197 + $0x88] sm:$0xff] %v7041
      %7068 = vst [vmem:[%s197 + $0x90] sm:$0xff] %v7042
      %7069 = vst [vmem:[%s197 + $0x98] sm:$0xff] %v7043
      %7070 = vst [vmem:[%s197 + $0xa0] sm:$0xff] %v7044
      %7071 = vst [vmem:[%s197 + $0xa8] sm:$0xff] %v7045
      %7072 = vst [vmem:[%s197 + $0xb0] sm:$0xff] %v7046
      %7073 = vst [vmem:[%s197 + $0xb8] sm:$0xff] %v7047
      %7074 = vst [vmem:[%s197 + $0xc0] sm:$0xff] %v7048
      %7075 = vst [vmem:[%s197 + $0xc8] sm:$0xff] %v7049
      %p7076 = scmp.lt.s32.totalorder %s15, 1
      %s7077 = scalar_select %p7076, %s15, 1
      %s7078 = smul.addr %s7077, 26
      %s7079 = smul.addr %s7078, 8
      %s7080 = scalar_lea.vmem %s4, %s7079
      // Predicated region
      $region37: #{upblock_forward.4} parent=35 // pred_check
        %p7081 = pneg %p122
      $region38: #{upblock_forward.4} parent=35 // pred_check_branch
        %7083 = sbr.rel (%p7081) target = $region40
      $region39: #{upblock_forward.4} parent=35 // pred_region
        _
      $region40: #{upblock_forward.4} parent=35 // pred_fallthru
        _
    $region36: #{upblock_forward.4} parent=5 // pred_fallthru
      _
    %p7084 = scmp.le.s32.totalorder 2, %s10
    // Predicated region
    $region41: #{upblock_forward.4} parent=5 // pred_check
      %p7085 = pneg %p7084
    $region42: #{upblock_forward.4} parent=5 // pred_check_branch
      %7087 = sbr.rel (%p7085) target = $region44
    $region43: #{upblock_forward.4} parent=5 // pred_region
      %s7088 = ssub.s32 %s10, 2
      // Predicated region
      $region45: #{upblock_forward.4} parent=43 // pred_check
        %p7089 = pneg %p128
      $region46: #{upblock_forward.4} parent=43 // pred_check_branch
        %7091 = sbr.rel (%p7089) target = $region48
      $region47: #{upblock_forward.4} parent=43 // pred_region
        %p7092 = scmp.lt.s32.totalorder %s16, 1
        %s7093 = scalar_select %p7092, %s16, 1
        %s7094 = smul.addr %s7093, 26
        %s7095 = smul.addr %s7094, 8
        %s7096 = scalar_lea.vmem %s4, %s7095
      $region48: #{upblock_forward.4} parent=43 // pred_fallthru
        _
    $region44: #{upblock_forward.4} parent=5 // pred_fallthru
      _
  $region6: #{upblock_forward.4} parent=0 // loop_footer
    %s14 = sadd.s32 1, %s10
  $region7: #{upblock_forward.4} parent=0 // loop_footer_branch
    %9 = sbr.rel target = $region3
  $region8: #{upblock_forward.4} parent=0 // loop_exit
    _

</llo_original>
